<compile_context>
chip_gen: v7x
topology: tpu7x:2x2x1
jax: 0.10.0
libtpu: 0.0.40
codegen_flags: <defaults>
</compile_context>

<pallas_src>
import functools
import math

import jax
import jax.numpy as jnp
from jax.experimental import pallas as pl
from jax.experimental.pallas import tpu as pltpu


# ----------------------------------------------------------------------------
# Fused DownBlock kernel (ResidualBlock + AttentionBlock), one batch / step
# ----------------------------------------------------------------------------
def _downblock_kernel(x_ref, mask_ref, g1w_ref, g1b_ref, gmat1_ref, w1_ref, b1_ref,
                      g2w_ref, g2b_ref, gmat2_ref, w2_ref, b2_ref, wsc_ref, bsc_ref,
                      wat_ref, bat_ref, bout_ref, o_ref,
                      h3_scr, g3_scr, att_scr, *,
                      Sp, M, N, Wp, Dp, H, W, D, eps, has_attn, has_sc_conv):
    """x_ref   : (1, Sp, Ci)  channels-last padded-volume voxels (zeros at padding)
       mask_ref: (Sp, 1)      1.0 at real-voxel rows, 0.0 at padding rows
       gmat*   : per-group aggregation matrices, entries 1/(S*Cg) within a group
       w1/w2   : (9, 3*Cin, Cout) D-folded conv taps (bf16), k = a*3+b
       wat     : (Co, 3*Co) packed [Q*scale | K | V@W_out^T] (bf16), n_heads=1
       o_ref   : (1, S, Co)  compact channels-last output (real voxels only)
       h3_scr/g3_scr: (N, 3*C) bf16 margin-padded D-folded activations."""
    Ci = gmat1_ref.shape[0]
    Co = o_ref.shape[-1]
    WpDp = Wp * Dp

    mask = mask_ref[...]                                  # (Sp, 1) f32
    # TODO(synk): for production volumes compute this mask in-kernel from an
    # iota over the flat row index instead of shipping an (Sp,1) VMEM block.

    # ---- refresh only the margin/halo rows of the folded-activation scratches.
    # Every row of h3/g3 is rewritten each grid step (either here or by the
    # shifted stores below), so nothing stale survives across batch elements and
    # no cross-core init ordering is needed (safe under megacore sharding).
    zf = jnp.zeros((M + 8, 3 * Ci), jnp.bfloat16)
    h3_scr[0:M + 8, :] = zf
    h3_scr[M + Sp - 8:N, :] = zf
    zg = jnp.zeros((M + 8, 3 * Co), jnp.bfloat16)
    g3_scr[0:M + 8, :] = zg
    g3_scr[M + Sp - 8:N, :] = zg

    # ---- GroupNorm1 + SiLU (padding rows are exactly zero -> sums are exact) --
    x = x_ref[0]                                          # (Sp, Ci) f32
    s = jnp.sum(x, axis=0, keepdims=True)                 # (1, Ci)
    s2 = jnp.sum(x * x, axis=0, keepdims=True)
    mean = jnp.dot(s, gmat1_ref[...], preferred_element_type=jnp.float32)
    ex2 = jnp.dot(s2, gmat1_ref[...], preferred_element_type=jnp.float32)
    # TODO(synk): E[x^2]-mean^2 can cancel catastrophically at production scale;
    # switch to a centered second pass if activations develop large group means.
    inv = jax.lax.rsqrt(ex2 - mean * mean + eps)
    h = (x - mean) * inv * g1w_ref[...] + g1b_ref[...]
    h = h * jax.nn.sigmoid(h)                             # SiLU
    hb = (h * mask).astype(jnp.bfloat16)                  # zero non-real rows

    # ---- D-tap folding: h3[M+q, c*Ci:(c+1)*Ci] = h[q + c - 1] ----
    h3_scr[M + 1:M + 1 + Sp, 0:Ci] = hb
    h3_scr[M:M + Sp, Ci:2 * Ci] = hb
    h3_scr[M - 1:M - 1 + Sp, 2 * Ci:3 * Ci] = hb

    # ---- Conv1: 9 shifted (Sp, 3Ci) x (3Ci, Co) bf16 MXU matmuls (aligned) ----
    parts = []
    for a in range(3):
        pa = None
        for b in range(3):
            off = (a - 1) * WpDp + (b - 1) * Dp           # static multiple of 8
            d = jnp.dot(h3_scr[M + off:M + off + Sp, :], w1_ref[a * 3 + b],
                        preferred_element_type=jnp.float32)
            pa = d if pa is None else pa + d
        parts.append(pa)                                  # 3 independent acc chains
    acc1 = parts[0] + parts[1] + parts[2] + b1_ref[...]   # (Sp, Co)

    # ---- GroupNorm2 (masked stats: border rows are extrapolated junk) + SiLU --
    am = acc1 * mask
    s = jnp.sum(am, axis=0, keepdims=True)
    s2 = jnp.sum(acc1 * am, axis=0, keepdims=True)
    mean = jnp.dot(s, gmat2_ref[...], preferred_element_type=jnp.float32)
    ex2 = jnp.dot(s2, gmat2_ref[...], preferred_element_type=jnp.float32)
    inv = jax.lax.rsqrt(ex2 - mean * mean + eps)
    h2 = (acc1 - mean) * inv * g2w_ref[...] + g2b_ref[...]
    h2 = h2 * jax.nn.sigmoid(h2)
    # TODO(synk): nn.Dropout(p=0.1) is identity in eval mode; training-mode
    # random masking is not implemented here.
    h2b = (h2 * mask).astype(jnp.bfloat16)

    g3_scr[M + 1:M + 1 + Sp, 0:Co] = h2b
    g3_scr[M:M + Sp, Co:2 * Co] = h2b
    g3_scr[M - 1:M - 1 + Sp, 2 * Co:3 * Co] = h2b

    # ---- Conv2 ----
    parts = []
    for a in range(3):
        pa = None
        for b in range(3):
            off = (a - 1) * WpDp + (b - 1) * Dp
            d = jnp.dot(g3_scr[M + off:M + off + Sp, :], w2_ref[a * 3 + b],
                        preferred_element_type=jnp.float32)
            pa = d if pa is None else pa + d
        parts.append(pa)
    acc2 = parts[0] + parts[1] + parts[2] + b2_ref[...]

    # ---- shortcut (1x1x1 conv or identity) + residual ----
    if has_sc_conv:
        sc = jnp.dot(x.astype(jnp.bfloat16), wsc_ref[...],
                     preferred_element_type=jnp.float32) + bsc_ref[...]
    else:
        sc = x                                            # Ci == Co: exact identity
    r = acc2 + sc                                         # (Sp, Co)

    # ---- gather the real-voxel rows into a compact (S, Co) buffer ----
    # TODO(synk): static H*W unroll; restructure (flash-style KV tiling plus a
    # spatial grid axis) before running production-size grids / v7x VMEM.
    for hh in range(H):
        for ww in range(W):
            src = (hh + 1) * WpDp + (ww + 1) * Dp         # multiple of 8
            dst = (hh * W + ww) * D
            att_scr[dst:dst + D, :] = r[src:src + D, :]

    att = att_scr[...]                                    # (S, Co) f32 = resblock out

    if not has_attn:
        o_ref[0] = att.astype(o_ref.dtype)
        return

    # ---- AttentionBlock (n_heads=1): W_out folded into V, scale folded into Q --
    attb = att.astype(jnp.bfloat16)
    qkv = jnp.dot(attb, wat_ref[...],
                  preferred_element_type=jnp.float32) + bat_ref[...]   # (S, 3Co)
    q = qkv[:, 0:Co].astype(jnp.bfloat16)
    k = qkv[:, Co:2 * Co].astype(jnp.bfloat16)
    vo = qkv[:, 2 * Co:3 * Co]                             # already projected by W_out
    logits = jax.lax.dot_general(q, k, (((1,), (1,)), ((), ())),
                                 preferred_element_type=jnp.float32)   # (S, S)
    m = jnp.max(logits, axis=-1, keepdims=True)
    p = jnp.exp(logits - m)
    denom = jnp.sum(p, axis=-1, keepdims=True)
    attn = (p * pl.reciprocal(denom, approx=True)).astype(jnp.bfloat16)
    head = jnp.dot(attn, vo.astype(jnp.bfloat16),
                   preferred_element_type=jnp.float32)                 # (S, Co)
    o_ref[0] = (head + bout_ref[...] + att).astype(o_ref.dtype)        # + residual


# ----------------------------------------------------------------------------
# Wrapper: layout glue + weight packing + pallas_call
# ----------------------------------------------------------------------------
def downblock_pallas(x, p, *, n_groups, has_attn, eps=1e-5):
    """x: (B, Ci, H, W, D) f32 -> (B, Co, H, W, D) f32."""
    B, Ci, H, W, D = x.shape
    Co = p['conv1_w'].shape[0]
    S = H * W * D
    Hp, Wp = H + 2, W + 2
    Dp = ((D + 2 + 7) // 8) * 8          # depth rows padded so Dp, Wp*Dp are 8-aligned
    WpDp = Wp * Dp
    Sp = Hp * WpDp
    M = ((WpDp + Dp + 7) // 8) * 8       # sublane-aligned scratch margin
    N = Sp + 2 * M

    # --- one-time input layout glue (input is unavoidably channels-first) ---
    x_cl = jnp.transpose(x, (0, 2, 3, 4, 1))                          # (B,H,W,D,Ci)
    x_pad = jnp.pad(x_cl, ((0, 0), (1, 1), (1, 1), (0, Dp - D), (0, 0)))
    x_flat = x_pad.reshape(B, Sp, Ci)                                 # (B,Sp,Ci)

    mask3 = jnp.zeros((Hp, Wp, Dp), jnp.float32)
    mask = mask3.at[1:H + 1, 1:W + 1, 0:D].set(1.0).reshape(Sp, 1)    # (Sp,1)

    def group_mat(C):
        cg = C // n_groups
        g = jnp.arange(C) // cg
        return (g[:, None] == g[None, :]).astype(jnp.float32) / (S * cg)

    def fold_conv(w):                    # (Cout,Cin,3,3,3) -> (9, 3*Cin, Cout) bf16
        wt = jnp.transpose(w, (2, 3, 4, 1, 0))                        # [a,b,c,ci,co]
        return wt.reshape(9, 3 * w.shape[1], w.shape[0]).astype(jnp.bfloat16)

    gmat1, gmat2 = group_mat(Ci), group_mat(Co)
    w1, b1 = fold_conv(p['conv1_w']), p['conv1_b'].reshape(1, Co)
    w2, b2 = fold_conv(p['conv2_w']), p['conv2_b'].reshape(1, Co)
    g1w, g1b = p['gn1_w'].reshape(1, Ci), p['gn1_b'].reshape(1, Ci)
    g2w, g2b = p['gn2_w'].reshape(1, Co), p['gn2_b'].reshape(1, Co)

    has_sc_conv = Ci != Co
    if has_sc_conv:
        wsc = p['sc_w'].T.astype(jnp.bfloat16)                        # (Ci, Co)
        bsc = p['sc_b'].reshape(1, Co)
    else:
        wsc = jnp.zeros((Ci, Co), jnp.bfloat16)                       # unread
        bsc = jnp.zeros((1, Co), jnp.float32)

    if has_attn:
        # DownBlock builds AttentionBlock(out_channels, n_groups) -> n_heads=1, d_k=Co
        dk = Co
        scale = dk ** (-0.5)
        Wq, Wk, Wv = (p['attn_proj_w'][:dk], p['attn_proj_w'][dk:2 * dk],
                      p['attn_proj_w'][2 * dk:])
        bq, bk, bv = (p['attn_proj_b'][:dk], p['attn_proj_b'][dk:2 * dk],
                      p['attn_proj_b'][2 * dk:])
        wo_t = p['attn_out_w'].T                                      # (dk, Co)
        wat = jnp.concatenate([Wq.T * scale, Wk.T, Wv.T @ wo_t],
                              axis=1).astype(jnp.bfloat16)            # (Co, 3Co)
        bat = jnp.concatenate([bq * scale, bk, bv @ wo_t]
                              ).reshape(1, 3 * Co).astype(jnp.float32)
        bout = p['attn_out_b'].reshape(1, Co).astype(jnp.float32)
    else:
        wat = jnp.zeros((Co, 3 * Co), jnp.bfloat16)
        bat = jnp.zeros((1, 3 * Co), jnp.float32)
        bout = jnp.zeros((1, Co), jnp.float32)

    kernel = functools.partial(
        _downblock_kernel, Sp=Sp, M=M, N=N, Wp=Wp, Dp=Dp, H=H, W=W, D=D,
        eps=eps, has_attn=has_attn, has_sc_conv=has_sc_conv)

    full = lambda shape: pl.BlockSpec(shape, lambda b, _s=shape: (0,) * len(_s))

    out_seq = pl.pallas_call(
        kernel,
        out_shape=jax.ShapeDtypeStruct((B, S, Co), jnp.float32),
        grid_spec=pltpu.PrefetchScalarGridSpec(
            num_scalar_prefetch=0,
            grid=(B,),
            in_specs=[
                pl.BlockSpec((1, Sp, Ci), lambda b: (b, 0, 0)),
                full((Sp, 1)),
                full((1, Ci)), full((1, Ci)), full((Ci, Ci)),
                full((9, 3 * Ci, Co)), full((1, Co)),
                full((1, Co)), full((1, Co)), full((Co, Co)),
                full((9, 3 * Co, Co)), full((1, Co)),
                full((Ci, Co)), full((1, Co)),
                full((Co, 3 * Co)), full((1, 3 * Co)), full((1, Co)),
            ],
            out_specs=pl.BlockSpec((1, S, Co), lambda b: (b, 0, 0)),
            scratch_shapes=[
                pltpu.VMEM((N, 3 * Ci), jnp.bfloat16),   # D-folded GN1+SiLU acts
                pltpu.VMEM((N, 3 * Co), jnp.bfloat16),   # D-folded GN2+SiLU acts
                pltpu.VMEM((S, Co), jnp.float32),        # compact residual output
            ]),
        compiler_params=pltpu.CompilerParams(
            dimension_semantics=("parallel",),
            vmem_limit_bytes=32 * 1024 * 1024),
    )(x_flat, mask, g1w, g1b, gmat1, w1, b1, g2w, g2b, gmat2, w2, b2,
      wsc, bsc, wat, bat, bout)

    # single unavoidable layout pass back to the PyTorch (B, C, H, W, D) format
    return jnp.transpose(out_seq, (0, 2, 1)).reshape(B, Co, H, W, D)


# ----------------------------------------------------------------------------
# Pure-JAX references (mirror the PyTorch forward, f32)
# ----------------------------------------------------------------------------
def residual_block_reference(x, p, *, n_groups, eps=1e-5):
    B, Ci, H, W, D = x.shape
    Co = p['conv1_w'].shape[0]

    def gn(h, w_, b_):
        C = h.shape[1]
        hg = h.reshape(B, n_groups, C // n_groups, H, W, D)
        mu = hg.mean(axis=(2, 3, 4, 5), keepdims=True)
        var = ((hg - mu) ** 2).mean(axis=(2, 3, 4, 5), keepdims=True)
        hn = ((hg - mu) / jnp.sqrt(var + eps)).reshape(B, C, H, W, D)
        return hn * w_.reshape(1, C, 1, 1, 1) + b_.reshape(1, C, 1, 1, 1)

    silu = lambda z: z * jax.nn.sigmoid(z)

    def conv3(h, w_, b_):
        hp = jnp.pad(h, ((0, 0), (0, 0), (1, 1), (1, 1), (1, 1)))
        out = jnp.zeros((B, w_.shape[0], H, W, D), jnp.float32)
        for a in range(3):
            for bb in range(3):
                for c in range(3):
                    out = out + jnp.einsum('bcxyz,oc->boxyz',
                                           hp[:, :, a:a + H, bb:bb + W, c:c + D],
                                           w_[:, :, a, bb, c])
        return out + b_.reshape(1, -1, 1, 1, 1)

    h = conv3(silu(gn(x, p['gn1_w'], p['gn1_b'])), p['conv1_w'], p['conv1_b'])
    h = silu(gn(h, p['gn2_w'], p['gn2_b']))
    h = conv3(h, p['conv2_w'], p['conv2_b'])
    if Ci != Co:
        sc = jnp.einsum('bcxyz,oc->boxyz', x, p['sc_w']) + p['sc_b'].reshape(1, Co, 1, 1, 1)
    else:
        sc = x
    return h + sc


def downblock_reference(x, p, *, n_groups, has_attn, eps=1e-5):
    r = residual_block_reference(x, p, n_groups=n_groups, eps=eps)
    if not has_attn:
        return r
    B, Co, H, W, D = r.shape
    S = H * W * D
    dk = Co                                                # n_heads=1, d_k=Co
    xs = jnp.transpose(r.reshape(B, Co, S), (0, 2, 1))
    qkv = xs @ p['attn_proj_w'].T + p['attn_proj_b']
    q, k, v = qkv[..., :dk], qkv[..., dk:2 * dk], qkv[..., 2 * dk:]
    attn = jax.nn.softmax(jnp.einsum('bid,bjd->bij', q, k) * dk ** (-0.5), axis=2)
    res = jnp.einsum('bij,bjd->bid', attn, v) @ p['attn_out_w'].T + p['attn_out_b'] + xs
    return jnp.transpose(res, (0, 2, 1)).reshape(B, Co, H, W, D)


# ----------------------------------------------------------------------------
if __name__ == "__main__":
    B, Ci, Co = 2, 16, 32
    H = W = D = 4                       # S = 64 voxels
    n_groups = 16

    key = jax.random.PRNGKey(0)
    ks = jax.random.split(key, 16)
    u = lambda k, shape, bound: jax.random.uniform(k, shape, jnp.float32, -bound, bound)

    x = jax.random.normal(ks[0], (B, Ci, H, W, D), dtype=jnp.float32)
    f1 = 1.0 / math.sqrt(Ci * 27)
    f2 = 1.0 / math.sqrt(Co * 27)
    fs = 1.0 / math.sqrt(Ci)
    fa = 1.0 / math.sqrt(Co)
    p = dict(
        gn1_w=1.0 + 0.1 * jax.random.normal(ks[1], (Ci,), jnp.float32),
        gn1_b=0.1 * jax.random.normal(ks[2], (Ci,), jnp.float32),
        conv1_w=u(ks[3], (Co, Ci, 3, 3, 3), f1),
        conv1_b=u(ks[4], (Co,), f1),
        gn2_w=1.0 + 0.1 * jax.random.normal(ks[5], (Co,), jnp.float32),
        gn2_b=0.1 * jax.random.normal(ks[6], (Co,), jnp.float32),
        conv2_w=u(ks[7], (Co, Co, 3, 3, 3), f2),
        conv2_b=u(ks[8], (Co,), f2),
        sc_w=u(ks[9], (Co, Ci), fs),          # 1x1x1 shortcut conv
        sc_b=u(ks[10], (Co,), fs),
        attn_proj_w=u(ks[11], (3 * Co, Co), fa),
        attn_proj_b=u(ks[12], (3 * Co,), fa),
        attn_out_w=u(ks[13], (Co, Co), fa),
        attn_out_b=u(ks[14], (Co,), fa),
    )

    # full DownBlock (ResidualBlock + AttentionBlock), conv/attention in bf16
    out = downblock_pallas(x, p, n_groups=n_groups, has_attn=True)
    out = jax.block_until_ready(out)
    assert out.shape == (B, Co, H, W, D)
    ref = downblock_reference(x, p, n_groups=n_groups, has_attn=True)
    assert jnp.allclose(out, ref, atol=5e-2, rtol=5e-2), "downblock mismatch"

    # residual-only path (has_attn=False) against the f32 reference
    r_ker = downblock_pallas(x, p, n_groups=n_groups, has_attn=False)
    r_ker = jax.block_until_ready(r_ker)
    r_ref = residual_block_reference(x, p, n_groups=n_groups)
    assert jnp.allclose(r_ker, r_ref, atol=5e-2, rtol=5e-2), "residual block mismatch"

    print("KERNEL_OK")
</pallas_src>

<mosaic_0001>
module attributes {stable_mosaic.version = 11 : i64} {
  func.func @_downblock_kernel(%arg0: i32, %arg1: memref<1x288x16xf32, #tpu.memory_space<vmem>>, %arg2: memref<288x1xf32, #tpu.memory_space<vmem>>, %arg3: memref<1x16xf32, #tpu.memory_space<vmem>>, %arg4: memref<1x16xf32, #tpu.memory_space<vmem>>, %arg5: memref<16x16xf32, #tpu.memory_space<vmem>>, %arg6: memref<9x48x32xbf16, #tpu.memory_space<vmem>>, %arg7: memref<1x32xf32, #tpu.memory_space<vmem>>, %arg8: memref<1x32xf32, #tpu.memory_space<vmem>>, %arg9: memref<1x32xf32, #tpu.memory_space<vmem>>, %arg10: memref<32x32xf32, #tpu.memory_space<vmem>>, %arg11: memref<9x96x32xbf16, #tpu.memory_space<vmem>>, %arg12: memref<1x32xf32, #tpu.memory_space<vmem>>, %arg13: memref<16x32xbf16, #tpu.memory_space<vmem>>, %arg14: memref<1x32xf32, #tpu.memory_space<vmem>>, %arg15: memref<32x96xbf16, #tpu.memory_space<vmem>>, %arg16: memref<1x96xf32, #tpu.memory_space<vmem>>, %arg17: memref<1x32xf32, #tpu.memory_space<vmem>>, %arg18: memref<1x64x32xf32, #tpu.memory_space<vmem>>, %arg19: memref<400x48xbf16, #tpu.memory_space<vmem>>, %arg20: memref<400x96xbf16, #tpu.memory_space<vmem>>, %arg21: memref<64x32xf32, #tpu.memory_space<vmem>>) attributes {dimension_semantics = [#tpu.dimension_semantics<parallel>], iteration_bounds = array<i64: 2>, scalar_prefetch = 0 : i64, scratch_operands = 3 : i64, tpu.core_type = #tpu.core_type<tc>, window_params = [{transform_indices = @transform_0, window_bounds = array<i64: 1, 288, 16>}, {pipeline_mode = #tpu.pipeline_mode<synchronous>, transform_indices = @transform_1, window_bounds = array<i64: 288, 1>}, {pipeline_mode = #tpu.pipeline_mode<synchronous>, transform_indices = @transform_2, window_bounds = array<i64: 1, 16>}, {pipeline_mode = #tpu.pipeline_mode<synchronous>, transform_indices = @transform_3, window_bounds = array<i64: 1, 16>}, {pipeline_mode = #tpu.pipeline_mode<synchronous>, transform_indices = @transform_4, window_bounds = array<i64: 16, 16>}, {pipeline_mode = #tpu.pipeline_mode<synchronous>, transform_indices = @transform_5, window_bounds = array<i64: 9, 48, 32>}, {pipeline_mode = #tpu.pipeline_mode<synchronous>, transform_indices = @transform_6, window_bounds = array<i64: 1, 32>}, {pipeline_mode = #tpu.pipeline_mode<synchronous>, transform_indices = @transform_7, window_bounds = array<i64: 1, 32>}, {pipeline_mode = #tpu.pipeline_mode<synchronous>, transform_indices = @transform_8, window_bounds = array<i64: 1, 32>}, {pipeline_mode = #tpu.pipeline_mode<synchronous>, transform_indices = @transform_9, window_bounds = array<i64: 32, 32>}, {pipeline_mode = #tpu.pipeline_mode<synchronous>, transform_indices = @transform_10, window_bounds = array<i64: 9, 96, 32>}, {pipeline_mode = #tpu.pipeline_mode<synchronous>, transform_indices = @transform_11, window_bounds = array<i64: 1, 32>}, {pipeline_mode = #tpu.pipeline_mode<synchronous>, transform_indices = @transform_12, window_bounds = array<i64: 16, 32>}, {pipeline_mode = #tpu.pipeline_mode<synchronous>, transform_indices = @transform_13, window_bounds = array<i64: 1, 32>}, {pipeline_mode = #tpu.pipeline_mode<synchronous>, transform_indices = @transform_14, window_bounds = array<i64: 32, 96>}, {pipeline_mode = #tpu.pipeline_mode<synchronous>, transform_indices = @transform_15, window_bounds = array<i64: 1, 96>}, {pipeline_mode = #tpu.pipeline_mode<synchronous>, transform_indices = @transform_16, window_bounds = array<i64: 1, 32>}, {transform_indices = @transform_17, window_bounds = array<i64: 1, 64, 32>}]} {
    %c0 = arith.constant 0 : index
    %c0_0 = arith.constant 0 : index
    %0 = vector.load %arg2[%c0, %c0_0] : memref<288x1xf32, #tpu.memory_space<vmem>>, vector<288x1xf32>
    %cst = arith.constant 0.000000e+00 : bf16
    %1 = vector.broadcast %cst : bf16 to vector<64x48xbf16>
    %c0_1 = arith.constant 0 : index
    %c0_2 = arith.constant 0 : index
    %2 = vector.load %arg19[%c0_1, %c0_2] : memref<400x48xbf16, #tpu.memory_space<vmem>>, vector<64x48xbf16>
    tpu.vector_store %arg19[%c0_1, %c0_2], %1 {strides = array<i32>} : memref<400x48xbf16, #tpu.memory_space<vmem>>, vector<64x48xbf16>,
    %c336 = arith.constant 336 : index
    %c0_3 = arith.constant 0 : index
    %3 = vector.load %arg19[%c336, %c0_3] : memref<400x48xbf16, #tpu.memory_space<vmem>>, vector<64x48xbf16>
    tpu.vector_store %arg19[%c336, %c0_3], %1 {strides = array<i32>} : memref<400x48xbf16, #tpu.memory_space<vmem>>, vector<64x48xbf16>,
    %cst_4 = arith.constant 0.000000e+00 : bf16
    %4 = vector.broadcast %cst_4 : bf16 to vector<64x96xbf16>
    %c0_5 = arith.constant 0 : index
    %c0_6 = arith.constant 0 : index
    %5 = vector.load %arg20[%c0_5, %c0_6] : memref<400x96xbf16, #tpu.memory_space<vmem>>, vector<64x96xbf16>
    tpu.vector_store %arg20[%c0_5, %c0_6], %4 {strides = array<i32>} : memref<400x96xbf16, #tpu.memory_space<vmem>>, vector<64x96xbf16>,
    %c336_7 = arith.constant 336 : index
    %c0_8 = arith.constant 0 : index
    %6 = vector.load %arg20[%c336_7, %c0_8] : memref<400x96xbf16, #tpu.memory_space<vmem>>, vector<64x96xbf16>
    tpu.vector_store %arg20[%c336_7, %c0_8], %4 {strides = array<i32>} : memref<400x96xbf16, #tpu.memory_space<vmem>>, vector<64x96xbf16>,
    %c0_9 = arith.constant 0 : index
    %c0_10 = arith.constant 0 : index
    %c0_11 = arith.constant 0 : index
    %7 = vector.load %arg1[%c0_9, %c0_10, %c0_11] : memref<1x288x16xf32, #tpu.memory_space<vmem>>, vector<1x288x16xf32>
    %8 = vector.shape_cast %7 : vector<1x288x16xf32> to vector<288x16xf32>
    %cst_12 = arith.constant dense<0.000000e+00> : vector<16xf32>
    %9 = vector.multi_reduction <add>, %8, %cst_12 [0] : vector<288x16xf32> to vector<16xf32>
    %10 = vector.shape_cast %9 : vector<16xf32> to vector<1x16xf32>
    %11 = arith.mulf %8, %8 : vector<288x16xf32>
    %cst_13 = arith.constant dense<0.000000e+00> : vector<16xf32>
    %12 = vector.multi_reduction <add>, %11, %cst_13 [0] : vector<288x16xf32> to vector<16xf32>
    %13 = vector.shape_cast %12 : vector<16xf32> to vector<1x16xf32>
    %c0_14 = arith.constant 0 : index
    %c0_15 = arith.constant 0 : index
    %14 = vector.load %arg5[%c0_14, %c0_15] : memref<16x16xf32, #tpu.memory_space<vmem>>, vector<16x16xf32>
    %cst_16 = arith.constant dense<0.000000e+00> : vector<1x16xf32>
    %15 = tpu.matmul %10, %14, %cst_16 {dimension_numbers = #tpu.dot_dimension_numbers<[1], [0], [0], [1], [0, 0, 1, 1], [], []>} : vector<1x16xf32>, vector<16x16xf32>, vector<1x16xf32> -> vector<1x16xf32>
    %c0_17 = arith.constant 0 : index
    %c0_18 = arith.constant 0 : index
    %16 = vector.load %arg5[%c0_17, %c0_18] : memref<16x16xf32, #tpu.memory_space<vmem>>, vector<16x16xf32>
    %cst_19 = arith.constant dense<0.000000e+00> : vector<1x16xf32>
    %17 = tpu.matmul %13, %16, %cst_19 {dimension_numbers = #tpu.dot_dimension_numbers<[1], [0], [0], [1], [0, 0, 1, 1], [], []>} : vector<1x16xf32>, vector<16x16xf32>, vector<1x16xf32> -> vector<1x16xf32>
    %18 = arith.mulf %15, %15 : vector<1x16xf32>
    %19 = arith.subf %17, %18 : vector<1x16xf32>
    %cst_20 = arith.constant 9.99999974E-6 : f32
    %20 = vector.broadcast %cst_20 : f32 to vector<1x16xf32>
    %21 = arith.addf %19, %20 : vector<1x16xf32>
    %22 = math.rsqrt %21 : vector<1x16xf32>
    %23 = vector.broadcast %15 : vector<1x16xf32> to vector<288x16xf32>
    %24 = arith.subf %8, %23 : vector<288x16xf32>
    %25 = vector.broadcast %22 : vector<1x16xf32> to vector<288x16xf32>
    %26 = arith.mulf %24, %25 : vector<288x16xf32>
    %c0_21 = arith.constant 0 : index
    %c0_22 = arith.constant 0 : index
    %27 = vector.load %arg3[%c0_21, %c0_22] : memref<1x16xf32, #tpu.memory_space<vmem>>, vector<1x16xf32>
    %28 = vector.broadcast %27 : vector<1x16xf32> to vector<288x16xf32>
    %29 = arith.mulf %26, %28 : vector<288x16xf32>
    %c0_23 = arith.constant 0 : index
    %c0_24 = arith.constant 0 : index
    %30 = vector.load %arg4[%c0_23, %c0_24] : memref<1x16xf32, #tpu.memory_space<vmem>>, vector<1x16xf32>
    %31 = vector.broadcast %30 : vector<1x16xf32> to vector<288x16xf32>
    %32 = arith.addf %29, %31 : vector<288x16xf32>
    %33 = arith.negf %32 : vector<288x16xf32>
    %34 = math.exp %33 : vector<288x16xf32>
    %cst_25 = arith.constant 1.000000e+00 : f32
    %35 = vector.broadcast %cst_25 : f32 to vector<288x16xf32>
    %36 = arith.addf %35, %34 : vector<288x16xf32>
    %37 = arith.divf %35, %36 : vector<288x16xf32>
    %38 = arith.mulf %32, %37 : vector<288x16xf32>
    %39 = vector.broadcast %0 : vector<288x1xf32> to vector<288x16xf32>
    %40 = arith.mulf %38, %39 : vector<288x16xf32>
    %41 = arith.truncf %40 : vector<288x16xf32> to vector<288x16xbf16>
    %c57 = arith.constant 57 : index
    %c0_26 = arith.constant 0 : index
    %42 = vector.load %arg19[%c57, %c0_26] : memref<400x48xbf16, #tpu.memory_space<vmem>>, vector<288x16xbf16>
    tpu.vector_store %arg19[%c57, %c0_26], %41 {strides = array<i32>} : memref<400x48xbf16, #tpu.memory_space<vmem>>, vector<288x16xbf16>,
    %c56 = arith.constant 56 : index
    %c16 = arith.constant 16 : index
    %43 = vector.load %arg19[%c56, %c16] : memref<400x48xbf16, #tpu.memory_space<vmem>>, vector<288x16xbf16>
    tpu.vector_store %arg19[%c56, %c16], %41 {strides = array<i32>} : memref<400x48xbf16, #tpu.memory_space<vmem>>, vector<288x16xbf16>,
    %c55 = arith.constant 55 : index
    %c32 = arith.constant 32 : index
    %44 = vector.load %arg19[%c55, %c32] : memref<400x48xbf16, #tpu.memory_space<vmem>>, vector<288x16xbf16>
    tpu.vector_store %arg19[%c55, %c32], %41 {strides = array<i32>} : memref<400x48xbf16, #tpu.memory_space<vmem>>, vector<288x16xbf16>,
    %c0_27 = arith.constant 0 : index
    %c0_28 = arith.constant 0 : index
    %45 = vector.load %arg19[%c0_27, %c0_28] : memref<400x48xbf16, #tpu.memory_space<vmem>>, vector<288x48xbf16>
    %c0_29 = arith.constant 0 : index
    %c0_30 = arith.constant 0 : index
    %c0_31 = arith.constant 0 : index
    %46 = vector.load %arg6[%c0_29, %c0_30, %c0_31] : memref<9x48x32xbf16, #tpu.memory_space<vmem>>, vector<1x48x32xbf16>
    %47 = vector.shape_cast %46 : vector<1x48x32xbf16> to vector<48x32xbf16>
    %cst_32 = arith.constant dense<0.000000e+00> : vector<288x32xf32>
    %48 = tpu.matmul %45, %47, %cst_32 {dimension_numbers = #tpu.dot_dimension_numbers<[1], [0], [0], [1], [0, 0, 1, 1], [], []>} : vector<288x48xbf16>, vector<48x32xbf16>, vector<288x32xf32> -> vector<288x32xf32>
    %c8 = arith.constant 8 : index
    %c0_33 = arith.constant 0 : index
    %49 = vector.load %arg19[%c8, %c0_33] : memref<400x48xbf16, #tpu.memory_space<vmem>>, vector<288x48xbf16>
    %c1 = arith.constant 1 : index
    %c0_34 = arith.constant 0 : index
    %c0_35 = arith.constant 0 : index
    %50 = vector.load %arg6[%c1, %c0_34, %c0_35] : memref<9x48x32xbf16, #tpu.memory_space<vmem>>, vector<1x48x32xbf16>
    %51 = vector.shape_cast %50 : vector<1x48x32xbf16> to vector<48x32xbf16>
    %cst_36 = arith.constant dense<0.000000e+00> : vector<288x32xf32>
    %52 = tpu.matmul %49, %51, %cst_36 {dimension_numbers = #tpu.dot_dimension_numbers<[1], [0], [0], [1], [0, 0, 1, 1], [], []>} : vector<288x48xbf16>, vector<48x32xbf16>, vector<288x32xf32> -> vector<288x32xf32>
    %53 = arith.addf %48, %52 : vector<288x32xf32>
    %c16_37 = arith.constant 16 : index
    %c0_38 = arith.constant 0 : index
    %54 = vector.load %arg19[%c16_37, %c0_38] : memref<400x48xbf16, #tpu.memory_space<vmem>>, vector<288x48xbf16>
    %c2 = arith.constant 2 : index
    %c0_39 = arith.constant 0 : index
    %c0_40 = arith.constant 0 : index
    %55 = vector.load %arg6[%c2, %c0_39, %c0_40] : memref<9x48x32xbf16, #tpu.memory_space<vmem>>, vector<1x48x32xbf16>
    %56 = vector.shape_cast %55 : vector<1x48x32xbf16> to vector<48x32xbf16>
    %cst_41 = arith.constant dense<0.000000e+00> : vector<288x32xf32>
    %57 = tpu.matmul %54, %56, %cst_41 {dimension_numbers = #tpu.dot_dimension_numbers<[1], [0], [0], [1], [0, 0, 1, 1], [], []>} : vector<288x48xbf16>, vector<48x32xbf16>, vector<288x32xf32> -> vector<288x32xf32>
    %58 = arith.addf %53, %57 : vector<288x32xf32>
    %c48 = arith.constant 48 : index
    %c0_42 = arith.constant 0 : index
    %59 = vector.load %arg19[%c48, %c0_42] : memref<400x48xbf16, #tpu.memory_space<vmem>>, vector<288x48xbf16>
    %c3 = arith.constant 3 : index
    %c0_43 = arith.constant 0 : index
    %c0_44 = arith.constant 0 : index
    %60 = vector.load %arg6[%c3, %c0_43, %c0_44] : memref<9x48x32xbf16, #tpu.memory_space<vmem>>, vector<1x48x32xbf16>
    %61 = vector.shape_cast %60 : vector<1x48x32xbf16> to vector<48x32xbf16>
    %cst_45 = arith.constant dense<0.000000e+00> : vector<288x32xf32>
    %62 = tpu.matmul %59, %61, %cst_45 {dimension_numbers = #tpu.dot_dimension_numbers<[1], [0], [0], [1], [0, 0, 1, 1], [], []>} : vector<288x48xbf16>, vector<48x32xbf16>, vector<288x32xf32> -> vector<288x32xf32>
    %c56_46 = arith.constant 56 : index
    %c0_47 = arith.constant 0 : index
    %63 = vector.load %arg19[%c56_46, %c0_47] : memref<400x48xbf16, #tpu.memory_space<vmem>>, vector<288x48xbf16>
    %c4 = arith.constant 4 : index
    %c0_48 = arith.constant 0 : index
    %c0_49 = arith.constant 0 : index
    %64 = vector.load %arg6[%c4, %c0_48, %c0_49] : memref<9x48x32xbf16, #tpu.memory_space<vmem>>, vector<1x48x32xbf16>
    %65 = vector.shape_cast %64 : vector<1x48x32xbf16> to vector<48x32xbf16>
    %cst_50 = arith.constant dense<0.000000e+00> : vector<288x32xf32>
    %66 = tpu.matmul %63, %65, %cst_50 {dimension_numbers = #tpu.dot_dimension_numbers<[1], [0], [0], [1], [0, 0, 1, 1], [], []>} : vector<288x48xbf16>, vector<48x32xbf16>, vector<288x32xf32> -> vector<288x32xf32>
    %67 = arith.addf %62, %66 : vector<288x32xf32>
    %c64 = arith.constant 64 : index
    %c0_51 = arith.constant 0 : index
    %68 = vector.load %arg19[%c64, %c0_51] : memref<400x48xbf16, #tpu.memory_space<vmem>>, vector<288x48xbf16>
    %c5 = arith.constant 5 : index
    %c0_52 = arith.constant 0 : index
    %c0_53 = arith.constant 0 : index
    %69 = vector.load %arg6[%c5, %c0_52, %c0_53] : memref<9x48x32xbf16, #tpu.memory_space<vmem>>, vector<1x48x32xbf16>
    %70 = vector.shape_cast %69 : vector<1x48x32xbf16> to vector<48x32xbf16>
    %cst_54 = arith.constant dense<0.000000e+00> : vector<288x32xf32>
    %71 = tpu.matmul %68, %70, %cst_54 {dimension_numbers = #tpu.dot_dimension_numbers<[1], [0], [0], [1], [0, 0, 1, 1], [], []>} : vector<288x48xbf16>, vector<48x32xbf16>, vector<288x32xf32> -> vector<288x32xf32>
    %72 = arith.addf %67, %71 : vector<288x32xf32>
    %c96 = arith.constant 96 : index
    %c0_55 = arith.constant 0 : index
    %73 = vector.load %arg19[%c96, %c0_55] : memref<400x48xbf16, #tpu.memory_space<vmem>>, vector<288x48xbf16>
    %c6 = arith.constant 6 : index
    %c0_56 = arith.constant 0 : index
    %c0_57 = arith.constant 0 : index
    %74 = vector.load %arg6[%c6, %c0_56, %c0_57] : memref<9x48x32xbf16, #tpu.memory_space<vmem>>, vector<1x48x32xbf16>
    %75 = vector.shape_cast %74 : vector<1x48x32xbf16> to vector<48x32xbf16>
    %cst_58 = arith.constant dense<0.000000e+00> : vector<288x32xf32>
    %76 = tpu.matmul %73, %75, %cst_58 {dimension_numbers = #tpu.dot_dimension_numbers<[1], [0], [0], [1], [0, 0, 1, 1], [], []>} : vector<288x48xbf16>, vector<48x32xbf16>, vector<288x32xf32> -> vector<288x32xf32>
    %c104 = arith.constant 104 : index
    %c0_59 = arith.constant 0 : index
    %77 = vector.load %arg19[%c104, %c0_59] : memref<400x48xbf16, #tpu.memory_space<vmem>>, vector<288x48xbf16>
    %c7 = arith.constant 7 : index
    %c0_60 = arith.constant 0 : index
    %c0_61 = arith.constant 0 : index
    %78 = vector.load %arg6[%c7, %c0_60, %c0_61] : memref<9x48x32xbf16, #tpu.memory_space<vmem>>, vector<1x48x32xbf16>
    %79 = vector.shape_cast %78 : vector<1x48x32xbf16> to vector<48x32xbf16>
    %cst_62 = arith.constant dense<0.000000e+00> : vector<288x32xf32>
    %80 = tpu.matmul %77, %79, %cst_62 {dimension_numbers = #tpu.dot_dimension_numbers<[1], [0], [0], [1], [0, 0, 1, 1], [], []>} : vector<288x48xbf16>, vector<48x32xbf16>, vector<288x32xf32> -> vector<288x32xf32>
    %81 = arith.addf %76, %80 : vector<288x32xf32>
    %c112 = arith.constant 112 : index
    %c0_63 = arith.constant 0 : index
    %82 = vector.load %arg19[%c112, %c0_63] : memref<400x48xbf16, #tpu.memory_space<vmem>>, vector<288x48xbf16>
    %c8_64 = arith.constant 8 : index
    %c0_65 = arith.constant 0 : index
    %c0_66 = arith.constant 0 : index
    %83 = vector.load %arg6[%c8_64, %c0_65, %c0_66] : memref<9x48x32xbf16, #tpu.memory_space<vmem>>, vector<1x48x32xbf16>
    %84 = vector.shape_cast %83 : vector<1x48x32xbf16> to vector<48x32xbf16>
    %cst_67 = arith.constant dense<0.000000e+00> : vector<288x32xf32>
    %85 = tpu.matmul %82, %84, %cst_67 {dimension_numbers = #tpu.dot_dimension_numbers<[1], [0], [0], [1], [0, 0, 1, 1], [], []>} : vector<288x48xbf16>, vector<48x32xbf16>, vector<288x32xf32> -> vector<288x32xf32>
    %86 = arith.addf %81, %85 : vector<288x32xf32>
    %87 = arith.addf %58, %72 : vector<288x32xf32>
    %88 = arith.addf %87, %86 : vector<288x32xf32>
    %c0_68 = arith.constant 0 : index
    %c0_69 = arith.constant 0 : index
    %89 = vector.load %arg7[%c0_68, %c0_69] : memref<1x32xf32, #tpu.memory_space<vmem>>, vector<1x32xf32>
    %90 = vector.broadcast %89 : vector<1x32xf32> to vector<288x32xf32>
    %91 = arith.addf %88, %90 : vector<288x32xf32>
    %92 = vector.broadcast %0 : vector<288x1xf32> to vector<288x32xf32>
    %93 = arith.mulf %91, %92 : vector<288x32xf32>
    %cst_70 = arith.constant dense<0.000000e+00> : vector<32xf32>
    %94 = vector.multi_reduction <add>, %93, %cst_70 [0] : vector<288x32xf32> to vector<32xf32>
    %95 = vector.shape_cast %94 : vector<32xf32> to vector<1x32xf32>
    %96 = arith.mulf %91, %93 : vector<288x32xf32>
    %cst_71 = arith.constant dense<0.000000e+00> : vector<32xf32>
    %97 = vector.multi_reduction <add>, %96, %cst_71 [0] : vector<288x32xf32> to vector<32xf32>
    %98 = vector.shape_cast %97 : vector<32xf32> to vector<1x32xf32>
    %c0_72 = arith.constant 0 : index
    %c0_73 = arith.constant 0 : index
    %99 = vector.load %arg10[%c0_72, %c0_73] : memref<32x32xf32, #tpu.memory_space<vmem>>, vector<32x32xf32>
    %cst_74 = arith.constant dense<0.000000e+00> : vector<1x32xf32>
    %100 = tpu.matmul %95, %99, %cst_74 {dimension_numbers = #tpu.dot_dimension_numbers<[1], [0], [0], [1], [0, 0, 1, 1], [], []>} : vector<1x32xf32>, vector<32x32xf32>, vector<1x32xf32> -> vector<1x32xf32>
    %c0_75 = arith.constant 0 : index
    %c0_76 = arith.constant 0 : index
    %101 = vector.load %arg10[%c0_75, %c0_76] : memref<32x32xf32, #tpu.memory_space<vmem>>, vector<32x32xf32>
    %cst_77 = arith.constant dense<0.000000e+00> : vector<1x32xf32>
    %102 = tpu.matmul %98, %101, %cst_77 {dimension_numbers = #tpu.dot_dimension_numbers<[1], [0], [0], [1], [0, 0, 1, 1], [], []>} : vector<1x32xf32>, vector<32x32xf32>, vector<1x32xf32> -> vector<1x32xf32>
    %103 = arith.mulf %100, %100 : vector<1x32xf32>
    %104 = arith.subf %102, %103 : vector<1x32xf32>
    %cst_78 = arith.constant 9.99999974E-6 : f32
    %105 = vector.broadcast %cst_78 : f32 to vector<1x32xf32>
    %106 = arith.addf %104, %105 : vector<1x32xf32>
    %107 = math.rsqrt %106 : vector<1x32xf32>
    %108 = vector.broadcast %100 : vector<1x32xf32> to vector<288x32xf32>
    %109 = arith.subf %91, %108 : vector<288x32xf32>
    %110 = vector.broadcast %107 : vector<1x32xf32> to vector<288x32xf32>
    %111 = arith.mulf %109, %110 : vector<288x32xf32>
    %c0_79 = arith.constant 0 : index
    %c0_80 = arith.constant 0 : index
    %112 = vector.load %arg8[%c0_79, %c0_80] : memref<1x32xf32, #tpu.memory_space<vmem>>, vector<1x32xf32>
    %113 = vector.broadcast %112 : vector<1x32xf32> to vector<288x32xf32>
    %114 = arith.mulf %111, %113 : vector<288x32xf32>
    %c0_81 = arith.constant 0 : index
    %c0_82 = arith.constant 0 : index
    %115 = vector.load %arg9[%c0_81, %c0_82] : memref<1x32xf32, #tpu.memory_space<vmem>>, vector<1x32xf32>
    %116 = vector.broadcast %115 : vector<1x32xf32> to vector<288x32xf32>
    %117 = arith.addf %114, %116 : vector<288x32xf32>
    %118 = arith.negf %117 : vector<288x32xf32>
    %119 = math.exp %118 : vector<288x32xf32>
    %cst_83 = arith.constant 1.000000e+00 : f32
    %120 = vector.broadcast %cst_83 : f32 to vector<288x32xf32>
    %121 = arith.addf %120, %119 : vector<288x32xf32>
    %122 = arith.divf %120, %121 : vector<288x32xf32>
    %123 = arith.mulf %117, %122 : vector<288x32xf32>
    %124 = vector.broadcast %0 : vector<288x1xf32> to vector<288x32xf32>
    %125 = arith.mulf %123, %124 : vector<288x32xf32>
    %126 = arith.truncf %125 : vector<288x32xf32> to vector<288x32xbf16>
    %c57_84 = arith.constant 57 : index
    %c0_85 = arith.constant 0 : index
    %127 = vector.load %arg20[%c57_84, %c0_85] : memref<400x96xbf16, #tpu.memory_space<vmem>>, vector<288x32xbf16>
    tpu.vector_store %arg20[%c57_84, %c0_85], %126 {strides = array<i32>} : memref<400x96xbf16, #tpu.memory_space<vmem>>, vector<288x32xbf16>,
    %c56_86 = arith.constant 56 : index
    %c32_87 = arith.constant 32 : index
    %128 = vector.load %arg20[%c56_86, %c32_87] : memref<400x96xbf16, #tpu.memory_space<vmem>>, vector<288x32xbf16>
    tpu.vector_store %arg20[%c56_86, %c32_87], %126 {strides = array<i32>} : memref<400x96xbf16, #tpu.memory_space<vmem>>, vector<288x32xbf16>,
    %c55_88 = arith.constant 55 : index
    %c64_89 = arith.constant 64 : index
    %129 = vector.load %arg20[%c55_88, %c64_89] : memref<400x96xbf16, #tpu.memory_space<vmem>>, vector<288x32xbf16>
    tpu.vector_store %arg20[%c55_88, %c64_89], %126 {strides = array<i32>} : memref<400x96xbf16, #tpu.memory_space<vmem>>, vector<288x32xbf16>,
    %c0_90 = arith.constant 0 : index
    %c0_91 = arith.constant 0 : index
    %130 = vector.load %arg20[%c0_90, %c0_91] : memref<400x96xbf16, #tpu.memory_space<vmem>>, vector<288x96xbf16>
    %c0_92 = arith.constant 0 : index
    %c0_93 = arith.constant 0 : index
    %c0_94 = arith.constant 0 : index
    %131 = vector.load %arg11[%c0_92, %c0_93, %c0_94] : memref<9x96x32xbf16, #tpu.memory_space<vmem>>, vector<1x96x32xbf16>
    %132 = vector.shape_cast %131 : vector<1x96x32xbf16> to vector<96x32xbf16>
    %cst_95 = arith.constant dense<0.000000e+00> : vector<288x32xf32>
    %133 = tpu.matmul %130, %132, %cst_95 {dimension_numbers = #tpu.dot_dimension_numbers<[1], [0], [0], [1], [0, 0, 1, 1], [], []>} : vector<288x96xbf16>, vector<96x32xbf16>, vector<288x32xf32> -> vector<288x32xf32>
    %c8_96 = arith.constant 8 : index
    %c0_97 = arith.constant 0 : index
    %134 = vector.load %arg20[%c8_96, %c0_97] : memref<400x96xbf16, #tpu.memory_space<vmem>>, vector<288x96xbf16>
    %c1_98 = arith.constant 1 : index
    %c0_99 = arith.constant 0 : index
    %c0_100 = arith.constant 0 : index
    %135 = vector.load %arg11[%c1_98, %c0_99, %c0_100] : memref<9x96x32xbf16, #tpu.memory_space<vmem>>, vector<1x96x32xbf16>
    %136 = vector.shape_cast %135 : vector<1x96x32xbf16> to vector<96x32xbf16>
    %cst_101 = arith.constant dense<0.000000e+00> : vector<288x32xf32>
    %137 = tpu.matmul %134, %136, %cst_101 {dimension_numbers = #tpu.dot_dimension_numbers<[1], [0], [0], [1], [0, 0, 1, 1], [], []>} : vector<288x96xbf16>, vector<96x32xbf16>, vector<288x32xf32> -> vector<288x32xf32>
    %138 = arith.addf %133, %137 : vector<288x32xf32>
    %c16_102 = arith.constant 16 : index
    %c0_103 = arith.constant 0 : index
    %139 = vector.load %arg20[%c16_102, %c0_103] : memref<400x96xbf16, #tpu.memory_space<vmem>>, vector<288x96xbf16>
    %c2_104 = arith.constant 2 : index
    %c0_105 = arith.constant 0 : index
    %c0_106 = arith.constant 0 : index
    %140 = vector.load %arg11[%c2_104, %c0_105, %c0_106] : memref<9x96x32xbf16, #tpu.memory_space<vmem>>, vector<1x96x32xbf16>
    %141 = vector.shape_cast %140 : vector<1x96x32xbf16> to vector<96x32xbf16>
    %cst_107 = arith.constant dense<0.000000e+00> : vector<288x32xf32>
    %142 = tpu.matmul %139, %141, %cst_107 {dimension_numbers = #tpu.dot_dimension_numbers<[1], [0], [0], [1], [0, 0, 1, 1], [], []>} : vector<288x96xbf16>, vector<96x32xbf16>, vector<288x32xf32> -> vector<288x32xf32>
    %143 = arith.addf %138, %142 : vector<288x32xf32>
    %c48_108 = arith.constant 48 : index
    %c0_109 = arith.constant 0 : index
    %144 = vector.load %arg20[%c48_108, %c0_109] : memref<400x96xbf16, #tpu.memory_space<vmem>>, vector<288x96xbf16>
    %c3_110 = arith.constant 3 : index
    %c0_111 = arith.constant 0 : index
    %c0_112 = arith.constant 0 : index
    %145 = vector.load %arg11[%c3_110, %c0_111, %c0_112] : memref<9x96x32xbf16, #tpu.memory_space<vmem>>, vector<1x96x32xbf16>
    %146 = vector.shape_cast %145 : vector<1x96x32xbf16> to vector<96x32xbf16>
    %cst_113 = arith.constant dense<0.000000e+00> : vector<288x32xf32>
    %147 = tpu.matmul %144, %146, %cst_113 {dimension_numbers = #tpu.dot_dimension_numbers<[1], [0], [0], [1], [0, 0, 1, 1], [], []>} : vector<288x96xbf16>, vector<96x32xbf16>, vector<288x32xf32> -> vector<288x32xf32>
    %c56_114 = arith.constant 56 : index
    %c0_115 = arith.constant 0 : index
    %148 = vector.load %arg20[%c56_114, %c0_115] : memref<400x96xbf16, #tpu.memory_space<vmem>>, vector<288x96xbf16>
    %c4_116 = arith.constant 4 : index
    %c0_117 = arith.constant 0 : index
    %c0_118 = arith.constant 0 : index
    %149 = vector.load %arg11[%c4_116, %c0_117, %c0_118] : memref<9x96x32xbf16, #tpu.memory_space<vmem>>, vector<1x96x32xbf16>
    %150 = vector.shape_cast %149 : vector<1x96x32xbf16> to vector<96x32xbf16>
    %cst_119 = arith.constant dense<0.000000e+00> : vector<288x32xf32>
    %151 = tpu.matmul %148, %150, %cst_119 {dimension_numbers = #tpu.dot_dimension_numbers<[1], [0], [0], [1], [0, 0, 1, 1], [], []>} : vector<288x96xbf16>, vector<96x32xbf16>, vector<288x32xf32> -> vector<288x32xf32>
    %152 = arith.addf %147, %151 : vector<288x32xf32>
    %c64_120 = arith.constant 64 : index
    %c0_121 = arith.constant 0 : index
    %153 = vector.load %arg20[%c64_120, %c0_121] : memref<400x96xbf16, #tpu.memory_space<vmem>>, vector<288x96xbf16>
    %c5_122 = arith.constant 5 : index
    %c0_123 = arith.constant 0 : index
    %c0_124 = arith.constant 0 : index
    %154 = vector.load %arg11[%c5_122, %c0_123, %c0_124] : memref<9x96x32xbf16, #tpu.memory_space<vmem>>, vector<1x96x32xbf16>
    %155 = vector.shape_cast %154 : vector<1x96x32xbf16> to vector<96x32xbf16>
    %cst_125 = arith.constant dense<0.000000e+00> : vector<288x32xf32>
    %156 = tpu.matmul %153, %155, %cst_125 {dimension_numbers = #tpu.dot_dimension_numbers<[1], [0], [0], [1], [0, 0, 1, 1], [], []>} : vector<288x96xbf16>, vector<96x32xbf16>, vector<288x32xf32> -> vector<288x32xf32>
    %157 = arith.addf %152, %156 : vector<288x32xf32>
    %c96_126 = arith.constant 96 : index
    %c0_127 = arith.constant 0 : index
    %158 = vector.load %arg20[%c96_126, %c0_127] : memref<400x96xbf16, #tpu.memory_space<vmem>>, vector<288x96xbf16>
    %c6_128 = arith.constant 6 : index
    %c0_129 = arith.constant 0 : index
    %c0_130 = arith.constant 0 : index
    %159 = vector.load %arg11[%c6_128, %c0_129, %c0_130] : memref<9x96x32xbf16, #tpu.memory_space<vmem>>, vector<1x96x32xbf16>
    %160 = vector.shape_cast %159 : vector<1x96x32xbf16> to vector<96x32xbf16>
    %cst_131 = arith.constant dense<0.000000e+00> : vector<288x32xf32>
    %161 = tpu.matmul %158, %160, %cst_131 {dimension_numbers = #tpu.dot_dimension_numbers<[1], [0], [0], [1], [0, 0, 1, 1], [], []>} : vector<288x96xbf16>, vector<96x32xbf16>, vector<288x32xf32> -> vector<288x32xf32>
    %c104_132 = arith.constant 104 : index
    %c0_133 = arith.constant 0 : index
    %162 = vector.load %arg20[%c104_132, %c0_133] : memref<400x96xbf16, #tpu.memory_space<vmem>>, vector<288x96xbf16>
    %c7_134 = arith.constant 7 : index
    %c0_135 = arith.constant 0 : index
    %c0_136 = arith.constant 0 : index
    %163 = vector.load %arg11[%c7_134, %c0_135, %c0_136] : memref<9x96x32xbf16, #tpu.memory_space<vmem>>, vector<1x96x32xbf16>
    %164 = vector.shape_cast %163 : vector<1x96x32xbf16> to vector<96x32xbf16>
    %cst_137 = arith.constant dense<0.000000e+00> : vector<288x32xf32>
    %165 = tpu.matmul %162, %164, %cst_137 {dimension_numbers = #tpu.dot_dimension_numbers<[1], [0], [0], [1], [0, 0, 1, 1], [], []>} : vector<288x96xbf16>, vector<96x32xbf16>, vector<288x32xf32> -> vector<288x32xf32>
    %166 = arith.addf %161, %165 : vector<288x32xf32>
    %c112_138 = arith.constant 112 : index
    %c0_139 = arith.constant 0 : index
    %167 = vector.load %arg20[%c112_138, %c0_139] : memref<400x96xbf16, #tpu.memory_space<vmem>>, vector<288x96xbf16>
    %c8_140 = arith.constant 8 : index
    %c0_141 = arith.constant 0 : index
    %c0_142 = arith.constant 0 : index
    %168 = vector.load %arg11[%c8_140, %c0_141, %c0_142] : memref<9x96x32xbf16, #tpu.memory_space<vmem>>, vector<1x96x32xbf16>
    %169 = vector.shape_cast %168 : vector<1x96x32xbf16> to vector<96x32xbf16>
    %cst_143 = arith.constant dense<0.000000e+00> : vector<288x32xf32>
    %170 = tpu.matmul %167, %169, %cst_143 {dimension_numbers = #tpu.dot_dimension_numbers<[1], [0], [0], [1], [0, 0, 1, 1], [], []>} : vector<288x96xbf16>, vector<96x32xbf16>, vector<288x32xf32> -> vector<288x32xf32>
    %171 = arith.addf %166, %170 : vector<288x32xf32>
    %172 = arith.addf %143, %157 : vector<288x32xf32>
    %173 = arith.addf %172, %171 : vector<288x32xf32>
    %c0_144 = arith.constant 0 : index
    %c0_145 = arith.constant 0 : index
    %174 = vector.load %arg12[%c0_144, %c0_145] : memref<1x32xf32, #tpu.memory_space<vmem>>, vector<1x32xf32>
    %175 = vector.broadcast %174 : vector<1x32xf32> to vector<288x32xf32>
    %176 = arith.addf %173, %175 : vector<288x32xf32>
    %177 = arith.truncf %8 : vector<288x16xf32> to vector<288x16xbf16>
    %c0_146 = arith.constant 0 : index
    %c0_147 = arith.constant 0 : index
    %178 = vector.load %arg13[%c0_146, %c0_147] : memref<16x32xbf16, #tpu.memory_space<vmem>>, vector<16x32xbf16>
    %cst_148 = arith.constant dense<0.000000e+00> : vector<288x32xf32>
    %179 = tpu.matmul %177, %178, %cst_148 {dimension_numbers = #tpu.dot_dimension_numbers<[1], [0], [0], [1], [0, 0, 1, 1], [], []>} : vector<288x16xbf16>, vector<16x32xbf16>, vector<288x32xf32> -> vector<288x32xf32>
    %c0_149 = arith.constant 0 : index
    %c0_150 = arith.constant 0 : index
    %180 = vector.load %arg14[%c0_149, %c0_150] : memref<1x32xf32, #tpu.memory_space<vmem>>, vector<1x32xf32>
    %181 = vector.broadcast %180 : vector<1x32xf32> to vector<288x32xf32>
    %182 = arith.addf %179, %181 : vector<288x32xf32>
    %183 = arith.addf %176, %182 : vector<288x32xf32>
    %184 = vector.extract_strided_slice %183 {offsets = [56, 0], sizes = [4, 32], strides = [1, 1]} : vector<288x32xf32> to vector<4x32xf32>
    %c0_151 = arith.constant 0 : index
    %c0_152 = arith.constant 0 : index
    %185 = vector.load %arg21[%c0_151, %c0_152] : memref<64x32xf32, #tpu.memory_space<vmem>>, vector<4x32xf32>
    tpu.vector_store %arg21[%c0_151, %c0_152], %184 {strides = array<i32>} : memref<64x32xf32, #tpu.memory_space<vmem>>, vector<4x32xf32>,
    %186 = vector.extract_strided_slice %183 {offsets = [64, 0], sizes = [4, 32], strides = [1, 1]} : vector<288x32xf32> to vector<4x32xf32>
    %c4_153 = arith.constant 4 : index
    %c0_154 = arith.constant 0 : index
    %187 = vector.load %arg21[%c4_153, %c0_154] : memref<64x32xf32, #tpu.memory_space<vmem>>, vector<4x32xf32>
    tpu.vector_store %arg21[%c4_153, %c0_154], %186 {strides = array<i32>} : memref<64x32xf32, #tpu.memory_space<vmem>>, vector<4x32xf32>,
    %188 = vector.extract_strided_slice %183 {offsets = [72, 0], sizes = [4, 32], strides = [1, 1]} : vector<288x32xf32> to vector<4x32xf32>
    %c8_155 = arith.constant 8 : index
    %c0_156 = arith.constant 0 : index
    %189 = vector.load %arg21[%c8_155, %c0_156] : memref<64x32xf32, #tpu.memory_space<vmem>>, vector<4x32xf32>
    tpu.vector_store %arg21[%c8_155, %c0_156], %188 {strides = array<i32>} : memref<64x32xf32, #tpu.memory_space<vmem>>, vector<4x32xf32>,
    %190 = vector.extract_strided_slice %183 {offsets = [80, 0], sizes = [4, 32], strides = [1, 1]} : vector<288x32xf32> to vector<4x32xf32>
    %c12 = arith.constant 12 : index
    %c0_157 = arith.constant 0 : index
    %191 = vector.load %arg21[%c12, %c0_157] : memref<64x32xf32, #tpu.memory_space<vmem>>, vector<4x32xf32>
    tpu.vector_store %arg21[%c12, %c0_157], %190 {strides = array<i32>} : memref<64x32xf32, #tpu.memory_space<vmem>>, vector<4x32xf32>,
    %192 = vector.extract_strided_slice %183 {offsets = [104, 0], sizes = [4, 32], strides = [1, 1]} : vector<288x32xf32> to vector<4x32xf32>
    %c16_158 = arith.constant 16 : index
    %c0_159 = arith.constant 0 : index
    %193 = vector.load %arg21[%c16_158, %c0_159] : memref<64x32xf32, #tpu.memory_space<vmem>>, vector<4x32xf32>
    tpu.vector_store %arg21[%c16_158, %c0_159], %192 {strides = array<i32>} : memref<64x32xf32, #tpu.memory_space<vmem>>, vector<4x32xf32>,
    %194 = vector.extract_strided_slice %183 {offsets = [112, 0], sizes = [4, 32], strides = [1, 1]} : vector<288x32xf32> to vector<4x32xf32>
    %c20 = arith.constant 20 : index
    %c0_160 = arith.constant 0 : index
    %195 = vector.load %arg21[%c20, %c0_160] : memref<64x32xf32, #tpu.memory_space<vmem>>, vector<4x32xf32>
    tpu.vector_store %arg21[%c20, %c0_160], %194 {strides = array<i32>} : memref<64x32xf32, #tpu.memory_space<vmem>>, vector<4x32xf32>,
    %196 = vector.extract_strided_slice %183 {offsets = [120, 0], sizes = [4, 32], strides = [1, 1]} : vector<288x32xf32> to vector<4x32xf32>
    %c24 = arith.constant 24 : index
    %c0_161 = arith.constant 0 : index
    %197 = vector.load %arg21[%c24, %c0_161] : memref<64x32xf32, #tpu.memory_space<vmem>>, vector<4x32xf32>
    tpu.vector_store %arg21[%c24, %c0_161], %196 {strides = array<i32>} : memref<64x32xf32, #tpu.memory_space<vmem>>, vector<4x32xf32>,
    %198 = vector.extract_strided_slice %183 {offsets = [128, 0], sizes = [4, 32], strides = [1, 1]} : vector<288x32xf32> to vector<4x32xf32>
    %c28 = arith.constant 28 : index
    %c0_162 = arith.constant 0 : index
    %199 = vector.load %arg21[%c28, %c0_162] : memref<64x32xf32, #tpu.memory_space<vmem>>, vector<4x32xf32>
    tpu.vector_store %arg21[%c28, %c0_162], %198 {strides = array<i32>} : memref<64x32xf32, #tpu.memory_space<vmem>>, vector<4x32xf32>,
    %200 = vector.extract_strided_slice %183 {offsets = [152, 0], sizes = [4, 32], strides = [1, 1]} : vector<288x32xf32> to vector<4x32xf32>
    %c32_163 = arith.constant 32 : index
    %c0_164 = arith.constant 0 : index
    %201 = vector.load %arg21[%c32_163, %c0_164] : memref<64x32xf32, #tpu.memory_space<vmem>>, vector<4x32xf32>
    tpu.vector_store %arg21[%c32_163, %c0_164], %200 {strides = array<i32>} : memref<64x32xf32, #tpu.memory_space<vmem>>, vector<4x32xf32>,
    %202 = vector.extract_strided_slice %183 {offsets = [160, 0], sizes = [4, 32], strides = [1, 1]} : vector<288x32xf32> to vector<4x32xf32>
    %c36 = arith.constant 36 : index
    %c0_165 = arith.constant 0 : index
    %203 = vector.load %arg21[%c36, %c0_165] : memref<64x32xf32, #tpu.memory_space<vmem>>, vector<4x32xf32>
    tpu.vector_store %arg21[%c36, %c0_165], %202 {strides = array<i32>} : memref<64x32xf32, #tpu.memory_space<vmem>>, vector<4x32xf32>,
    %204 = vector.extract_strided_slice %183 {offsets = [168, 0], sizes = [4, 32], strides = [1, 1]} : vector<288x32xf32> to vector<4x32xf32>
    %c40 = arith.constant 40 : index
    %c0_166 = arith.constant 0 : index
    %205 = vector.load %arg21[%c40, %c0_166] : memref<64x32xf32, #tpu.memory_space<vmem>>, vector<4x32xf32>
    tpu.vector_store %arg21[%c40, %c0_166], %204 {strides = array<i32>} : memref<64x32xf32, #tpu.memory_space<vmem>>, vector<4x32xf32>,
    %206 = vector.extract_strided_slice %183 {offsets = [176, 0], sizes = [4, 32], strides = [1, 1]} : vector<288x32xf32> to vector<4x32xf32>
    %c44 = arith.constant 44 : index
    %c0_167 = arith.constant 0 : index
    %207 = vector.load %arg21[%c44, %c0_167] : memref<64x32xf32, #tpu.memory_space<vmem>>, vector<4x32xf32>
    tpu.vector_store %arg21[%c44, %c0_167], %206 {strides = array<i32>} : memref<64x32xf32, #tpu.memory_space<vmem>>, vector<4x32xf32>,
    %208 = vector.extract_strided_slice %183 {offsets = [200, 0], sizes = [4, 32], strides = [1, 1]} : vector<288x32xf32> to vector<4x32xf32>
    %c48_168 = arith.constant 48 : index
    %c0_169 = arith.constant 0 : index
    %209 = vector.load %arg21[%c48_168, %c0_169] : memref<64x32xf32, #tpu.memory_space<vmem>>, vector<4x32xf32>
    tpu.vector_store %arg21[%c48_168, %c0_169], %208 {strides = array<i32>} : memref<64x32xf32, #tpu.memory_space<vmem>>, vector<4x32xf32>,
    %210 = vector.extract_strided_slice %183 {offsets = [208, 0], sizes = [4, 32], strides = [1, 1]} : vector<288x32xf32> to vector<4x32xf32>
    %c52 = arith.constant 52 : index
    %c0_170 = arith.constant 0 : index
    %211 = vector.load %arg21[%c52, %c0_170] : memref<64x32xf32, #tpu.memory_space<vmem>>, vector<4x32xf32>
    tpu.vector_store %arg21[%c52, %c0_170], %210 {strides = array<i32>} : memref<64x32xf32, #tpu.memory_space<vmem>>, vector<4x32xf32>,
    %212 = vector.extract_strided_slice %183 {offsets = [216, 0], sizes = [4, 32], strides = [1, 1]} : vector<288x32xf32> to vector<4x32xf32>
    %c56_171 = arith.constant 56 : index
    %c0_172 = arith.constant 0 : index
    %213 = vector.load %arg21[%c56_171, %c0_172] : memref<64x32xf32, #tpu.memory_space<vmem>>, vector<4x32xf32>
    tpu.vector_store %arg21[%c56_171, %c0_172], %212 {strides = array<i32>} : memref<64x32xf32, #tpu.memory_space<vmem>>, vector<4x32xf32>,
    %214 = vector.extract_strided_slice %183 {offsets = [224, 0], sizes = [4, 32], strides = [1, 1]} : vector<288x32xf32> to vector<4x32xf32>
    %c60 = arith.constant 60 : index
    %c0_173 = arith.constant 0 : index
    %215 = vector.load %arg21[%c60, %c0_173] : memref<64x32xf32, #tpu.memory_space<vmem>>, vector<4x32xf32>
    tpu.vector_store %arg21[%c60, %c0_173], %214 {strides = array<i32>} : memref<64x32xf32, #tpu.memory_space<vmem>>, vector<4x32xf32>,
    %c0_174 = arith.constant 0 : index
    %c0_175 = arith.constant 0 : index
    %216 = vector.load %arg21[%c0_174, %c0_175] : memref<64x32xf32, #tpu.memory_space<vmem>>, vector<64x32xf32>
    %217 = arith.truncf %216 : vector<64x32xf32> to vector<64x32xbf16>
    %c0_176 = arith.constant 0 : index
    %c0_177 = arith.constant 0 : index
    %218 = vector.load %arg15[%c0_176, %c0_177] : memref<32x96xbf16, #tpu.memory_space<vmem>>, vector<32x96xbf16>
    %cst_178 = arith.constant dense<0.000000e+00> : vector<64x96xf32>
    %219 = tpu.matmul %217, %218, %cst_178 {dimension_numbers = #tpu.dot_dimension_numbers<[1], [0], [0], [1], [0, 0, 1, 1], [], []>} : vector<64x32xbf16>, vector<32x96xbf16>, vector<64x96xf32> -> vector<64x96xf32>
    %c0_179 = arith.constant 0 : index
    %c0_180 = arith.constant 0 : index
    %220 = vector.load %arg16[%c0_179, %c0_180] : memref<1x96xf32, #tpu.memory_space<vmem>>, vector<1x96xf32>
    %221 = vector.broadcast %220 : vector<1x96xf32> to vector<64x96xf32>
    %222 = arith.addf %219, %221 : vector<64x96xf32>
    %223 = vector.extract_strided_slice %222 {offsets = [0, 0], sizes = [64, 32], strides = [1, 1]} : vector<64x96xf32> to vector<64x32xf32>
    %224 = arith.truncf %223 : vector<64x32xf32> to vector<64x32xbf16>
    %225 = vector.extract_strided_slice %222 {offsets = [0, 32], sizes = [64, 32], strides = [1, 1]} : vector<64x96xf32> to vector<64x32xf32>
    %226 = arith.truncf %225 : vector<64x32xf32> to vector<64x32xbf16>
    %227 = vector.extract_strided_slice %222 {offsets = [0, 64], sizes = [64, 32], strides = [1, 1]} : vector<64x96xf32> to vector<64x32xf32>
    %cst_181 = arith.constant dense<0.000000e+00> : vector<64x64xf32>
    %228 = tpu.matmul %224, %226, %cst_181 {dimension_numbers = #tpu.dot_dimension_numbers<[1], [1], [0], [0], [0, 0, 1, 0], [], []>} : vector<64x32xbf16>, vector<64x32xbf16>, vector<64x64xf32> -> vector<64x64xf32>
    %cst_182 = arith.constant dense<0xFF800000> : vector<64xf32>
    %229 = vector.multi_reduction <maximumf>, %228, %cst_182 [1] : vector<64x64xf32> to vector<64xf32>
    %230 = vector.shape_cast %229 : vector<64xf32> to vector<64x1xf32>
    %231 = vector.broadcast %230 : vector<64x1xf32> to vector<64x64xf32>
    %232 = arith.subf %228, %231 : vector<64x64xf32>
    %233 = math.exp %232 : vector<64x64xf32>
    %cst_183 = arith.constant dense<0.000000e+00> : vector<64xf32>
    %234 = vector.multi_reduction <add>, %233, %cst_183 [1] : vector<64x64xf32> to vector<64xf32>
    %235 = vector.shape_cast %234 : vector<64xf32> to vector<64x1xf32>
    %236 = tpu.reciprocal %235 {approx = true} : vector<64x1xf32> -> vector<64x1xf32>
    %237 = vector.broadcast %236 : vector<64x1xf32> to vector<64x64xf32>
    %238 = arith.mulf %233, %237 : vector<64x64xf32>
    %239 = arith.truncf %238 : vector<64x64xf32> to vector<64x64xbf16>
    %240 = arith.truncf %227 : vector<64x32xf32> to vector<64x32xbf16>
    %cst_184 = arith.constant dense<0.000000e+00> : vector<64x32xf32>
    %241 = tpu.matmul %239, %240, %cst_184 {dimension_numbers = #tpu.dot_dimension_numbers<[1], [0], [0], [1], [0, 0, 1, 1], [], []>} : vector<64x64xbf16>, vector<64x32xbf16>, vector<64x32xf32> -> vector<64x32xf32>
    %c0_185 = arith.constant 0 : index
    %c0_186 = arith.constant 0 : index
    %242 = vector.load %arg17[%c0_185, %c0_186] : memref<1x32xf32, #tpu.memory_space<vmem>>, vector<1x32xf32>
    %243 = vector.broadcast %242 : vector<1x32xf32> to vector<64x32xf32>
    %244 = arith.addf %241, %243 : vector<64x32xf32>
    %245 = arith.addf %244, %216 : vector<64x32xf32>
    %c0_187 = arith.constant 0 : index
    %c0_188 = arith.constant 0 : index
    %c0_189 = arith.constant 0 : index
    %246 = vector.load %arg18[%c0_187, %c0_188, %c0_189] : memref<1x64x32xf32, #tpu.memory_space<vmem>>, vector<1x64x32xf32>
    %247 = vector.shape_cast %246 : vector<1x64x32xf32> to vector<64x32xf32>
    %248 = vector.shape_cast %245 : vector<64x32xf32> to vector<1x64x32xf32>
    tpu.vector_store %arg18[%c0_187, %c0_188, %c0_189], %248 {strides = array<i32>} : memref<1x64x32xf32, #tpu.memory_space<vmem>>, vector<1x64x32xf32>,
    return
  }
  func.func @transform_0(%arg0: i32) -> (i32, i32, i32) {
    %c0_i32 = arith.constant 0 : i32
    %c0_i32_0 = arith.constant 0 : i32
    %c0_i32_1 = arith.constant 0 : i32
    return %arg0, %c0_i32, %c0_i32_0 : i32, i32, i32
  }
  func.func @transform_1(%arg0: i32) -> (i32, i32) {
    %c0_i32 = arith.constant 0 : i32
    %c0_i32_0 = arith.constant 0 : i32
    %c0_i32_1 = arith.constant 0 : i32
    return %c0_i32, %c0_i32_0 : i32, i32
  }
  func.func @transform_2(%arg0: i32) -> (i32, i32) {
    %c0_i32 = arith.constant 0 : i32
    %c0_i32_0 = arith.constant 0 : i32
    %c0_i32_1 = arith.constant 0 : i32
    return %c0_i32, %c0_i32_0 : i32, i32
  }
  func.func @transform_3(%arg0: i32) -> (i32, i32) {
    %c0_i32 = arith.constant 0 : i32
    %c0_i32_0 = arith.constant 0 : i32
    %c0_i32_1 = arith.constant 0 : i32
    return %c0_i32, %c0_i32_0 : i32, i32
  }
  func.func @transform_4(%arg0: i32) -> (i32, i32) {
    %c0_i32 = arith.constant 0 : i32
    %c0_i32_0 = arith.constant 0 : i32
    %c0_i32_1 = arith.constant 0 : i32
    return %c0_i32, %c0_i32_0 : i32, i32
  }
  func.func @transform_5(%arg0: i32) -> (i32, i32, i32) {
    %c0_i32 = arith.constant 0 : i32
    %c0_i32_0 = arith.constant 0 : i32
    %c0_i32_1 = arith.constant 0 : i32
    %c0_i32_2 = arith.constant 0 : i32
    return %c0_i32, %c0_i32_0, %c0_i32_1 : i32, i32, i32
  }
  func.func @transform_6(%arg0: i32) -> (i32, i32) {
    %c0_i32 = arith.constant 0 : i32
    %c0_i32_0 = arith.constant 0 : i32
    %c0_i32_1 = arith.constant 0 : i32
    return %c0_i32, %c0_i32_0 : i32, i32
  }
  func.func @transform_7(%arg0: i32) -> (i32, i32) {
    %c0_i32 = arith.constant 0 : i32
    %c0_i32_0 = arith.constant 0 : i32
    %c0_i32_1 = arith.constant 0 : i32
    return %c0_i32, %c0_i32_0 : i32, i32
  }
  func.func @transform_8(%arg0: i32) -> (i32, i32) {
    %c0_i32 = arith.constant 0 : i32
    %c0_i32_0 = arith.constant 0 : i32
    %c0_i32_1 = arith.constant 0 : i32
    return %c0_i32, %c0_i32_0 : i32, i32
  }
  func.func @transform_9(%arg0: i32) -> (i32, i32) {
    %c0_i32 = arith.constant 0 : i32
    %c0_i32_0 = arith.constant 0 : i32
    %c0_i32_1 = arith.constant 0 : i32
    return %c0_i32, %c0_i32_0 : i32, i32
  }
  func.func @transform_10(%arg0: i32) -> (i32, i32, i32) {
    %c0_i32 = arith.constant 0 : i32
    %c0_i32_0 = arith.constant 0 : i32
    %c0_i32_1 = arith.constant 0 : i32
    %c0_i32_2 = arith.constant 0 : i32
    return %c0_i32, %c0_i32_0, %c0_i32_1 : i32, i32, i32
  }
  func.func @transform_11(%arg0: i32) -> (i32, i32) {
    %c0_i32 = arith.constant 0 : i32
    %c0_i32_0 = arith.constant 0 : i32
    %c0_i32_1 = arith.constant 0 : i32
    return %c0_i32, %c0_i32_0 : i32, i32
  }
  func.func @transform_12(%arg0: i32) -> (i32, i32) {
    %c0_i32 = arith.constant 0 : i32
    %c0_i32_0 = arith.constant 0 : i32
    %c0_i32_1 = arith.constant 0 : i32
    return %c0_i32, %c0_i32_0 : i32, i32
  }
  func.func @transform_13(%arg0: i32) -> (i32, i32) {
    %c0_i32 = arith.constant 0 : i32
    %c0_i32_0 = arith.constant 0 : i32
    %c0_i32_1 = arith.constant 0 : i32
    return %c0_i32, %c0_i32_0 : i32, i32
  }
  func.func @transform_14(%arg0: i32) -> (i32, i32) {
    %c0_i32 = arith.constant 0 : i32
    %c0_i32_0 = arith.constant 0 : i32
    %c0_i32_1 = arith.constant 0 : i32
    return %c0_i32, %c0_i32_0 : i32, i32
  }
  func.func @transform_15(%arg0: i32) -> (i32, i32) {
    %c0_i32 = arith.constant 0 : i32
    %c0_i32_0 = arith.constant 0 : i32
    %c0_i32_1 = arith.constant 0 : i32
    return %c0_i32, %c0_i32_0 : i32, i32
  }
  func.func @transform_16(%arg0: i32) -> (i32, i32) {
    %c0_i32 = arith.constant 0 : i32
    %c0_i32_0 = arith.constant 0 : i32
    %c0_i32_1 = arith.constant 0 : i32
    return %c0_i32, %c0_i32_0 : i32, i32
  }
  func.func @transform_17(%arg0: i32) -> (i32, i32, i32) {
    %c0_i32 = arith.constant 0 : i32
    %c0_i32_0 = arith.constant 0 : i32
    %c0_i32_1 = arith.constant 0 : i32
    return %arg0, %c0_i32, %c0_i32_0 : i32, i32, i32
  }
}

</mosaic_0001>

<llo_original>
// kernel: tpu_custom_call.1
$region0: #{tpu_custom_call.1}
  #allocation0 [shape = 'u32[]', space=smem, size = 0x4, offset = 0x4, fixed_abs, tag = 'smem constant byte address 0x4 - core index']
  #allocation1 [shape = 'u32[144,128]{1,0:T(1,128)}', space=vmem, size = 0x12000, scoped, tag = 'internal scratch']
  #allocation2 [shape = 'bf16[400,48]{1,0:T(16,128)(2,1)}', space=vmem, size = 0x19000, scoped, tag = 'scratch operand']
  #allocation3 [shape = 'bf16[400,96]{1,0:T(16,128)(2,1)}', space=vmem, size = 0x19000, scoped, tag = 'scratch operand']
  #allocation4 [shape = 'f32[64,32]{1,0:T(8,128)}', space=vmem, size = 0x8000, scoped, tag = 'scratch operand']
  %s0 = inlined_call_operand.vmem [shape: f32[2,288,16], index: 0, kind: input, shape index: {}]
  %s1 = inlined_call_operand.vmem [shape: f32[288,1], index: 1, kind: input, shape index: {}]
  %s2 = inlined_call_operand.vmem [shape: f32[1,16], index: 2, kind: input, shape index: {}]
  %s3 = inlined_call_operand.vmem [shape: f32[1,16], index: 3, kind: input, shape index: {}]
  %s4 = inlined_call_operand.vmem [shape: f32[16,16], index: 4, kind: input, shape index: {}]
  %s5 = inlined_call_operand.vmem [shape: bf16[9,48,32], index: 5, kind: input, shape index: {}]
  %s6 = inlined_call_operand.vmem [shape: f32[1,32], index: 6, kind: input, shape index: {}]
  %s7 = inlined_call_operand.vmem [shape: f32[1,32], index: 7, kind: input, shape index: {}]
  %s8 = inlined_call_operand.vmem [shape: f32[1,32], index: 8, kind: input, shape index: {}]
  %s9 = inlined_call_operand.vmem [shape: f32[32,32], index: 9, kind: input, shape index: {}]
  %s10 = inlined_call_operand.vmem [shape: bf16[9,96,32], index: 10, kind: input, shape index: {}]
  %s11 = inlined_call_operand.vmem [shape: f32[1,32], index: 11, kind: input, shape index: {}]
  %s12 = inlined_call_operand.vmem [shape: bf16[16,32], index: 12, kind: input, shape index: {}]
  %s13 = inlined_call_operand.vmem [shape: f32[1,32], index: 13, kind: input, shape index: {}]
  %s14 = inlined_call_operand.vmem [shape: bf16[32,96], index: 14, kind: input, shape index: {}]
  %s15 = inlined_call_operand.vmem [shape: f32[1,96], index: 15, kind: input, shape index: {}]
  %s16 = inlined_call_operand.vmem [shape: f32[1,32], index: 16, kind: input, shape index: {}]
  %s17 = inlined_call_operand.vmem [shape: f32[2,64,32], index: 17, kind: output, shape index: {}]
  %s18 = sld [smem:[#allocation0]]
  $region101: #{tpu_custom_call.1} parent=0
    _
  %s20 = ssub.s32 1, %s18
  %s21 = scalar_select 0, %s20, %s18
  loop: start=0, step=1, limit=4
  $region2: #{tpu_custom_call.1} parent=0 // loop_pre_header
    _
  $region3: #{tpu_custom_call.1} parent=0 // loop_header
    %s23 = sphi 0, %s27
    %p24 = scmp.ge.s32.totalorder %s23, 4
    %s33 = sphi 0, %s35
    %s36 = sphi 0, %s33
    %s37 = sphi 0, %s36
    %s53 = sphi 0, %s37
    %s57 = sphi 0, %s57
    %s59 = sphi 0, %s57
    %s60 = sphi 0, %s59
    %s74 = sphi 0, %s60
    %s78 = sphi 0, %s78
    %s80 = sphi 0, %s78
    %s81 = sphi 0, %s80
    %s95 = sphi 0, %s81
    %s99 = sphi 0, %s99
    %s101 = sphi 0, %s99
    %s102 = sphi 0, %s101
    %s116 = sphi 0, %s102
    %s120 = sphi 0, %s120
    %s122 = sphi 0, %s120
    %s123 = sphi 0, %s122
    %s137 = sphi 0, %s123
    %s141 = sphi 0, %s141
    %s143 = sphi 0, %s141
    %s144 = sphi 0, %s143
    %s158 = sphi 0, %s144
    %s162 = sphi 0, %s162
    %s164 = sphi 0, %s162
    %s165 = sphi 0, %s164
    %s179 = sphi 0, %s165
    %s183 = sphi 0, %s183
    %s185 = sphi 0, %s183
    %s186 = sphi 0, %s185
    %s200 = sphi 0, %s186
    %s204 = sphi 0, %s204
    %s206 = sphi 0, %s204
    %s207 = sphi 0, %s206
    %s221 = sphi 0, %s207
    %s225 = sphi 0, %s225
    %s227 = sphi 0, %s225
    %s228 = sphi 0, %s227
    %s242 = sphi 0, %s228
    %s246 = sphi 0, %s246
    %s248 = sphi 0, %s246
    %s249 = sphi 0, %s248
    %s263 = sphi 0, %s249
    %s267 = sphi 0, %s267
    %s269 = sphi 0, %s267
    %s270 = sphi 0, %s269
    %s284 = sphi 0, %s270
    %s288 = sphi 0, %s288
    %s290 = sphi 0, %s288
    %s291 = sphi 0, %s290
    %s305 = sphi 0, %s291
    %s309 = sphi 0, %s309
    %s311 = sphi 0, %s309
    %s312 = sphi 0, %s311
    %s326 = sphi 0, %s312
    %s330 = sphi 0, %s330
    %s332 = sphi 0, %s330
    %s333 = sphi 0, %s332
    %s347 = sphi 0, %s333
    %s351 = sphi 0, %s351
    %s353 = sphi 0, %s351
    %s354 = sphi 0, %s353
    %s368 = sphi 0, %s354
    %s372 = sphi 0, %s372
    %s374 = sphi 0, %s372
    %s375 = sphi 0, %s374
    %s389 = sphi 0, %s375
    %s395 = sphi 0, %s397
    %s398 = sphi 0, %s395
    %s399 = sphi 0, %s398
    %s415 = sphi 0, %s399
  $region4: #{tpu_custom_call.1} parent=0 // loop_header_branch
    %26 = sbr.rel (%p24) target = $region8
  $region5: #{tpu_custom_call.1} parent=0 // loop_body
    %s28 = ssub.s32 %s23, 1
    %s29 = ssub.s32 %s23, 2
    %s30 = sadd.s32 %s23, 1
    %s31 = ssub.s32 %s23, %s30
    %p32 = scmp.eq.s32.totalorder %s31, 0
    %s34 = sadd.s32 %s33, 1
    %s35 = scalar_select %p32, %s33, %s34
    %p38 = pneg %p32
    %p39 = scmp.eq.s32.totalorder %s23, 1
    %p40 = por %p38, %p39
    %p41 = scmp.ne.s32.totalorder %s33, %s36
    %p42 = scmp.eq.s32.totalorder %s23, 0
    %p43 = por %p41, %p42
    %p44 = scmp.ne.s32.totalorder %s33, %s36
    %p45 = scmp.eq.s32.totalorder %s28, 1
    %p46 = por %p44, %p45
    %p47 = scmp.ne.s32.totalorder %s36, %s37
    %p48 = scmp.eq.s32.totalorder %s28, 0
    %p49 = por %p47, %p48
    %p50 = scmp.ne.s32.totalorder %s36, %s37
    %p51 = scmp.eq.s32.totalorder %s29, 1
    %p52 = por %p50, %p51
    %p54 = scmp.ne.s32.totalorder %s37, %s53
    %p55 = scmp.eq.s32.totalorder %s29, 0
    %p56 = por %p54, %p55
    %s58 = sadd.s32 %s57, 1
    %p61 = scmp.eq.s32.totalorder %s23, 1
    %p62 = scmp.ne.s32.totalorder %s57, %s59
    %p63 = scmp.eq.s32.totalorder %s23, 0
    %p64 = por %p62, %p63
    %p65 = scmp.ne.s32.totalorder %s57, %s59
    %p66 = scmp.eq.s32.totalorder %s28, 1
    %p67 = por %p65, %p66
    %p68 = scmp.ne.s32.totalorder %s59, %s60
    %p69 = scmp.eq.s32.totalorder %s28, 0
    %p70 = por %p68, %p69
    %p71 = scmp.ne.s32.totalorder %s59, %s60
    %p72 = scmp.eq.s32.totalorder %s29, 1
    %p73 = por %p71, %p72
    %p75 = scmp.ne.s32.totalorder %s60, %s74
    %p76 = scmp.eq.s32.totalorder %s29, 0
    %p77 = por %p75, %p76
    %s79 = sadd.s32 %s78, 1
    %p82 = scmp.eq.s32.totalorder %s23, 1
    %p83 = scmp.ne.s32.totalorder %s78, %s80
    %p84 = scmp.eq.s32.totalorder %s23, 0
    %p85 = por %p83, %p84
    %p86 = scmp.ne.s32.totalorder %s78, %s80
    %p87 = scmp.eq.s32.totalorder %s28, 1
    %p88 = por %p86, %p87
    %p89 = scmp.ne.s32.totalorder %s80, %s81
    %p90 = scmp.eq.s32.totalorder %s28, 0
    %p91 = por %p89, %p90
    %p92 = scmp.ne.s32.totalorder %s80, %s81
    %p93 = scmp.eq.s32.totalorder %s29, 1
    %p94 = por %p92, %p93
    %p96 = scmp.ne.s32.totalorder %s81, %s95
    %p97 = scmp.eq.s32.totalorder %s29, 0
    %p98 = por %p96, %p97
    %s100 = sadd.s32 %s99, 1
    %p103 = scmp.eq.s32.totalorder %s23, 1
    %p104 = scmp.ne.s32.totalorder %s99, %s101
    %p105 = scmp.eq.s32.totalorder %s23, 0
    %p106 = por %p104, %p105
    %p107 = scmp.ne.s32.totalorder %s99, %s101
    %p108 = scmp.eq.s32.totalorder %s28, 1
    %p109 = por %p107, %p108
    %p110 = scmp.ne.s32.totalorder %s101, %s102
    %p111 = scmp.eq.s32.totalorder %s28, 0
    %p112 = por %p110, %p111
    %p113 = scmp.ne.s32.totalorder %s101, %s102
    %p114 = scmp.eq.s32.totalorder %s29, 1
    %p115 = por %p113, %p114
    %p117 = scmp.ne.s32.totalorder %s102, %s116
    %p118 = scmp.eq.s32.totalorder %s29, 0
    %p119 = por %p117, %p118
    %s121 = sadd.s32 %s120, 1
    %p124 = scmp.eq.s32.totalorder %s23, 1
    %p125 = scmp.ne.s32.totalorder %s120, %s122
    %p126 = scmp.eq.s32.totalorder %s23, 0
    %p127 = por %p125, %p126
    %p128 = scmp.ne.s32.totalorder %s120, %s122
    %p129 = scmp.eq.s32.totalorder %s28, 1
    %p130 = por %p128, %p129
    %p131 = scmp.ne.s32.totalorder %s122, %s123
    %p132 = scmp.eq.s32.totalorder %s28, 0
    %p133 = por %p131, %p132
    %p134 = scmp.ne.s32.totalorder %s122, %s123
    %p135 = scmp.eq.s32.totalorder %s29, 1
    %p136 = por %p134, %p135
    %p138 = scmp.ne.s32.totalorder %s123, %s137
    %p139 = scmp.eq.s32.totalorder %s29, 0
    %p140 = por %p138, %p139
    %s142 = sadd.s32 %s141, 1
    %p145 = scmp.eq.s32.totalorder %s23, 1
    %p146 = scmp.ne.s32.totalorder %s141, %s143
    %p147 = scmp.eq.s32.totalorder %s23, 0
    %p148 = por %p146, %p147
    %p149 = scmp.ne.s32.totalorder %s141, %s143
    %p150 = scmp.eq.s32.totalorder %s28, 1
    %p151 = por %p149, %p150
    %p152 = scmp.ne.s32.totalorder %s143, %s144
    %p153 = scmp.eq.s32.totalorder %s28, 0
    %p154 = por %p152, %p153
    %p155 = scmp.ne.s32.totalorder %s143, %s144
    %p156 = scmp.eq.s32.totalorder %s29, 1
    %p157 = por %p155, %p156
    %p159 = scmp.ne.s32.totalorder %s144, %s158
    %p160 = scmp.eq.s32.totalorder %s29, 0
    %p161 = por %p159, %p160
    %s163 = sadd.s32 %s162, 1
    %p166 = scmp.eq.s32.totalorder %s23, 1
    %p167 = scmp.ne.s32.totalorder %s162, %s164
    %p168 = scmp.eq.s32.totalorder %s23, 0
    %p169 = por %p167, %p168
    %p170 = scmp.ne.s32.totalorder %s162, %s164
    %p171 = scmp.eq.s32.totalorder %s28, 1
    %p172 = por %p170, %p171
    %p173 = scmp.ne.s32.totalorder %s164, %s165
    %p174 = scmp.eq.s32.totalorder %s28, 0
    %p175 = por %p173, %p174
    %p176 = scmp.ne.s32.totalorder %s164, %s165
    %p177 = scmp.eq.s32.totalorder %s29, 1
    %p178 = por %p176, %p177
    %p180 = scmp.ne.s32.totalorder %s165, %s179
    %p181 = scmp.eq.s32.totalorder %s29, 0
    %p182 = por %p180, %p181
    %s184 = sadd.s32 %s183, 1
    %p187 = scmp.eq.s32.totalorder %s23, 1
    %p188 = scmp.ne.s32.totalorder %s183, %s185
    %p189 = scmp.eq.s32.totalorder %s23, 0
    %p190 = por %p188, %p189
    %p191 = scmp.ne.s32.totalorder %s183, %s185
    %p192 = scmp.eq.s32.totalorder %s28, 1
    %p193 = por %p191, %p192
    %p194 = scmp.ne.s32.totalorder %s185, %s186
    %p195 = scmp.eq.s32.totalorder %s28, 0
    %p196 = por %p194, %p195
    %p197 = scmp.ne.s32.totalorder %s185, %s186
    %p198 = scmp.eq.s32.totalorder %s29, 1
    %p199 = por %p197, %p198
    %p201 = scmp.ne.s32.totalorder %s186, %s200
    %p202 = scmp.eq.s32.totalorder %s29, 0
    %p203 = por %p201, %p202
    %s205 = sadd.s32 %s204, 1
    %p208 = scmp.eq.s32.totalorder %s23, 1
    %p209 = scmp.ne.s32.totalorder %s204, %s206
    %p210 = scmp.eq.s32.totalorder %s23, 0
    %p211 = por %p209, %p210
    %p212 = scmp.ne.s32.totalorder %s204, %s206
    %p213 = scmp.eq.s32.totalorder %s28, 1
    %p214 = por %p212, %p213
    %p215 = scmp.ne.s32.totalorder %s206, %s207
    %p216 = scmp.eq.s32.totalorder %s28, 0
    %p217 = por %p215, %p216
    %p218 = scmp.ne.s32.totalorder %s206, %s207
    %p219 = scmp.eq.s32.totalorder %s29, 1
    %p220 = por %p218, %p219
    %p222 = scmp.ne.s32.totalorder %s207, %s221
    %p223 = scmp.eq.s32.totalorder %s29, 0
    %p224 = por %p222, %p223
    %s226 = sadd.s32 %s225, 1
    %p229 = scmp.eq.s32.totalorder %s23, 1
    %p230 = scmp.ne.s32.totalorder %s225, %s227
    %p231 = scmp.eq.s32.totalorder %s23, 0
    %p232 = por %p230, %p231
    %p233 = scmp.ne.s32.totalorder %s225, %s227
    %p234 = scmp.eq.s32.totalorder %s28, 1
    %p235 = por %p233, %p234
    %p236 = scmp.ne.s32.totalorder %s227, %s228
    %p237 = scmp.eq.s32.totalorder %s28, 0
    %p238 = por %p236, %p237
    %p239 = scmp.ne.s32.totalorder %s227, %s228
    %p240 = scmp.eq.s32.totalorder %s29, 1
    %p241 = por %p239, %p240
    %p243 = scmp.ne.s32.totalorder %s228, %s242
    %p244 = scmp.eq.s32.totalorder %s29, 0
    %p245 = por %p243, %p244
    %s247 = sadd.s32 %s246, 1
    %p250 = scmp.eq.s32.totalorder %s23, 1
    %p251 = scmp.ne.s32.totalorder %s246, %s248
    %p252 = scmp.eq.s32.totalorder %s23, 0
    %p253 = por %p251, %p252
    %p254 = scmp.ne.s32.totalorder %s246, %s248
    %p255 = scmp.eq.s32.totalorder %s28, 1
    %p256 = por %p254, %p255
    %p257 = scmp.ne.s32.totalorder %s248, %s249
    %p258 = scmp.eq.s32.totalorder %s28, 0
    %p259 = por %p257, %p258
    %p260 = scmp.ne.s32.totalorder %s248, %s249
    %p261 = scmp.eq.s32.totalorder %s29, 1
    %p262 = por %p260, %p261
    %p264 = scmp.ne.s32.totalorder %s249, %s263
    %p265 = scmp.eq.s32.totalorder %s29, 0
    %p266 = por %p264, %p265
    %s268 = sadd.s32 %s267, 1
    %p271 = scmp.eq.s32.totalorder %s23, 1
    %p272 = scmp.ne.s32.totalorder %s267, %s269
    %p273 = scmp.eq.s32.totalorder %s23, 0
    %p274 = por %p272, %p273
    %p275 = scmp.ne.s32.totalorder %s267, %s269
    %p276 = scmp.eq.s32.totalorder %s28, 1
    %p277 = por %p275, %p276
    %p278 = scmp.ne.s32.totalorder %s269, %s270
    %p279 = scmp.eq.s32.totalorder %s28, 0
    %p280 = por %p278, %p279
    %p281 = scmp.ne.s32.totalorder %s269, %s270
    %p282 = scmp.eq.s32.totalorder %s29, 1
    %p283 = por %p281, %p282
    %p285 = scmp.ne.s32.totalorder %s270, %s284
    %p286 = scmp.eq.s32.totalorder %s29, 0
    %p287 = por %p285, %p286
    %s289 = sadd.s32 %s288, 1
    %p292 = scmp.eq.s32.totalorder %s23, 1
    %p293 = scmp.ne.s32.totalorder %s288, %s290
    %p294 = scmp.eq.s32.totalorder %s23, 0
    %p295 = por %p293, %p294
    %p296 = scmp.ne.s32.totalorder %s288, %s290
    %p297 = scmp.eq.s32.totalorder %s28, 1
    %p298 = por %p296, %p297
    %p299 = scmp.ne.s32.totalorder %s290, %s291
    %p300 = scmp.eq.s32.totalorder %s28, 0
    %p301 = por %p299, %p300
    %p302 = scmp.ne.s32.totalorder %s290, %s291
    %p303 = scmp.eq.s32.totalorder %s29, 1
    %p304 = por %p302, %p303
    %p306 = scmp.ne.s32.totalorder %s291, %s305
    %p307 = scmp.eq.s32.totalorder %s29, 0
    %p308 = por %p306, %p307
    %s310 = sadd.s32 %s309, 1
    %p313 = scmp.eq.s32.totalorder %s23, 1
    %p314 = scmp.ne.s32.totalorder %s309, %s311
    %p315 = scmp.eq.s32.totalorder %s23, 0
    %p316 = por %p314, %p315
    %p317 = scmp.ne.s32.totalorder %s309, %s311
    %p318 = scmp.eq.s32.totalorder %s28, 1
    %p319 = por %p317, %p318
    %p320 = scmp.ne.s32.totalorder %s311, %s312
    %p321 = scmp.eq.s32.totalorder %s28, 0
    %p322 = por %p320, %p321
    %p323 = scmp.ne.s32.totalorder %s311, %s312
    %p324 = scmp.eq.s32.totalorder %s29, 1
    %p325 = por %p323, %p324
    %p327 = scmp.ne.s32.totalorder %s312, %s326
    %p328 = scmp.eq.s32.totalorder %s29, 0
    %p329 = por %p327, %p328
    %s331 = sadd.s32 %s330, 1
    %p334 = scmp.eq.s32.totalorder %s23, 1
    %p335 = scmp.ne.s32.totalorder %s330, %s332
    %p336 = scmp.eq.s32.totalorder %s23, 0
    %p337 = por %p335, %p336
    %p338 = scmp.ne.s32.totalorder %s330, %s332
    %p339 = scmp.eq.s32.totalorder %s28, 1
    %p340 = por %p338, %p339
    %p341 = scmp.ne.s32.totalorder %s332, %s333
    %p342 = scmp.eq.s32.totalorder %s28, 0
    %p343 = por %p341, %p342
    %p344 = scmp.ne.s32.totalorder %s332, %s333
    %p345 = scmp.eq.s32.totalorder %s29, 1
    %p346 = por %p344, %p345
    %p348 = scmp.ne.s32.totalorder %s333, %s347
    %p349 = scmp.eq.s32.totalorder %s29, 0
    %p350 = por %p348, %p349
    %s352 = sadd.s32 %s351, 1
    %p355 = scmp.eq.s32.totalorder %s23, 1
    %p356 = scmp.ne.s32.totalorder %s351, %s353
    %p357 = scmp.eq.s32.totalorder %s23, 0
    %p358 = por %p356, %p357
    %p359 = scmp.ne.s32.totalorder %s351, %s353
    %p360 = scmp.eq.s32.totalorder %s28, 1
    %p361 = por %p359, %p360
    %p362 = scmp.ne.s32.totalorder %s353, %s354
    %p363 = scmp.eq.s32.totalorder %s28, 0
    %p364 = por %p362, %p363
    %p365 = scmp.ne.s32.totalorder %s353, %s354
    %p366 = scmp.eq.s32.totalorder %s29, 1
    %p367 = por %p365, %p366
    %p369 = scmp.ne.s32.totalorder %s354, %s368
    %p370 = scmp.eq.s32.totalorder %s29, 0
    %p371 = por %p369, %p370
    %s373 = sadd.s32 %s372, 1
    %p376 = scmp.eq.s32.totalorder %s23, 1
    %p377 = scmp.ne.s32.totalorder %s372, %s374
    %p378 = scmp.eq.s32.totalorder %s23, 0
    %p379 = por %p377, %p378
    %p380 = scmp.ne.s32.totalorder %s372, %s374
    %p381 = scmp.eq.s32.totalorder %s28, 1
    %p382 = por %p380, %p381
    %p383 = scmp.ne.s32.totalorder %s374, %s375
    %p384 = scmp.eq.s32.totalorder %s28, 0
    %p385 = por %p383, %p384
    %p386 = scmp.ne.s32.totalorder %s374, %s375
    %p387 = scmp.eq.s32.totalorder %s29, 1
    %p388 = por %p386, %p387
    %p390 = scmp.ne.s32.totalorder %s375, %s389
    %p391 = scmp.eq.s32.totalorder %s29, 0
    %p392 = por %p390, %p391
    %s393 = ssub.s32 %s23, %s30
    %p394 = scmp.eq.s32.totalorder %s393, 0
    %s396 = sadd.s32 %s395, 1
    %s397 = scalar_select %p394, %s395, %s396
    %p400 = pneg %p394
    %p401 = scmp.eq.s32.totalorder %s23, 1
    %p402 = por %p400, %p401
    %p403 = scmp.ne.s32.totalorder %s395, %s398
    %p404 = scmp.eq.s32.totalorder %s23, 0
    %p405 = por %p403, %p404
    %p406 = scmp.ne.s32.totalorder %s395, %s398
    %p407 = scmp.eq.s32.totalorder %s28, 1
    %p408 = por %p406, %p407
    %p409 = scmp.ne.s32.totalorder %s398, %s399
    %p410 = scmp.eq.s32.totalorder %s28, 0
    %p411 = por %p409, %p410
    %p412 = scmp.ne.s32.totalorder %s398, %s399
    %p413 = scmp.eq.s32.totalorder %s29, 1
    %p414 = por %p412, %p413
    %p416 = scmp.ne.s32.totalorder %s399, %s415
    %p417 = scmp.eq.s32.totalorder %s29, 0
    %p418 = por %p416, %p417
    %p419 = scmp.le.s32.totalorder 1, %s23
    %p420 = scmp.lt.s32.totalorder %s23, 3
    %p421 = pnand %p419, %p420
    %p422 = pneg %p421
    // Predicated region
    $region9: #{tpu_custom_call.1} parent=5 // pred_check
      _
    $region10: #{tpu_custom_call.1} parent=5 // pred_check_branch
      %424 = sbr.rel (%p421) target = $region12
    $region11: #{tpu_custom_call.1} parent=5 // pred_region
      %s425 = ssub.s32 %s23, 1
      // Predicated region
      $region13: #{tpu_custom_call.1} parent=11 // pred_check
        %p426 = pneg %p70
      $region14: #{tpu_custom_call.1} parent=11 // pred_check_branch
        %428 = sbr.rel (%p426) target = $region16
      $region15: #{tpu_custom_call.1} parent=11 // pred_region
        _
      $region16: #{tpu_custom_call.1} parent=11 // pred_fallthru
        _
      // Predicated region
      $region17: #{tpu_custom_call.1} parent=11 // pred_check
        %p429 = pneg %p91
      $region18: #{tpu_custom_call.1} parent=11 // pred_check_branch
        %431 = sbr.rel (%p429) target = $region20
      $region19: #{tpu_custom_call.1} parent=11 // pred_region
        _
      $region20: #{tpu_custom_call.1} parent=11 // pred_fallthru
        _
      // Predicated region
      $region21: #{tpu_custom_call.1} parent=11 // pred_check
        %p432 = pneg %p112
      $region22: #{tpu_custom_call.1} parent=11 // pred_check_branch
        %434 = sbr.rel (%p432) target = $region24
      $region23: #{tpu_custom_call.1} parent=11 // pred_region
        _
      $region24: #{tpu_custom_call.1} parent=11 // pred_fallthru
        _
      // Predicated region
      $region25: #{tpu_custom_call.1} parent=11 // pred_check
        %p435 = pneg %p133
      $region26: #{tpu_custom_call.1} parent=11 // pred_check_branch
        %437 = sbr.rel (%p435) target = $region28
      $region27: #{tpu_custom_call.1} parent=11 // pred_region
        _
      $region28: #{tpu_custom_call.1} parent=11 // pred_fallthru
        _
      // Predicated region
      $region29: #{tpu_custom_call.1} parent=11 // pred_check
        %p438 = pneg %p154
      $region30: #{tpu_custom_call.1} parent=11 // pred_check_branch
        %440 = sbr.rel (%p438) target = $region32
      $region31: #{tpu_custom_call.1} parent=11 // pred_region
        _
      $region32: #{tpu_custom_call.1} parent=11 // pred_fallthru
        _
      // Predicated region
      $region33: #{tpu_custom_call.1} parent=11 // pred_check
        %p441 = pneg %p175
      $region34: #{tpu_custom_call.1} parent=11 // pred_check_branch
        %443 = sbr.rel (%p441) target = $region36
      $region35: #{tpu_custom_call.1} parent=11 // pred_region
        _
      $region36: #{tpu_custom_call.1} parent=11 // pred_fallthru
        _
      // Predicated region
      $region37: #{tpu_custom_call.1} parent=11 // pred_check
        %p444 = pneg %p196
      $region38: #{tpu_custom_call.1} parent=11 // pred_check_branch
        %446 = sbr.rel (%p444) target = $region40
      $region39: #{tpu_custom_call.1} parent=11 // pred_region
        _
      $region40: #{tpu_custom_call.1} parent=11 // pred_fallthru
        _
      // Predicated region
      $region41: #{tpu_custom_call.1} parent=11 // pred_check
        %p447 = pneg %p217
      $region42: #{tpu_custom_call.1} parent=11 // pred_check_branch
        %449 = sbr.rel (%p447) target = $region44
      $region43: #{tpu_custom_call.1} parent=11 // pred_region
        _
      $region44: #{tpu_custom_call.1} parent=11 // pred_fallthru
        _
      // Predicated region
      $region45: #{tpu_custom_call.1} parent=11 // pred_check
        %p450 = pneg %p238
      $region46: #{tpu_custom_call.1} parent=11 // pred_check_branch
        %452 = sbr.rel (%p450) target = $region48
      $region47: #{tpu_custom_call.1} parent=11 // pred_region
        _
      $region48: #{tpu_custom_call.1} parent=11 // pred_fallthru
        _
      // Predicated region
      $region49: #{tpu_custom_call.1} parent=11 // pred_check
        %p453 = pneg %p259
      $region50: #{tpu_custom_call.1} parent=11 // pred_check_branch
        %455 = sbr.rel (%p453) target = $region52
      $region51: #{tpu_custom_call.1} parent=11 // pred_region
        _
      $region52: #{tpu_custom_call.1} parent=11 // pred_fallthru
        _
      // Predicated region
      $region53: #{tpu_custom_call.1} parent=11 // pred_check
        %p456 = pneg %p280
      $region54: #{tpu_custom_call.1} parent=11 // pred_check_branch
        %458 = sbr.rel (%p456) target = $region56
      $region55: #{tpu_custom_call.1} parent=11 // pred_region
        _
      $region56: #{tpu_custom_call.1} parent=11 // pred_fallthru
        _
      // Predicated region
      $region57: #{tpu_custom_call.1} parent=11 // pred_check
        %p459 = pneg %p301
      $region58: #{tpu_custom_call.1} parent=11 // pred_check_branch
        %461 = sbr.rel (%p459) target = $region60
      $region59: #{tpu_custom_call.1} parent=11 // pred_region
        _
      $region60: #{tpu_custom_call.1} parent=11 // pred_fallthru
        _
      // Predicated region
      $region61: #{tpu_custom_call.1} parent=11 // pred_check
        %p462 = pneg %p322
      $region62: #{tpu_custom_call.1} parent=11 // pred_check_branch
        %464 = sbr.rel (%p462) target = $region64
      $region63: #{tpu_custom_call.1} parent=11 // pred_region
        _
      $region64: #{tpu_custom_call.1} parent=11 // pred_fallthru
        _
      // Predicated region
      $region65: #{tpu_custom_call.1} parent=11 // pred_check
        %p465 = pneg %p343
      $region66: #{tpu_custom_call.1} parent=11 // pred_check_branch
        %467 = sbr.rel (%p465) target = $region68
      $region67: #{tpu_custom_call.1} parent=11 // pred_region
        _
      $region68: #{tpu_custom_call.1} parent=11 // pred_fallthru
        _
      // Predicated region
      $region69: #{tpu_custom_call.1} parent=11 // pred_check
        %p468 = pneg %p364
      $region70: #{tpu_custom_call.1} parent=11 // pred_check_branch
        %470 = sbr.rel (%p468) target = $region72
      $region71: #{tpu_custom_call.1} parent=11 // pred_region
        _
      $region72: #{tpu_custom_call.1} parent=11 // pred_fallthru
        _
      // Predicated region
      $region73: #{tpu_custom_call.1} parent=11 // pred_check
        %p471 = pneg %p385
      $region74: #{tpu_custom_call.1} parent=11 // pred_check_branch
        %473 = sbr.rel (%p471) target = $region76
      $region75: #{tpu_custom_call.1} parent=11 // pred_region
        _
      $region76: #{tpu_custom_call.1} parent=11 // pred_fallthru
        _
    $region12: #{tpu_custom_call.1} parent=5 // pred_fallthru
      _
    %p474 = scmp.lt.s32.totalorder %s23, 2
    // Predicated region
    $region77: #{tpu_custom_call.1} parent=5 // pred_check
      %p475 = pneg %p474
    $region78: #{tpu_custom_call.1} parent=5 // pred_check_branch
      %477 = sbr.rel (%p475) target = $region80
    $region79: #{tpu_custom_call.1} parent=5 // pred_region
      // Predicated region
      $region81: #{tpu_custom_call.1} parent=79 // pred_check
        %p478 = pneg %p43
      $region82: #{tpu_custom_call.1} parent=79 // pred_check_branch
        %480 = sbr.rel (%p478) target = $region84
      $region83: #{tpu_custom_call.1} parent=79 // pred_region
        %p481 = scmp.lt.s32.totalorder %s23, 1
        %s482 = scalar_select %p481, %s23, 1
        %s483 = smul.addr %s482, 36
        %s484 = smul.addr %s483, 8
        %s485 = scalar_lea.vmem %s0, %s484
      $region84: #{tpu_custom_call.1} parent=79 // pred_fallthru
        _
    $region80: #{tpu_custom_call.1} parent=5 // pred_fallthru
      _
    %p486 = scmp.le.s32.totalorder 1, %s23
    %p487 = scmp.lt.s32.totalorder %s23, 3
    %p488 = pnand %p486, %p487
    %p489 = pneg %p488
    // Predicated region
    $region85: #{tpu_custom_call.1} parent=5 // pred_check
      _
    $region86: #{tpu_custom_call.1} parent=5 // pred_check_branch
      %491 = sbr.rel (%p488) target = $region88
    $region87: #{tpu_custom_call.1} parent=5 // pred_region
      %s492 = ssub.s32 %s23, 1
      %p493 = scmp.lt.s32.totalorder %s28, 1
      %s494 = scalar_select %p493, %s28, 1
      %s495 = smul.addr %s494, 36
      %s496 = smul.addr %s495, 8
      %s497 = scalar_lea.vmem %s0, %s496
      %p498 = pneg %p49
      %p499 = pneg %p46
      %p500 = pneg %p70
      %p501 = pneg %p67
      %p502 = pneg %p91
      %p503 = pneg %p88
      %p504 = pneg %p112
      %p505 = pneg %p109
      %p506 = pneg %p133
      %p507 = pneg %p130
      %p508 = pneg %p154
      %p509 = pneg %p151
      %p510 = pneg %p175
      %p511 = pneg %p172
      %p512 = pneg %p196
      %p513 = pneg %p193
      %p514 = pneg %p217
      %p515 = pneg %p214
      %p516 = pneg %p238
      %p517 = pneg %p235
      %p518 = pneg %p259
      %p519 = pneg %p256
      %p520 = pneg %p280
      %p521 = pneg %p277
      %p522 = pneg %p301
      %p523 = pneg %p298
      %p524 = pneg %p322
      %p525 = pneg %p319
      %p526 = pneg %p343
      %p527 = pneg %p340
      %p528 = pneg %p364
      %p529 = pneg %p361
      %p530 = pneg %p385
      %p531 = pneg %p382
      %p532 = pneg %p411
      %p533 = pneg %p408
      %p534 = scmp.lt.s32.totalorder %s28, 1
      %s535 = scalar_select %p534, %s28, 1
      %s536 = smul.addr %s535, 8
      %s537 = smul.addr %s536, 8
      %s538 = scalar_lea.vmem %s17, %s537
      %p539 = scmp.lt.s32.totalorder %s28, 1
      %s540 = scalar_select %p539, %s28, 1
      %s541 = smul.addr %s540, 36
      %s542 = smul.addr %s541, 8
      %s543 = scalar_lea.vmem %s0, %s542
      %p544 = scmp.lt.s32.totalorder %s28, 1
      %s545 = scalar_select %p544, %s28, 1
      %s546 = smul.addr %s545, 8
      %s547 = smul.addr %s546, 8
      %s548 = scalar_lea.vmem %s17, %s547
      %v550 = vld [vmem:[%s1] sm:$0xff]
      %v551 = vld [vmem:[%s1 + $0x8] sm:$0xff]
      %v552 = vld [vmem:[%s1 + $0x10] sm:$0xff]
      %v553 = vld [vmem:[%s1 + $0x18] sm:$0xff]
      %v554 = vld [vmem:[%s1 + $0x20] sm:$0xff]
      %v555 = vld [vmem:[%s1 + $0x28] sm:$0xff]
      %v556 = vld [vmem:[%s1 + $0x30] sm:$0xff]
      %v557 = vld [vmem:[%s1 + $0x38] sm:$0xff]
      %v558 = vld [vmem:[%s1 + $0x40] sm:$0xff]
      %v559 = vld [vmem:[%s1 + $0x48] sm:$0xff]
      %v560 = vld [vmem:[%s1 + $0x50] sm:$0xff]
      %v561 = vld [vmem:[%s1 + $0x58] sm:$0xff]
      %v562 = vld [vmem:[%s1 + $0x60] sm:$0xff]
      %v563 = vld [vmem:[%s1 + $0x68] sm:$0xff]
      %v564 = vld [vmem:[%s1 + $0x70] sm:$0xff]
      %v565 = vld [vmem:[%s1 + $0x78] sm:$0xff]
      %v566 = vld [vmem:[%s1 + $0x80] sm:$0xff]
      %v567 = vld [vmem:[%s1 + $0x88] sm:$0xff]
      %v568 = vld [vmem:[%s1 + $0x90] sm:$0xff]
      %v569 = vld [vmem:[%s1 + $0x98] sm:$0xff]
      %v570 = vld [vmem:[%s1 + $0xa0] sm:$0xff]
      %v571 = vld [vmem:[%s1 + $0xa8] sm:$0xff]
      %v572 = vld [vmem:[%s1 + $0xb0] sm:$0xff]
      %v573 = vld [vmem:[%s1 + $0xb8] sm:$0xff]
      %v574 = vld [vmem:[%s1 + $0xc0] sm:$0xff]
      %v575 = vld [vmem:[%s1 + $0xc8] sm:$0xff]
      %v576 = vld [vmem:[%s1 + $0xd0] sm:$0xff]
      %v577 = vld [vmem:[%s1 + $0xd8] sm:$0xff]
      %v578 = vld [vmem:[%s1 + $0xe0] sm:$0xff]
      %v579 = vld [vmem:[%s1 + $0xe8] sm:$0xff]
      %v580 = vld [vmem:[%s1 + $0xf0] sm:$0xff]
      %v581 = vld [vmem:[%s1 + $0xf8] sm:$0xff]
      %v582 = vld [vmem:[%s1 + $0x100] sm:$0xff]
      %v583 = vld [vmem:[%s1 + $0x108] sm:$0xff]
      %v584 = vld [vmem:[%s1 + $0x110] sm:$0xff]
      %v585 = vld [vmem:[%s1 + $0x118] sm:$0xff]
      %vm586 = vcmask 392192
      %587 = vst.msk [vmem:[#allocation2] sm:$0xff] %vm586, 0
      %588 = vst.msk [vmem:[#allocation2 + $0x8] sm:$0xff] %vm586, 0
      %589 = vst.msk [vmem:[#allocation2 + $0x10] sm:$0xff] %vm586, 0
      %590 = vst.msk [vmem:[#allocation2 + $0x18] sm:$0xff] %vm586, 0
      %591 = vst.msk [vmem:[#allocation2 + $0xa8] sm:$0xff] %vm586, 0
      %592 = vst.msk [vmem:[#allocation2 + $0xb0] sm:$0xff] %vm586, 0
      %593 = vst.msk [vmem:[#allocation2 + $0xb8] sm:$0xff] %vm586, 0
      %594 = vst.msk [vmem:[#allocation2 + $0xc0] sm:$0xff] %vm586, 0
      %vm595 = vcmask 785408
      %596 = vst.msk [vmem:[#allocation3] sm:$0xff] %vm595, 0
      %597 = vst.msk [vmem:[#allocation3 + $0x8] sm:$0xff] %vm595, 0
      %598 = vst.msk [vmem:[#allocation3 + $0x10] sm:$0xff] %vm595, 0
      %599 = vst.msk [vmem:[#allocation3 + $0x18] sm:$0xff] %vm595, 0
      %600 = vst.msk [vmem:[#allocation3 + $0xa8] sm:$0xff] %vm595, 0
      %601 = vst.msk [vmem:[#allocation3 + $0xb0] sm:$0xff] %vm595, 0
      %602 = vst.msk [vmem:[#allocation3 + $0xb8] sm:$0xff] %vm595, 0
      %603 = vst.msk [vmem:[#allocation3 + $0xc0] sm:$0xff] %vm595, 0
      %v604 = vld [vmem:[%s543] sm:$0xff]
      %v605 = vld [vmem:[%s543 + $0x8] sm:$0xff]
      %v606 = vld [vmem:[%s543 + $0x10] sm:$0xff]
      %v607 = vld [vmem:[%s543 + $0x18] sm:$0xff]
      %v608 = vld [vmem:[%s543 + $0x20] sm:$0xff]
      %v609 = vld [vmem:[%s543 + $0x28] sm:$0xff]
      %v610 = vld [vmem:[%s543 + $0x30] sm:$0xff]
      %v611 = vld [vmem:[%s543 + $0x38] sm:$0xff]
      %v612 = vld [vmem:[%s543 + $0x40] sm:$0xff]
      %v613 = vld [vmem:[%s543 + $0x48] sm:$0xff]
      %v614 = vld [vmem:[%s543 + $0x50] sm:$0xff]
      %v615 = vld [vmem:[%s543 + $0x58] sm:$0xff]
      %v616 = vld [vmem:[%s543 + $0x60] sm:$0xff]
      %v617 = vld [vmem:[%s543 + $0x68] sm:$0xff]
      %v618 = vld [vmem:[%s543 + $0x70] sm:$0xff]
      %v619 = vld [vmem:[%s543 + $0x78] sm:$0xff]
      %v620 = vld [vmem:[%s543 + $0x80] sm:$0xff]
      %v621 = vld [vmem:[%s543 + $0x88] sm:$0xff]
      %v622 = vld [vmem:[%s543 + $0x90] sm:$0xff]
      %v623 = vld [vmem:[%s543 + $0x98] sm:$0xff]
      %v624 = vld [vmem:[%s543 + $0xa0] sm:$0xff]
      %v625 = vld [vmem:[%s543 + $0xa8] sm:$0xff]
      %v626 = vld [vmem:[%s543 + $0xb0] sm:$0xff]
      %v627 = vld [vmem:[%s543 + $0xb8] sm:$0xff]
      %v628 = vld [vmem:[%s543 + $0xc0] sm:$0xff]
      %v629 = vld [vmem:[%s543 + $0xc8] sm:$0xff]
      %v630 = vld [vmem:[%s543 + $0xd0] sm:$0xff]
      %v631 = vld [vmem:[%s543 + $0xd8] sm:$0xff]
      %v632 = vld [vmem:[%s543 + $0xe0] sm:$0xff]
      %v633 = vld [vmem:[%s543 + $0xe8] sm:$0xff]
      %v634 = vld [vmem:[%s543 + $0xf0] sm:$0xff]
      %v635 = vld [vmem:[%s543 + $0xf8] sm:$0xff]
      %v636 = vld [vmem:[%s543 + $0x100] sm:$0xff]
      %v637 = vld [vmem:[%s543 + $0x108] sm:$0xff]
      %v638 = vld [vmem:[%s543 + $0x110] sm:$0xff]
      %v639 = vld [vmem:[%s543 + $0x118] sm:$0xff]
      %vm640 = vcmask 130048
      %v641 = vsel %vm640, %v604, 0.0
      %v642 = vsel %vm640, %v605, 0.0
      %v643 = vadd.f32 %v641, %v642
      %v644 = vsel %vm640, %v606, 0.0
      %v645 = vadd.f32 %v643, %v644
      %v646 = vsel %vm640, %v607, 0.0
      %v647 = vadd.f32 %v645, %v646
      %v648 = vsel %vm640, %v608, 0.0
      %v649 = vadd.f32 %v647, %v648
      %v650 = vsel %vm640, %v609, 0.0
      %v651 = vadd.f32 %v649, %v650
      %v652 = vsel %vm640, %v610, 0.0
      %v653 = vadd.f32 %v651, %v652
      %v654 = vsel %vm640, %v611, 0.0
      %v655 = vadd.f32 %v653, %v654
      %v656 = vsel %vm640, %v612, 0.0
      %v657 = vadd.f32 %v655, %v656
      %v658 = vsel %vm640, %v613, 0.0
      %v659 = vadd.f32 %v657, %v658
      %v660 = vsel %vm640, %v614, 0.0
      %v661 = vadd.f32 %v659, %v660
      %v662 = vsel %vm640, %v615, 0.0
      %v663 = vadd.f32 %v661, %v662
      %v664 = vsel %vm640, %v616, 0.0
      %v665 = vadd.f32 %v663, %v664
      %v666 = vsel %vm640, %v617, 0.0
      %v667 = vadd.f32 %v665, %v666
      %v668 = vsel %vm640, %v618, 0.0
      %v669 = vadd.f32 %v667, %v668
      %v670 = vsel %vm640, %v619, 0.0
      %v671 = vadd.f32 %v669, %v670
      %v672 = vsel %vm640, %v620, 0.0
      %v673 = vadd.f32 %v671, %v672
      %v674 = vsel %vm640, %v621, 0.0
      %v675 = vadd.f32 %v673, %v674
      %v676 = vsel %vm640, %v622, 0.0
      %v677 = vadd.f32 %v675, %v676
      %v678 = vsel %vm640, %v623, 0.0
      %v679 = vadd.f32 %v677, %v678
      %v680 = vsel %vm640, %v624, 0.0
      %v681 = vadd.f32 %v679, %v680
      %v682 = vsel %vm640, %v625, 0.0
      %v683 = vadd.f32 %v681, %v682
      %v684 = vsel %vm640, %v626, 0.0
      %v685 = vadd.f32 %v683, %v684
      %v686 = vsel %vm640, %v627, 0.0
      %v687 = vadd.f32 %v685, %v686
      %v688 = vsel %vm640, %v628, 0.0
      %v689 = vadd.f32 %v687, %v688
      %v690 = vsel %vm640, %v629, 0.0
      %v691 = vadd.f32 %v689, %v690
      %v692 = vsel %vm640, %v630, 0.0
      %v693 = vadd.f32 %v691, %v692
      %v694 = vsel %vm640, %v631, 0.0
      %v695 = vadd.f32 %v693, %v694
      %v696 = vsel %vm640, %v632, 0.0
      %v697 = vadd.f32 %v695, %v696
      %v698 = vsel %vm640, %v633, 0.0
      %v699 = vadd.f32 %v697, %v698
      %v700 = vsel %vm640, %v634, 0.0
      %v701 = vadd.f32 %v699, %v700
      %v702 = vsel %vm640, %v635, 0.0
      %v703 = vadd.f32 %v701, %v702
      %v704 = vsel %vm640, %v636, 0.0
      %v705 = vadd.f32 %v703, %v704
      %v706 = vsel %vm640, %v637, 0.0
      %v707 = vadd.f32 %v705, %v706
      %v708 = vsel %vm640, %v638, 0.0
      %v709 = vadd.f32 %v707, %v708
      %v710 = vsel %vm640, %v639, 0.0
      %v711 = vadd.f32 %v709, %v710
      %v712 = vrot.slane %v711, 4
      %v713 = vadd.f32 %v711, %v712
      %v714 = vrot.slane %v713, 2
      %v715 = vadd.f32 %v713, %v714
      %v716 = vrot.slane %v715, 1
      %v717 = vadd.f32 %v715, %v716
      %v718 = vmul.f32 %v604, %v604
      %v719 = vmul.f32 %v605, %v605
      %v720 = vmul.f32 %v606, %v606
      %v721 = vmul.f32 %v607, %v607
      %v722 = vmul.f32 %v608, %v608
      %v723 = vmul.f32 %v609, %v609
      %v724 = vmul.f32 %v610, %v610
      %v725 = vmul.f32 %v611, %v611
      %v726 = vmul.f32 %v612, %v612
      %v727 = vmul.f32 %v613, %v613
      %v728 = vmul.f32 %v614, %v614
      %v729 = vmul.f32 %v615, %v615
      %v730 = vmul.f32 %v616, %v616
      %v731 = vmul.f32 %v617, %v617
      %v732 = vmul.f32 %v618, %v618
      %v733 = vmul.f32 %v619, %v619
      %v734 = vmul.f32 %v620, %v620
      %v735 = vmul.f32 %v621, %v621
      %v736 = vmul.f32 %v622, %v622
      %v737 = vmul.f32 %v623, %v623
      %v738 = vmul.f32 %v624, %v624
      %v739 = vmul.f32 %v625, %v625
      %v740 = vmul.f32 %v626, %v626
      %v741 = vmul.f32 %v627, %v627
      %v742 = vmul.f32 %v628, %v628
      %v743 = vmul.f32 %v629, %v629
      %v744 = vmul.f32 %v630, %v630
      %v745 = vmul.f32 %v631, %v631
      %v746 = vmul.f32 %v632, %v632
      %v747 = vmul.f32 %v633, %v633
      %v748 = vmul.f32 %v634, %v634
      %v749 = vmul.f32 %v635, %v635
      %v750 = vmul.f32 %v636, %v636
      %v751 = vmul.f32 %v637, %v637
      %v752 = vmul.f32 %v638, %v638
      %v753 = vmul.f32 %v639, %v639
      %v754 = vsel %vm640, %v718, 0.0
      %v755 = vsel %vm640, %v719, 0.0
      %v756 = vadd.f32 %v754, %v755
      %v757 = vsel %vm640, %v720, 0.0
      %v758 = vadd.f32 %v756, %v757
      %v759 = vsel %vm640, %v721, 0.0
      %v760 = vadd.f32 %v758, %v759
      %v761 = vsel %vm640, %v722, 0.0
      %v762 = vadd.f32 %v760, %v761
      %v763 = vsel %vm640, %v723, 0.0
      %v764 = vadd.f32 %v762, %v763
      %v765 = vsel %vm640, %v724, 0.0
      %v766 = vadd.f32 %v764, %v765
      %v767 = vsel %vm640, %v725, 0.0
      %v768 = vadd.f32 %v766, %v767
      %v769 = vsel %vm640, %v726, 0.0
      %v770 = vadd.f32 %v768, %v769
      %v771 = vsel %vm640, %v727, 0.0
      %v772 = vadd.f32 %v770, %v771
      %v773 = vsel %vm640, %v728, 0.0
      %v774 = vadd.f32 %v772, %v773
      %v775 = vsel %vm640, %v729, 0.0
      %v776 = vadd.f32 %v774, %v775
      %v777 = vsel %vm640, %v730, 0.0
      %v778 = vadd.f32 %v776, %v777
      %v779 = vsel %vm640, %v731, 0.0
      %v780 = vadd.f32 %v778, %v779
      %v781 = vsel %vm640, %v732, 0.0
      %v782 = vadd.f32 %v780, %v781
      %v783 = vsel %vm640, %v733, 0.0
      %v784 = vadd.f32 %v782, %v783
      %v785 = vsel %vm640, %v734, 0.0
      %v786 = vadd.f32 %v784, %v785
      %v787 = vsel %vm640, %v735, 0.0
      %v788 = vadd.f32 %v786, %v787
      %v789 = vsel %vm640, %v736, 0.0
      %v790 = vadd.f32 %v788, %v789
      %v791 = vsel %vm640, %v737, 0.0
      %v792 = vadd.f32 %v790, %v791
      %v793 = vsel %vm640, %v738, 0.0
      %v794 = vadd.f32 %v792, %v793
      %v795 = vsel %vm640, %v739, 0.0
      %v796 = vadd.f32 %v794, %v795
      %v797 = vsel %vm640, %v740, 0.0
      %v798 = vadd.f32 %v796, %v797
      %v799 = vsel %vm640, %v741, 0.0
      %v800 = vadd.f32 %v798, %v799
      %v801 = vsel %vm640, %v742, 0.0
      %v802 = vadd.f32 %v800, %v801
      %v803 = vsel %vm640, %v743, 0.0
      %v804 = vadd.f32 %v802, %v803
      %v805 = vsel %vm640, %v744, 0.0
      %v806 = vadd.f32 %v804, %v805
      %v807 = vsel %vm640, %v745, 0.0
      %v808 = vadd.f32 %v806, %v807
      %v809 = vsel %vm640, %v746, 0.0
      %v810 = vadd.f32 %v808, %v809
      %v811 = vsel %vm640, %v747, 0.0
      %v812 = vadd.f32 %v810, %v811
      %v813 = vsel %vm640, %v748, 0.0
      %v814 = vadd.f32 %v812, %v813
      %v815 = vsel %vm640, %v749, 0.0
      %v816 = vadd.f32 %v814, %v815
      %v817 = vsel %vm640, %v750, 0.0
      %v818 = vadd.f32 %v816, %v817
      %v819 = vsel %vm640, %v751, 0.0
      %v820 = vadd.f32 %v818, %v819
      %v821 = vsel %vm640, %v752, 0.0
      %v822 = vadd.f32 %v820, %v821
      %v823 = vsel %vm640, %v753, 0.0
      %v824 = vadd.f32 %v822, %v823
      %v825 = vrot.slane %v824, 4
      %v826 = vadd.f32 %v824, %v825
      %v827 = vrot.slane %v826, 2
      %v828 = vadd.f32 %v826, %v827
      %v829 = vrot.slane %v828, 1
      %v830 = vadd.f32 %v828, %v829
      %v831 = vld [vmem:[%s4] sm:$0xff]
      %v832 = vld [vmem:[%s4 + $0x8] sm:$0xff]
      %v834 = vsel %vm640, %v717, 0
      %836 = vmatprep.subr.mxu0 0.0
      %837 = vmatpush1.msra.mxu0 %v831
      %838 = vmatprep.subr.mxu0 0.0
      %839 = vmatpush1.msra.mxu0 %v832
      %840 = vmatprep.subr.mxu0 0.0
      %841 = vmatpush1.msra.mxu0 0.0
      %842 = vmatprep.subr.mxu0 0.0
      %843 = vmatpush1.msra.mxu0 0.0
      %844 = vmatprep.subr.mxu0 0.0
      %845 = vmatpush1.msra.mxu0 0.0
      %846 = vmatprep.subr.mxu0 0.0
      %847 = vmatpush1.msra.mxu0 0.0
      %848 = vmatprep.subr.mxu0 0.0
      %849 = vmatpush1.msra.mxu0 0.0
      %850 = vmatprep.subr.mxu0 0.0
      %851 = vmatpush1.msra.mxu0 0.0
      %852 = vmatprep.subr.mxu0 0.0
      %853 = vmatpush1.msra.mxu0 0.0
      %854 = vmatprep.subr.mxu0 0.0
      %855 = vmatpush1.msra.mxu0 0.0
      %856 = vmatprep.subr.mxu0 0.0
      %857 = vmatpush1.msra.mxu0 0.0
      %858 = vmatprep.subr.mxu0 0.0
      %859 = vmatpush1.msra.mxu0 0.0
      %860 = vmatprep.subr.mxu0 0.0
      %861 = vmatpush1.msra.mxu0 0.0
      %862 = vmatprep.subr.mxu0 0.0
      %863 = vmatpush1.msra.mxu0 0.0
      %864 = vmatprep.subr.mxu0 0.0
      %865 = vmatpush1.msra.mxu0 0.0
      %866 = vmatprep.subr.mxu0 0.0
      %867 = vmatpush1.msra.mxu0 0.0
      %868 = vmatprep.subr.mxu0 0.0
      %869 = vmatpush1.msra.mxu0 0.0
      %870 = vmatprep.subr.mxu0 0.0
      %871 = vmatpush1.msra.mxu0 0.0
      %872 = vmatprep.subr.mxu0 0.0
      %873 = vmatpush1.msra.mxu0 0.0
      %874 = vmatprep.subr.mxu0 0.0
      %875 = vmatpush1.msra.mxu0 0.0
      %876 = vmatprep.subr.mxu0 0.0
      %877 = vmatpush1.msra.mxu0 0.0
      %878 = vmatprep.subr.mxu0 0.0
      %879 = vmatpush1.msra.mxu0 0.0
      %880 = vmatprep.subr.mxu0 0.0
      %881 = vmatpush1.msra.mxu0 0.0
      %882 = vmatprep.subr.mxu0 0.0
      %883 = vmatpush1.msra.mxu0 0.0
      %884 = vmatprep.subr.mxu0 0.0
      %885 = vmatpush1.msra.mxu0 0.0
      %886 = vmatprep.subr.mxu0 0.0
      %887 = vmatpush1.msra.mxu0 0.0
      %888 = vmatprep.subr.mxu0 0.0
      %889 = vmatpush1.msra.mxu0 0.0
      %890 = vmatprep.subr.mxu0 0.0
      %891 = vmatpush1.msra.mxu0 0.0
      %892 = vmatprep.subr.mxu0 0.0
      %893 = vmatpush1.msra.mxu0 0.0
      %894 = vmatprep.subr.mxu0 0.0
      %895 = vmatpush1.msra.mxu0 0.0
      %896 = vmatprep.subr.mxu0 0.0
      %897 = vmatpush1.msra.mxu0 0.0
      %898 = vmatprep.subr.mxu0 0.0
      %899 = vmatpush1.msra.mxu0 0.0
      %900 = vmatprep.mubr.f32.mxu0 0.0
      %901 = vmatmul.mubr.f32.gmra.mrb[0].mxu0 %v834
      %v902 = vpop.f32.mrb[0].mxu0
      %v903 = vadd.f32 0.0, %v902
      %v904 = vpop.f32.mrb[0].mxu0
      %905 = vdwg.mxu0
      %v907 = vsel %vm640, %v830, 0
      %909 = vmatprep.subr.mxu0 0.0
      %910 = vmatpush1.msra.mxu0 %v831
      %911 = vmatprep.subr.mxu0 0.0
      %912 = vmatpush1.msra.mxu0 %v832
      %913 = vmatprep.subr.mxu0 0.0
      %914 = vmatpush1.msra.mxu0 0.0
      %915 = vmatprep.subr.mxu0 0.0
      %916 = vmatpush1.msra.mxu0 0.0
      %917 = vmatprep.subr.mxu0 0.0
      %918 = vmatpush1.msra.mxu0 0.0
      %919 = vmatprep.subr.mxu0 0.0
      %920 = vmatpush1.msra.mxu0 0.0
      %921 = vmatprep.subr.mxu0 0.0
      %922 = vmatpush1.msra.mxu0 0.0
      %923 = vmatprep.subr.mxu0 0.0
      %924 = vmatpush1.msra.mxu0 0.0
      %925 = vmatprep.subr.mxu0 0.0
      %926 = vmatpush1.msra.mxu0 0.0
      %927 = vmatprep.subr.mxu0 0.0
      %928 = vmatpush1.msra.mxu0 0.0
      %929 = vmatprep.subr.mxu0 0.0
      %930 = vmatpush1.msra.mxu0 0.0
      %931 = vmatprep.subr.mxu0 0.0
      %932 = vmatpush1.msra.mxu0 0.0
      %933 = vmatprep.subr.mxu0 0.0
      %934 = vmatpush1.msra.mxu0 0.0
      %935 = vmatprep.subr.mxu0 0.0
      %936 = vmatpush1.msra.mxu0 0.0
      %937 = vmatprep.subr.mxu0 0.0
      %938 = vmatpush1.msra.mxu0 0.0
      %939 = vmatprep.subr.mxu0 0.0
      %940 = vmatpush1.msra.mxu0 0.0
      %941 = vmatprep.subr.mxu0 0.0
      %942 = vmatpush1.msra.mxu0 0.0
      %943 = vmatprep.subr.mxu0 0.0
      %944 = vmatpush1.msra.mxu0 0.0
      %945 = vmatprep.subr.mxu0 0.0
      %946 = vmatpush1.msra.mxu0 0.0
      %947 = vmatprep.subr.mxu0 0.0
      %948 = vmatpush1.msra.mxu0 0.0
      %949 = vmatprep.subr.mxu0 0.0
      %950 = vmatpush1.msra.mxu0 0.0
      %951 = vmatprep.subr.mxu0 0.0
      %952 = vmatpush1.msra.mxu0 0.0
      %953 = vmatprep.subr.mxu0 0.0
      %954 = vmatpush1.msra.mxu0 0.0
      %955 = vmatprep.subr.mxu0 0.0
      %956 = vmatpush1.msra.mxu0 0.0
      %957 = vmatprep.subr.mxu0 0.0
      %958 = vmatpush1.msra.mxu0 0.0
      %959 = vmatprep.subr.mxu0 0.0
      %960 = vmatpush1.msra.mxu0 0.0
      %961 = vmatprep.subr.mxu0 0.0
      %962 = vmatpush1.msra.mxu0 0.0
      %963 = vmatprep.subr.mxu0 0.0
      %964 = vmatpush1.msra.mxu0 0.0
      %965 = vmatprep.subr.mxu0 0.0
      %966 = vmatpush1.msra.mxu0 0.0
      %967 = vmatprep.subr.mxu0 0.0
      %968 = vmatpush1.msra.mxu0 0.0
      %969 = vmatprep.subr.mxu0 0.0
      %970 = vmatpush1.msra.mxu0 0.0
      %971 = vmatprep.subr.mxu0 0.0
      %972 = vmatpush1.msra.mxu0 0.0
      %973 = vmatprep.mubr.f32.mxu0 0.0
      %974 = vmatmul.mubr.f32.gmra.mrb[0].mxu0 %v907
      %v975 = vpop.f32.mrb[0].mxu0
      %v976 = vadd.f32 0.0, %v975
      %v977 = vpop.f32.mrb[0].mxu0
      %978 = vdwg.mxu0
      %v979 = vmul.f32 %v903, %v903
      %v980 = vsub.f32 %v976, %v979
      %v981 = vadd.f32 %v980, 1e-05
      %v982 = vrsqrt.pop %v981
      %v983 = vlaneseq
      %v984 = vshrl.u32 %v983, 7
      %v985 = vsub.s32 0, %v984
      %v986 = vrot.slane %v903, %v985
      %v987 = vsub.f32 %v604, %v986
      %v988 = vsub.f32 %v605, %v986
      %v989 = vsub.f32 %v606, %v986
      %v990 = vsub.f32 %v607, %v986
      %v991 = vsub.f32 %v608, %v986
      %v992 = vsub.f32 %v609, %v986
      %v993 = vsub.f32 %v610, %v986
      %v994 = vsub.f32 %v611, %v986
      %v995 = vsub.f32 %v612, %v986
      %v996 = vsub.f32 %v613, %v986
      %v997 = vsub.f32 %v614, %v986
      %v998 = vsub.f32 %v615, %v986
      %v999 = vsub.f32 %v616, %v986
      %v1000 = vsub.f32 %v617, %v986
      %v1001 = vsub.f32 %v618, %v986
      %v1002 = vsub.f32 %v619, %v986
      %v1003 = vsub.f32 %v620, %v986
      %v1004 = vsub.f32 %v621, %v986
      %v1005 = vsub.f32 %v622, %v986
      %v1006 = vsub.f32 %v623, %v986
      %v1007 = vsub.f32 %v624, %v986
      %v1008 = vsub.f32 %v625, %v986
      %v1009 = vsub.f32 %v626, %v986
      %v1010 = vsub.f32 %v627, %v986
      %v1011 = vsub.f32 %v628, %v986
      %v1012 = vsub.f32 %v629, %v986
      %v1013 = vsub.f32 %v630, %v986
      %v1014 = vsub.f32 %v631, %v986
      %v1015 = vsub.f32 %v632, %v986
      %v1016 = vsub.f32 %v633, %v986
      %v1017 = vsub.f32 %v634, %v986
      %v1018 = vsub.f32 %v635, %v986
      %v1019 = vsub.f32 %v636, %v986
      %v1020 = vsub.f32 %v637, %v986
      %v1021 = vsub.f32 %v638, %v986
      %v1022 = vsub.f32 %v639, %v986
      %v1023 = vlaneseq
      %v1024 = vshrl.u32 %v1023, 7
      %v1025 = vsub.s32 0, %v1024
      %v1026 = vrot.slane %v982, %v1025
      %v1027 = vmul.f32 %v987, %v1026
      %v1028 = vmul.f32 %v988, %v1026
      %v1029 = vmul.f32 %v989, %v1026
      %v1030 = vmul.f32 %v990, %v1026
      %v1031 = vmul.f32 %v991, %v1026
      %v1032 = vmul.f32 %v992, %v1026
      %v1033 = vmul.f32 %v993, %v1026
      %v1034 = vmul.f32 %v994, %v1026
      %v1035 = vmul.f32 %v995, %v1026
      %v1036 = vmul.f32 %v996, %v1026
      %v1037 = vmul.f32 %v997, %v1026
      %v1038 = vmul.f32 %v998, %v1026
      %v1039 = vmul.f32 %v999, %v1026
      %v1040 = vmul.f32 %v1000, %v1026
      %v1041 = vmul.f32 %v1001, %v1026
      %v1042 = vmul.f32 %v1002, %v1026
      %v1043 = vmul.f32 %v1003, %v1026
      %v1044 = vmul.f32 %v1004, %v1026
      %v1045 = vmul.f32 %v1005, %v1026
      %v1046 = vmul.f32 %v1006, %v1026
      %v1047 = vmul.f32 %v1007, %v1026
      %v1048 = vmul.f32 %v1008, %v1026
      %v1049 = vmul.f32 %v1009, %v1026
      %v1050 = vmul.f32 %v1010, %v1026
      %v1051 = vmul.f32 %v1011, %v1026
      %v1052 = vmul.f32 %v1012, %v1026
      %v1053 = vmul.f32 %v1013, %v1026
      %v1054 = vmul.f32 %v1014, %v1026
      %v1055 = vmul.f32 %v1015, %v1026
      %v1056 = vmul.f32 %v1016, %v1026
      %v1057 = vmul.f32 %v1017, %v1026
      %v1058 = vmul.f32 %v1018, %v1026
      %v1059 = vmul.f32 %v1019, %v1026
      %v1060 = vmul.f32 %v1020, %v1026
      %v1061 = vmul.f32 %v1021, %v1026
      %v1062 = vmul.f32 %v1022, %v1026
      %v1063 = vld [vmem:[%s2] sm:$0x1]
      %v1065 = vlaneseq
      %v1066 = vshrl.u32 %v1065, 7
      %v1067 = vsub.s32 0, %v1066
      %v1068 = vrot.slane %v1063, %v1067
      %v1070 = vmul.f32 %v1027, %v1068
      %v1071 = vmul.f32 %v1028, %v1068
      %v1072 = vmul.f32 %v1029, %v1068
      %v1073 = vmul.f32 %v1030, %v1068
      %v1074 = vmul.f32 %v1031, %v1068
      %v1075 = vmul.f32 %v1032, %v1068
      %v1076 = vmul.f32 %v1033, %v1068
      %v1077 = vmul.f32 %v1034, %v1068
      %v1078 = vmul.f32 %v1035, %v1068
      %v1079 = vmul.f32 %v1036, %v1068
      %v1080 = vmul.f32 %v1037, %v1068
      %v1081 = vmul.f32 %v1038, %v1068
      %v1082 = vmul.f32 %v1039, %v1068
      %v1083 = vmul.f32 %v1040, %v1068
      %v1084 = vmul.f32 %v1041, %v1068
      %v1085 = vmul.f32 %v1042, %v1068
      %v1086 = vmul.f32 %v1043, %v1068
      %v1087 = vmul.f32 %v1044, %v1068
      %v1088 = vmul.f32 %v1045, %v1068
      %v1089 = vmul.f32 %v1046, %v1068
      %v1090 = vmul.f32 %v1047, %v1068
      %v1091 = vmul.f32 %v1048, %v1068
      %v1092 = vmul.f32 %v1049, %v1068
      %v1093 = vmul.f32 %v1050, %v1068
      %v1094 = vmul.f32 %v1051, %v1068
      %v1095 = vmul.f32 %v1052, %v1068
      %v1096 = vmul.f32 %v1053, %v1068
      %v1097 = vmul.f32 %v1054, %v1068
      %v1098 = vmul.f32 %v1055, %v1068
      %v1099 = vmul.f32 %v1056, %v1068
      %v1100 = vmul.f32 %v1057, %v1068
      %v1101 = vmul.f32 %v1058, %v1068
      %v1102 = vmul.f32 %v1059, %v1068
      %v1103 = vmul.f32 %v1060, %v1068
      %v1104 = vmul.f32 %v1061, %v1068
      %v1105 = vmul.f32 %v1062, %v1068
      %v1106 = vld [vmem:[%s3] sm:$0x1]
      %v1108 = vlaneseq
      %v1109 = vshrl.u32 %v1108, 7
      %v1110 = vsub.s32 0, %v1109
      %v1111 = vrot.slane %v1106, %v1110
      %v1113 = vadd.f32 %v1070, %v1111
      %v1114 = vadd.f32 %v1071, %v1111
      %v1115 = vadd.f32 %v1072, %v1111
      %v1116 = vadd.f32 %v1073, %v1111
      %v1117 = vadd.f32 %v1074, %v1111
      %v1118 = vadd.f32 %v1075, %v1111
      %v1119 = vadd.f32 %v1076, %v1111
      %v1120 = vadd.f32 %v1077, %v1111
      %v1121 = vadd.f32 %v1078, %v1111
      %v1122 = vadd.f32 %v1079, %v1111
      %v1123 = vadd.f32 %v1080, %v1111
      %v1124 = vadd.f32 %v1081, %v1111
      %v1125 = vadd.f32 %v1082, %v1111
      %v1126 = vadd.f32 %v1083, %v1111
      %v1127 = vadd.f32 %v1084, %v1111
      %v1128 = vadd.f32 %v1085, %v1111
      %v1129 = vadd.f32 %v1086, %v1111
      %v1130 = vadd.f32 %v1087, %v1111
      %v1131 = vadd.f32 %v1088, %v1111
      %v1132 = vadd.f32 %v1089, %v1111
      %v1133 = vadd.f32 %v1090, %v1111
      %v1134 = vadd.f32 %v1091, %v1111
      %v1135 = vadd.f32 %v1092, %v1111
      %v1136 = vadd.f32 %v1093, %v1111
      %v1137 = vadd.f32 %v1094, %v1111
      %v1138 = vadd.f32 %v1095, %v1111
      %v1139 = vadd.f32 %v1096, %v1111
      %v1140 = vadd.f32 %v1097, %v1111
      %v1141 = vadd.f32 %v1098, %v1111
      %v1142 = vadd.f32 %v1099, %v1111
      %v1143 = vadd.f32 %v1100, %v1111
      %v1144 = vadd.f32 %v1101, %v1111
      %v1145 = vadd.f32 %v1102, %v1111
      %v1146 = vadd.f32 %v1103, %v1111
      %v1147 = vadd.f32 %v1104, %v1111
      %v1148 = vadd.f32 %v1105, %v1111
      %v1149 = vxor.u32 %v1113, 2147483648
      %v1150 = vxor.u32 %v1114, 2147483648
      %v1151 = vxor.u32 %v1115, 2147483648
      %v1152 = vxor.u32 %v1116, 2147483648
      %v1153 = vxor.u32 %v1117, 2147483648
      %v1154 = vxor.u32 %v1118, 2147483648
      %v1155 = vxor.u32 %v1119, 2147483648
      %v1156 = vxor.u32 %v1120, 2147483648
      %v1157 = vxor.u32 %v1121, 2147483648
      %v1158 = vxor.u32 %v1122, 2147483648
      %v1159 = vxor.u32 %v1123, 2147483648
      %v1160 = vxor.u32 %v1124, 2147483648
      %v1161 = vxor.u32 %v1125, 2147483648
      %v1162 = vxor.u32 %v1126, 2147483648
      %v1163 = vxor.u32 %v1127, 2147483648
      %v1164 = vxor.u32 %v1128, 2147483648
      %v1165 = vxor.u32 %v1129, 2147483648
      %v1166 = vxor.u32 %v1130, 2147483648
      %v1167 = vxor.u32 %v1131, 2147483648
      %v1168 = vxor.u32 %v1132, 2147483648
      %v1169 = vxor.u32 %v1133, 2147483648
      %v1170 = vxor.u32 %v1134, 2147483648
      %v1171 = vxor.u32 %v1135, 2147483648
      %v1172 = vxor.u32 %v1136, 2147483648
      %v1173 = vxor.u32 %v1137, 2147483648
      %v1174 = vxor.u32 %v1138, 2147483648
      %v1175 = vxor.u32 %v1139, 2147483648
      %v1176 = vxor.u32 %v1140, 2147483648
      %v1177 = vxor.u32 %v1141, 2147483648
      %v1178 = vxor.u32 %v1142, 2147483648
      %v1179 = vxor.u32 %v1143, 2147483648
      %v1180 = vxor.u32 %v1144, 2147483648
      %v1181 = vxor.u32 %v1145, 2147483648
      %v1182 = vxor.u32 %v1146, 2147483648
      %v1183 = vxor.u32 %v1147, 2147483648
      %v1184 = vxor.u32 %v1148, 2147483648
      %v1185 = vmul.f32 %v1149, 1.442695
      %v1186 = vpow.pop %v1185
      %v1187 = vmul.f32 %v1150, 1.442695
      %v1188 = vpow.pop %v1187
      %v1189 = vmul.f32 %v1151, 1.442695
      %v1190 = vpow.pop %v1189
      %v1191 = vmul.f32 %v1152, 1.442695
      %v1192 = vpow.pop %v1191
      %v1193 = vmul.f32 %v1153, 1.442695
      %v1194 = vpow.pop %v1193
      %v1195 = vmul.f32 %v1154, 1.442695
      %v1196 = vpow.pop %v1195
      %v1197 = vmul.f32 %v1155, 1.442695
      %v1198 = vpow.pop %v1197
      %v1199 = vmul.f32 %v1156, 1.442695
      %v1200 = vpow.pop %v1199
      %v1201 = vmul.f32 %v1157, 1.442695
      %v1202 = vpow.pop %v1201
      %v1203 = vmul.f32 %v1158, 1.442695
      %v1204 = vpow.pop %v1203
      %v1205 = vmul.f32 %v1159, 1.442695
      %v1206 = vpow.pop %v1205
      %v1207 = vmul.f32 %v1160, 1.442695
      %v1208 = vpow.pop %v1207
      %v1209 = vmul.f32 %v1161, 1.442695
      %v1210 = vpow.pop %v1209
      %v1211 = vmul.f32 %v1162, 1.442695
      %v1212 = vpow.pop %v1211
      %v1213 = vmul.f32 %v1163, 1.442695
      %v1214 = vpow.pop %v1213
      %v1215 = vmul.f32 %v1164, 1.442695
      %v1216 = vpow.pop %v1215
      %v1217 = vmul.f32 %v1165, 1.442695
      %v1218 = vpow.pop %v1217
      %v1219 = vmul.f32 %v1166, 1.442695
      %v1220 = vpow.pop %v1219
      %v1221 = vmul.f32 %v1167, 1.442695
      %v1222 = vpow.pop %v1221
      %v1223 = vmul.f32 %v1168, 1.442695
      %v1224 = vpow.pop %v1223
      %v1225 = vmul.f32 %v1169, 1.442695
      %v1226 = vpow.pop %v1225
      %v1227 = vmul.f32 %v1170, 1.442695
      %v1228 = vpow.pop %v1227
      %v1229 = vmul.f32 %v1171, 1.442695
      %v1230 = vpow.pop %v1229
      %v1231 = vmul.f32 %v1172, 1.442695
      %v1232 = vpow.pop %v1231
      %v1233 = vmul.f32 %v1173, 1.442695
      %v1234 = vpow.pop %v1233
      %v1235 = vmul.f32 %v1174, 1.442695
      %v1236 = vpow.pop %v1235
      %v1237 = vmul.f32 %v1175, 1.442695
      %v1238 = vpow.pop %v1237
      %v1239 = vmul.f32 %v1176, 1.442695
      %v1240 = vpow.pop %v1239
      %v1241 = vmul.f32 %v1177, 1.442695
      %v1242 = vpow.pop %v1241
      %v1243 = vmul.f32 %v1178, 1.442695
      %v1244 = vpow.pop %v1243
      %v1245 = vmul.f32 %v1179, 1.442695
      %v1246 = vpow.pop %v1245
      %v1247 = vmul.f32 %v1180, 1.442695
      %v1248 = vpow.pop %v1247
      %v1249 = vmul.f32 %v1181, 1.442695
      %v1250 = vpow.pop %v1249
      %v1251 = vmul.f32 %v1182, 1.442695
      %v1252 = vpow.pop %v1251
      %v1253 = vmul.f32 %v1183, 1.442695
      %v1254 = vpow.pop %v1253
      %v1255 = vmul.f32 %v1184, 1.442695
      %v1256 = vpow.pop %v1255
      %v1257 = vadd.f32 %v1186, 1.0
      %v1258 = vadd.f32 %v1188, 1.0
      %v1259 = vadd.f32 %v1190, 1.0
      %v1260 = vadd.f32 %v1192, 1.0
      %v1261 = vadd.f32 %v1194, 1.0
      %v1262 = vadd.f32 %v1196, 1.0
      %v1263 = vadd.f32 %v1198, 1.0
      %v1264 = vadd.f32 %v1200, 1.0
      %v1265 = vadd.f32 %v1202, 1.0
      %v1266 = vadd.f32 %v1204, 1.0
      %v1267 = vadd.f32 %v1206, 1.0
      %v1268 = vadd.f32 %v1208, 1.0
      %v1269 = vadd.f32 %v1210, 1.0
      %v1270 = vadd.f32 %v1212, 1.0
      %v1271 = vadd.f32 %v1214, 1.0
      %v1272 = vadd.f32 %v1216, 1.0
      %v1273 = vadd.f32 %v1218, 1.0
      %v1274 = vadd.f32 %v1220, 1.0
      %v1275 = vadd.f32 %v1222, 1.0
      %v1276 = vadd.f32 %v1224, 1.0
      %v1277 = vadd.f32 %v1226, 1.0
      %v1278 = vadd.f32 %v1228, 1.0
      %v1279 = vadd.f32 %v1230, 1.0
      %v1280 = vadd.f32 %v1232, 1.0
      %v1281 = vadd.f32 %v1234, 1.0
      %v1282 = vadd.f32 %v1236, 1.0
      %v1283 = vadd.f32 %v1238, 1.0
      %v1284 = vadd.f32 %v1240, 1.0
      %v1285 = vadd.f32 %v1242, 1.0
      %v1286 = vadd.f32 %v1244, 1.0
      %v1287 = vadd.f32 %v1246, 1.0
      %v1288 = vadd.f32 %v1248, 1.0
      %v1289 = vadd.f32 %v1250, 1.0
      %v1290 = vadd.f32 %v1252, 1.0
      %v1291 = vadd.f32 %v1254, 1.0
      %v1292 = vadd.f32 %v1256, 1.0
      %v1293 = vrcp.pop %v1257
      %v1294 = vmul.f32 1.0, %v1293
      %v1295 = vrcp.pop %v1258
      %v1296 = vmul.f32 1.0, %v1295
      %v1297 = vrcp.pop %v1259
      %v1298 = vmul.f32 1.0, %v1297
      %v1299 = vrcp.pop %v1260
      %v1300 = vmul.f32 1.0, %v1299
      %v1301 = vrcp.pop %v1261
      %v1302 = vmul.f32 1.0, %v1301
      %v1303 = vrcp.pop %v1262
      %v1304 = vmul.f32 1.0, %v1303
      %v1305 = vrcp.pop %v1263
      %v1306 = vmul.f32 1.0, %v1305
      %v1307 = vrcp.pop %v1264
      %v1308 = vmul.f32 1.0, %v1307
      %v1309 = vrcp.pop %v1265
      %v1310 = vmul.f32 1.0, %v1309
      %v1311 = vrcp.pop %v1266
      %v1312 = vmul.f32 1.0, %v1311
      %v1313 = vrcp.pop %v1267
      %v1314 = vmul.f32 1.0, %v1313
      %v1315 = vrcp.pop %v1268
      %v1316 = vmul.f32 1.0, %v1315
      %v1317 = vrcp.pop %v1269
      %v1318 = vmul.f32 1.0, %v1317
      %v1319 = vrcp.pop %v1270
      %v1320 = vmul.f32 1.0, %v1319
      %v1321 = vrcp.pop %v1271
      %v1322 = vmul.f32 1.0, %v1321
      %v1323 = vrcp.pop %v1272
      %v1324 = vmul.f32 1.0, %v1323
      %v1325 = vrcp.pop %v1273
      %v1326 = vmul.f32 1.0, %v1325
      %v1327 = vrcp.pop %v1274
      %v1328 = vmul.f32 1.0, %v1327
      %v1329 = vrcp.pop %v1275
      %v1330 = vmul.f32 1.0, %v1329
      %v1331 = vrcp.pop %v1276
      %v1332 = vmul.f32 1.0, %v1331
      %v1333 = vrcp.pop %v1277
      %v1334 = vmul.f32 1.0, %v1333
      %v1335 = vrcp.pop %v1278
      %v1336 = vmul.f32 1.0, %v1335
      %v1337 = vrcp.pop %v1279
      %v1338 = vmul.f32 1.0, %v1337
      %v1339 = vrcp.pop %v1280
      %v1340 = vmul.f32 1.0, %v1339
      %v1341 = vrcp.pop %v1281
      %v1342 = vmul.f32 1.0, %v1341
      %v1343 = vrcp.pop %v1282
      %v1344 = vmul.f32 1.0, %v1343
      %v1345 = vrcp.pop %v1283
      %v1346 = vmul.f32 1.0, %v1345
      %v1347 = vrcp.pop %v1284
      %v1348 = vmul.f32 1.0, %v1347
      %v1349 = vrcp.pop %v1285
      %v1350 = vmul.f32 1.0, %v1349
      %v1351 = vrcp.pop %v1286
      %v1352 = vmul.f32 1.0, %v1351
      %v1353 = vrcp.pop %v1287
      %v1354 = vmul.f32 1.0, %v1353
      %v1355 = vrcp.pop %v1288
      %v1356 = vmul.f32 1.0, %v1355
      %v1357 = vrcp.pop %v1289
      %v1358 = vmul.f32 1.0, %v1357
      %v1359 = vrcp.pop %v1290
      %v1360 = vmul.f32 1.0, %v1359
      %v1361 = vrcp.pop %v1291
      %v1362 = vmul.f32 1.0, %v1361
      %v1363 = vrcp.pop %v1292
      %v1364 = vmul.f32 1.0, %v1363
      %v1365 = vmul.f32 %v1113, %v1294
      %v1366 = vmul.f32 %v1114, %v1296
      %v1367 = vmul.f32 %v1115, %v1298
      %v1368 = vmul.f32 %v1116, %v1300
      %v1369 = vmul.f32 %v1117, %v1302
      %v1370 = vmul.f32 %v1118, %v1304
      %v1371 = vmul.f32 %v1119, %v1306
      %v1372 = vmul.f32 %v1120, %v1308
      %v1373 = vmul.f32 %v1121, %v1310
      %v1374 = vmul.f32 %v1122, %v1312
      %v1375 = vmul.f32 %v1123, %v1314
      %v1376 = vmul.f32 %v1124, %v1316
      %v1377 = vmul.f32 %v1125, %v1318
      %v1378 = vmul.f32 %v1126, %v1320
      %v1379 = vmul.f32 %v1127, %v1322
      %v1380 = vmul.f32 %v1128, %v1324
      %v1381 = vmul.f32 %v1129, %v1326
      %v1382 = vmul.f32 %v1130, %v1328
      %v1383 = vmul.f32 %v1131, %v1330
      %v1384 = vmul.f32 %v1132, %v1332
      %v1385 = vmul.f32 %v1133, %v1334
      %v1386 = vmul.f32 %v1134, %v1336
      %v1387 = vmul.f32 %v1135, %v1338
      %v1388 = vmul.f32 %v1136, %v1340
      %v1389 = vmul.f32 %v1137, %v1342
      %v1390 = vmul.f32 %v1138, %v1344
      %v1391 = vmul.f32 %v1139, %v1346
      %v1392 = vmul.f32 %v1140, %v1348
      %v1393 = vmul.f32 %v1141, %v1350
      %v1394 = vmul.f32 %v1142, %v1352
      %v1395 = vmul.f32 %v1143, %v1354
      %v1396 = vmul.f32 %v1144, %v1356
      %v1397 = vmul.f32 %v1145, %v1358
      %v1398 = vmul.f32 %v1146, %v1360
      %v1399 = vmul.f32 %v1147, %v1362
      %v1400 = vmul.f32 %v1148, %v1364
      %1402 = vset.pattern.permute.xlu0 0
      %1403 = vperm.xlu0 %1402, %v550
      %v1404 = vpop.permute.xlu0 %1403
      %1407 = vset.pattern.permute.xlu0 0
      %1408 = vperm.xlu0 %1407, %v551
      %v1409 = vpop.permute.xlu0 %1408
      %1412 = vset.pattern.permute.xlu0 0
      %1413 = vperm.xlu0 %1412, %v552
      %v1414 = vpop.permute.xlu0 %1413
      %1417 = vset.pattern.permute.xlu0 0
      %1418 = vperm.xlu0 %1417, %v553
      %v1419 = vpop.permute.xlu0 %1418
      %1422 = vset.pattern.permute.xlu0 0
      %1423 = vperm.xlu0 %1422, %v554
      %v1424 = vpop.permute.xlu0 %1423
      %1427 = vset.pattern.permute.xlu0 0
      %1428 = vperm.xlu0 %1427, %v555
      %v1429 = vpop.permute.xlu0 %1428
      %1432 = vset.pattern.permute.xlu0 0
      %1433 = vperm.xlu0 %1432, %v556
      %v1434 = vpop.permute.xlu0 %1433
      %1437 = vset.pattern.permute.xlu0 0
      %1438 = vperm.xlu0 %1437, %v557
      %v1439 = vpop.permute.xlu0 %1438
      %1442 = vset.pattern.permute.xlu0 0
      %1443 = vperm.xlu0 %1442, %v558
      %v1444 = vpop.permute.xlu0 %1443
      %1447 = vset.pattern.permute.xlu0 0
      %1448 = vperm.xlu0 %1447, %v559
      %v1449 = vpop.permute.xlu0 %1448
      %1452 = vset.pattern.permute.xlu0 0
      %1453 = vperm.xlu0 %1452, %v560
      %v1454 = vpop.permute.xlu0 %1453
      %1457 = vset.pattern.permute.xlu0 0
      %1458 = vperm.xlu0 %1457, %v561
      %v1459 = vpop.permute.xlu0 %1458
      %1462 = vset.pattern.permute.xlu0 0
      %1463 = vperm.xlu0 %1462, %v562
      %v1464 = vpop.permute.xlu0 %1463
      %1467 = vset.pattern.permute.xlu0 0
      %1468 = vperm.xlu0 %1467, %v563
      %v1469 = vpop.permute.xlu0 %1468
      %1472 = vset.pattern.permute.xlu0 0
      %1473 = vperm.xlu0 %1472, %v564
      %v1474 = vpop.permute.xlu0 %1473
      %1477 = vset.pattern.permute.xlu0 0
      %1478 = vperm.xlu0 %1477, %v565
      %v1479 = vpop.permute.xlu0 %1478
      %1482 = vset.pattern.permute.xlu0 0
      %1483 = vperm.xlu0 %1482, %v566
      %v1484 = vpop.permute.xlu0 %1483
      %1487 = vset.pattern.permute.xlu0 0
      %1488 = vperm.xlu0 %1487, %v567
      %v1489 = vpop.permute.xlu0 %1488
      %1492 = vset.pattern.permute.xlu0 0
      %1493 = vperm.xlu0 %1492, %v568
      %v1494 = vpop.permute.xlu0 %1493
      %1497 = vset.pattern.permute.xlu0 0
      %1498 = vperm.xlu0 %1497, %v569
      %v1499 = vpop.permute.xlu0 %1498
      %1502 = vset.pattern.permute.xlu0 0
      %1503 = vperm.xlu0 %1502, %v570
      %v1504 = vpop.permute.xlu0 %1503
      %1507 = vset.pattern.permute.xlu0 0
      %1508 = vperm.xlu0 %1507, %v571
      %v1509 = vpop.permute.xlu0 %1508
      %1512 = vset.pattern.permute.xlu0 0
      %1513 = vperm.xlu0 %1512, %v572
      %v1514 = vpop.permute.xlu0 %1513
      %1517 = vset.pattern.permute.xlu0 0
      %1518 = vperm.xlu0 %1517, %v573
      %v1519 = vpop.permute.xlu0 %1518
      %1522 = vset.pattern.permute.xlu0 0
      %1523 = vperm.xlu0 %1522, %v574
      %v1524 = vpop.permute.xlu0 %1523
      %1527 = vset.pattern.permute.xlu0 0
      %1528 = vperm.xlu0 %1527, %v575
      %v1529 = vpop.permute.xlu0 %1528
      %1532 = vset.pattern.permute.xlu0 0
      %1533 = vperm.xlu0 %1532, %v576
      %v1534 = vpop.permute.xlu0 %1533
      %1537 = vset.pattern.permute.xlu0 0
      %1538 = vperm.xlu0 %1537, %v577
      %v1539 = vpop.permute.xlu0 %1538
      %1542 = vset.pattern.permute.xlu0 0
      %1543 = vperm.xlu0 %1542, %v578
      %v1544 = vpop.permute.xlu0 %1543
      %1547 = vset.pattern.permute.xlu0 0
      %1548 = vperm.xlu0 %1547, %v579
      %v1549 = vpop.permute.xlu0 %1548
      %1552 = vset.pattern.permute.xlu0 0
      %1553 = vperm.xlu0 %1552, %v580
      %v1554 = vpop.permute.xlu0 %1553
      %1557 = vset.pattern.permute.xlu0 0
      %1558 = vperm.xlu0 %1557, %v581
      %v1559 = vpop.permute.xlu0 %1558
      %1562 = vset.pattern.permute.xlu0 0
      %1563 = vperm.xlu0 %1562, %v582
      %v1564 = vpop.permute.xlu0 %1563
      %1567 = vset.pattern.permute.xlu0 0
      %1568 = vperm.xlu0 %1567, %v583
      %v1569 = vpop.permute.xlu0 %1568
      %1572 = vset.pattern.permute.xlu0 0
      %1573 = vperm.xlu0 %1572, %v584
      %v1574 = vpop.permute.xlu0 %1573
      %1577 = vset.pattern.permute.xlu0 0
      %1578 = vperm.xlu0 %1577, %v585
      %v1579 = vpop.permute.xlu0 %1578
      %v1581 = vmul.f32 %v1365, %v1404
      %v1582 = vmul.f32 %v1366, %v1409
      %v1583 = vmul.f32 %v1367, %v1414
      %v1584 = vmul.f32 %v1368, %v1419
      %v1585 = vmul.f32 %v1369, %v1424
      %v1586 = vmul.f32 %v1370, %v1429
      %v1587 = vmul.f32 %v1371, %v1434
      %v1588 = vmul.f32 %v1372, %v1439
      %v1589 = vmul.f32 %v1373, %v1444
      %v1590 = vmul.f32 %v1374, %v1449
      %v1591 = vmul.f32 %v1375, %v1454
      %v1592 = vmul.f32 %v1376, %v1459
      %v1593 = vmul.f32 %v1377, %v1464
      %v1594 = vmul.f32 %v1378, %v1469
      %v1595 = vmul.f32 %v1379, %v1474
      %v1596 = vmul.f32 %v1380, %v1479
      %v1597 = vmul.f32 %v1381, %v1484
      %v1598 = vmul.f32 %v1382, %v1489
      %v1599 = vmul.f32 %v1383, %v1494
      %v1600 = vmul.f32 %v1384, %v1499
      %v1601 = vmul.f32 %v1385, %v1504
      %v1602 = vmul.f32 %v1386, %v1509
      %v1603 = vmul.f32 %v1387, %v1514
      %v1604 = vmul.f32 %v1388, %v1519
      %v1605 = vmul.f32 %v1389, %v1524
      %v1606 = vmul.f32 %v1390, %v1529
      %v1607 = vmul.f32 %v1391, %v1534
      %v1608 = vmul.f32 %v1392, %v1539
      %v1609 = vmul.f32 %v1393, %v1544
      %v1610 = vmul.f32 %v1394, %v1549
      %v1611 = vmul.f32 %v1395, %v1554
      %v1612 = vmul.f32 %v1396, %v1559
      %v1613 = vmul.f32 %v1397, %v1564
      %v1614 = vmul.f32 %v1398, %v1569
      %v1615 = vmul.f32 %v1399, %v1574
      %v1616 = vmul.f32 %v1400, %v1579
      %v1617 = vpack.c.bf16 %v1582, %v1581
      %v1618 = vpack.c.bf16 %v1584, %v1583
      %v1619 = vpack.c.bf16 %v1586, %v1585
      %v1620 = vpack.c.bf16 %v1588, %v1587
      %v1621 = vpack.c.bf16 %v1590, %v1589
      %v1622 = vpack.c.bf16 %v1592, %v1591
      %v1623 = vpack.c.bf16 %v1594, %v1593
      %v1624 = vpack.c.bf16 %v1596, %v1595
      %v1625 = vpack.c.bf16 %v1598, %v1597
      %v1626 = vpack.c.bf16 %v1600, %v1599
      %v1627 = vpack.c.bf16 %v1602, %v1601
      %v1628 = vpack.c.bf16 %v1604, %v1603
      %v1629 = vpack.c.bf16 %v1606, %v1605
      %v1630 = vpack.c.bf16 %v1608, %v1607
      %v1631 = vpack.c.bf16 %v1610, %v1609
      %v1632 = vpack.c.bf16 %v1612, %v1611
      %v1633 = vpack.c.bf16 %v1614, %v1613
      %v1634 = vpack.c.bf16 %v1616, %v1615
      %vm1635 = vsmask.f32 4352
      %v1637 = vshrl.u32 %v1617, 16
      %v1639 = vrot.slane %v1637, 3
      %v1640 = vshll.u32 %v1617, 16
      %v1642 = vrot.slane %v1640, 4
      %v1643 = vor.u32 %v1639, %v1642
      %v1645 = vshrl.u32 %v1618, 16
      %v1647 = vrot.slane %v1645, 3
      %v1648 = vshll.u32 %v1618, 16
      %v1650 = vrot.slane %v1648, 4
      %v1651 = vor.u32 %v1647, %v1650
      %v1652 = vsel %vm1635, %v1643, %v1651
      %v1654 = vshrl.u32 %v1619, 16
      %v1656 = vrot.slane %v1654, 3
      %v1657 = vshll.u32 %v1619, 16
      %v1659 = vrot.slane %v1657, 4
      %v1660 = vor.u32 %v1656, %v1659
      %v1661 = vsel %vm1635, %v1651, %v1660
      %v1663 = vshrl.u32 %v1620, 16
      %v1665 = vrot.slane %v1663, 3
      %v1666 = vshll.u32 %v1620, 16
      %v1668 = vrot.slane %v1666, 4
      %v1669 = vor.u32 %v1665, %v1668
      %v1670 = vsel %vm1635, %v1660, %v1669
      %v1672 = vshrl.u32 %v1621, 16
      %v1674 = vrot.slane %v1672, 3
      %v1675 = vshll.u32 %v1621, 16
      %v1677 = vrot.slane %v1675, 4
      %v1678 = vor.u32 %v1674, %v1677
      %v1679 = vsel %vm1635, %v1669, %v1678
      %v1681 = vshrl.u32 %v1622, 16
      %v1683 = vrot.slane %v1681, 3
      %v1684 = vshll.u32 %v1622, 16
      %v1686 = vrot.slane %v1684, 4
      %v1687 = vor.u32 %v1683, %v1686
      %v1688 = vsel %vm1635, %v1678, %v1687
      %v1690 = vshrl.u32 %v1623, 16
      %v1692 = vrot.slane %v1690, 3
      %v1693 = vshll.u32 %v1623, 16
      %v1695 = vrot.slane %v1693, 4
      %v1696 = vor.u32 %v1692, %v1695
      %v1697 = vsel %vm1635, %v1687, %v1696
      %v1699 = vshrl.u32 %v1624, 16
      %v1701 = vrot.slane %v1699, 3
      %v1702 = vshll.u32 %v1624, 16
      %v1704 = vrot.slane %v1702, 4
      %v1705 = vor.u32 %v1701, %v1704
      %v1706 = vsel %vm1635, %v1696, %v1705
      %v1708 = vshrl.u32 %v1625, 16
      %v1710 = vrot.slane %v1708, 3
      %v1711 = vshll.u32 %v1625, 16
      %v1713 = vrot.slane %v1711, 4
      %v1714 = vor.u32 %v1710, %v1713
      %v1715 = vsel %vm1635, %v1705, %v1714
      %v1717 = vshrl.u32 %v1626, 16
      %v1719 = vrot.slane %v1717, 3
      %v1720 = vshll.u32 %v1626, 16
      %v1722 = vrot.slane %v1720, 4
      %v1723 = vor.u32 %v1719, %v1722
      %v1724 = vsel %vm1635, %v1714, %v1723
      %v1726 = vshrl.u32 %v1627, 16
      %v1728 = vrot.slane %v1726, 3
      %v1729 = vshll.u32 %v1627, 16
      %v1731 = vrot.slane %v1729, 4
      %v1732 = vor.u32 %v1728, %v1731
      %v1733 = vsel %vm1635, %v1723, %v1732
      %v1735 = vshrl.u32 %v1628, 16
      %v1737 = vrot.slane %v1735, 3
      %v1738 = vshll.u32 %v1628, 16
      %v1740 = vrot.slane %v1738, 4
      %v1741 = vor.u32 %v1737, %v1740
      %v1742 = vsel %vm1635, %v1732, %v1741
      %v1744 = vshrl.u32 %v1629, 16
      %v1746 = vrot.slane %v1744, 3
      %v1747 = vshll.u32 %v1629, 16
      %v1749 = vrot.slane %v1747, 4
      %v1750 = vor.u32 %v1746, %v1749
      %v1751 = vsel %vm1635, %v1741, %v1750
      %v1753 = vshrl.u32 %v1630, 16
      %v1755 = vrot.slane %v1753, 3
      %v1756 = vshll.u32 %v1630, 16
      %v1758 = vrot.slane %v1756, 4
      %v1759 = vor.u32 %v1755, %v1758
      %v1760 = vsel %vm1635, %v1750, %v1759
      %v1762 = vshrl.u32 %v1631, 16
      %v1764 = vrot.slane %v1762, 3
      %v1765 = vshll.u32 %v1631, 16
      %v1767 = vrot.slane %v1765, 4
      %v1768 = vor.u32 %v1764, %v1767
      %v1769 = vsel %vm1635, %v1759, %v1768
      %v1771 = vshrl.u32 %v1632, 16
      %v1773 = vrot.slane %v1771, 3
      %v1774 = vshll.u32 %v1632, 16
      %v1776 = vrot.slane %v1774, 4
      %v1777 = vor.u32 %v1773, %v1776
      %v1778 = vsel %vm1635, %v1768, %v1777
      %v1780 = vshrl.u32 %v1633, 16
      %v1782 = vrot.slane %v1780, 3
      %v1783 = vshll.u32 %v1633, 16
      %v1785 = vrot.slane %v1783, 4
      %v1786 = vor.u32 %v1782, %v1785
      %v1787 = vsel %vm1635, %v1777, %v1786
      %v1789 = vshrl.u32 %v1634, 16
      %v1791 = vrot.slane %v1789, 3
      %v1792 = vshll.u32 %v1634, 16
      %v1794 = vrot.slane %v1792, 4
      %v1795 = vor.u32 %v1791, %v1794
      %v1796 = vsel %vm1635, %v1786, %v1795
      %vm1816 = vcmask 130052
      %vm1817 = vsmask.f32 7954
      %vm1818 = vmand %vm1816, %vm1817
      %v1819 = vld [vmem:[#allocation2 + $0x18] sm:$0xf0]
      %v1820 = vsel %vm1818, %v1643, %v1819
      %1821 = vst [vmem:[#allocation2 + $0x18] sm:$0xf0] %v1820
      %1822 = vst.msk [vmem:[#allocation2 + $0x20] sm:$0xff] %vm640, %v1652
      %1823 = vst.msk [vmem:[#allocation2 + $0x28] sm:$0xff] %vm640, %v1661
      %1824 = vst.msk [vmem:[#allocation2 + $0x30] sm:$0xff] %vm640, %v1670
      %1825 = vst.msk [vmem:[#allocation2 + $0x38] sm:$0xff] %vm640, %v1679
      %1826 = vst.msk [vmem:[#allocation2 + $0x40] sm:$0xff] %vm640, %v1688
      %1827 = vst.msk [vmem:[#allocation2 + $0x48] sm:$0xff] %vm640, %v1697
      %1828 = vst.msk [vmem:[#allocation2 + $0x50] sm:$0xff] %vm640, %v1706
      %1829 = vst.msk [vmem:[#allocation2 + $0x58] sm:$0xff] %vm640, %v1715
      %1830 = vst.msk [vmem:[#allocation2 + $0x60] sm:$0xff] %vm640, %v1724
      %1831 = vst.msk [vmem:[#allocation2 + $0x68] sm:$0xff] %vm640, %v1733
      %1832 = vst.msk [vmem:[#allocation2 + $0x70] sm:$0xff] %vm640, %v1742
      %1833 = vst.msk [vmem:[#allocation2 + $0x78] sm:$0xff] %vm640, %v1751
      %1834 = vst.msk [vmem:[#allocation2 + $0x80] sm:$0xff] %vm640, %v1760
      %1835 = vst.msk [vmem:[#allocation2 + $0x88] sm:$0xff] %vm640, %v1769
      %1836 = vst.msk [vmem:[#allocation2 + $0x90] sm:$0xff] %vm640, %v1778
      %1837 = vst.msk [vmem:[#allocation2 + $0x98] sm:$0xff] %vm640, %v1787
      %1838 = vst.msk [vmem:[#allocation2 + $0xa0] sm:$0xff] %vm640, %v1796
      %vm1839 = vcmask 126976
      %vm1840 = vmand %vm1839, %vm1635
      %v1841 = vld [vmem:[#allocation2 + $0xa8] sm:$0x1f]
      %v1842 = vsel %vm1840, %v1795, %v1841
      %1843 = vst [vmem:[#allocation2 + $0xa8] sm:$0x1f] %v1842
      %vm1862 = vcmask 1043456
      %v1863 = vrot.slane %v1617, 4
      %v1864 = vrot.slane %v1618, 4
      %v1865 = vsel %vm1862, %v1863, %v1864
      %v1866 = vrot.slane %v1619, 4
      %v1867 = vsel %vm1862, %v1864, %v1866
      %v1868 = vrot.slane %v1620, 4
      %v1869 = vsel %vm1862, %v1866, %v1868
      %v1870 = vrot.slane %v1621, 4
      %v1871 = vsel %vm1862, %v1868, %v1870
      %v1872 = vrot.slane %v1622, 4
      %v1873 = vsel %vm1862, %v1870, %v1872
      %v1874 = vrot.slane %v1623, 4
      %v1875 = vsel %vm1862, %v1872, %v1874
      %v1876 = vrot.slane %v1624, 4
      %v1877 = vsel %vm1862, %v1874, %v1876
      %v1878 = vrot.slane %v1625, 4
      %v1879 = vsel %vm1862, %v1876, %v1878
      %v1880 = vrot.slane %v1626, 4
      %v1881 = vsel %vm1862, %v1878, %v1880
      %v1882 = vrot.slane %v1627, 4
      %v1883 = vsel %vm1862, %v1880, %v1882
      %v1884 = vrot.slane %v1628, 4
      %v1885 = vsel %vm1862, %v1882, %v1884
      %v1886 = vrot.slane %v1629, 4
      %v1887 = vsel %vm1862, %v1884, %v1886
      %v1888 = vrot.slane %v1630, 4
      %v1889 = vsel %vm1862, %v1886, %v1888
      %v1890 = vrot.slane %v1631, 4
      %v1891 = vsel %vm1862, %v1888, %v1890
      %v1892 = vrot.slane %v1632, 4
      %v1893 = vsel %vm1862, %v1890, %v1892
      %v1894 = vrot.slane %v1633, 4
      %v1895 = vsel %vm1862, %v1892, %v1894
      %v1896 = vrot.slane %v1634, 4
      %v1897 = vsel %vm1862, %v1894, %v1896
      %1898 = vrot.lane.b32.xlu0 %v1863, 16
      %v1899 = vpop.permute.xlu0 %1898
      %1900 = vrot.lane.b32.xlu0 %v1865, 16
      %v1901 = vpop.permute.xlu0 %1900
      %1902 = vrot.lane.b32.xlu0 %v1867, 16
      %v1903 = vpop.permute.xlu0 %1902
      %1904 = vrot.lane.b32.xlu0 %v1869, 16
      %v1905 = vpop.permute.xlu0 %1904
      %1906 = vrot.lane.b32.xlu0 %v1871, 16
      %v1907 = vpop.permute.xlu0 %1906
      %1908 = vrot.lane.b32.xlu0 %v1873, 16
      %v1909 = vpop.permute.xlu0 %1908
      %1910 = vrot.lane.b32.xlu0 %v1875, 16
      %v1911 = vpop.permute.xlu0 %1910
      %1912 = vrot.lane.b32.xlu0 %v1877, 16
      %v1913 = vpop.permute.xlu0 %1912
      %1914 = vrot.lane.b32.xlu0 %v1879, 16
      %v1915 = vpop.permute.xlu0 %1914
      %1916 = vrot.lane.b32.xlu0 %v1881, 16
      %v1917 = vpop.permute.xlu0 %1916
      %1918 = vrot.lane.b32.xlu0 %v1883, 16
      %v1919 = vpop.permute.xlu0 %1918
      %1920 = vrot.lane.b32.xlu0 %v1885, 16
      %v1921 = vpop.permute.xlu0 %1920
      %1922 = vrot.lane.b32.xlu0 %v1887, 16
      %v1923 = vpop.permute.xlu0 %1922
      %1924 = vrot.lane.b32.xlu0 %v1889, 16
      %v1925 = vpop.permute.xlu0 %1924
      %1926 = vrot.lane.b32.xlu0 %v1891, 16
      %v1927 = vpop.permute.xlu0 %1926
      %1928 = vrot.lane.b32.xlu0 %v1893, 16
      %v1929 = vpop.permute.xlu0 %1928
      %1930 = vrot.lane.b32.xlu0 %v1895, 16
      %v1931 = vpop.permute.xlu0 %1930
      %1932 = vrot.lane.b32.xlu0 %v1897, 16
      %v1933 = vpop.permute.xlu0 %1932
      %1934 = vrot.lane.b32.xlu0 %v1896, 16
      %v1935 = vpop.permute.xlu0 %1934
      %vm1955 = vcmask 261252
      %1956 = vst.msk [vmem:[#allocation2 + $0x18] sm:$0xf0] %vm1955, %v1899
      %vm1957 = vcmask 261248
      %1958 = vst.msk [vmem:[#allocation2 + $0x20] sm:$0xff] %vm1957, %v1901
      %1959 = vst.msk [vmem:[#allocation2 + $0x28] sm:$0xff] %vm1957, %v1903
      %1960 = vst.msk [vmem:[#allocation2 + $0x30] sm:$0xff] %vm1957, %v1905
      %1961 = vst.msk [vmem:[#allocation2 + $0x38] sm:$0xff] %vm1957, %v1907
      %1962 = vst.msk [vmem:[#allocation2 + $0x40] sm:$0xff] %vm1957, %v1909
      %1963 = vst.msk [vmem:[#allocation2 + $0x48] sm:$0xff] %vm1957, %v1911
      %1964 = vst.msk [vmem:[#allocation2 + $0x50] sm:$0xff] %vm1957, %v1913
      %1965 = vst.msk [vmem:[#allocation2 + $0x58] sm:$0xff] %vm1957, %v1915
      %1966 = vst.msk [vmem:[#allocation2 + $0x60] sm:$0xff] %vm1957, %v1917
      %1967 = vst.msk [vmem:[#allocation2 + $0x68] sm:$0xff] %vm1957, %v1919
      %1968 = vst.msk [vmem:[#allocation2 + $0x70] sm:$0xff] %vm1957, %v1921
      %1969 = vst.msk [vmem:[#allocation2 + $0x78] sm:$0xff] %vm1957, %v1923
      %1970 = vst.msk [vmem:[#allocation2 + $0x80] sm:$0xff] %vm1957, %v1925
      %1971 = vst.msk [vmem:[#allocation2 + $0x88] sm:$0xff] %vm1957, %v1927
      %1972 = vst.msk [vmem:[#allocation2 + $0x90] sm:$0xff] %vm1957, %v1929
      %1973 = vst.msk [vmem:[#allocation2 + $0x98] sm:$0xff] %vm1957, %v1931
      %1974 = vst.msk [vmem:[#allocation2 + $0xa0] sm:$0xff] %vm1957, %v1933
      %vm1975 = vcmask 257152
      %1976 = vst.msk [vmem:[#allocation2 + $0xa8] sm:$0xf] %vm1975, %v1935
      %vm1977 = vsmask.f32 3328
      %v1978 = vrot.slane %v1637, 4
      %v1979 = vrot.slane %v1640, 5
      %v1980 = vor.u32 %v1978, %v1979
      %v1981 = vrot.slane %v1645, 4
      %v1982 = vrot.slane %v1648, 5
      %v1983 = vor.u32 %v1981, %v1982
      %v1984 = vsel %vm1977, %v1980, %v1983
      %v1985 = vrot.slane %v1654, 4
      %v1986 = vrot.slane %v1657, 5
      %v1987 = vor.u32 %v1985, %v1986
      %v1988 = vsel %vm1977, %v1983, %v1987
      %v1989 = vrot.slane %v1663, 4
      %v1990 = vrot.slane %v1666, 5
      %v1991 = vor.u32 %v1989, %v1990
      %v1992 = vsel %vm1977, %v1987, %v1991
      %v1993 = vrot.slane %v1672, 4
      %v1994 = vrot.slane %v1675, 5
      %v1995 = vor.u32 %v1993, %v1994
      %v1996 = vsel %vm1977, %v1991, %v1995
      %v1997 = vrot.slane %v1681, 4
      %v1998 = vrot.slane %v1684, 5
      %v1999 = vor.u32 %v1997, %v1998
      %v2000 = vsel %vm1977, %v1995, %v1999
      %v2001 = vrot.slane %v1690, 4
      %v2002 = vrot.slane %v1693, 5
      %v2003 = vor.u32 %v2001, %v2002
      %v2004 = vsel %vm1977, %v1999, %v2003
      %v2005 = vrot.slane %v1699, 4
      %v2006 = vrot.slane %v1702, 5
      %v2007 = vor.u32 %v2005, %v2006
      %v2008 = vsel %vm1977, %v2003, %v2007
      %v2009 = vrot.slane %v1708, 4
      %v2010 = vrot.slane %v1711, 5
      %v2011 = vor.u32 %v2009, %v2010
      %v2012 = vsel %vm1977, %v2007, %v2011
      %v2013 = vrot.slane %v1717, 4
      %v2014 = vrot.slane %v1720, 5
      %v2015 = vor.u32 %v2013, %v2014
      %v2016 = vsel %vm1977, %v2011, %v2015
      %v2017 = vrot.slane %v1726, 4
      %v2018 = vrot.slane %v1729, 5
      %v2019 = vor.u32 %v2017, %v2018
      %v2020 = vsel %vm1977, %v2015, %v2019
      %v2021 = vrot.slane %v1735, 4
      %v2022 = vrot.slane %v1738, 5
      %v2023 = vor.u32 %v2021, %v2022
      %v2024 = vsel %vm1977, %v2019, %v2023
      %v2025 = vrot.slane %v1744, 4
      %v2026 = vrot.slane %v1747, 5
      %v2027 = vor.u32 %v2025, %v2026
      %v2028 = vsel %vm1977, %v2023, %v2027
      %v2029 = vrot.slane %v1753, 4
      %v2030 = vrot.slane %v1756, 5
      %v2031 = vor.u32 %v2029, %v2030
      %v2032 = vsel %vm1977, %v2027, %v2031
      %v2033 = vrot.slane %v1762, 4
      %v2034 = vrot.slane %v1765, 5
      %v2035 = vor.u32 %v2033, %v2034
      %v2036 = vsel %vm1977, %v2031, %v2035
      %v2037 = vrot.slane %v1771, 4
      %v2038 = vrot.slane %v1774, 5
      %v2039 = vor.u32 %v2037, %v2038
      %v2040 = vsel %vm1977, %v2035, %v2039
      %v2041 = vrot.slane %v1780, 4
      %v2042 = vrot.slane %v1783, 5
      %v2043 = vor.u32 %v2041, %v2042
      %v2044 = vsel %vm1977, %v2039, %v2043
      %v2045 = vrot.slane %v1789, 4
      %v2046 = vrot.slane %v1792, 5
      %v2047 = vor.u32 %v2045, %v2046
      %v2048 = vsel %vm1977, %v2043, %v2047
      %2049 = vrot.lane.b32.xlu0 %v1980, 32
      %v2050 = vpop.permute.xlu0 %2049
      %2051 = vrot.lane.b32.xlu0 %v1984, 32
      %v2052 = vpop.permute.xlu0 %2051
      %2053 = vrot.lane.b32.xlu0 %v1988, 32
      %v2054 = vpop.permute.xlu0 %2053
      %2055 = vrot.lane.b32.xlu0 %v1992, 32
      %v2056 = vpop.permute.xlu0 %2055
      %2057 = vrot.lane.b32.xlu0 %v1996, 32
      %v2058 = vpop.permute.xlu0 %2057
      %2059 = vrot.lane.b32.xlu0 %v2000, 32
      %v2060 = vpop.permute.xlu0 %2059
      %2061 = vrot.lane.b32.xlu0 %v2004, 32
      %v2062 = vpop.permute.xlu0 %2061
      %2063 = vrot.lane.b32.xlu0 %v2008, 32
      %v2064 = vpop.permute.xlu0 %2063
      %2065 = vrot.lane.b32.xlu0 %v2012, 32
      %v2066 = vpop.permute.xlu0 %2065
      %2067 = vrot.lane.b32.xlu0 %v2016, 32
      %v2068 = vpop.permute.xlu0 %2067
      %2069 = vrot.lane.b32.xlu0 %v2020, 32
      %v2070 = vpop.permute.xlu0 %2069
      %2071 = vrot.lane.b32.xlu0 %v2024, 32
      %v2072 = vpop.permute.xlu0 %2071
      %2073 = vrot.lane.b32.xlu0 %v2028, 32
      %v2074 = vpop.permute.xlu0 %2073
      %2075 = vrot.lane.b32.xlu0 %v2032, 32
      %v2076 = vpop.permute.xlu0 %2075
      %2077 = vrot.lane.b32.xlu0 %v2036, 32
      %v2078 = vpop.permute.xlu0 %2077
      %2079 = vrot.lane.b32.xlu0 %v2040, 32
      %v2080 = vpop.permute.xlu0 %2079
      %2081 = vrot.lane.b32.xlu0 %v2044, 32
      %v2082 = vpop.permute.xlu0 %2081
      %2083 = vrot.lane.b32.xlu0 %v2048, 32
      %v2084 = vpop.permute.xlu0 %2083
      %2085 = vrot.lane.b32.xlu0 %v2047, 32
      %v2086 = vpop.permute.xlu0 %2085
      %vm2106 = vcmask 392451
      %vm2107 = vsmask.f32 7950
      %vm2108 = vmand %vm2106, %vm2107
      %v2109 = vld [vmem:[#allocation2 + $0x18] sm:$0xf8]
      %v2110 = vsel %vm2108, %v2050, %v2109
      %2111 = vst [vmem:[#allocation2 + $0x18] sm:$0xf8] %v2110
      %vm2112 = vcmask 392448
      %2113 = vst.msk [vmem:[#allocation2 + $0x20] sm:$0xff] %vm2112, %v2052
      %2114 = vst.msk [vmem:[#allocation2 + $0x28] sm:$0xff] %vm2112, %v2054
      %2115 = vst.msk [vmem:[#allocation2 + $0x30] sm:$0xff] %vm2112, %v2056
      %2116 = vst.msk [vmem:[#allocation2 + $0x38] sm:$0xff] %vm2112, %v2058
      %2117 = vst.msk [vmem:[#allocation2 + $0x40] sm:$0xff] %vm2112, %v2060
      %2118 = vst.msk [vmem:[#allocation2 + $0x48] sm:$0xff] %vm2112, %v2062
      %2119 = vst.msk [vmem:[#allocation2 + $0x50] sm:$0xff] %vm2112, %v2064
      %2120 = vst.msk [vmem:[#allocation2 + $0x58] sm:$0xff] %vm2112, %v2066
      %2121 = vst.msk [vmem:[#allocation2 + $0x60] sm:$0xff] %vm2112, %v2068
      %2122 = vst.msk [vmem:[#allocation2 + $0x68] sm:$0xff] %vm2112, %v2070
      %2123 = vst.msk [vmem:[#allocation2 + $0x70] sm:$0xff] %vm2112, %v2072
      %2124 = vst.msk [vmem:[#allocation2 + $0x78] sm:$0xff] %vm2112, %v2074
      %2125 = vst.msk [vmem:[#allocation2 + $0x80] sm:$0xff] %vm2112, %v2076
      %2126 = vst.msk [vmem:[#allocation2 + $0x88] sm:$0xff] %vm2112, %v2078
      %2127 = vst.msk [vmem:[#allocation2 + $0x90] sm:$0xff] %vm2112, %v2080
      %2128 = vst.msk [vmem:[#allocation2 + $0x98] sm:$0xff] %vm2112, %v2082
      %2129 = vst.msk [vmem:[#allocation2 + $0xa0] sm:$0xff] %vm2112, %v2084
      %vm2130 = vcmask 388352
      %vm2131 = vmand %vm2130, %vm1977
      %v2132 = vld [vmem:[#allocation2 + $0xa8] sm:$0xf]
      %v2133 = vsel %vm2131, %v2086, %v2132
      %2134 = vst [vmem:[#allocation2 + $0xa8] sm:$0xf] %v2133
      %v2135 = vld [vmem:[#allocation2] sm:$0xff]
      %v2136 = vld [vmem:[#allocation2 + $0x8] sm:$0xff]
      %v2137 = vld [vmem:[#allocation2 + $0x10] sm:$0xff]
      %v2138 = vld [vmem:[#allocation2 + $0x18] sm:$0xff]
      %v2139 = vld [vmem:[#allocation2 + $0x20] sm:$0xff]
      %v2140 = vld [vmem:[#allocation2 + $0x28] sm:$0xff]
      %v2141 = vld [vmem:[#allocation2 + $0x30] sm:$0xff]
      %v2142 = vld [vmem:[#allocation2 + $0x38] sm:$0xff]
      %v2143 = vld [vmem:[#allocation2 + $0x40] sm:$0xff]
      %v2144 = vld [vmem:[#allocation2 + $0x48] sm:$0xff]
      %v2145 = vld [vmem:[#allocation2 + $0x50] sm:$0xff]
      %v2146 = vld [vmem:[#allocation2 + $0x58] sm:$0xff]
      %v2147 = vld [vmem:[#allocation2 + $0x60] sm:$0xff]
      %v2148 = vld [vmem:[#allocation2 + $0x68] sm:$0xff]
      %v2149 = vld [vmem:[#allocation2 + $0x70] sm:$0xff]
      %v2150 = vld [vmem:[#allocation2 + $0x78] sm:$0xff]
      %v2151 = vld [vmem:[#allocation2 + $0x80] sm:$0xff]
      %v2152 = vld [vmem:[#allocation2 + $0x88] sm:$0xff]
      %v2153 = vld [vmem:[%s5] sm:$0xf]
      %v2154 = vld [vmem:[%s5 + $0x4] sm:$0xf]
      %v2155 = vld [vmem:[%s5 + $0x8] sm:$0xf]
      %v2156 = vld [vmem:[%s5 + $0xc] sm:$0xf]
      %v2157 = vld [vmem:[%s5 + $0x10] sm:$0xf]
      %v2158 = vld [vmem:[%s5 + $0x14] sm:$0xf]
      %v2159 = vld [vmem:[#allocation2] sm:$0xf0]
      %v2160 = vld [vmem:[#allocation2 + $0x90] sm:$0xf]
      %s2161 = scalar_lea.vmem %s5, 24
      %v2162 = vld [vmem:[%s2161] sm:$0xf]
      %v2163 = vld [vmem:[%s2161 + $0x4] sm:$0xf]
      %v2164 = vld [vmem:[%s2161 + $0x8] sm:$0xf]
      %v2165 = vld [vmem:[%s2161 + $0xc] sm:$0xf]
      %v2166 = vld [vmem:[%s2161 + $0x10] sm:$0xf]
      %v2167 = vld [vmem:[%s2161 + $0x14] sm:$0xf]
      %v2187 = vrot.slane %v2159, 4
      %v2188 = vrot.slane %v2136, 4
      %v2189 = vsel %vm1862, %v2187, %v2188
      %v2190 = vrot.slane %v2137, 4
      %v2191 = vsel %vm1862, %v2188, %v2190
      %v2192 = vrot.slane %v2138, 4
      %v2193 = vsel %vm1862, %v2190, %v2192
      %v2194 = vrot.slane %v2139, 4
      %v2195 = vsel %vm1862, %v2192, %v2194
      %v2196 = vrot.slane %v2140, 4
      %v2197 = vsel %vm1862, %v2194, %v2196
      %v2198 = vrot.slane %v2141, 4
      %v2199 = vsel %vm1862, %v2196, %v2198
      %v2200 = vrot.slane %v2142, 4
      %v2201 = vsel %vm1862, %v2198, %v2200
      %v2202 = vrot.slane %v2143, 4
      %v2203 = vsel %vm1862, %v2200, %v2202
      %v2204 = vrot.slane %v2144, 4
      %v2205 = vsel %vm1862, %v2202, %v2204
      %v2206 = vrot.slane %v2145, 4
      %v2207 = vsel %vm1862, %v2204, %v2206
      %v2208 = vrot.slane %v2146, 4
      %v2209 = vsel %vm1862, %v2206, %v2208
      %v2210 = vrot.slane %v2147, 4
      %v2211 = vsel %vm1862, %v2208, %v2210
      %v2212 = vrot.slane %v2148, 4
      %v2213 = vsel %vm1862, %v2210, %v2212
      %v2214 = vrot.slane %v2149, 4
      %v2215 = vsel %vm1862, %v2212, %v2214
      %v2216 = vrot.slane %v2150, 4
      %v2217 = vsel %vm1862, %v2214, %v2216
      %v2218 = vrot.slane %v2151, 4
      %v2219 = vsel %vm1862, %v2216, %v2218
      %v2220 = vrot.slane %v2152, 4
      %v2221 = vsel %vm1862, %v2218, %v2220
      %v2222 = vrot.slane %v2160, 4
      %v2223 = vsel %vm1862, %v2220, %v2222
      %v2230 = vunpack.c.l.b16 %v2162
      %v2231 = vunpack.c.l.b16 %v2163
      %v2232 = vunpack.c.l.b16 %v2164
      %v2233 = vunpack.c.l.b16 %v2165
      %v2234 = vunpack.c.l.b16 %v2166
      %v2235 = vunpack.c.l.b16 %v2167
      %v2236 = vpack.c.b16 %v2231, %v2230
      %v2237 = vpack.c.b16 %v2233, %v2232
      %v2238 = vpack.c.b16 %v2235, %v2234
      %v2243 = vsel %vm586, %v2189, 0
      %v2246 = vsel %vm586, %v2191, 0
      %v2249 = vsel %vm586, %v2193, 0
      %v2252 = vsel %vm586, %v2195, 0
      %v2255 = vsel %vm586, %v2197, 0
      %v2258 = vsel %vm586, %v2199, 0
      %v2261 = vsel %vm586, %v2201, 0
      %v2264 = vsel %vm586, %v2203, 0
      %v2267 = vsel %vm586, %v2205, 0
      %v2270 = vsel %vm586, %v2207, 0
      %v2273 = vsel %vm586, %v2209, 0
      %v2276 = vsel %vm586, %v2211, 0
      %v2279 = vsel %vm586, %v2213, 0
      %v2282 = vsel %vm586, %v2215, 0
      %v2285 = vsel %vm586, %v2217, 0
      %v2288 = vsel %vm586, %v2219, 0
      %v2291 = vsel %vm586, %v2221, 0
      %v2294 = vsel %vm586, %v2223, 0
      %2296 = vmatprep.subr.bf16.mxu0 0
      %2297 = vmatpush1.bf16.msra.mxu0 %v2236
      %2298 = vmatprep.subr.bf16.mxu0 0
      %2299 = vmatpush1.bf16.msra.mxu0 %v2237
      %2300 = vmatprep.subr.bf16.mxu0 0
      %2301 = vmatpush1.bf16.msra.mxu0 %v2238
      %2302 = vmatprep.subr.bf16.mxu0 0
      %2303 = vmatpush1.bf16.msra.mxu0 0
      %2304 = vmatprep.subr.bf16.mxu0 0
      %2305 = vmatpush1.bf16.msra.mxu0 0
      %2306 = vmatprep.subr.bf16.mxu0 0
      %2307 = vmatpush1.bf16.msra.mxu0 0
      %2308 = vmatprep.subr.bf16.mxu0 0
      %2309 = vmatpush1.bf16.msra.mxu0 0
      %2310 = vmatprep.subr.bf16.mxu0 0
      %2311 = vmatpush1.bf16.msra.mxu0 0
      %2312 = vmatprep.subr.bf16.mxu0 0
      %2313 = vmatpush1.bf16.msra.mxu0 0
      %2314 = vmatprep.subr.bf16.mxu0 0
      %2315 = vmatpush1.bf16.msra.mxu0 0
      %2316 = vmatprep.subr.bf16.mxu0 0
      %2317 = vmatpush1.bf16.msra.mxu0 0
      %2318 = vmatprep.subr.bf16.mxu0 0
      %2319 = vmatpush1.bf16.msra.mxu0 0
      %2320 = vmatprep.subr.bf16.mxu0 0
      %2321 = vmatpush1.bf16.msra.mxu0 0
      %2322 = vmatprep.subr.bf16.mxu0 0
      %2323 = vmatpush1.bf16.msra.mxu0 0
      %2324 = vmatprep.subr.bf16.mxu0 0
      %2325 = vmatpush1.bf16.msra.mxu0 0
      %2326 = vmatprep.subr.bf16.mxu0 0
      %2327 = vmatpush1.bf16.msra.mxu0 0
      %2328 = vmatprep.mubr.bf16.mxu0 0
      %2329 = vmatmul.mubr.bf16.gmra.mrb[0].mxu0 %v2243
      %v2330 = vpop.f32.mrb[0].mxu0
      %v2331 = vadd.f32 0.0, %v2330
      %v2332 = vpop.f32.mrb[0].mxu0
      %v2333 = vpop.f32.mrb[0].mxu0
      %v2334 = vadd.f32 0.0, %v2333
      %v2335 = vpop.f32.mrb[0].mxu0
      %2336 = vmatprep.mubr.bf16.mxu0 0
      %2337 = vmatmul.mubr.bf16.gmra.mrb[0].mxu0 %v2246
      %v2338 = vpop.f32.mrb[0].mxu0
      %v2339 = vadd.f32 0.0, %v2338
      %v2340 = vpop.f32.mrb[0].mxu0
      %v2341 = vpop.f32.mrb[0].mxu0
      %v2342 = vadd.f32 0.0, %v2341
      %v2343 = vpop.f32.mrb[0].mxu0
      %2344 = vmatprep.mubr.bf16.mxu0 0
      %2345 = vmatmul.mubr.bf16.gmra.mrb[0].mxu0 %v2249
      %v2346 = vpop.f32.mrb[0].mxu0
      %v2347 = vadd.f32 0.0, %v2346
      %v2348 = vpop.f32.mrb[0].mxu0
      %v2349 = vpop.f32.mrb[0].mxu0
      %v2350 = vadd.f32 0.0, %v2349
      %v2351 = vpop.f32.mrb[0].mxu0
      %2352 = vmatprep.mubr.bf16.mxu0 0
      %2353 = vmatmul.mubr.bf16.gmra.mrb[0].mxu0 %v2252
      %v2354 = vpop.f32.mrb[0].mxu0
      %v2355 = vadd.f32 0.0, %v2354
      %v2356 = vpop.f32.mrb[0].mxu0
      %v2357 = vpop.f32.mrb[0].mxu0
      %v2358 = vadd.f32 0.0, %v2357
      %v2359 = vpop.f32.mrb[0].mxu0
      %2360 = vmatprep.mubr.bf16.mxu0 0
      %2361 = vmatmul.mubr.bf16.gmra.mrb[0].mxu0 %v2255
      %v2362 = vpop.f32.mrb[0].mxu0
      %v2363 = vadd.f32 0.0, %v2362
      %v2364 = vpop.f32.mrb[0].mxu0
      %v2365 = vpop.f32.mrb[0].mxu0
      %v2366 = vadd.f32 0.0, %v2365
      %v2367 = vpop.f32.mrb[0].mxu0
      %2368 = vmatprep.mubr.bf16.mxu0 0
      %2369 = vmatmul.mubr.bf16.gmra.mrb[0].mxu0 %v2258
      %v2370 = vpop.f32.mrb[0].mxu0
      %v2371 = vadd.f32 0.0, %v2370
      %v2372 = vpop.f32.mrb[0].mxu0
      %v2373 = vpop.f32.mrb[0].mxu0
      %v2374 = vadd.f32 0.0, %v2373
      %v2375 = vpop.f32.mrb[0].mxu0
      %2376 = vmatprep.mubr.bf16.mxu0 0
      %2377 = vmatmul.mubr.bf16.gmra.mrb[0].mxu0 %v2261
      %v2378 = vpop.f32.mrb[0].mxu0
      %v2379 = vadd.f32 0.0, %v2378
      %v2380 = vpop.f32.mrb[0].mxu0
      %v2381 = vpop.f32.mrb[0].mxu0
      %v2382 = vadd.f32 0.0, %v2381
      %v2383 = vpop.f32.mrb[0].mxu0
      %2384 = vmatprep.mubr.bf16.mxu0 0
      %2385 = vmatmul.mubr.bf16.gmra.mrb[0].mxu0 %v2264
      %v2386 = vpop.f32.mrb[0].mxu0
      %v2387 = vadd.f32 0.0, %v2386
      %v2388 = vpop.f32.mrb[0].mxu0
      %v2389 = vpop.f32.mrb[0].mxu0
      %v2390 = vadd.f32 0.0, %v2389
      %v2391 = vpop.f32.mrb[0].mxu0
      %2392 = vmatprep.mubr.bf16.mxu0 0
      %2393 = vmatmul.mubr.bf16.gmra.mrb[0].mxu0 %v2267
      %v2394 = vpop.f32.mrb[0].mxu0
      %v2395 = vadd.f32 0.0, %v2394
      %v2396 = vpop.f32.mrb[0].mxu0
      %v2397 = vpop.f32.mrb[0].mxu0
      %v2398 = vadd.f32 0.0, %v2397
      %v2399 = vpop.f32.mrb[0].mxu0
      %2400 = vmatprep.mubr.bf16.mxu0 0
      %2401 = vmatmul.mubr.bf16.gmra.mrb[0].mxu0 %v2270
      %v2402 = vpop.f32.mrb[0].mxu0
      %v2403 = vadd.f32 0.0, %v2402
      %v2404 = vpop.f32.mrb[0].mxu0
      %v2405 = vpop.f32.mrb[0].mxu0
      %v2406 = vadd.f32 0.0, %v2405
      %v2407 = vpop.f32.mrb[0].mxu0
      %2408 = vmatprep.mubr.bf16.mxu0 0
      %2409 = vmatmul.mubr.bf16.gmra.mrb[0].mxu0 %v2273
      %v2410 = vpop.f32.mrb[0].mxu0
      %v2411 = vadd.f32 0.0, %v2410
      %v2412 = vpop.f32.mrb[0].mxu0
      %v2413 = vpop.f32.mrb[0].mxu0
      %v2414 = vadd.f32 0.0, %v2413
      %v2415 = vpop.f32.mrb[0].mxu0
      %2416 = vmatprep.mubr.bf16.mxu0 0
      %2417 = vmatmul.mubr.bf16.gmra.mrb[0].mxu0 %v2276
      %v2418 = vpop.f32.mrb[0].mxu0
      %v2419 = vadd.f32 0.0, %v2418
      %v2420 = vpop.f32.mrb[0].mxu0
      %v2421 = vpop.f32.mrb[0].mxu0
      %v2422 = vadd.f32 0.0, %v2421
      %v2423 = vpop.f32.mrb[0].mxu0
      %2424 = vmatprep.mubr.bf16.mxu0 0
      %2425 = vmatmul.mubr.bf16.gmra.mrb[0].mxu0 %v2279
      %v2426 = vpop.f32.mrb[0].mxu0
      %v2427 = vadd.f32 0.0, %v2426
      %v2428 = vpop.f32.mrb[0].mxu0
      %v2429 = vpop.f32.mrb[0].mxu0
      %v2430 = vadd.f32 0.0, %v2429
      %v2431 = vpop.f32.mrb[0].mxu0
      %2432 = vmatprep.mubr.bf16.mxu0 0
      %2433 = vmatmul.mubr.bf16.gmra.mrb[0].mxu0 %v2282
      %v2434 = vpop.f32.mrb[0].mxu0
      %v2435 = vadd.f32 0.0, %v2434
      %v2436 = vpop.f32.mrb[0].mxu0
      %v2437 = vpop.f32.mrb[0].mxu0
      %v2438 = vadd.f32 0.0, %v2437
      %v2439 = vpop.f32.mrb[0].mxu0
      %2440 = vmatprep.mubr.bf16.mxu0 0
      %2441 = vmatmul.mubr.bf16.gmra.mrb[0].mxu0 %v2285
      %v2442 = vpop.f32.mrb[0].mxu0
      %v2443 = vadd.f32 0.0, %v2442
      %v2444 = vpop.f32.mrb[0].mxu0
      %v2445 = vpop.f32.mrb[0].mxu0
      %v2446 = vadd.f32 0.0, %v2445
      %v2447 = vpop.f32.mrb[0].mxu0
      %2448 = vmatprep.mubr.bf16.mxu0 0
      %2449 = vmatmul.mubr.bf16.gmra.mrb[0].mxu0 %v2288
      %v2450 = vpop.f32.mrb[0].mxu0
      %v2451 = vadd.f32 0.0, %v2450
      %v2452 = vpop.f32.mrb[0].mxu0
      %v2453 = vpop.f32.mrb[0].mxu0
      %v2454 = vadd.f32 0.0, %v2453
      %v2455 = vpop.f32.mrb[0].mxu0
      %2456 = vmatprep.mubr.bf16.mxu0 0
      %2457 = vmatmul.mubr.bf16.gmra.mrb[0].mxu0 %v2291
      %v2458 = vpop.f32.mrb[0].mxu0
      %v2459 = vadd.f32 0.0, %v2458
      %v2460 = vpop.f32.mrb[0].mxu0
      %v2461 = vpop.f32.mrb[0].mxu0
      %v2462 = vadd.f32 0.0, %v2461
      %v2463 = vpop.f32.mrb[0].mxu0
      %2464 = vmatprep.mubr.bf16.mxu0 0
      %2465 = vmatmul.mubr.bf16.gmra.mrb[0].mxu0 %v2294
      %v2466 = vpop.f32.mrb[0].mxu0
      %v2467 = vadd.f32 0.0, %v2466
      %v2468 = vpop.f32.mrb[0].mxu0
      %v2469 = vpop.f32.mrb[0].mxu0
      %v2470 = vadd.f32 0.0, %v2469
      %v2471 = vpop.f32.mrb[0].mxu0
      %2472 = vdwg.mxu0
      %v2479 = vunpack.c.l.b16 %v2153
      %v2480 = vunpack.c.l.b16 %v2154
      %v2481 = vunpack.c.l.b16 %v2155
      %v2482 = vunpack.c.l.b16 %v2156
      %v2483 = vunpack.c.l.b16 %v2157
      %v2484 = vunpack.c.l.b16 %v2158
      %v2485 = vpack.c.b16 %v2480, %v2479
      %v2486 = vpack.c.b16 %v2482, %v2481
      %v2487 = vpack.c.b16 %v2484, %v2483
      %v2492 = vsel %vm586, %v2135, 0
      %v2495 = vsel %vm586, %v2136, 0
      %v2498 = vsel %vm586, %v2137, 0
      %v2501 = vsel %vm586, %v2138, 0
      %v2504 = vsel %vm586, %v2139, 0
      %v2507 = vsel %vm586, %v2140, 0
      %v2510 = vsel %vm586, %v2141, 0
      %v2513 = vsel %vm586, %v2142, 0
      %v2516 = vsel %vm586, %v2143, 0
      %v2519 = vsel %vm586, %v2144, 0
      %v2522 = vsel %vm586, %v2145, 0
      %v2525 = vsel %vm586, %v2146, 0
      %v2528 = vsel %vm586, %v2147, 0
      %v2531 = vsel %vm586, %v2148, 0
      %v2534 = vsel %vm586, %v2149, 0
      %v2537 = vsel %vm586, %v2150, 0
      %v2540 = vsel %vm586, %v2151, 0
      %v2543 = vsel %vm586, %v2152, 0
      %2545 = vmatprep.subr.bf16.mxu0 0
      %2546 = vmatpush1.bf16.msra.mxu0 %v2485
      %2547 = vmatprep.subr.bf16.mxu0 0
      %2548 = vmatpush1.bf16.msra.mxu0 %v2486
      %2549 = vmatprep.subr.bf16.mxu0 0
      %2550 = vmatpush1.bf16.msra.mxu0 %v2487
      %2551 = vmatprep.subr.bf16.mxu0 0
      %2552 = vmatpush1.bf16.msra.mxu0 0
      %2553 = vmatprep.subr.bf16.mxu0 0
      %2554 = vmatpush1.bf16.msra.mxu0 0
      %2555 = vmatprep.subr.bf16.mxu0 0
      %2556 = vmatpush1.bf16.msra.mxu0 0
      %2557 = vmatprep.subr.bf16.mxu0 0
      %2558 = vmatpush1.bf16.msra.mxu0 0
      %2559 = vmatprep.subr.bf16.mxu0 0
      %2560 = vmatpush1.bf16.msra.mxu0 0
      %2561 = vmatprep.subr.bf16.mxu0 0
      %2562 = vmatpush1.bf16.msra.mxu0 0
      %2563 = vmatprep.subr.bf16.mxu0 0
      %2564 = vmatpush1.bf16.msra.mxu0 0
      %2565 = vmatprep.subr.bf16.mxu0 0
      %2566 = vmatpush1.bf16.msra.mxu0 0
      %2567 = vmatprep.subr.bf16.mxu0 0
      %2568 = vmatpush1.bf16.msra.mxu0 0
      %2569 = vmatprep.subr.bf16.mxu0 0
      %2570 = vmatpush1.bf16.msra.mxu0 0
      %2571 = vmatprep.subr.bf16.mxu0 0
      %2572 = vmatpush1.bf16.msra.mxu0 0
      %2573 = vmatprep.subr.bf16.mxu0 0
      %2574 = vmatpush1.bf16.msra.mxu0 0
      %2575 = vmatprep.subr.bf16.mxu0 0
      %2576 = vmatpush1.bf16.msra.mxu0 0
      %2577 = vmatprep.mubr.bf16.mxu0 0
      %2578 = vmatmul.mubr.bf16.gmra.mrb[0].mxu0 %v2492
      %v2579 = vpop.f32.mrb[0].mxu0
      %v2580 = vadd.f32 %v2331, %v2579
      %v2581 = vpop.f32.mrb[0].mxu0
      %v2582 = vpop.f32.mrb[0].mxu0
      %v2583 = vadd.f32 %v2334, %v2582
      %v2584 = vpop.f32.mrb[0].mxu0
      %2585 = vmatprep.mubr.bf16.mxu0 0
      %2586 = vmatmul.mubr.bf16.gmra.mrb[0].mxu0 %v2495
      %v2587 = vpop.f32.mrb[0].mxu0
      %v2588 = vadd.f32 %v2339, %v2587
      %v2589 = vpop.f32.mrb[0].mxu0
      %v2590 = vpop.f32.mrb[0].mxu0
      %v2591 = vadd.f32 %v2342, %v2590
      %v2592 = vpop.f32.mrb[0].mxu0
      %2593 = vmatprep.mubr.bf16.mxu0 0
      %2594 = vmatmul.mubr.bf16.gmra.mrb[0].mxu0 %v2498
      %v2595 = vpop.f32.mrb[0].mxu0
      %v2596 = vadd.f32 %v2347, %v2595
      %v2597 = vpop.f32.mrb[0].mxu0
      %v2598 = vpop.f32.mrb[0].mxu0
      %v2599 = vadd.f32 %v2350, %v2598
      %v2600 = vpop.f32.mrb[0].mxu0
      %2601 = vmatprep.mubr.bf16.mxu0 0
      %2602 = vmatmul.mubr.bf16.gmra.mrb[0].mxu0 %v2501
      %v2603 = vpop.f32.mrb[0].mxu0
      %v2604 = vadd.f32 %v2355, %v2603
      %v2605 = vpop.f32.mrb[0].mxu0
      %v2606 = vpop.f32.mrb[0].mxu0
      %v2607 = vadd.f32 %v2358, %v2606
      %v2608 = vpop.f32.mrb[0].mxu0
      %2609 = vmatprep.mubr.bf16.mxu0 0
      %2610 = vmatmul.mubr.bf16.gmra.mrb[0].mxu0 %v2504
      %v2611 = vpop.f32.mrb[0].mxu0
      %v2612 = vadd.f32 %v2363, %v2611
      %v2613 = vpop.f32.mrb[0].mxu0
      %v2614 = vpop.f32.mrb[0].mxu0
      %v2615 = vadd.f32 %v2366, %v2614
      %v2616 = vpop.f32.mrb[0].mxu0
      %2617 = vmatprep.mubr.bf16.mxu0 0
      %2618 = vmatmul.mubr.bf16.gmra.mrb[0].mxu0 %v2507
      %v2619 = vpop.f32.mrb[0].mxu0
      %v2620 = vadd.f32 %v2371, %v2619
      %v2621 = vpop.f32.mrb[0].mxu0
      %v2622 = vpop.f32.mrb[0].mxu0
      %v2623 = vadd.f32 %v2374, %v2622
      %v2624 = vpop.f32.mrb[0].mxu0
      %2625 = vmatprep.mubr.bf16.mxu0 0
      %2626 = vmatmul.mubr.bf16.gmra.mrb[0].mxu0 %v2510
      %v2627 = vpop.f32.mrb[0].mxu0
      %v2628 = vadd.f32 %v2379, %v2627
      %v2629 = vpop.f32.mrb[0].mxu0
      %v2630 = vpop.f32.mrb[0].mxu0
      %v2631 = vadd.f32 %v2382, %v2630
      %v2632 = vpop.f32.mrb[0].mxu0
      %2633 = vmatprep.mubr.bf16.mxu0 0
      %2634 = vmatmul.mubr.bf16.gmra.mrb[0].mxu0 %v2513
      %v2635 = vpop.f32.mrb[0].mxu0
      %v2636 = vadd.f32 %v2387, %v2635
      %v2637 = vpop.f32.mrb[0].mxu0
      %v2638 = vpop.f32.mrb[0].mxu0
      %v2639 = vadd.f32 %v2390, %v2638
      %v2640 = vpop.f32.mrb[0].mxu0
      %2641 = vmatprep.mubr.bf16.mxu0 0
      %2642 = vmatmul.mubr.bf16.gmra.mrb[0].mxu0 %v2516
      %v2643 = vpop.f32.mrb[0].mxu0
      %v2644 = vadd.f32 %v2395, %v2643
      %v2645 = vpop.f32.mrb[0].mxu0
      %v2646 = vpop.f32.mrb[0].mxu0
      %v2647 = vadd.f32 %v2398, %v2646
      %v2648 = vpop.f32.mrb[0].mxu0
      %2649 = vmatprep.mubr.bf16.mxu0 0
      %2650 = vmatmul.mubr.bf16.gmra.mrb[0].mxu0 %v2519
      %v2651 = vpop.f32.mrb[0].mxu0
      %v2652 = vadd.f32 %v2403, %v2651
      %v2653 = vpop.f32.mrb[0].mxu0
      %v2654 = vpop.f32.mrb[0].mxu0
      %v2655 = vadd.f32 %v2406, %v2654
      %v2656 = vpop.f32.mrb[0].mxu0
      %2657 = vmatprep.mubr.bf16.mxu0 0
      %2658 = vmatmul.mubr.bf16.gmra.mrb[0].mxu0 %v2522
      %v2659 = vpop.f32.mrb[0].mxu0
      %v2660 = vadd.f32 %v2411, %v2659
      %v2661 = vpop.f32.mrb[0].mxu0
      %v2662 = vpop.f32.mrb[0].mxu0
      %v2663 = vadd.f32 %v2414, %v2662
      %v2664 = vpop.f32.mrb[0].mxu0
      %2665 = vmatprep.mubr.bf16.mxu0 0
      %2666 = vmatmul.mubr.bf16.gmra.mrb[0].mxu0 %v2525
      %v2667 = vpop.f32.mrb[0].mxu0
      %v2668 = vadd.f32 %v2419, %v2667
      %v2669 = vpop.f32.mrb[0].mxu0
      %v2670 = vpop.f32.mrb[0].mxu0
      %v2671 = vadd.f32 %v2422, %v2670
      %v2672 = vpop.f32.mrb[0].mxu0
      %2673 = vmatprep.mubr.bf16.mxu0 0
      %2674 = vmatmul.mubr.bf16.gmra.mrb[0].mxu0 %v2528
      %v2675 = vpop.f32.mrb[0].mxu0
      %v2676 = vadd.f32 %v2427, %v2675
      %v2677 = vpop.f32.mrb[0].mxu0
      %v2678 = vpop.f32.mrb[0].mxu0
      %v2679 = vadd.f32 %v2430, %v2678
      %v2680 = vpop.f32.mrb[0].mxu0
      %2681 = vmatprep.mubr.bf16.mxu0 0
      %2682 = vmatmul.mubr.bf16.gmra.mrb[0].mxu0 %v2531
      %v2683 = vpop.f32.mrb[0].mxu0
      %v2684 = vadd.f32 %v2435, %v2683
      %v2685 = vpop.f32.mrb[0].mxu0
      %v2686 = vpop.f32.mrb[0].mxu0
      %v2687 = vadd.f32 %v2438, %v2686
      %v2688 = vpop.f32.mrb[0].mxu0
      %2689 = vmatprep.mubr.bf16.mxu0 0
      %2690 = vmatmul.mubr.bf16.gmra.mrb[0].mxu0 %v2534
      %v2691 = vpop.f32.mrb[0].mxu0
      %v2692 = vadd.f32 %v2443, %v2691
      %v2693 = vpop.f32.mrb[0].mxu0
      %v2694 = vpop.f32.mrb[0].mxu0
      %v2695 = vadd.f32 %v2446, %v2694
      %v2696 = vpop.f32.mrb[0].mxu0
      %2697 = vmatprep.mubr.bf16.mxu0 0
      %2698 = vmatmul.mubr.bf16.gmra.mrb[0].mxu0 %v2537
      %v2699 = vpop.f32.mrb[0].mxu0
      %v2700 = vadd.f32 %v2451, %v2699
      %v2701 = vpop.f32.mrb[0].mxu0
      %v2702 = vpop.f32.mrb[0].mxu0
      %v2703 = vadd.f32 %v2454, %v2702
      %v2704 = vpop.f32.mrb[0].mxu0
      %2705 = vmatprep.mubr.bf16.mxu0 0
      %2706 = vmatmul.mubr.bf16.gmra.mrb[0].mxu0 %v2540
      %v2707 = vpop.f32.mrb[0].mxu0
      %v2708 = vadd.f32 %v2459, %v2707
      %v2709 = vpop.f32.mrb[0].mxu0
      %v2710 = vpop.f32.mrb[0].mxu0
      %v2711 = vadd.f32 %v2462, %v2710
      %v2712 = vpop.f32.mrb[0].mxu0
      %2713 = vmatprep.mubr.bf16.mxu0 0
      %2714 = vmatmul.mubr.bf16.gmra.mrb[0].mxu0 %v2543
      %v2715 = vpop.f32.mrb[0].mxu0
      %v2716 = vadd.f32 %v2467, %v2715
      %v2717 = vpop.f32.mrb[0].mxu0
      %v2718 = vpop.f32.mrb[0].mxu0
      %v2719 = vadd.f32 %v2470, %v2718
      %v2720 = vpop.f32.mrb[0].mxu0
      %2721 = vdwg.mxu0
      %v2722 = vld [vmem:[#allocation2 + $0x90] sm:$0xff]
      %s2723 = scalar_lea.vmem %s5, 48
      %v2724 = vld [vmem:[%s2723] sm:$0xf]
      %v2725 = vld [vmem:[%s2723 + $0x4] sm:$0xf]
      %v2726 = vld [vmem:[%s2723 + $0x8] sm:$0xf]
      %v2727 = vld [vmem:[%s2723 + $0xc] sm:$0xf]
      %v2728 = vld [vmem:[%s2723 + $0x10] sm:$0xf]
      %v2729 = vld [vmem:[%s2723 + $0x14] sm:$0xf]
      %v2736 = vunpack.c.l.b16 %v2724
      %v2737 = vunpack.c.l.b16 %v2725
      %v2738 = vunpack.c.l.b16 %v2726
      %v2739 = vunpack.c.l.b16 %v2727
      %v2740 = vunpack.c.l.b16 %v2728
      %v2741 = vunpack.c.l.b16 %v2729
      %v2742 = vpack.c.b16 %v2737, %v2736
      %v2743 = vpack.c.b16 %v2739, %v2738
      %v2744 = vpack.c.b16 %v2741, %v2740
      %v2749 = vsel %vm586, %v2722, 0
      %2751 = vmatprep.subr.bf16.mxu0 0
      %2752 = vmatpush1.bf16.msra.mxu0 %v2742
      %2753 = vmatprep.subr.bf16.mxu0 0
      %2754 = vmatpush1.bf16.msra.mxu0 %v2743
      %2755 = vmatprep.subr.bf16.mxu0 0
      %2756 = vmatpush1.bf16.msra.mxu0 %v2744
      %2757 = vmatprep.subr.bf16.mxu0 0
      %2758 = vmatpush1.bf16.msra.mxu0 0
      %2759 = vmatprep.subr.bf16.mxu0 0
      %2760 = vmatpush1.bf16.msra.mxu0 0
      %2761 = vmatprep.subr.bf16.mxu0 0
      %2762 = vmatpush1.bf16.msra.mxu0 0
      %2763 = vmatprep.subr.bf16.mxu0 0
      %2764 = vmatpush1.bf16.msra.mxu0 0
      %2765 = vmatprep.subr.bf16.mxu0 0
      %2766 = vmatpush1.bf16.msra.mxu0 0
      %2767 = vmatprep.subr.bf16.mxu0 0
      %2768 = vmatpush1.bf16.msra.mxu0 0
      %2769 = vmatprep.subr.bf16.mxu0 0
      %2770 = vmatpush1.bf16.msra.mxu0 0
      %2771 = vmatprep.subr.bf16.mxu0 0
      %2772 = vmatpush1.bf16.msra.mxu0 0
      %2773 = vmatprep.subr.bf16.mxu0 0
      %2774 = vmatpush1.bf16.msra.mxu0 0
      %2775 = vmatprep.subr.bf16.mxu0 0
      %2776 = vmatpush1.bf16.msra.mxu0 0
      %2777 = vmatprep.subr.bf16.mxu0 0
      %2778 = vmatpush1.bf16.msra.mxu0 0
      %2779 = vmatprep.subr.bf16.mxu0 0
      %2780 = vmatpush1.bf16.msra.mxu0 0
      %2781 = vmatprep.subr.bf16.mxu0 0
      %2782 = vmatpush1.bf16.msra.mxu0 0
      %2783 = vmatprep.mubr.bf16.mxu0 0
      %2784 = vmatmul.mubr.bf16.gmra.mrb[0].mxu0 %v2495
      %v2785 = vpop.f32.mrb[0].mxu0
      %v2786 = vadd.f32 0.0, %v2785
      %v2787 = vpop.f32.mrb[0].mxu0
      %v2788 = vpop.f32.mrb[0].mxu0
      %v2789 = vadd.f32 0.0, %v2788
      %v2790 = vpop.f32.mrb[0].mxu0
      %2791 = vmatprep.mubr.bf16.mxu0 0
      %2792 = vmatmul.mubr.bf16.gmra.mrb[0].mxu0 %v2498
      %v2793 = vpop.f32.mrb[0].mxu0
      %v2794 = vadd.f32 0.0, %v2793
      %v2795 = vpop.f32.mrb[0].mxu0
      %v2796 = vpop.f32.mrb[0].mxu0
      %v2797 = vadd.f32 0.0, %v2796
      %v2798 = vpop.f32.mrb[0].mxu0
      %2799 = vmatprep.mubr.bf16.mxu0 0
      %2800 = vmatmul.mubr.bf16.gmra.mrb[0].mxu0 %v2501
      %v2801 = vpop.f32.mrb[0].mxu0
      %v2802 = vadd.f32 0.0, %v2801
      %v2803 = vpop.f32.mrb[0].mxu0
      %v2804 = vpop.f32.mrb[0].mxu0
      %v2805 = vadd.f32 0.0, %v2804
      %v2806 = vpop.f32.mrb[0].mxu0
      %2807 = vmatprep.mubr.bf16.mxu0 0
      %2808 = vmatmul.mubr.bf16.gmra.mrb[0].mxu0 %v2504
      %v2809 = vpop.f32.mrb[0].mxu0
      %v2810 = vadd.f32 0.0, %v2809
      %v2811 = vpop.f32.mrb[0].mxu0
      %v2812 = vpop.f32.mrb[0].mxu0
      %v2813 = vadd.f32 0.0, %v2812
      %v2814 = vpop.f32.mrb[0].mxu0
      %2815 = vmatprep.mubr.bf16.mxu0 0
      %2816 = vmatmul.mubr.bf16.gmra.mrb[0].mxu0 %v2507
      %v2817 = vpop.f32.mrb[0].mxu0
      %v2818 = vadd.f32 0.0, %v2817
      %v2819 = vpop.f32.mrb[0].mxu0
      %v2820 = vpop.f32.mrb[0].mxu0
      %v2821 = vadd.f32 0.0, %v2820
      %v2822 = vpop.f32.mrb[0].mxu0
      %2823 = vmatprep.mubr.bf16.mxu0 0
      %2824 = vmatmul.mubr.bf16.gmra.mrb[0].mxu0 %v2510
      %v2825 = vpop.f32.mrb[0].mxu0
      %v2826 = vadd.f32 0.0, %v2825
      %v2827 = vpop.f32.mrb[0].mxu0
      %v2828 = vpop.f32.mrb[0].mxu0
      %v2829 = vadd.f32 0.0, %v2828
      %v2830 = vpop.f32.mrb[0].mxu0
      %2831 = vmatprep.mubr.bf16.mxu0 0
      %2832 = vmatmul.mubr.bf16.gmra.mrb[0].mxu0 %v2513
      %v2833 = vpop.f32.mrb[0].mxu0
      %v2834 = vadd.f32 0.0, %v2833
      %v2835 = vpop.f32.mrb[0].mxu0
      %v2836 = vpop.f32.mrb[0].mxu0
      %v2837 = vadd.f32 0.0, %v2836
      %v2838 = vpop.f32.mrb[0].mxu0
      %2839 = vmatprep.mubr.bf16.mxu0 0
      %2840 = vmatmul.mubr.bf16.gmra.mrb[0].mxu0 %v2516
      %v2841 = vpop.f32.mrb[0].mxu0
      %v2842 = vadd.f32 0.0, %v2841
      %v2843 = vpop.f32.mrb[0].mxu0
      %v2844 = vpop.f32.mrb[0].mxu0
      %v2845 = vadd.f32 0.0, %v2844
      %v2846 = vpop.f32.mrb[0].mxu0
      %2847 = vmatprep.mubr.bf16.mxu0 0
      %2848 = vmatmul.mubr.bf16.gmra.mrb[0].mxu0 %v2519
      %v2849 = vpop.f32.mrb[0].mxu0
      %v2850 = vadd.f32 0.0, %v2849
      %v2851 = vpop.f32.mrb[0].mxu0
      %v2852 = vpop.f32.mrb[0].mxu0
      %v2853 = vadd.f32 0.0, %v2852
      %v2854 = vpop.f32.mrb[0].mxu0
      %2855 = vmatprep.mubr.bf16.mxu0 0
      %2856 = vmatmul.mubr.bf16.gmra.mrb[0].mxu0 %v2522
      %v2857 = vpop.f32.mrb[0].mxu0
      %v2858 = vadd.f32 0.0, %v2857
      %v2859 = vpop.f32.mrb[0].mxu0
      %v2860 = vpop.f32.mrb[0].mxu0
      %v2861 = vadd.f32 0.0, %v2860
      %v2862 = vpop.f32.mrb[0].mxu0
      %2863 = vmatprep.mubr.bf16.mxu0 0
      %2864 = vmatmul.mubr.bf16.gmra.mrb[0].mxu0 %v2525
      %v2865 = vpop.f32.mrb[0].mxu0
      %v2866 = vadd.f32 0.0, %v2865
      %v2867 = vpop.f32.mrb[0].mxu0
      %v2868 = vpop.f32.mrb[0].mxu0
      %v2869 = vadd.f32 0.0, %v2868
      %v2870 = vpop.f32.mrb[0].mxu0
      %2871 = vmatprep.mubr.bf16.mxu0 0
      %2872 = vmatmul.mubr.bf16.gmra.mrb[0].mxu0 %v2528
      %v2873 = vpop.f32.mrb[0].mxu0
      %v2874 = vadd.f32 0.0, %v2873
      %v2875 = vpop.f32.mrb[0].mxu0
      %v2876 = vpop.f32.mrb[0].mxu0
      %v2877 = vadd.f32 0.0, %v2876
      %v2878 = vpop.f32.mrb[0].mxu0
      %2879 = vmatprep.mubr.bf16.mxu0 0
      %2880 = vmatmul.mubr.bf16.gmra.mrb[0].mxu0 %v2531
      %v2881 = vpop.f32.mrb[0].mxu0
      %v2882 = vadd.f32 0.0, %v2881
      %v2883 = vpop.f32.mrb[0].mxu0
      %v2884 = vpop.f32.mrb[0].mxu0
      %v2885 = vadd.f32 0.0, %v2884
      %v2886 = vpop.f32.mrb[0].mxu0
      %2887 = vmatprep.mubr.bf16.mxu0 0
      %2888 = vmatmul.mubr.bf16.gmra.mrb[0].mxu0 %v2534
      %v2889 = vpop.f32.mrb[0].mxu0
      %v2890 = vadd.f32 0.0, %v2889
      %v2891 = vpop.f32.mrb[0].mxu0
      %v2892 = vpop.f32.mrb[0].mxu0
      %v2893 = vadd.f32 0.0, %v2892
      %v2894 = vpop.f32.mrb[0].mxu0
      %2895 = vmatprep.mubr.bf16.mxu0 0
      %2896 = vmatmul.mubr.bf16.gmra.mrb[0].mxu0 %v2537
      %v2897 = vpop.f32.mrb[0].mxu0
      %v2898 = vadd.f32 0.0, %v2897
      %v2899 = vpop.f32.mrb[0].mxu0
      %v2900 = vpop.f32.mrb[0].mxu0
      %v2901 = vadd.f32 0.0, %v2900
      %v2902 = vpop.f32.mrb[0].mxu0
      %2903 = vmatprep.mubr.bf16.mxu0 0
      %2904 = vmatmul.mubr.bf16.gmra.mrb[0].mxu0 %v2540
      %v2905 = vpop.f32.mrb[0].mxu0
      %v2906 = vadd.f32 0.0, %v2905
      %v2907 = vpop.f32.mrb[0].mxu0
      %v2908 = vpop.f32.mrb[0].mxu0
      %v2909 = vadd.f32 0.0, %v2908
      %v2910 = vpop.f32.mrb[0].mxu0
      %2911 = vmatprep.mubr.bf16.mxu0 0
      %2912 = vmatmul.mubr.bf16.gmra.mrb[0].mxu0 %v2543
      %v2913 = vpop.f32.mrb[0].mxu0
      %v2914 = vadd.f32 0.0, %v2913
      %v2915 = vpop.f32.mrb[0].mxu0
      %v2916 = vpop.f32.mrb[0].mxu0
      %v2917 = vadd.f32 0.0, %v2916
      %v2918 = vpop.f32.mrb[0].mxu0
      %2919 = vmatprep.mubr.bf16.mxu0 0
      %2920 = vmatmul.mubr.bf16.gmra.mrb[0].mxu0 %v2749
      %v2921 = vpop.f32.mrb[0].mxu0
      %v2922 = vadd.f32 0.0, %v2921
      %v2923 = vpop.f32.mrb[0].mxu0
      %v2924 = vpop.f32.mrb[0].mxu0
      %v2925 = vadd.f32 0.0, %v2924
      %v2926 = vpop.f32.mrb[0].mxu0
      %2927 = vdwg.mxu0
      %v2928 = vadd.f32 %v2580, %v2786
      %v2929 = vadd.f32 %v2583, %v2789
      %v2930 = vadd.f32 %v2588, %v2794
      %v2931 = vadd.f32 %v2591, %v2797
      %v2932 = vadd.f32 %v2596, %v2802
      %v2933 = vadd.f32 %v2599, %v2805
      %v2934 = vadd.f32 %v2604, %v2810
      %v2935 = vadd.f32 %v2607, %v2813
      %v2936 = vadd.f32 %v2612, %v2818
      %v2937 = vadd.f32 %v2615, %v2821
      %v2938 = vadd.f32 %v2620, %v2826
      %v2939 = vadd.f32 %v2623, %v2829
      %v2940 = vadd.f32 %v2628, %v2834
      %v2941 = vadd.f32 %v2631, %v2837
      %v2942 = vadd.f32 %v2636, %v2842
      %v2943 = vadd.f32 %v2639, %v2845
      %v2944 = vadd.f32 %v2644, %v2850
      %v2945 = vadd.f32 %v2647, %v2853
      %v2946 = vadd.f32 %v2652, %v2858
      %v2947 = vadd.f32 %v2655, %v2861
      %v2948 = vadd.f32 %v2660, %v2866
      %v2949 = vadd.f32 %v2663, %v2869
      %v2950 = vadd.f32 %v2668, %v2874
      %v2951 = vadd.f32 %v2671, %v2877
      %v2952 = vadd.f32 %v2676, %v2882
      %v2953 = vadd.f32 %v2679, %v2885
      %v2954 = vadd.f32 %v2684, %v2890
      %v2955 = vadd.f32 %v2687, %v2893
      %v2956 = vadd.f32 %v2692, %v2898
      %v2957 = vadd.f32 %v2695, %v2901
      %v2958 = vadd.f32 %v2700, %v2906
      %v2959 = vadd.f32 %v2703, %v2909
      %v2960 = vadd.f32 %v2708, %v2914
      %v2961 = vadd.f32 %v2711, %v2917
      %v2962 = vadd.f32 %v2716, %v2922
      %v2963 = vadd.f32 %v2719, %v2925
      %v2964 = vld [vmem:[#allocation2 + $0x18] sm:$0xff]
      %v2965 = vld [vmem:[#allocation2 + $0x20] sm:$0xff]
      %v2966 = vld [vmem:[#allocation2 + $0x28] sm:$0xff]
      %v2967 = vld [vmem:[#allocation2 + $0x30] sm:$0xff]
      %v2968 = vld [vmem:[#allocation2 + $0x38] sm:$0xff]
      %v2969 = vld [vmem:[#allocation2 + $0x40] sm:$0xff]
      %v2970 = vld [vmem:[#allocation2 + $0x48] sm:$0xff]
      %v2971 = vld [vmem:[#allocation2 + $0x50] sm:$0xff]
      %v2972 = vld [vmem:[#allocation2 + $0x58] sm:$0xff]
      %v2973 = vld [vmem:[#allocation2 + $0x60] sm:$0xff]
      %v2974 = vld [vmem:[#allocation2 + $0x68] sm:$0xff]
      %v2975 = vld [vmem:[#allocation2 + $0x70] sm:$0xff]
      %v2976 = vld [vmem:[#allocation2 + $0x78] sm:$0xff]
      %v2977 = vld [vmem:[#allocation2 + $0x80] sm:$0xff]
      %v2978 = vld [vmem:[#allocation2 + $0x88] sm:$0xff]
      %v2979 = vld [vmem:[#allocation2 + $0x90] sm:$0xff]
      %v2980 = vld [vmem:[#allocation2 + $0x98] sm:$0xff]
      %v2981 = vld [vmem:[#allocation2 + $0xa0] sm:$0xff]
      %s2982 = scalar_lea.vmem %s5, 72
      %v2983 = vld [vmem:[%s2982] sm:$0xf]
      %v2984 = vld [vmem:[%s2982 + $0x4] sm:$0xf]
      %v2985 = vld [vmem:[%s2982 + $0x8] sm:$0xf]
      %v2986 = vld [vmem:[%s2982 + $0xc] sm:$0xf]
      %v2987 = vld [vmem:[%s2982 + $0x10] sm:$0xf]
      %v2988 = vld [vmem:[%s2982 + $0x14] sm:$0xf]
      %v2989 = vld [vmem:[#allocation2 + $0x18] sm:$0xf0]
      %v2990 = vld [vmem:[#allocation2 + $0xa8] sm:$0xf]
      %s2991 = scalar_lea.vmem %s5, 96
      %v2992 = vld [vmem:[%s2991] sm:$0xf]
      %v2993 = vld [vmem:[%s2991 + $0x4] sm:$0xf]
      %v2994 = vld [vmem:[%s2991 + $0x8] sm:$0xf]
      %v2995 = vld [vmem:[%s2991 + $0xc] sm:$0xf]
      %v2996 = vld [vmem:[%s2991 + $0x10] sm:$0xf]
      %v2997 = vld [vmem:[%s2991 + $0x14] sm:$0xf]
      %v3017 = vrot.slane %v2989, 4
      %v3018 = vrot.slane %v2965, 4
      %v3019 = vsel %vm1862, %v3017, %v3018
      %v3020 = vrot.slane %v2966, 4
      %v3021 = vsel %vm1862, %v3018, %v3020
      %v3022 = vrot.slane %v2967, 4
      %v3023 = vsel %vm1862, %v3020, %v3022
      %v3024 = vrot.slane %v2968, 4
      %v3025 = vsel %vm1862, %v3022, %v3024
      %v3026 = vrot.slane %v2969, 4
      %v3027 = vsel %vm1862, %v3024, %v3026
      %v3028 = vrot.slane %v2970, 4
      %v3029 = vsel %vm1862, %v3026, %v3028
      %v3030 = vrot.slane %v2971, 4
      %v3031 = vsel %vm1862, %v3028, %v3030
      %v3032 = vrot.slane %v2972, 4
      %v3033 = vsel %vm1862, %v3030, %v3032
      %v3034 = vrot.slane %v2973, 4
      %v3035 = vsel %vm1862, %v3032, %v3034
      %v3036 = vrot.slane %v2974, 4
      %v3037 = vsel %vm1862, %v3034, %v3036
      %v3038 = vrot.slane %v2975, 4
      %v3039 = vsel %vm1862, %v3036, %v3038
      %v3040 = vrot.slane %v2976, 4
      %v3041 = vsel %vm1862, %v3038, %v3040
      %v3042 = vrot.slane %v2977, 4
      %v3043 = vsel %vm1862, %v3040, %v3042
      %v3044 = vrot.slane %v2978, 4
      %v3045 = vsel %vm1862, %v3042, %v3044
      %v3046 = vrot.slane %v2979, 4
      %v3047 = vsel %vm1862, %v3044, %v3046
      %v3048 = vrot.slane %v2980, 4
      %v3049 = vsel %vm1862, %v3046, %v3048
      %v3050 = vrot.slane %v2981, 4
      %v3051 = vsel %vm1862, %v3048, %v3050
      %v3052 = vrot.slane %v2990, 4
      %v3053 = vsel %vm1862, %v3050, %v3052
      %v3060 = vunpack.c.l.b16 %v2992
      %v3061 = vunpack.c.l.b16 %v2993
      %v3062 = vunpack.c.l.b16 %v2994
      %v3063 = vunpack.c.l.b16 %v2995
      %v3064 = vunpack.c.l.b16 %v2996
      %v3065 = vunpack.c.l.b16 %v2997
      %v3066 = vpack.c.b16 %v3061, %v3060
      %v3067 = vpack.c.b16 %v3063, %v3062
      %v3068 = vpack.c.b16 %v3065, %v3064
      %v3073 = vsel %vm586, %v3019, 0
      %v3076 = vsel %vm586, %v3021, 0
      %v3079 = vsel %vm586, %v3023, 0
      %v3082 = vsel %vm586, %v3025, 0
      %v3085 = vsel %vm586, %v3027, 0
      %v3088 = vsel %vm586, %v3029, 0
      %v3091 = vsel %vm586, %v3031, 0
      %v3094 = vsel %vm586, %v3033, 0
      %v3097 = vsel %vm586, %v3035, 0
      %v3100 = vsel %vm586, %v3037, 0
      %v3103 = vsel %vm586, %v3039, 0
      %v3106 = vsel %vm586, %v3041, 0
      %v3109 = vsel %vm586, %v3043, 0
      %v3112 = vsel %vm586, %v3045, 0
      %v3115 = vsel %vm586, %v3047, 0
      %v3118 = vsel %vm586, %v3049, 0
      %v3121 = vsel %vm586, %v3051, 0
      %v3124 = vsel %vm586, %v3053, 0
      %3126 = vmatprep.subr.bf16.mxu0 0
      %3127 = vmatpush1.bf16.msra.mxu0 %v3066
      %3128 = vmatprep.subr.bf16.mxu0 0
      %3129 = vmatpush1.bf16.msra.mxu0 %v3067
      %3130 = vmatprep.subr.bf16.mxu0 0
      %3131 = vmatpush1.bf16.msra.mxu0 %v3068
      %3132 = vmatprep.subr.bf16.mxu0 0
      %3133 = vmatpush1.bf16.msra.mxu0 0
      %3134 = vmatprep.subr.bf16.mxu0 0
      %3135 = vmatpush1.bf16.msra.mxu0 0
      %3136 = vmatprep.subr.bf16.mxu0 0
      %3137 = vmatpush1.bf16.msra.mxu0 0
      %3138 = vmatprep.subr.bf16.mxu0 0
      %3139 = vmatpush1.bf16.msra.mxu0 0
      %3140 = vmatprep.subr.bf16.mxu0 0
      %3141 = vmatpush1.bf16.msra.mxu0 0
      %3142 = vmatprep.subr.bf16.mxu0 0
      %3143 = vmatpush1.bf16.msra.mxu0 0
      %3144 = vmatprep.subr.bf16.mxu0 0
      %3145 = vmatpush1.bf16.msra.mxu0 0
      %3146 = vmatprep.subr.bf16.mxu0 0
      %3147 = vmatpush1.bf16.msra.mxu0 0
      %3148 = vmatprep.subr.bf16.mxu0 0
      %3149 = vmatpush1.bf16.msra.mxu0 0
      %3150 = vmatprep.subr.bf16.mxu0 0
      %3151 = vmatpush1.bf16.msra.mxu0 0
      %3152 = vmatprep.subr.bf16.mxu0 0
      %3153 = vmatpush1.bf16.msra.mxu0 0
      %3154 = vmatprep.subr.bf16.mxu0 0
      %3155 = vmatpush1.bf16.msra.mxu0 0
      %3156 = vmatprep.subr.bf16.mxu0 0
      %3157 = vmatpush1.bf16.msra.mxu0 0
      %3158 = vmatprep.mubr.bf16.mxu0 0
      %3159 = vmatmul.mubr.bf16.gmra.mrb[0].mxu0 %v3073
      %v3160 = vpop.f32.mrb[0].mxu0
      %v3161 = vadd.f32 0.0, %v3160
      %v3162 = vpop.f32.mrb[0].mxu0
      %v3163 = vpop.f32.mrb[0].mxu0
      %v3164 = vadd.f32 0.0, %v3163
      %v3165 = vpop.f32.mrb[0].mxu0
      %3166 = vmatprep.mubr.bf16.mxu0 0
      %3167 = vmatmul.mubr.bf16.gmra.mrb[0].mxu0 %v3076
      %v3168 = vpop.f32.mrb[0].mxu0
      %v3169 = vadd.f32 0.0, %v3168
      %v3170 = vpop.f32.mrb[0].mxu0
      %v3171 = vpop.f32.mrb[0].mxu0
      %v3172 = vadd.f32 0.0, %v3171
      %v3173 = vpop.f32.mrb[0].mxu0
      %3174 = vmatprep.mubr.bf16.mxu0 0
      %3175 = vmatmul.mubr.bf16.gmra.mrb[0].mxu0 %v3079
      %v3176 = vpop.f32.mrb[0].mxu0
      %v3177 = vadd.f32 0.0, %v3176
      %v3178 = vpop.f32.mrb[0].mxu0
      %v3179 = vpop.f32.mrb[0].mxu0
      %v3180 = vadd.f32 0.0, %v3179
      %v3181 = vpop.f32.mrb[0].mxu0
      %3182 = vmatprep.mubr.bf16.mxu0 0
      %3183 = vmatmul.mubr.bf16.gmra.mrb[0].mxu0 %v3082
      %v3184 = vpop.f32.mrb[0].mxu0
      %v3185 = vadd.f32 0.0, %v3184
      %v3186 = vpop.f32.mrb[0].mxu0
      %v3187 = vpop.f32.mrb[0].mxu0
      %v3188 = vadd.f32 0.0, %v3187
      %v3189 = vpop.f32.mrb[0].mxu0
      %3190 = vmatprep.mubr.bf16.mxu0 0
      %3191 = vmatmul.mubr.bf16.gmra.mrb[0].mxu0 %v3085
      %v3192 = vpop.f32.mrb[0].mxu0
      %v3193 = vadd.f32 0.0, %v3192
      %v3194 = vpop.f32.mrb[0].mxu0
      %v3195 = vpop.f32.mrb[0].mxu0
      %v3196 = vadd.f32 0.0, %v3195
      %v3197 = vpop.f32.mrb[0].mxu0
      %3198 = vmatprep.mubr.bf16.mxu0 0
      %3199 = vmatmul.mubr.bf16.gmra.mrb[0].mxu0 %v3088
      %v3200 = vpop.f32.mrb[0].mxu0
      %v3201 = vadd.f32 0.0, %v3200
      %v3202 = vpop.f32.mrb[0].mxu0
      %v3203 = vpop.f32.mrb[0].mxu0
      %v3204 = vadd.f32 0.0, %v3203
      %v3205 = vpop.f32.mrb[0].mxu0
      %3206 = vmatprep.mubr.bf16.mxu0 0
      %3207 = vmatmul.mubr.bf16.gmra.mrb[0].mxu0 %v3091
      %v3208 = vpop.f32.mrb[0].mxu0
      %v3209 = vadd.f32 0.0, %v3208
      %v3210 = vpop.f32.mrb[0].mxu0
      %v3211 = vpop.f32.mrb[0].mxu0
      %v3212 = vadd.f32 0.0, %v3211
      %v3213 = vpop.f32.mrb[0].mxu0
      %3214 = vmatprep.mubr.bf16.mxu0 0
      %3215 = vmatmul.mubr.bf16.gmra.mrb[0].mxu0 %v3094
      %v3216 = vpop.f32.mrb[0].mxu0
      %v3217 = vadd.f32 0.0, %v3216
      %v3218 = vpop.f32.mrb[0].mxu0
      %v3219 = vpop.f32.mrb[0].mxu0
      %v3220 = vadd.f32 0.0, %v3219
      %v3221 = vpop.f32.mrb[0].mxu0
      %3222 = vmatprep.mubr.bf16.mxu0 0
      %3223 = vmatmul.mubr.bf16.gmra.mrb[0].mxu0 %v3097
      %v3224 = vpop.f32.mrb[0].mxu0
      %v3225 = vadd.f32 0.0, %v3224
      %v3226 = vpop.f32.mrb[0].mxu0
      %v3227 = vpop.f32.mrb[0].mxu0
      %v3228 = vadd.f32 0.0, %v3227
      %v3229 = vpop.f32.mrb[0].mxu0
      %3230 = vmatprep.mubr.bf16.mxu0 0
      %3231 = vmatmul.mubr.bf16.gmra.mrb[0].mxu0 %v3100
      %v3232 = vpop.f32.mrb[0].mxu0
      %v3233 = vadd.f32 0.0, %v3232
      %v3234 = vpop.f32.mrb[0].mxu0
      %v3235 = vpop.f32.mrb[0].mxu0
      %v3236 = vadd.f32 0.0, %v3235
      %v3237 = vpop.f32.mrb[0].mxu0
      %3238 = vmatprep.mubr.bf16.mxu0 0
      %3239 = vmatmul.mubr.bf16.gmra.mrb[0].mxu0 %v3103
      %v3240 = vpop.f32.mrb[0].mxu0
      %v3241 = vadd.f32 0.0, %v3240
      %v3242 = vpop.f32.mrb[0].mxu0
      %v3243 = vpop.f32.mrb[0].mxu0
      %v3244 = vadd.f32 0.0, %v3243
      %v3245 = vpop.f32.mrb[0].mxu0
      %3246 = vmatprep.mubr.bf16.mxu0 0
      %3247 = vmatmul.mubr.bf16.gmra.mrb[0].mxu0 %v3106
      %v3248 = vpop.f32.mrb[0].mxu0
      %v3249 = vadd.f32 0.0, %v3248
      %v3250 = vpop.f32.mrb[0].mxu0
      %v3251 = vpop.f32.mrb[0].mxu0
      %v3252 = vadd.f32 0.0, %v3251
      %v3253 = vpop.f32.mrb[0].mxu0
      %3254 = vmatprep.mubr.bf16.mxu0 0
      %3255 = vmatmul.mubr.bf16.gmra.mrb[0].mxu0 %v3109
      %v3256 = vpop.f32.mrb[0].mxu0
      %v3257 = vadd.f32 0.0, %v3256
      %v3258 = vpop.f32.mrb[0].mxu0
      %v3259 = vpop.f32.mrb[0].mxu0
      %v3260 = vadd.f32 0.0, %v3259
      %v3261 = vpop.f32.mrb[0].mxu0
      %3262 = vmatprep.mubr.bf16.mxu0 0
      %3263 = vmatmul.mubr.bf16.gmra.mrb[0].mxu0 %v3112
      %v3264 = vpop.f32.mrb[0].mxu0
      %v3265 = vadd.f32 0.0, %v3264
      %v3266 = vpop.f32.mrb[0].mxu0
      %v3267 = vpop.f32.mrb[0].mxu0
      %v3268 = vadd.f32 0.0, %v3267
      %v3269 = vpop.f32.mrb[0].mxu0
      %3270 = vmatprep.mubr.bf16.mxu0 0
      %3271 = vmatmul.mubr.bf16.gmra.mrb[0].mxu0 %v3115
      %v3272 = vpop.f32.mrb[0].mxu0
      %v3273 = vadd.f32 0.0, %v3272
      %v3274 = vpop.f32.mrb[0].mxu0
      %v3275 = vpop.f32.mrb[0].mxu0
      %v3276 = vadd.f32 0.0, %v3275
      %v3277 = vpop.f32.mrb[0].mxu0
      %3278 = vmatprep.mubr.bf16.mxu0 0
      %3279 = vmatmul.mubr.bf16.gmra.mrb[0].mxu0 %v3118
      %v3280 = vpop.f32.mrb[0].mxu0
      %v3281 = vadd.f32 0.0, %v3280
      %v3282 = vpop.f32.mrb[0].mxu0
      %v3283 = vpop.f32.mrb[0].mxu0
      %v3284 = vadd.f32 0.0, %v3283
      %v3285 = vpop.f32.mrb[0].mxu0
      %3286 = vmatprep.mubr.bf16.mxu0 0
      %3287 = vmatmul.mubr.bf16.gmra.mrb[0].mxu0 %v3121
      %v3288 = vpop.f32.mrb[0].mxu0
      %v3289 = vadd.f32 0.0, %v3288
      %v3290 = vpop.f32.mrb[0].mxu0
      %v3291 = vpop.f32.mrb[0].mxu0
      %v3292 = vadd.f32 0.0, %v3291
      %v3293 = vpop.f32.mrb[0].mxu0
      %3294 = vmatprep.mubr.bf16.mxu0 0
      %3295 = vmatmul.mubr.bf16.gmra.mrb[0].mxu0 %v3124
      %v3296 = vpop.f32.mrb[0].mxu0
      %v3297 = vadd.f32 0.0, %v3296
      %v3298 = vpop.f32.mrb[0].mxu0
      %v3299 = vpop.f32.mrb[0].mxu0
      %v3300 = vadd.f32 0.0, %v3299
      %v3301 = vpop.f32.mrb[0].mxu0
      %3302 = vdwg.mxu0
      %v3309 = vunpack.c.l.b16 %v2983
      %v3310 = vunpack.c.l.b16 %v2984
      %v3311 = vunpack.c.l.b16 %v2985
      %v3312 = vunpack.c.l.b16 %v2986
      %v3313 = vunpack.c.l.b16 %v2987
      %v3314 = vunpack.c.l.b16 %v2988
      %v3315 = vpack.c.b16 %v3310, %v3309
      %v3316 = vpack.c.b16 %v3312, %v3311
      %v3317 = vpack.c.b16 %v3314, %v3313
      %v3322 = vsel %vm586, %v2964, 0
      %v3325 = vsel %vm586, %v2965, 0
      %v3328 = vsel %vm586, %v2966, 0
      %v3331 = vsel %vm586, %v2967, 0
      %v3334 = vsel %vm586, %v2968, 0
      %v3337 = vsel %vm586, %v2969, 0
      %v3340 = vsel %vm586, %v2970, 0
      %v3343 = vsel %vm586, %v2971, 0
      %v3346 = vsel %vm586, %v2972, 0
      %v3349 = vsel %vm586, %v2973, 0
      %v3352 = vsel %vm586, %v2974, 0
      %v3355 = vsel %vm586, %v2975, 0
      %v3358 = vsel %vm586, %v2976, 0
      %v3361 = vsel %vm586, %v2977, 0
      %v3364 = vsel %vm586, %v2978, 0
      %v3367 = vsel %vm586, %v2979, 0
      %v3370 = vsel %vm586, %v2980, 0
      %v3373 = vsel %vm586, %v2981, 0
      %3375 = vmatprep.subr.bf16.mxu0 0
      %3376 = vmatpush1.bf16.msra.mxu0 %v3315
      %3377 = vmatprep.subr.bf16.mxu0 0
      %3378 = vmatpush1.bf16.msra.mxu0 %v3316
      %3379 = vmatprep.subr.bf16.mxu0 0
      %3380 = vmatpush1.bf16.msra.mxu0 %v3317
      %3381 = vmatprep.subr.bf16.mxu0 0
      %3382 = vmatpush1.bf16.msra.mxu0 0
      %3383 = vmatprep.subr.bf16.mxu0 0
      %3384 = vmatpush1.bf16.msra.mxu0 0
      %3385 = vmatprep.subr.bf16.mxu0 0
      %3386 = vmatpush1.bf16.msra.mxu0 0
      %3387 = vmatprep.subr.bf16.mxu0 0
      %3388 = vmatpush1.bf16.msra.mxu0 0
      %3389 = vmatprep.subr.bf16.mxu0 0
      %3390 = vmatpush1.bf16.msra.mxu0 0
      %3391 = vmatprep.subr.bf16.mxu0 0
      %3392 = vmatpush1.bf16.msra.mxu0 0
      %3393 = vmatprep.subr.bf16.mxu0 0
      %3394 = vmatpush1.bf16.msra.mxu0 0
      %3395 = vmatprep.subr.bf16.mxu0 0
      %3396 = vmatpush1.bf16.msra.mxu0 0
      %3397 = vmatprep.subr.bf16.mxu0 0
      %3398 = vmatpush1.bf16.msra.mxu0 0
      %3399 = vmatprep.subr.bf16.mxu0 0
      %3400 = vmatpush1.bf16.msra.mxu0 0
      %3401 = vmatprep.subr.bf16.mxu0 0
      %3402 = vmatpush1.bf16.msra.mxu0 0
      %3403 = vmatprep.subr.bf16.mxu0 0
      %3404 = vmatpush1.bf16.msra.mxu0 0
      %3405 = vmatprep.subr.bf16.mxu0 0
      %3406 = vmatpush1.bf16.msra.mxu0 0
      %3407 = vmatprep.mubr.bf16.mxu0 0
      %3408 = vmatmul.mubr.bf16.gmra.mrb[0].mxu0 %v3322
      %v3409 = vpop.f32.mrb[0].mxu0
      %v3410 = vadd.f32 %v3161, %v3409
      %v3411 = vpop.f32.mrb[0].mxu0
      %v3412 = vpop.f32.mrb[0].mxu0
      %v3413 = vadd.f32 %v3164, %v3412
      %v3414 = vpop.f32.mrb[0].mxu0
      %3415 = vmatprep.mubr.bf16.mxu0 0
      %3416 = vmatmul.mubr.bf16.gmra.mrb[0].mxu0 %v3325
      %v3417 = vpop.f32.mrb[0].mxu0
      %v3418 = vadd.f32 %v3169, %v3417
      %v3419 = vpop.f32.mrb[0].mxu0
      %v3420 = vpop.f32.mrb[0].mxu0
      %v3421 = vadd.f32 %v3172, %v3420
      %v3422 = vpop.f32.mrb[0].mxu0
      %3423 = vmatprep.mubr.bf16.mxu0 0
      %3424 = vmatmul.mubr.bf16.gmra.mrb[0].mxu0 %v3328
      %v3425 = vpop.f32.mrb[0].mxu0
      %v3426 = vadd.f32 %v3177, %v3425
      %v3427 = vpop.f32.mrb[0].mxu0
      %v3428 = vpop.f32.mrb[0].mxu0
      %v3429 = vadd.f32 %v3180, %v3428
      %v3430 = vpop.f32.mrb[0].mxu0
      %3431 = vmatprep.mubr.bf16.mxu0 0
      %3432 = vmatmul.mubr.bf16.gmra.mrb[0].mxu0 %v3331
      %v3433 = vpop.f32.mrb[0].mxu0
      %v3434 = vadd.f32 %v3185, %v3433
      %v3435 = vpop.f32.mrb[0].mxu0
      %v3436 = vpop.f32.mrb[0].mxu0
      %v3437 = vadd.f32 %v3188, %v3436
      %v3438 = vpop.f32.mrb[0].mxu0
      %3439 = vmatprep.mubr.bf16.mxu0 0
      %3440 = vmatmul.mubr.bf16.gmra.mrb[0].mxu0 %v3334
      %v3441 = vpop.f32.mrb[0].mxu0
      %v3442 = vadd.f32 %v3193, %v3441
      %v3443 = vpop.f32.mrb[0].mxu0
      %v3444 = vpop.f32.mrb[0].mxu0
      %v3445 = vadd.f32 %v3196, %v3444
      %v3446 = vpop.f32.mrb[0].mxu0
      %3447 = vmatprep.mubr.bf16.mxu0 0
      %3448 = vmatmul.mubr.bf16.gmra.mrb[0].mxu0 %v3337
      %v3449 = vpop.f32.mrb[0].mxu0
      %v3450 = vadd.f32 %v3201, %v3449
      %v3451 = vpop.f32.mrb[0].mxu0
      %v3452 = vpop.f32.mrb[0].mxu0
      %v3453 = vadd.f32 %v3204, %v3452
      %v3454 = vpop.f32.mrb[0].mxu0
      %3455 = vmatprep.mubr.bf16.mxu0 0
      %3456 = vmatmul.mubr.bf16.gmra.mrb[0].mxu0 %v3340
      %v3457 = vpop.f32.mrb[0].mxu0
      %v3458 = vadd.f32 %v3209, %v3457
      %v3459 = vpop.f32.mrb[0].mxu0
      %v3460 = vpop.f32.mrb[0].mxu0
      %v3461 = vadd.f32 %v3212, %v3460
      %v3462 = vpop.f32.mrb[0].mxu0
      %3463 = vmatprep.mubr.bf16.mxu0 0
      %3464 = vmatmul.mubr.bf16.gmra.mrb[0].mxu0 %v3343
      %v3465 = vpop.f32.mrb[0].mxu0
      %v3466 = vadd.f32 %v3217, %v3465
      %v3467 = vpop.f32.mrb[0].mxu0
      %v3468 = vpop.f32.mrb[0].mxu0
      %v3469 = vadd.f32 %v3220, %v3468
      %v3470 = vpop.f32.mrb[0].mxu0
      %3471 = vmatprep.mubr.bf16.mxu0 0
      %3472 = vmatmul.mubr.bf16.gmra.mrb[0].mxu0 %v3346
      %v3473 = vpop.f32.mrb[0].mxu0
      %v3474 = vadd.f32 %v3225, %v3473
      %v3475 = vpop.f32.mrb[0].mxu0
      %v3476 = vpop.f32.mrb[0].mxu0
      %v3477 = vadd.f32 %v3228, %v3476
      %v3478 = vpop.f32.mrb[0].mxu0
      %3479 = vmatprep.mubr.bf16.mxu0 0
      %3480 = vmatmul.mubr.bf16.gmra.mrb[0].mxu0 %v3349
      %v3481 = vpop.f32.mrb[0].mxu0
      %v3482 = vadd.f32 %v3233, %v3481
      %v3483 = vpop.f32.mrb[0].mxu0
      %v3484 = vpop.f32.mrb[0].mxu0
      %v3485 = vadd.f32 %v3236, %v3484
      %v3486 = vpop.f32.mrb[0].mxu0
      %3487 = vmatprep.mubr.bf16.mxu0 0
      %3488 = vmatmul.mubr.bf16.gmra.mrb[0].mxu0 %v3352
      %v3489 = vpop.f32.mrb[0].mxu0
      %v3490 = vadd.f32 %v3241, %v3489
      %v3491 = vpop.f32.mrb[0].mxu0
      %v3492 = vpop.f32.mrb[0].mxu0
      %v3493 = vadd.f32 %v3244, %v3492
      %v3494 = vpop.f32.mrb[0].mxu0
      %3495 = vmatprep.mubr.bf16.mxu0 0
      %3496 = vmatmul.mubr.bf16.gmra.mrb[0].mxu0 %v3355
      %v3497 = vpop.f32.mrb[0].mxu0
      %v3498 = vadd.f32 %v3249, %v3497
      %v3499 = vpop.f32.mrb[0].mxu0
      %v3500 = vpop.f32.mrb[0].mxu0
      %v3501 = vadd.f32 %v3252, %v3500
      %v3502 = vpop.f32.mrb[0].mxu0
      %3503 = vmatprep.mubr.bf16.mxu0 0
      %3504 = vmatmul.mubr.bf16.gmra.mrb[0].mxu0 %v3358
      %v3505 = vpop.f32.mrb[0].mxu0
      %v3506 = vadd.f32 %v3257, %v3505
      %v3507 = vpop.f32.mrb[0].mxu0
      %v3508 = vpop.f32.mrb[0].mxu0
      %v3509 = vadd.f32 %v3260, %v3508
      %v3510 = vpop.f32.mrb[0].mxu0
      %3511 = vmatprep.mubr.bf16.mxu0 0
      %3512 = vmatmul.mubr.bf16.gmra.mrb[0].mxu0 %v3361
      %v3513 = vpop.f32.mrb[0].mxu0
      %v3514 = vadd.f32 %v3265, %v3513
      %v3515 = vpop.f32.mrb[0].mxu0
      %v3516 = vpop.f32.mrb[0].mxu0
      %v3517 = vadd.f32 %v3268, %v3516
      %v3518 = vpop.f32.mrb[0].mxu0
      %3519 = vmatprep.mubr.bf16.mxu0 0
      %3520 = vmatmul.mubr.bf16.gmra.mrb[0].mxu0 %v3364
      %v3521 = vpop.f32.mrb[0].mxu0
      %v3522 = vadd.f32 %v3273, %v3521
      %v3523 = vpop.f32.mrb[0].mxu0
      %v3524 = vpop.f32.mrb[0].mxu0
      %v3525 = vadd.f32 %v3276, %v3524
      %v3526 = vpop.f32.mrb[0].mxu0
      %3527 = vmatprep.mubr.bf16.mxu0 0
      %3528 = vmatmul.mubr.bf16.gmra.mrb[0].mxu0 %v3367
      %v3529 = vpop.f32.mrb[0].mxu0
      %v3530 = vadd.f32 %v3281, %v3529
      %v3531 = vpop.f32.mrb[0].mxu0
      %v3532 = vpop.f32.mrb[0].mxu0
      %v3533 = vadd.f32 %v3284, %v3532
      %v3534 = vpop.f32.mrb[0].mxu0
      %3535 = vmatprep.mubr.bf16.mxu0 0
      %3536 = vmatmul.mubr.bf16.gmra.mrb[0].mxu0 %v3370
      %v3537 = vpop.f32.mrb[0].mxu0
      %v3538 = vadd.f32 %v3289, %v3537
      %v3539 = vpop.f32.mrb[0].mxu0
      %v3540 = vpop.f32.mrb[0].mxu0
      %v3541 = vadd.f32 %v3292, %v3540
      %v3542 = vpop.f32.mrb[0].mxu0
      %3543 = vmatprep.mubr.bf16.mxu0 0
      %3544 = vmatmul.mubr.bf16.gmra.mrb[0].mxu0 %v3373
      %v3545 = vpop.f32.mrb[0].mxu0
      %v3546 = vadd.f32 %v3297, %v3545
      %v3547 = vpop.f32.mrb[0].mxu0
      %v3548 = vpop.f32.mrb[0].mxu0
      %v3549 = vadd.f32 %v3300, %v3548
      %v3550 = vpop.f32.mrb[0].mxu0
      %3551 = vdwg.mxu0
      %v3552 = vld [vmem:[#allocation2 + $0xa8] sm:$0xff]
      %s3553 = scalar_lea.vmem %s5, 120
      %v3554 = vld [vmem:[%s3553] sm:$0xf]
      %v3555 = vld [vmem:[%s3553 + $0x4] sm:$0xf]
      %v3556 = vld [vmem:[%s3553 + $0x8] sm:$0xf]
      %v3557 = vld [vmem:[%s3553 + $0xc] sm:$0xf]
      %v3558 = vld [vmem:[%s3553 + $0x10] sm:$0xf]
      %v3559 = vld [vmem:[%s3553 + $0x14] sm:$0xf]
      %v3566 = vunpack.c.l.b16 %v3554
      %v3567 = vunpack.c.l.b16 %v3555
      %v3568 = vunpack.c.l.b16 %v3556
      %v3569 = vunpack.c.l.b16 %v3557
      %v3570 = vunpack.c.l.b16 %v3558
      %v3571 = vunpack.c.l.b16 %v3559
      %v3572 = vpack.c.b16 %v3567, %v3566
      %v3573 = vpack.c.b16 %v3569, %v3568
      %v3574 = vpack.c.b16 %v3571, %v3570
      %v3579 = vsel %vm586, %v3552, 0
      %3581 = vmatprep.subr.bf16.mxu0 0
      %3582 = vmatpush1.bf16.msra.mxu0 %v3572
      %3583 = vmatprep.subr.bf16.mxu0 0
      %3584 = vmatpush1.bf16.msra.mxu0 %v3573
      %3585 = vmatprep.subr.bf16.mxu0 0
      %3586 = vmatpush1.bf16.msra.mxu0 %v3574
      %3587 = vmatprep.subr.bf16.mxu0 0
      %3588 = vmatpush1.bf16.msra.mxu0 0
      %3589 = vmatprep.subr.bf16.mxu0 0
      %3590 = vmatpush1.bf16.msra.mxu0 0
      %3591 = vmatprep.subr.bf16.mxu0 0
      %3592 = vmatpush1.bf16.msra.mxu0 0
      %3593 = vmatprep.subr.bf16.mxu0 0
      %3594 = vmatpush1.bf16.msra.mxu0 0
      %3595 = vmatprep.subr.bf16.mxu0 0
      %3596 = vmatpush1.bf16.msra.mxu0 0
      %3597 = vmatprep.subr.bf16.mxu0 0
      %3598 = vmatpush1.bf16.msra.mxu0 0
      %3599 = vmatprep.subr.bf16.mxu0 0
      %3600 = vmatpush1.bf16.msra.mxu0 0
      %3601 = vmatprep.subr.bf16.mxu0 0
      %3602 = vmatpush1.bf16.msra.mxu0 0
      %3603 = vmatprep.subr.bf16.mxu0 0
      %3604 = vmatpush1.bf16.msra.mxu0 0
      %3605 = vmatprep.subr.bf16.mxu0 0
      %3606 = vmatpush1.bf16.msra.mxu0 0
      %3607 = vmatprep.subr.bf16.mxu0 0
      %3608 = vmatpush1.bf16.msra.mxu0 0
      %3609 = vmatprep.subr.bf16.mxu0 0
      %3610 = vmatpush1.bf16.msra.mxu0 0
      %3611 = vmatprep.subr.bf16.mxu0 0
      %3612 = vmatpush1.bf16.msra.mxu0 0
      %3613 = vmatprep.mubr.bf16.mxu0 0
      %3614 = vmatmul.mubr.bf16.gmra.mrb[0].mxu0 %v3325
      %v3615 = vpop.f32.mrb[0].mxu0
      %v3616 = vadd.f32 0.0, %v3615
      %v3617 = vpop.f32.mrb[0].mxu0
      %v3618 = vpop.f32.mrb[0].mxu0
      %v3619 = vadd.f32 0.0, %v3618
      %v3620 = vpop.f32.mrb[0].mxu0
      %3621 = vmatprep.mubr.bf16.mxu0 0
      %3622 = vmatmul.mubr.bf16.gmra.mrb[0].mxu0 %v3328
      %v3623 = vpop.f32.mrb[0].mxu0
      %v3624 = vadd.f32 0.0, %v3623
      %v3625 = vpop.f32.mrb[0].mxu0
      %v3626 = vpop.f32.mrb[0].mxu0
      %v3627 = vadd.f32 0.0, %v3626
      %v3628 = vpop.f32.mrb[0].mxu0
      %3629 = vmatprep.mubr.bf16.mxu0 0
      %3630 = vmatmul.mubr.bf16.gmra.mrb[0].mxu0 %v3331
      %v3631 = vpop.f32.mrb[0].mxu0
      %v3632 = vadd.f32 0.0, %v3631
      %v3633 = vpop.f32.mrb[0].mxu0
      %v3634 = vpop.f32.mrb[0].mxu0
      %v3635 = vadd.f32 0.0, %v3634
      %v3636 = vpop.f32.mrb[0].mxu0
      %3637 = vmatprep.mubr.bf16.mxu0 0
      %3638 = vmatmul.mubr.bf16.gmra.mrb[0].mxu0 %v3334
      %v3639 = vpop.f32.mrb[0].mxu0
      %v3640 = vadd.f32 0.0, %v3639
      %v3641 = vpop.f32.mrb[0].mxu0
      %v3642 = vpop.f32.mrb[0].mxu0
      %v3643 = vadd.f32 0.0, %v3642
      %v3644 = vpop.f32.mrb[0].mxu0
      %3645 = vmatprep.mubr.bf16.mxu0 0
      %3646 = vmatmul.mubr.bf16.gmra.mrb[0].mxu0 %v3337
      %v3647 = vpop.f32.mrb[0].mxu0
      %v3648 = vadd.f32 0.0, %v3647
      %v3649 = vpop.f32.mrb[0].mxu0
      %v3650 = vpop.f32.mrb[0].mxu0
      %v3651 = vadd.f32 0.0, %v3650
      %v3652 = vpop.f32.mrb[0].mxu0
      %3653 = vmatprep.mubr.bf16.mxu0 0
      %3654 = vmatmul.mubr.bf16.gmra.mrb[0].mxu0 %v3340
      %v3655 = vpop.f32.mrb[0].mxu0
      %v3656 = vadd.f32 0.0, %v3655
      %v3657 = vpop.f32.mrb[0].mxu0
      %v3658 = vpop.f32.mrb[0].mxu0
      %v3659 = vadd.f32 0.0, %v3658
      %v3660 = vpop.f32.mrb[0].mxu0
      %3661 = vmatprep.mubr.bf16.mxu0 0
      %3662 = vmatmul.mubr.bf16.gmra.mrb[0].mxu0 %v3343
      %v3663 = vpop.f32.mrb[0].mxu0
      %v3664 = vadd.f32 0.0, %v3663
      %v3665 = vpop.f32.mrb[0].mxu0
      %v3666 = vpop.f32.mrb[0].mxu0
      %v3667 = vadd.f32 0.0, %v3666
      %v3668 = vpop.f32.mrb[0].mxu0
      %3669 = vmatprep.mubr.bf16.mxu0 0
      %3670 = vmatmul.mubr.bf16.gmra.mrb[0].mxu0 %v3346
      %v3671 = vpop.f32.mrb[0].mxu0
      %v3672 = vadd.f32 0.0, %v3671
      %v3673 = vpop.f32.mrb[0].mxu0
      %v3674 = vpop.f32.mrb[0].mxu0
      %v3675 = vadd.f32 0.0, %v3674
      %v3676 = vpop.f32.mrb[0].mxu0
      %3677 = vmatprep.mubr.bf16.mxu0 0
      %3678 = vmatmul.mubr.bf16.gmra.mrb[0].mxu0 %v3349
      %v3679 = vpop.f32.mrb[0].mxu0
      %v3680 = vadd.f32 0.0, %v3679
      %v3681 = vpop.f32.mrb[0].mxu0
      %v3682 = vpop.f32.mrb[0].mxu0
      %v3683 = vadd.f32 0.0, %v3682
      %v3684 = vpop.f32.mrb[0].mxu0
      %3685 = vmatprep.mubr.bf16.mxu0 0
      %3686 = vmatmul.mubr.bf16.gmra.mrb[0].mxu0 %v3352
      %v3687 = vpop.f32.mrb[0].mxu0
      %v3688 = vadd.f32 0.0, %v3687
      %v3689 = vpop.f32.mrb[0].mxu0
      %v3690 = vpop.f32.mrb[0].mxu0
      %v3691 = vadd.f32 0.0, %v3690
      %v3692 = vpop.f32.mrb[0].mxu0
      %3693 = vmatprep.mubr.bf16.mxu0 0
      %3694 = vmatmul.mubr.bf16.gmra.mrb[0].mxu0 %v3355
      %v3695 = vpop.f32.mrb[0].mxu0
      %v3696 = vadd.f32 0.0, %v3695
      %v3697 = vpop.f32.mrb[0].mxu0
      %v3698 = vpop.f32.mrb[0].mxu0
      %v3699 = vadd.f32 0.0, %v3698
      %v3700 = vpop.f32.mrb[0].mxu0
      %3701 = vmatprep.mubr.bf16.mxu0 0
      %3702 = vmatmul.mubr.bf16.gmra.mrb[0].mxu0 %v3358
      %v3703 = vpop.f32.mrb[0].mxu0
      %v3704 = vadd.f32 0.0, %v3703
      %v3705 = vpop.f32.mrb[0].mxu0
      %v3706 = vpop.f32.mrb[0].mxu0
      %v3707 = vadd.f32 0.0, %v3706
      %v3708 = vpop.f32.mrb[0].mxu0
      %3709 = vmatprep.mubr.bf16.mxu0 0
      %3710 = vmatmul.mubr.bf16.gmra.mrb[0].mxu0 %v3361
      %v3711 = vpop.f32.mrb[0].mxu0
      %v3712 = vadd.f32 0.0, %v3711
      %v3713 = vpop.f32.mrb[0].mxu0
      %v3714 = vpop.f32.mrb[0].mxu0
      %v3715 = vadd.f32 0.0, %v3714
      %v3716 = vpop.f32.mrb[0].mxu0
      %3717 = vmatprep.mubr.bf16.mxu0 0
      %3718 = vmatmul.mubr.bf16.gmra.mrb[0].mxu0 %v3364
      %v3719 = vpop.f32.mrb[0].mxu0
      %v3720 = vadd.f32 0.0, %v3719
      %v3721 = vpop.f32.mrb[0].mxu0
      %v3722 = vpop.f32.mrb[0].mxu0
      %v3723 = vadd.f32 0.0, %v3722
      %v3724 = vpop.f32.mrb[0].mxu0
      %3725 = vmatprep.mubr.bf16.mxu0 0
      %3726 = vmatmul.mubr.bf16.gmra.mrb[0].mxu0 %v3367
      %v3727 = vpop.f32.mrb[0].mxu0
      %v3728 = vadd.f32 0.0, %v3727
      %v3729 = vpop.f32.mrb[0].mxu0
      %v3730 = vpop.f32.mrb[0].mxu0
      %v3731 = vadd.f32 0.0, %v3730
      %v3732 = vpop.f32.mrb[0].mxu0
      %3733 = vmatprep.mubr.bf16.mxu0 0
      %3734 = vmatmul.mubr.bf16.gmra.mrb[0].mxu0 %v3370
      %v3735 = vpop.f32.mrb[0].mxu0
      %v3736 = vadd.f32 0.0, %v3735
      %v3737 = vpop.f32.mrb[0].mxu0
      %v3738 = vpop.f32.mrb[0].mxu0
      %v3739 = vadd.f32 0.0, %v3738
      %v3740 = vpop.f32.mrb[0].mxu0
      %3741 = vmatprep.mubr.bf16.mxu0 0
      %3742 = vmatmul.mubr.bf16.gmra.mrb[0].mxu0 %v3373
      %v3743 = vpop.f32.mrb[0].mxu0
      %v3744 = vadd.f32 0.0, %v3743
      %v3745 = vpop.f32.mrb[0].mxu0
      %v3746 = vpop.f32.mrb[0].mxu0
      %v3747 = vadd.f32 0.0, %v3746
      %v3748 = vpop.f32.mrb[0].mxu0
      %3749 = vmatprep.mubr.bf16.mxu0 0
      %3750 = vmatmul.mubr.bf16.gmra.mrb[0].mxu0 %v3579
      %v3751 = vpop.f32.mrb[0].mxu0
      %v3752 = vadd.f32 0.0, %v3751
      %v3753 = vpop.f32.mrb[0].mxu0
      %v3754 = vpop.f32.mrb[0].mxu0
      %v3755 = vadd.f32 0.0, %v3754
      %v3756 = vpop.f32.mrb[0].mxu0
      %3757 = vdwg.mxu0
      %v3758 = vadd.f32 %v3410, %v3616
      %v3759 = vadd.f32 %v3413, %v3619
      %v3760 = vadd.f32 %v3418, %v3624
      %v3761 = vadd.f32 %v3421, %v3627
      %v3762 = vadd.f32 %v3426, %v3632
      %v3763 = vadd.f32 %v3429, %v3635
      %v3764 = vadd.f32 %v3434, %v3640
      %v3765 = vadd.f32 %v3437, %v3643
      %v3766 = vadd.f32 %v3442, %v3648
      %v3767 = vadd.f32 %v3445, %v3651
      %v3768 = vadd.f32 %v3450, %v3656
      %v3769 = vadd.f32 %v3453, %v3659
      %v3770 = vadd.f32 %v3458, %v3664
      %v3771 = vadd.f32 %v3461, %v3667
      %v3772 = vadd.f32 %v3466, %v3672
      %v3773 = vadd.f32 %v3469, %v3675
      %v3774 = vadd.f32 %v3474, %v3680
      %v3775 = vadd.f32 %v3477, %v3683
      %v3776 = vadd.f32 %v3482, %v3688
      %v3777 = vadd.f32 %v3485, %v3691
      %v3778 = vadd.f32 %v3490, %v3696
      %v3779 = vadd.f32 %v3493, %v3699
      %v3780 = vadd.f32 %v3498, %v3704
      %v3781 = vadd.f32 %v3501, %v3707
      %v3782 = vadd.f32 %v3506, %v3712
      %v3783 = vadd.f32 %v3509, %v3715
      %v3784 = vadd.f32 %v3514, %v3720
      %v3785 = vadd.f32 %v3517, %v3723
      %v3786 = vadd.f32 %v3522, %v3728
      %v3787 = vadd.f32 %v3525, %v3731
      %v3788 = vadd.f32 %v3530, %v3736
      %v3789 = vadd.f32 %v3533, %v3739
      %v3790 = vadd.f32 %v3538, %v3744
      %v3791 = vadd.f32 %v3541, %v3747
      %v3792 = vadd.f32 %v3546, %v3752
      %v3793 = vadd.f32 %v3549, %v3755
      %v3794 = vld [vmem:[#allocation2 + $0x30] sm:$0xff]
      %v3795 = vld [vmem:[#allocation2 + $0x38] sm:$0xff]
      %v3796 = vld [vmem:[#allocation2 + $0x40] sm:$0xff]
      %v3797 = vld [vmem:[#allocation2 + $0x48] sm:$0xff]
      %v3798 = vld [vmem:[#allocation2 + $0x50] sm:$0xff]
      %v3799 = vld [vmem:[#allocation2 + $0x58] sm:$0xff]
      %v3800 = vld [vmem:[#allocation2 + $0x60] sm:$0xff]
      %v3801 = vld [vmem:[#allocation2 + $0x68] sm:$0xff]
      %v3802 = vld [vmem:[#allocation2 + $0x70] sm:$0xff]
      %v3803 = vld [vmem:[#allocation2 + $0x78] sm:$0xff]
      %v3804 = vld [vmem:[#allocation2 + $0x80] sm:$0xff]
      %v3805 = vld [vmem:[#allocation2 + $0x88] sm:$0xff]
      %v3806 = vld [vmem:[#allocation2 + $0x90] sm:$0xff]
      %v3807 = vld [vmem:[#allocation2 + $0x98] sm:$0xff]
      %v3808 = vld [vmem:[#allocation2 + $0xa0] sm:$0xff]
      %v3809 = vld [vmem:[#allocation2 + $0xa8] sm:$0xff]
      %v3810 = vld [vmem:[#allocation2 + $0xb0] sm:$0xff]
      %v3811 = vld [vmem:[#allocation2 + $0xb8] sm:$0xff]
      %s3812 = scalar_lea.vmem %s5, 144
      %v3813 = vld [vmem:[%s3812] sm:$0xf]
      %v3814 = vld [vmem:[%s3812 + $0x4] sm:$0xf]
      %v3815 = vld [vmem:[%s3812 + $0x8] sm:$0xf]
      %v3816 = vld [vmem:[%s3812 + $0xc] sm:$0xf]
      %v3817 = vld [vmem:[%s3812 + $0x10] sm:$0xf]
      %v3818 = vld [vmem:[%s3812 + $0x14] sm:$0xf]
      %v3819 = vld [vmem:[#allocation2 + $0x30] sm:$0xf0]
      %v3820 = vld [vmem:[#allocation2 + $0xc0] sm:$0xf]
      %s3821 = scalar_lea.vmem %s5, 168
      %v3822 = vld [vmem:[%s3821] sm:$0xf]
      %v3823 = vld [vmem:[%s3821 + $0x4] sm:$0xf]
      %v3824 = vld [vmem:[%s3821 + $0x8] sm:$0xf]
      %v3825 = vld [vmem:[%s3821 + $0xc] sm:$0xf]
      %v3826 = vld [vmem:[%s3821 + $0x10] sm:$0xf]
      %v3827 = vld [vmem:[%s3821 + $0x14] sm:$0xf]
      %v3847 = vrot.slane %v3819, 4
      %v3848 = vrot.slane %v3795, 4
      %v3849 = vsel %vm1862, %v3847, %v3848
      %v3850 = vrot.slane %v3796, 4
      %v3851 = vsel %vm1862, %v3848, %v3850
      %v3852 = vrot.slane %v3797, 4
      %v3853 = vsel %vm1862, %v3850, %v3852
      %v3854 = vrot.slane %v3798, 4
      %v3855 = vsel %vm1862, %v3852, %v3854
      %v3856 = vrot.slane %v3799, 4
      %v3857 = vsel %vm1862, %v3854, %v3856
      %v3858 = vrot.slane %v3800, 4
      %v3859 = vsel %vm1862, %v3856, %v3858
      %v3860 = vrot.slane %v3801, 4
      %v3861 = vsel %vm1862, %v3858, %v3860
      %v3862 = vrot.slane %v3802, 4
      %v3863 = vsel %vm1862, %v3860, %v3862
      %v3864 = vrot.slane %v3803, 4
      %v3865 = vsel %vm1862, %v3862, %v3864
      %v3866 = vrot.slane %v3804, 4
      %v3867 = vsel %vm1862, %v3864, %v3866
      %v3868 = vrot.slane %v3805, 4
      %v3869 = vsel %vm1862, %v3866, %v3868
      %v3870 = vrot.slane %v3806, 4
      %v3871 = vsel %vm1862, %v3868, %v3870
      %v3872 = vrot.slane %v3807, 4
      %v3873 = vsel %vm1862, %v3870, %v3872
      %v3874 = vrot.slane %v3808, 4
      %v3875 = vsel %vm1862, %v3872, %v3874
      %v3876 = vrot.slane %v3809, 4
      %v3877 = vsel %vm1862, %v3874, %v3876
      %v3878 = vrot.slane %v3810, 4
      %v3879 = vsel %vm1862, %v3876, %v3878
      %v3880 = vrot.slane %v3811, 4
      %v3881 = vsel %vm1862, %v3878, %v3880
      %v3882 = vrot.slane %v3820, 4
      %v3883 = vsel %vm1862, %v3880, %v3882
      %v3890 = vunpack.c.l.b16 %v3822
      %v3891 = vunpack.c.l.b16 %v3823
      %v3892 = vunpack.c.l.b16 %v3824
      %v3893 = vunpack.c.l.b16 %v3825
      %v3894 = vunpack.c.l.b16 %v3826
      %v3895 = vunpack.c.l.b16 %v3827
      %v3896 = vpack.c.b16 %v3891, %v3890
      %v3897 = vpack.c.b16 %v3893, %v3892
      %v3898 = vpack.c.b16 %v3895, %v3894
      %v3903 = vsel %vm586, %v3849, 0
      %v3906 = vsel %vm586, %v3851, 0
      %v3909 = vsel %vm586, %v3853, 0
      %v3912 = vsel %vm586, %v3855, 0
      %v3915 = vsel %vm586, %v3857, 0
      %v3918 = vsel %vm586, %v3859, 0
      %v3921 = vsel %vm586, %v3861, 0
      %v3924 = vsel %vm586, %v3863, 0
      %v3927 = vsel %vm586, %v3865, 0
      %v3930 = vsel %vm586, %v3867, 0
      %v3933 = vsel %vm586, %v3869, 0
      %v3936 = vsel %vm586, %v3871, 0
      %v3939 = vsel %vm586, %v3873, 0
      %v3942 = vsel %vm586, %v3875, 0
      %v3945 = vsel %vm586, %v3877, 0
      %v3948 = vsel %vm586, %v3879, 0
      %v3951 = vsel %vm586, %v3881, 0
      %v3954 = vsel %vm586, %v3883, 0
      %3956 = vmatprep.subr.bf16.mxu0 0
      %3957 = vmatpush1.bf16.msra.mxu0 %v3896
      %3958 = vmatprep.subr.bf16.mxu0 0
      %3959 = vmatpush1.bf16.msra.mxu0 %v3897
      %3960 = vmatprep.subr.bf16.mxu0 0
      %3961 = vmatpush1.bf16.msra.mxu0 %v3898
      %3962 = vmatprep.subr.bf16.mxu0 0
      %3963 = vmatpush1.bf16.msra.mxu0 0
      %3964 = vmatprep.subr.bf16.mxu0 0
      %3965 = vmatpush1.bf16.msra.mxu0 0
      %3966 = vmatprep.subr.bf16.mxu0 0
      %3967 = vmatpush1.bf16.msra.mxu0 0
      %3968 = vmatprep.subr.bf16.mxu0 0
      %3969 = vmatpush1.bf16.msra.mxu0 0
      %3970 = vmatprep.subr.bf16.mxu0 0
      %3971 = vmatpush1.bf16.msra.mxu0 0
      %3972 = vmatprep.subr.bf16.mxu0 0
      %3973 = vmatpush1.bf16.msra.mxu0 0
      %3974 = vmatprep.subr.bf16.mxu0 0
      %3975 = vmatpush1.bf16.msra.mxu0 0
      %3976 = vmatprep.subr.bf16.mxu0 0
      %3977 = vmatpush1.bf16.msra.mxu0 0
      %3978 = vmatprep.subr.bf16.mxu0 0
      %3979 = vmatpush1.bf16.msra.mxu0 0
      %3980 = vmatprep.subr.bf16.mxu0 0
      %3981 = vmatpush1.bf16.msra.mxu0 0
      %3982 = vmatprep.subr.bf16.mxu0 0
      %3983 = vmatpush1.bf16.msra.mxu0 0
      %3984 = vmatprep.subr.bf16.mxu0 0
      %3985 = vmatpush1.bf16.msra.mxu0 0
      %3986 = vmatprep.subr.bf16.mxu0 0
      %3987 = vmatpush1.bf16.msra.mxu0 0
      %3988 = vmatprep.mubr.bf16.mxu0 0
      %3989 = vmatmul.mubr.bf16.gmra.mrb[0].mxu0 %v3903
      %v3990 = vpop.f32.mrb[0].mxu0
      %v3991 = vadd.f32 0.0, %v3990
      %v3992 = vpop.f32.mrb[0].mxu0
      %v3993 = vpop.f32.mrb[0].mxu0
      %v3994 = vadd.f32 0.0, %v3993
      %v3995 = vpop.f32.mrb[0].mxu0
      %3996 = vmatprep.mubr.bf16.mxu0 0
      %3997 = vmatmul.mubr.bf16.gmra.mrb[0].mxu0 %v3906
      %v3998 = vpop.f32.mrb[0].mxu0
      %v3999 = vadd.f32 0.0, %v3998
      %v4000 = vpop.f32.mrb[0].mxu0
      %v4001 = vpop.f32.mrb[0].mxu0
      %v4002 = vadd.f32 0.0, %v4001
      %v4003 = vpop.f32.mrb[0].mxu0
      %4004 = vmatprep.mubr.bf16.mxu0 0
      %4005 = vmatmul.mubr.bf16.gmra.mrb[0].mxu0 %v3909
      %v4006 = vpop.f32.mrb[0].mxu0
      %v4007 = vadd.f32 0.0, %v4006
      %v4008 = vpop.f32.mrb[0].mxu0
      %v4009 = vpop.f32.mrb[0].mxu0
      %v4010 = vadd.f32 0.0, %v4009
      %v4011 = vpop.f32.mrb[0].mxu0
      %4012 = vmatprep.mubr.bf16.mxu0 0
      %4013 = vmatmul.mubr.bf16.gmra.mrb[0].mxu0 %v3912
      %v4014 = vpop.f32.mrb[0].mxu0
      %v4015 = vadd.f32 0.0, %v4014
      %v4016 = vpop.f32.mrb[0].mxu0
      %v4017 = vpop.f32.mrb[0].mxu0
      %v4018 = vadd.f32 0.0, %v4017
      %v4019 = vpop.f32.mrb[0].mxu0
      %4020 = vmatprep.mubr.bf16.mxu0 0
      %4021 = vmatmul.mubr.bf16.gmra.mrb[0].mxu0 %v3915
      %v4022 = vpop.f32.mrb[0].mxu0
      %v4023 = vadd.f32 0.0, %v4022
      %v4024 = vpop.f32.mrb[0].mxu0
      %v4025 = vpop.f32.mrb[0].mxu0
      %v4026 = vadd.f32 0.0, %v4025
      %v4027 = vpop.f32.mrb[0].mxu0
      %4028 = vmatprep.mubr.bf16.mxu0 0
      %4029 = vmatmul.mubr.bf16.gmra.mrb[0].mxu0 %v3918
      %v4030 = vpop.f32.mrb[0].mxu0
      %v4031 = vadd.f32 0.0, %v4030
      %v4032 = vpop.f32.mrb[0].mxu0
      %v4033 = vpop.f32.mrb[0].mxu0
      %v4034 = vadd.f32 0.0, %v4033
      %v4035 = vpop.f32.mrb[0].mxu0
      %4036 = vmatprep.mubr.bf16.mxu0 0
      %4037 = vmatmul.mubr.bf16.gmra.mrb[0].mxu0 %v3921
      %v4038 = vpop.f32.mrb[0].mxu0
      %v4039 = vadd.f32 0.0, %v4038
      %v4040 = vpop.f32.mrb[0].mxu0
      %v4041 = vpop.f32.mrb[0].mxu0
      %v4042 = vadd.f32 0.0, %v4041
      %v4043 = vpop.f32.mrb[0].mxu0
      %4044 = vmatprep.mubr.bf16.mxu0 0
      %4045 = vmatmul.mubr.bf16.gmra.mrb[0].mxu0 %v3924
      %v4046 = vpop.f32.mrb[0].mxu0
      %v4047 = vadd.f32 0.0, %v4046
      %v4048 = vpop.f32.mrb[0].mxu0
      %v4049 = vpop.f32.mrb[0].mxu0
      %v4050 = vadd.f32 0.0, %v4049
      %v4051 = vpop.f32.mrb[0].mxu0
      %4052 = vmatprep.mubr.bf16.mxu0 0
      %4053 = vmatmul.mubr.bf16.gmra.mrb[0].mxu0 %v3927
      %v4054 = vpop.f32.mrb[0].mxu0
      %v4055 = vadd.f32 0.0, %v4054
      %v4056 = vpop.f32.mrb[0].mxu0
      %v4057 = vpop.f32.mrb[0].mxu0
      %v4058 = vadd.f32 0.0, %v4057
      %v4059 = vpop.f32.mrb[0].mxu0
      %4060 = vmatprep.mubr.bf16.mxu0 0
      %4061 = vmatmul.mubr.bf16.gmra.mrb[0].mxu0 %v3930
      %v4062 = vpop.f32.mrb[0].mxu0
      %v4063 = vadd.f32 0.0, %v4062
      %v4064 = vpop.f32.mrb[0].mxu0
      %v4065 = vpop.f32.mrb[0].mxu0
      %v4066 = vadd.f32 0.0, %v4065
      %v4067 = vpop.f32.mrb[0].mxu0
      %4068 = vmatprep.mubr.bf16.mxu0 0
      %4069 = vmatmul.mubr.bf16.gmra.mrb[0].mxu0 %v3933
      %v4070 = vpop.f32.mrb[0].mxu0
      %v4071 = vadd.f32 0.0, %v4070
      %v4072 = vpop.f32.mrb[0].mxu0
      %v4073 = vpop.f32.mrb[0].mxu0
      %v4074 = vadd.f32 0.0, %v4073
      %v4075 = vpop.f32.mrb[0].mxu0
      %4076 = vmatprep.mubr.bf16.mxu0 0
      %4077 = vmatmul.mubr.bf16.gmra.mrb[0].mxu0 %v3936
      %v4078 = vpop.f32.mrb[0].mxu0
      %v4079 = vadd.f32 0.0, %v4078
      %v4080 = vpop.f32.mrb[0].mxu0
      %v4081 = vpop.f32.mrb[0].mxu0
      %v4082 = vadd.f32 0.0, %v4081
      %v4083 = vpop.f32.mrb[0].mxu0
      %4084 = vmatprep.mubr.bf16.mxu0 0
      %4085 = vmatmul.mubr.bf16.gmra.mrb[0].mxu0 %v3939
      %v4086 = vpop.f32.mrb[0].mxu0
      %v4087 = vadd.f32 0.0, %v4086
      %v4088 = vpop.f32.mrb[0].mxu0
      %v4089 = vpop.f32.mrb[0].mxu0
      %v4090 = vadd.f32 0.0, %v4089
      %v4091 = vpop.f32.mrb[0].mxu0
      %4092 = vmatprep.mubr.bf16.mxu0 0
      %4093 = vmatmul.mubr.bf16.gmra.mrb[0].mxu0 %v3942
      %v4094 = vpop.f32.mrb[0].mxu0
      %v4095 = vadd.f32 0.0, %v4094
      %v4096 = vpop.f32.mrb[0].mxu0
      %v4097 = vpop.f32.mrb[0].mxu0
      %v4098 = vadd.f32 0.0, %v4097
      %v4099 = vpop.f32.mrb[0].mxu0
      %4100 = vmatprep.mubr.bf16.mxu0 0
      %4101 = vmatmul.mubr.bf16.gmra.mrb[0].mxu0 %v3945
      %v4102 = vpop.f32.mrb[0].mxu0
      %v4103 = vadd.f32 0.0, %v4102
      %v4104 = vpop.f32.mrb[0].mxu0
      %v4105 = vpop.f32.mrb[0].mxu0
      %v4106 = vadd.f32 0.0, %v4105
      %v4107 = vpop.f32.mrb[0].mxu0
      %4108 = vmatprep.mubr.bf16.mxu0 0
      %4109 = vmatmul.mubr.bf16.gmra.mrb[0].mxu0 %v3948
      %v4110 = vpop.f32.mrb[0].mxu0
      %v4111 = vadd.f32 0.0, %v4110
      %v4112 = vpop.f32.mrb[0].mxu0
      %v4113 = vpop.f32.mrb[0].mxu0
      %v4114 = vadd.f32 0.0, %v4113
      %v4115 = vpop.f32.mrb[0].mxu0
      %4116 = vmatprep.mubr.bf16.mxu0 0
      %4117 = vmatmul.mubr.bf16.gmra.mrb[0].mxu0 %v3951
      %v4118 = vpop.f32.mrb[0].mxu0
      %v4119 = vadd.f32 0.0, %v4118
      %v4120 = vpop.f32.mrb[0].mxu0
      %v4121 = vpop.f32.mrb[0].mxu0
      %v4122 = vadd.f32 0.0, %v4121
      %v4123 = vpop.f32.mrb[0].mxu0
      %4124 = vmatprep.mubr.bf16.mxu0 0
      %4125 = vmatmul.mubr.bf16.gmra.mrb[0].mxu0 %v3954
      %v4126 = vpop.f32.mrb[0].mxu0
      %v4127 = vadd.f32 0.0, %v4126
      %v4128 = vpop.f32.mrb[0].mxu0
      %v4129 = vpop.f32.mrb[0].mxu0
      %v4130 = vadd.f32 0.0, %v4129
      %v4131 = vpop.f32.mrb[0].mxu0
      %4132 = vdwg.mxu0
      %v4139 = vunpack.c.l.b16 %v3813
      %v4140 = vunpack.c.l.b16 %v3814
      %v4141 = vunpack.c.l.b16 %v3815
      %v4142 = vunpack.c.l.b16 %v3816
      %v4143 = vunpack.c.l.b16 %v3817
      %v4144 = vunpack.c.l.b16 %v3818
      %v4145 = vpack.c.b16 %v4140, %v4139
      %v4146 = vpack.c.b16 %v4142, %v4141
      %v4147 = vpack.c.b16 %v4144, %v4143
      %v4152 = vsel %vm586, %v3794, 0
      %v4155 = vsel %vm586, %v3795, 0
      %v4158 = vsel %vm586, %v3796, 0
      %v4161 = vsel %vm586, %v3797, 0
      %v4164 = vsel %vm586, %v3798, 0
      %v4167 = vsel %vm586, %v3799, 0
      %v4170 = vsel %vm586, %v3800, 0
      %v4173 = vsel %vm586, %v3801, 0
      %v4176 = vsel %vm586, %v3802, 0
      %v4179 = vsel %vm586, %v3803, 0
      %v4182 = vsel %vm586, %v3804, 0
      %v4185 = vsel %vm586, %v3805, 0
      %v4188 = vsel %vm586, %v3806, 0
      %v4191 = vsel %vm586, %v3807, 0
      %v4194 = vsel %vm586, %v3808, 0
      %v4197 = vsel %vm586, %v3809, 0
      %v4200 = vsel %vm586, %v3810, 0
      %v4203 = vsel %vm586, %v3811, 0
      %4205 = vmatprep.subr.bf16.mxu0 0
      %4206 = vmatpush1.bf16.msra.mxu0 %v4145
      %4207 = vmatprep.subr.bf16.mxu0 0
      %4208 = vmatpush1.bf16.msra.mxu0 %v4146
      %4209 = vmatprep.subr.bf16.mxu0 0
      %4210 = vmatpush1.bf16.msra.mxu0 %v4147
      %4211 = vmatprep.subr.bf16.mxu0 0
      %4212 = vmatpush1.bf16.msra.mxu0 0
      %4213 = vmatprep.subr.bf16.mxu0 0
      %4214 = vmatpush1.bf16.msra.mxu0 0
      %4215 = vmatprep.subr.bf16.mxu0 0
      %4216 = vmatpush1.bf16.msra.mxu0 0
      %4217 = vmatprep.subr.bf16.mxu0 0
      %4218 = vmatpush1.bf16.msra.mxu0 0
      %4219 = vmatprep.subr.bf16.mxu0 0
      %4220 = vmatpush1.bf16.msra.mxu0 0
      %4221 = vmatprep.subr.bf16.mxu0 0
      %4222 = vmatpush1.bf16.msra.mxu0 0
      %4223 = vmatprep.subr.bf16.mxu0 0
      %4224 = vmatpush1.bf16.msra.mxu0 0
      %4225 = vmatprep.subr.bf16.mxu0 0
      %4226 = vmatpush1.bf16.msra.mxu0 0
      %4227 = vmatprep.subr.bf16.mxu0 0
      %4228 = vmatpush1.bf16.msra.mxu0 0
      %4229 = vmatprep.subr.bf16.mxu0 0
      %4230 = vmatpush1.bf16.msra.mxu0 0
      %4231 = vmatprep.subr.bf16.mxu0 0
      %4232 = vmatpush1.bf16.msra.mxu0 0
      %4233 = vmatprep.subr.bf16.mxu0 0
      %4234 = vmatpush1.bf16.msra.mxu0 0
      %4235 = vmatprep.subr.bf16.mxu0 0
      %4236 = vmatpush1.bf16.msra.mxu0 0
      %4237 = vmatprep.mubr.bf16.mxu0 0
      %4238 = vmatmul.mubr.bf16.gmra.mrb[0].mxu0 %v4152
      %v4239 = vpop.f32.mrb[0].mxu0
      %v4240 = vadd.f32 %v3991, %v4239
      %v4241 = vpop.f32.mrb[0].mxu0
      %v4242 = vpop.f32.mrb[0].mxu0
      %v4243 = vadd.f32 %v3994, %v4242
      %v4244 = vpop.f32.mrb[0].mxu0
      %4245 = vmatprep.mubr.bf16.mxu0 0
      %4246 = vmatmul.mubr.bf16.gmra.mrb[0].mxu0 %v4155
      %v4247 = vpop.f32.mrb[0].mxu0
      %v4248 = vadd.f32 %v3999, %v4247
      %v4249 = vpop.f32.mrb[0].mxu0
      %v4250 = vpop.f32.mrb[0].mxu0
      %v4251 = vadd.f32 %v4002, %v4250
      %v4252 = vpop.f32.mrb[0].mxu0
      %4253 = vmatprep.mubr.bf16.mxu0 0
      %4254 = vmatmul.mubr.bf16.gmra.mrb[0].mxu0 %v4158
      %v4255 = vpop.f32.mrb[0].mxu0
      %v4256 = vadd.f32 %v4007, %v4255
      %v4257 = vpop.f32.mrb[0].mxu0
      %v4258 = vpop.f32.mrb[0].mxu0
      %v4259 = vadd.f32 %v4010, %v4258
      %v4260 = vpop.f32.mrb[0].mxu0
      %4261 = vmatprep.mubr.bf16.mxu0 0
      %4262 = vmatmul.mubr.bf16.gmra.mrb[0].mxu0 %v4161
      %v4263 = vpop.f32.mrb[0].mxu0
      %v4264 = vadd.f32 %v4015, %v4263
      %v4265 = vpop.f32.mrb[0].mxu0
      %v4266 = vpop.f32.mrb[0].mxu0
      %v4267 = vadd.f32 %v4018, %v4266
      %v4268 = vpop.f32.mrb[0].mxu0
      %4269 = vmatprep.mubr.bf16.mxu0 0
      %4270 = vmatmul.mubr.bf16.gmra.mrb[0].mxu0 %v4164
      %v4271 = vpop.f32.mrb[0].mxu0
      %v4272 = vadd.f32 %v4023, %v4271
      %v4273 = vpop.f32.mrb[0].mxu0
      %v4274 = vpop.f32.mrb[0].mxu0
      %v4275 = vadd.f32 %v4026, %v4274
      %v4276 = vpop.f32.mrb[0].mxu0
      %4277 = vmatprep.mubr.bf16.mxu0 0
      %4278 = vmatmul.mubr.bf16.gmra.mrb[0].mxu0 %v4167
      %v4279 = vpop.f32.mrb[0].mxu0
      %v4280 = vadd.f32 %v4031, %v4279
      %v4281 = vpop.f32.mrb[0].mxu0
      %v4282 = vpop.f32.mrb[0].mxu0
      %v4283 = vadd.f32 %v4034, %v4282
      %v4284 = vpop.f32.mrb[0].mxu0
      %4285 = vmatprep.mubr.bf16.mxu0 0
      %4286 = vmatmul.mubr.bf16.gmra.mrb[0].mxu0 %v4170
      %v4287 = vpop.f32.mrb[0].mxu0
      %v4288 = vadd.f32 %v4039, %v4287
      %v4289 = vpop.f32.mrb[0].mxu0
      %v4290 = vpop.f32.mrb[0].mxu0
      %v4291 = vadd.f32 %v4042, %v4290
      %v4292 = vpop.f32.mrb[0].mxu0
      %4293 = vmatprep.mubr.bf16.mxu0 0
      %4294 = vmatmul.mubr.bf16.gmra.mrb[0].mxu0 %v4173
      %v4295 = vpop.f32.mrb[0].mxu0
      %v4296 = vadd.f32 %v4047, %v4295
      %v4297 = vpop.f32.mrb[0].mxu0
      %v4298 = vpop.f32.mrb[0].mxu0
      %v4299 = vadd.f32 %v4050, %v4298
      %v4300 = vpop.f32.mrb[0].mxu0
      %4301 = vmatprep.mubr.bf16.mxu0 0
      %4302 = vmatmul.mubr.bf16.gmra.mrb[0].mxu0 %v4176
      %v4303 = vpop.f32.mrb[0].mxu0
      %v4304 = vadd.f32 %v4055, %v4303
      %v4305 = vpop.f32.mrb[0].mxu0
      %v4306 = vpop.f32.mrb[0].mxu0
      %v4307 = vadd.f32 %v4058, %v4306
      %v4308 = vpop.f32.mrb[0].mxu0
      %4309 = vmatprep.mubr.bf16.mxu0 0
      %4310 = vmatmul.mubr.bf16.gmra.mrb[0].mxu0 %v4179
      %v4311 = vpop.f32.mrb[0].mxu0
      %v4312 = vadd.f32 %v4063, %v4311
      %v4313 = vpop.f32.mrb[0].mxu0
      %v4314 = vpop.f32.mrb[0].mxu0
      %v4315 = vadd.f32 %v4066, %v4314
      %v4316 = vpop.f32.mrb[0].mxu0
      %4317 = vmatprep.mubr.bf16.mxu0 0
      %4318 = vmatmul.mubr.bf16.gmra.mrb[0].mxu0 %v4182
      %v4319 = vpop.f32.mrb[0].mxu0
      %v4320 = vadd.f32 %v4071, %v4319
      %v4321 = vpop.f32.mrb[0].mxu0
      %v4322 = vpop.f32.mrb[0].mxu0
      %v4323 = vadd.f32 %v4074, %v4322
      %v4324 = vpop.f32.mrb[0].mxu0
      %4325 = vmatprep.mubr.bf16.mxu0 0
      %4326 = vmatmul.mubr.bf16.gmra.mrb[0].mxu0 %v4185
      %v4327 = vpop.f32.mrb[0].mxu0
      %v4328 = vadd.f32 %v4079, %v4327
      %v4329 = vpop.f32.mrb[0].mxu0
      %v4330 = vpop.f32.mrb[0].mxu0
      %v4331 = vadd.f32 %v4082, %v4330
      %v4332 = vpop.f32.mrb[0].mxu0
      %4333 = vmatprep.mubr.bf16.mxu0 0
      %4334 = vmatmul.mubr.bf16.gmra.mrb[0].mxu0 %v4188
      %v4335 = vpop.f32.mrb[0].mxu0
      %v4336 = vadd.f32 %v4087, %v4335
      %v4337 = vpop.f32.mrb[0].mxu0
      %v4338 = vpop.f32.mrb[0].mxu0
      %v4339 = vadd.f32 %v4090, %v4338
      %v4340 = vpop.f32.mrb[0].mxu0
      %4341 = vmatprep.mubr.bf16.mxu0 0
      %4342 = vmatmul.mubr.bf16.gmra.mrb[0].mxu0 %v4191
      %v4343 = vpop.f32.mrb[0].mxu0
      %v4344 = vadd.f32 %v4095, %v4343
      %v4345 = vpop.f32.mrb[0].mxu0
      %v4346 = vpop.f32.mrb[0].mxu0
      %v4347 = vadd.f32 %v4098, %v4346
      %v4348 = vpop.f32.mrb[0].mxu0
      %4349 = vmatprep.mubr.bf16.mxu0 0
      %4350 = vmatmul.mubr.bf16.gmra.mrb[0].mxu0 %v4194
      %v4351 = vpop.f32.mrb[0].mxu0
      %v4352 = vadd.f32 %v4103, %v4351
      %v4353 = vpop.f32.mrb[0].mxu0
      %v4354 = vpop.f32.mrb[0].mxu0
      %v4355 = vadd.f32 %v4106, %v4354
      %v4356 = vpop.f32.mrb[0].mxu0
      %4357 = vmatprep.mubr.bf16.mxu0 0
      %4358 = vmatmul.mubr.bf16.gmra.mrb[0].mxu0 %v4197
      %v4359 = vpop.f32.mrb[0].mxu0
      %v4360 = vadd.f32 %v4111, %v4359
      %v4361 = vpop.f32.mrb[0].mxu0
      %v4362 = vpop.f32.mrb[0].mxu0
      %v4363 = vadd.f32 %v4114, %v4362
      %v4364 = vpop.f32.mrb[0].mxu0
      %4365 = vmatprep.mubr.bf16.mxu0 0
      %4366 = vmatmul.mubr.bf16.gmra.mrb[0].mxu0 %v4200
      %v4367 = vpop.f32.mrb[0].mxu0
      %v4368 = vadd.f32 %v4119, %v4367
      %v4369 = vpop.f32.mrb[0].mxu0
      %v4370 = vpop.f32.mrb[0].mxu0
      %v4371 = vadd.f32 %v4122, %v4370
      %v4372 = vpop.f32.mrb[0].mxu0
      %4373 = vmatprep.mubr.bf16.mxu0 0
      %4374 = vmatmul.mubr.bf16.gmra.mrb[0].mxu0 %v4203
      %v4375 = vpop.f32.mrb[0].mxu0
      %v4376 = vadd.f32 %v4127, %v4375
      %v4377 = vpop.f32.mrb[0].mxu0
      %v4378 = vpop.f32.mrb[0].mxu0
      %v4379 = vadd.f32 %v4130, %v4378
      %v4380 = vpop.f32.mrb[0].mxu0
      %4381 = vdwg.mxu0
      %v4382 = vld [vmem:[#allocation2 + $0xc0] sm:$0xff]
      %s4383 = scalar_lea.vmem %s5, 192
      %v4384 = vld [vmem:[%s4383] sm:$0xf]
      %v4385 = vld [vmem:[%s4383 + $0x4] sm:$0xf]
      %v4386 = vld [vmem:[%s4383 + $0x8] sm:$0xf]
      %v4387 = vld [vmem:[%s4383 + $0xc] sm:$0xf]
      %v4388 = vld [vmem:[%s4383 + $0x10] sm:$0xf]
      %v4389 = vld [vmem:[%s4383 + $0x14] sm:$0xf]
      %v4396 = vunpack.c.l.b16 %v4384
      %v4397 = vunpack.c.l.b16 %v4385
      %v4398 = vunpack.c.l.b16 %v4386
      %v4399 = vunpack.c.l.b16 %v4387
      %v4400 = vunpack.c.l.b16 %v4388
      %v4401 = vunpack.c.l.b16 %v4389
      %v4402 = vpack.c.b16 %v4397, %v4396
      %v4403 = vpack.c.b16 %v4399, %v4398
      %v4404 = vpack.c.b16 %v4401, %v4400
      %v4409 = vsel %vm586, %v4382, 0
      %4411 = vmatprep.subr.bf16.mxu0 0
      %4412 = vmatpush1.bf16.msra.mxu0 %v4402
      %4413 = vmatprep.subr.bf16.mxu0 0
      %4414 = vmatpush1.bf16.msra.mxu0 %v4403
      %4415 = vmatprep.subr.bf16.mxu0 0
      %4416 = vmatpush1.bf16.msra.mxu0 %v4404
      %4417 = vmatprep.subr.bf16.mxu0 0
      %4418 = vmatpush1.bf16.msra.mxu0 0
      %4419 = vmatprep.subr.bf16.mxu0 0
      %4420 = vmatpush1.bf16.msra.mxu0 0
      %4421 = vmatprep.subr.bf16.mxu0 0
      %4422 = vmatpush1.bf16.msra.mxu0 0
      %4423 = vmatprep.subr.bf16.mxu0 0
      %4424 = vmatpush1.bf16.msra.mxu0 0
      %4425 = vmatprep.subr.bf16.mxu0 0
      %4426 = vmatpush1.bf16.msra.mxu0 0
      %4427 = vmatprep.subr.bf16.mxu0 0
      %4428 = vmatpush1.bf16.msra.mxu0 0
      %4429 = vmatprep.subr.bf16.mxu0 0
      %4430 = vmatpush1.bf16.msra.mxu0 0
      %4431 = vmatprep.subr.bf16.mxu0 0
      %4432 = vmatpush1.bf16.msra.mxu0 0
      %4433 = vmatprep.subr.bf16.mxu0 0
      %4434 = vmatpush1.bf16.msra.mxu0 0
      %4435 = vmatprep.subr.bf16.mxu0 0
      %4436 = vmatpush1.bf16.msra.mxu0 0
      %4437 = vmatprep.subr.bf16.mxu0 0
      %4438 = vmatpush1.bf16.msra.mxu0 0
      %4439 = vmatprep.subr.bf16.mxu0 0
      %4440 = vmatpush1.bf16.msra.mxu0 0
      %4441 = vmatprep.subr.bf16.mxu0 0
      %4442 = vmatpush1.bf16.msra.mxu0 0
      %4443 = vmatprep.mubr.bf16.mxu0 0
      %4444 = vmatmul.mubr.bf16.gmra.mrb[0].mxu0 %v4155
      %v4445 = vpop.f32.mrb[0].mxu0
      %v4446 = vadd.f32 0.0, %v4445
      %v4447 = vpop.f32.mrb[0].mxu0
      %v4448 = vpop.f32.mrb[0].mxu0
      %v4449 = vadd.f32 0.0, %v4448
      %v4450 = vpop.f32.mrb[0].mxu0
      %4451 = vmatprep.mubr.bf16.mxu0 0
      %4452 = vmatmul.mubr.bf16.gmra.mrb[0].mxu0 %v4158
      %v4453 = vpop.f32.mrb[0].mxu0
      %v4454 = vadd.f32 0.0, %v4453
      %v4455 = vpop.f32.mrb[0].mxu0
      %v4456 = vpop.f32.mrb[0].mxu0
      %v4457 = vadd.f32 0.0, %v4456
      %v4458 = vpop.f32.mrb[0].mxu0
      %4459 = vmatprep.mubr.bf16.mxu0 0
      %4460 = vmatmul.mubr.bf16.gmra.mrb[0].mxu0 %v4161
      %v4461 = vpop.f32.mrb[0].mxu0
      %v4462 = vadd.f32 0.0, %v4461
      %v4463 = vpop.f32.mrb[0].mxu0
      %v4464 = vpop.f32.mrb[0].mxu0
      %v4465 = vadd.f32 0.0, %v4464
      %v4466 = vpop.f32.mrb[0].mxu0
      %4467 = vmatprep.mubr.bf16.mxu0 0
      %4468 = vmatmul.mubr.bf16.gmra.mrb[0].mxu0 %v4164
      %v4469 = vpop.f32.mrb[0].mxu0
      %v4470 = vadd.f32 0.0, %v4469
      %v4471 = vpop.f32.mrb[0].mxu0
      %v4472 = vpop.f32.mrb[0].mxu0
      %v4473 = vadd.f32 0.0, %v4472
      %v4474 = vpop.f32.mrb[0].mxu0
      %4475 = vmatprep.mubr.bf16.mxu0 0
      %4476 = vmatmul.mubr.bf16.gmra.mrb[0].mxu0 %v4167
      %v4477 = vpop.f32.mrb[0].mxu0
      %v4478 = vadd.f32 0.0, %v4477
      %v4479 = vpop.f32.mrb[0].mxu0
      %v4480 = vpop.f32.mrb[0].mxu0
      %v4481 = vadd.f32 0.0, %v4480
      %v4482 = vpop.f32.mrb[0].mxu0
      %4483 = vmatprep.mubr.bf16.mxu0 0
      %4484 = vmatmul.mubr.bf16.gmra.mrb[0].mxu0 %v4170
      %v4485 = vpop.f32.mrb[0].mxu0
      %v4486 = vadd.f32 0.0, %v4485
      %v4487 = vpop.f32.mrb[0].mxu0
      %v4488 = vpop.f32.mrb[0].mxu0
      %v4489 = vadd.f32 0.0, %v4488
      %v4490 = vpop.f32.mrb[0].mxu0
      %4491 = vmatprep.mubr.bf16.mxu0 0
      %4492 = vmatmul.mubr.bf16.gmra.mrb[0].mxu0 %v4173
      %v4493 = vpop.f32.mrb[0].mxu0
      %v4494 = vadd.f32 0.0, %v4493
      %v4495 = vpop.f32.mrb[0].mxu0
      %v4496 = vpop.f32.mrb[0].mxu0
      %v4497 = vadd.f32 0.0, %v4496
      %v4498 = vpop.f32.mrb[0].mxu0
      %4499 = vmatprep.mubr.bf16.mxu0 0
      %4500 = vmatmul.mubr.bf16.gmra.mrb[0].mxu0 %v4176
      %v4501 = vpop.f32.mrb[0].mxu0
      %v4502 = vadd.f32 0.0, %v4501
      %v4503 = vpop.f32.mrb[0].mxu0
      %v4504 = vpop.f32.mrb[0].mxu0
      %v4505 = vadd.f32 0.0, %v4504
      %v4506 = vpop.f32.mrb[0].mxu0
      %4507 = vmatprep.mubr.bf16.mxu0 0
      %4508 = vmatmul.mubr.bf16.gmra.mrb[0].mxu0 %v4179
      %v4509 = vpop.f32.mrb[0].mxu0
      %v4510 = vadd.f32 0.0, %v4509
      %v4511 = vpop.f32.mrb[0].mxu0
      %v4512 = vpop.f32.mrb[0].mxu0
      %v4513 = vadd.f32 0.0, %v4512
      %v4514 = vpop.f32.mrb[0].mxu0
      %4515 = vmatprep.mubr.bf16.mxu0 0
      %4516 = vmatmul.mubr.bf16.gmra.mrb[0].mxu0 %v4182
      %v4517 = vpop.f32.mrb[0].mxu0
      %v4518 = vadd.f32 0.0, %v4517
      %v4519 = vpop.f32.mrb[0].mxu0
      %v4520 = vpop.f32.mrb[0].mxu0
      %v4521 = vadd.f32 0.0, %v4520
      %v4522 = vpop.f32.mrb[0].mxu0
      %4523 = vmatprep.mubr.bf16.mxu0 0
      %4524 = vmatmul.mubr.bf16.gmra.mrb[0].mxu0 %v4185
      %v4525 = vpop.f32.mrb[0].mxu0
      %v4526 = vadd.f32 0.0, %v4525
      %v4527 = vpop.f32.mrb[0].mxu0
      %v4528 = vpop.f32.mrb[0].mxu0
      %v4529 = vadd.f32 0.0, %v4528
      %v4530 = vpop.f32.mrb[0].mxu0
      %4531 = vmatprep.mubr.bf16.mxu0 0
      %4532 = vmatmul.mubr.bf16.gmra.mrb[0].mxu0 %v4188
      %v4533 = vpop.f32.mrb[0].mxu0
      %v4534 = vadd.f32 0.0, %v4533
      %v4535 = vpop.f32.mrb[0].mxu0
      %v4536 = vpop.f32.mrb[0].mxu0
      %v4537 = vadd.f32 0.0, %v4536
      %v4538 = vpop.f32.mrb[0].mxu0
      %4539 = vmatprep.mubr.bf16.mxu0 0
      %4540 = vmatmul.mubr.bf16.gmra.mrb[0].mxu0 %v4191
      %v4541 = vpop.f32.mrb[0].mxu0
      %v4542 = vadd.f32 0.0, %v4541
      %v4543 = vpop.f32.mrb[0].mxu0
      %v4544 = vpop.f32.mrb[0].mxu0
      %v4545 = vadd.f32 0.0, %v4544
      %v4546 = vpop.f32.mrb[0].mxu0
      %4547 = vmatprep.mubr.bf16.mxu0 0
      %4548 = vmatmul.mubr.bf16.gmra.mrb[0].mxu0 %v4194
      %v4549 = vpop.f32.mrb[0].mxu0
      %v4550 = vadd.f32 0.0, %v4549
      %v4551 = vpop.f32.mrb[0].mxu0
      %v4552 = vpop.f32.mrb[0].mxu0
      %v4553 = vadd.f32 0.0, %v4552
      %v4554 = vpop.f32.mrb[0].mxu0
      %4555 = vmatprep.mubr.bf16.mxu0 0
      %4556 = vmatmul.mubr.bf16.gmra.mrb[0].mxu0 %v4197
      %v4557 = vpop.f32.mrb[0].mxu0
      %v4558 = vadd.f32 0.0, %v4557
      %v4559 = vpop.f32.mrb[0].mxu0
      %v4560 = vpop.f32.mrb[0].mxu0
      %v4561 = vadd.f32 0.0, %v4560
      %v4562 = vpop.f32.mrb[0].mxu0
      %4563 = vmatprep.mubr.bf16.mxu0 0
      %4564 = vmatmul.mubr.bf16.gmra.mrb[0].mxu0 %v4200
      %v4565 = vpop.f32.mrb[0].mxu0
      %v4566 = vadd.f32 0.0, %v4565
      %v4567 = vpop.f32.mrb[0].mxu0
      %v4568 = vpop.f32.mrb[0].mxu0
      %v4569 = vadd.f32 0.0, %v4568
      %v4570 = vpop.f32.mrb[0].mxu0
      %4571 = vmatprep.mubr.bf16.mxu0 0
      %4572 = vmatmul.mubr.bf16.gmra.mrb[0].mxu0 %v4203
      %v4573 = vpop.f32.mrb[0].mxu0
      %v4574 = vadd.f32 0.0, %v4573
      %v4575 = vpop.f32.mrb[0].mxu0
      %v4576 = vpop.f32.mrb[0].mxu0
      %v4577 = vadd.f32 0.0, %v4576
      %v4578 = vpop.f32.mrb[0].mxu0
      %4579 = vmatprep.mubr.bf16.mxu0 0
      %4580 = vmatmul.mubr.bf16.gmra.mrb[0].mxu0 %v4409
      %v4581 = vpop.f32.mrb[0].mxu0
      %v4582 = vadd.f32 0.0, %v4581
      %v4583 = vpop.f32.mrb[0].mxu0
      %v4584 = vpop.f32.mrb[0].mxu0
      %v4585 = vadd.f32 0.0, %v4584
      %v4586 = vpop.f32.mrb[0].mxu0
      %4587 = vdwg.mxu0
      %v4588 = vadd.f32 %v4240, %v4446
      %v4589 = vadd.f32 %v4243, %v4449
      %v4590 = vadd.f32 %v4248, %v4454
      %v4591 = vadd.f32 %v4251, %v4457
      %v4592 = vadd.f32 %v4256, %v4462
      %v4593 = vadd.f32 %v4259, %v4465
      %v4594 = vadd.f32 %v4264, %v4470
      %v4595 = vadd.f32 %v4267, %v4473
      %v4596 = vadd.f32 %v4272, %v4478
      %v4597 = vadd.f32 %v4275, %v4481
      %v4598 = vadd.f32 %v4280, %v4486
      %v4599 = vadd.f32 %v4283, %v4489
      %v4600 = vadd.f32 %v4288, %v4494
      %v4601 = vadd.f32 %v4291, %v4497
      %v4602 = vadd.f32 %v4296, %v4502
      %v4603 = vadd.f32 %v4299, %v4505
      %v4604 = vadd.f32 %v4304, %v4510
      %v4605 = vadd.f32 %v4307, %v4513
      %v4606 = vadd.f32 %v4312, %v4518
      %v4607 = vadd.f32 %v4315, %v4521
      %v4608 = vadd.f32 %v4320, %v4526
      %v4609 = vadd.f32 %v4323, %v4529
      %v4610 = vadd.f32 %v4328, %v4534
      %v4611 = vadd.f32 %v4331, %v4537
      %v4612 = vadd.f32 %v4336, %v4542
      %v4613 = vadd.f32 %v4339, %v4545
      %v4614 = vadd.f32 %v4344, %v4550
      %v4615 = vadd.f32 %v4347, %v4553
      %v4616 = vadd.f32 %v4352, %v4558
      %v4617 = vadd.f32 %v4355, %v4561
      %v4618 = vadd.f32 %v4360, %v4566
      %v4619 = vadd.f32 %v4363, %v4569
      %v4620 = vadd.f32 %v4368, %v4574
      %v4621 = vadd.f32 %v4371, %v4577
      %v4622 = vadd.f32 %v4376, %v4582
      %v4623 = vadd.f32 %v4379, %v4585
      %v4624 = vadd.f32 %v2928, %v3758
      %v4625 = vadd.f32 %v2929, %v3759
      %v4626 = vadd.f32 %v2930, %v3760
      %v4627 = vadd.f32 %v2931, %v3761
      %v4628 = vadd.f32 %v2932, %v3762
      %v4629 = vadd.f32 %v2933, %v3763
      %v4630 = vadd.f32 %v2934, %v3764
      %v4631 = vadd.f32 %v2935, %v3765
      %v4632 = vadd.f32 %v2936, %v3766
      %v4633 = vadd.f32 %v2937, %v3767
      %v4634 = vadd.f32 %v2938, %v3768
      %v4635 = vadd.f32 %v2939, %v3769
      %v4636 = vadd.f32 %v2940, %v3770
      %v4637 = vadd.f32 %v2941, %v3771
      %v4638 = vadd.f32 %v2942, %v3772
      %v4639 = vadd.f32 %v2943, %v3773
      %v4640 = vadd.f32 %v2944, %v3774
      %v4641 = vadd.f32 %v2945, %v3775
      %v4642 = vadd.f32 %v2946, %v3776
      %v4643 = vadd.f32 %v2947, %v3777
      %v4644 = vadd.f32 %v2948, %v3778
      %v4645 = vadd.f32 %v2949, %v3779
      %v4646 = vadd.f32 %v2950, %v3780
      %v4647 = vadd.f32 %v2951, %v3781
      %v4648 = vadd.f32 %v2952, %v3782
      %v4649 = vadd.f32 %v2953, %v3783
      %v4650 = vadd.f32 %v2954, %v3784
      %v4651 = vadd.f32 %v2955, %v3785
      %v4652 = vadd.f32 %v2956, %v3786
      %v4653 = vadd.f32 %v2957, %v3787
      %v4654 = vadd.f32 %v2958, %v3788
      %v4655 = vadd.f32 %v2959, %v3789
      %v4656 = vadd.f32 %v2960, %v3790
      %v4657 = vadd.f32 %v2961, %v3791
      %v4658 = vadd.f32 %v2962, %v3792
      %v4659 = vadd.f32 %v2963, %v3793
      %v4660 = vadd.f32 %v4624, %v4588
      %v4661 = vadd.f32 %v4625, %v4589
      %v4662 = vadd.f32 %v4626, %v4590
      %v4663 = vadd.f32 %v4627, %v4591
      %v4664 = vadd.f32 %v4628, %v4592
      %v4665 = vadd.f32 %v4629, %v4593
      %v4666 = vadd.f32 %v4630, %v4594
      %v4667 = vadd.f32 %v4631, %v4595
      %v4668 = vadd.f32 %v4632, %v4596
      %v4669 = vadd.f32 %v4633, %v4597
      %v4670 = vadd.f32 %v4634, %v4598
      %v4671 = vadd.f32 %v4635, %v4599
      %v4672 = vadd.f32 %v4636, %v4600
      %v4673 = vadd.f32 %v4637, %v4601
      %v4674 = vadd.f32 %v4638, %v4602
      %v4675 = vadd.f32 %v4639, %v4603
      %v4676 = vadd.f32 %v4640, %v4604
      %v4677 = vadd.f32 %v4641, %v4605
      %v4678 = vadd.f32 %v4642, %v4606
      %v4679 = vadd.f32 %v4643, %v4607
      %v4680 = vadd.f32 %v4644, %v4608
      %v4681 = vadd.f32 %v4645, %v4609
      %v4682 = vadd.f32 %v4646, %v4610
      %v4683 = vadd.f32 %v4647, %v4611
      %v4684 = vadd.f32 %v4648, %v4612
      %v4685 = vadd.f32 %v4649, %v4613
      %v4686 = vadd.f32 %v4650, %v4614
      %v4687 = vadd.f32 %v4651, %v4615
      %v4688 = vadd.f32 %v4652, %v4616
      %v4689 = vadd.f32 %v4653, %v4617
      %v4690 = vadd.f32 %v4654, %v4618
      %v4691 = vadd.f32 %v4655, %v4619
      %v4692 = vadd.f32 %v4656, %v4620
      %v4693 = vadd.f32 %v4657, %v4621
      %v4694 = vadd.f32 %v4658, %v4622
      %v4695 = vadd.f32 %v4659, %v4623
      %v4696 = vld [vmem:[%s6] sm:$0x1]
      %v4698 = vlaneseq
      %v4699 = vshrl.u32 %v4698, 7
      %v4700 = vsub.s32 0, %v4699
      %v4701 = vrot.slane %v4696, %v4700
      %v4703 = vadd.f32 %v4660, %v4701
      %v4704 = vadd.f32 %v4661, %v4701
      %v4705 = vadd.f32 %v4662, %v4701
      %v4706 = vadd.f32 %v4663, %v4701
      %v4707 = vadd.f32 %v4664, %v4701
      %v4708 = vadd.f32 %v4665, %v4701
      %v4709 = vadd.f32 %v4666, %v4701
      %v4710 = vadd.f32 %v4667, %v4701
      %v4711 = vadd.f32 %v4668, %v4701
      %v4712 = vadd.f32 %v4669, %v4701
      %v4713 = vadd.f32 %v4670, %v4701
      %v4714 = vadd.f32 %v4671, %v4701
      %v4715 = vadd.f32 %v4672, %v4701
      %v4716 = vadd.f32 %v4673, %v4701
      %v4717 = vadd.f32 %v4674, %v4701
      %v4718 = vadd.f32 %v4675, %v4701
      %v4719 = vadd.f32 %v4676, %v4701
      %v4720 = vadd.f32 %v4677, %v4701
      %v4721 = vadd.f32 %v4678, %v4701
      %v4722 = vadd.f32 %v4679, %v4701
      %v4723 = vadd.f32 %v4680, %v4701
      %v4724 = vadd.f32 %v4681, %v4701
      %v4725 = vadd.f32 %v4682, %v4701
      %v4726 = vadd.f32 %v4683, %v4701
      %v4727 = vadd.f32 %v4684, %v4701
      %v4728 = vadd.f32 %v4685, %v4701
      %v4729 = vadd.f32 %v4686, %v4701
      %v4730 = vadd.f32 %v4687, %v4701
      %v4731 = vadd.f32 %v4688, %v4701
      %v4732 = vadd.f32 %v4689, %v4701
      %v4733 = vadd.f32 %v4690, %v4701
      %v4734 = vadd.f32 %v4691, %v4701
      %v4735 = vadd.f32 %v4692, %v4701
      %v4736 = vadd.f32 %v4693, %v4701
      %v4737 = vadd.f32 %v4694, %v4701
      %v4738 = vadd.f32 %v4695, %v4701
      %v4739 = vmul.f32 %v4703, %v1404
      %v4740 = vmul.f32 %v4704, %v1409
      %v4741 = vmul.f32 %v4705, %v1414
      %v4742 = vmul.f32 %v4706, %v1419
      %v4743 = vmul.f32 %v4707, %v1424
      %v4744 = vmul.f32 %v4708, %v1429
      %v4745 = vmul.f32 %v4709, %v1434
      %v4746 = vmul.f32 %v4710, %v1439
      %v4747 = vmul.f32 %v4711, %v1444
      %v4748 = vmul.f32 %v4712, %v1449
      %v4749 = vmul.f32 %v4713, %v1454
      %v4750 = vmul.f32 %v4714, %v1459
      %v4751 = vmul.f32 %v4715, %v1464
      %v4752 = vmul.f32 %v4716, %v1469
      %v4753 = vmul.f32 %v4717, %v1474
      %v4754 = vmul.f32 %v4718, %v1479
      %v4755 = vmul.f32 %v4719, %v1484
      %v4756 = vmul.f32 %v4720, %v1489
      %v4757 = vmul.f32 %v4721, %v1494
      %v4758 = vmul.f32 %v4722, %v1499
      %v4759 = vmul.f32 %v4723, %v1504
      %v4760 = vmul.f32 %v4724, %v1509
      %v4761 = vmul.f32 %v4725, %v1514
      %v4762 = vmul.f32 %v4726, %v1519
      %v4763 = vmul.f32 %v4727, %v1524
      %v4764 = vmul.f32 %v4728, %v1529
      %v4765 = vmul.f32 %v4729, %v1534
      %v4766 = vmul.f32 %v4730, %v1539
      %v4767 = vmul.f32 %v4731, %v1544
      %v4768 = vmul.f32 %v4732, %v1549
      %v4769 = vmul.f32 %v4733, %v1554
      %v4770 = vmul.f32 %v4734, %v1559
      %v4771 = vmul.f32 %v4735, %v1564
      %v4772 = vmul.f32 %v4736, %v1569
      %v4773 = vmul.f32 %v4737, %v1574
      %v4774 = vmul.f32 %v4738, %v1579
      %vm4775 = vcmask 261120
      %v4776 = vsel %vm4775, %v4739, 0.0
      %v4777 = vsel %vm4775, %v4740, 0.0
      %v4778 = vadd.f32 %v4776, %v4777
      %v4779 = vsel %vm4775, %v4741, 0.0
      %v4780 = vadd.f32 %v4778, %v4779
      %v4781 = vsel %vm4775, %v4742, 0.0
      %v4782 = vadd.f32 %v4780, %v4781
      %v4783 = vsel %vm4775, %v4743, 0.0
      %v4784 = vadd.f32 %v4782, %v4783
      %v4785 = vsel %vm4775, %v4744, 0.0
      %v4786 = vadd.f32 %v4784, %v4785
      %v4787 = vsel %vm4775, %v4745, 0.0
      %v4788 = vadd.f32 %v4786, %v4787
      %v4789 = vsel %vm4775, %v4746, 0.0
      %v4790 = vadd.f32 %v4788, %v4789
      %v4791 = vsel %vm4775, %v4747, 0.0
      %v4792 = vadd.f32 %v4790, %v4791
      %v4793 = vsel %vm4775, %v4748, 0.0
      %v4794 = vadd.f32 %v4792, %v4793
      %v4795 = vsel %vm4775, %v4749, 0.0
      %v4796 = vadd.f32 %v4794, %v4795
      %v4797 = vsel %vm4775, %v4750, 0.0
      %v4798 = vadd.f32 %v4796, %v4797
      %v4799 = vsel %vm4775, %v4751, 0.0
      %v4800 = vadd.f32 %v4798, %v4799
      %v4801 = vsel %vm4775, %v4752, 0.0
      %v4802 = vadd.f32 %v4800, %v4801
      %v4803 = vsel %vm4775, %v4753, 0.0
      %v4804 = vadd.f32 %v4802, %v4803
      %v4805 = vsel %vm4775, %v4754, 0.0
      %v4806 = vadd.f32 %v4804, %v4805
      %v4807 = vsel %vm4775, %v4755, 0.0
      %v4808 = vadd.f32 %v4806, %v4807
      %v4809 = vsel %vm4775, %v4756, 0.0
      %v4810 = vadd.f32 %v4808, %v4809
      %v4811 = vsel %vm4775, %v4757, 0.0
      %v4812 = vadd.f32 %v4810, %v4811
      %v4813 = vsel %vm4775, %v4758, 0.0
      %v4814 = vadd.f32 %v4812, %v4813
      %v4815 = vsel %vm4775, %v4759, 0.0
      %v4816 = vadd.f32 %v4814, %v4815
      %v4817 = vsel %vm4775, %v4760, 0.0
      %v4818 = vadd.f32 %v4816, %v4817
      %v4819 = vsel %vm4775, %v4761, 0.0
      %v4820 = vadd.f32 %v4818, %v4819
      %v4821 = vsel %vm4775, %v4762, 0.0
      %v4822 = vadd.f32 %v4820, %v4821
      %v4823 = vsel %vm4775, %v4763, 0.0
      %v4824 = vadd.f32 %v4822, %v4823
      %v4825 = vsel %vm4775, %v4764, 0.0
      %v4826 = vadd.f32 %v4824, %v4825
      %v4827 = vsel %vm4775, %v4765, 0.0
      %v4828 = vadd.f32 %v4826, %v4827
      %v4829 = vsel %vm4775, %v4766, 0.0
      %v4830 = vadd.f32 %v4828, %v4829
      %v4831 = vsel %vm4775, %v4767, 0.0
      %v4832 = vadd.f32 %v4830, %v4831
      %v4833 = vsel %vm4775, %v4768, 0.0
      %v4834 = vadd.f32 %v4832, %v4833
      %v4835 = vsel %vm4775, %v4769, 0.0
      %v4836 = vadd.f32 %v4834, %v4835
      %v4837 = vsel %vm4775, %v4770, 0.0
      %v4838 = vadd.f32 %v4836, %v4837
      %v4839 = vsel %vm4775, %v4771, 0.0
      %v4840 = vadd.f32 %v4838, %v4839
      %v4841 = vsel %vm4775, %v4772, 0.0
      %v4842 = vadd.f32 %v4840, %v4841
      %v4843 = vsel %vm4775, %v4773, 0.0
      %v4844 = vadd.f32 %v4842, %v4843
      %v4845 = vsel %vm4775, %v4774, 0.0
      %v4846 = vadd.f32 %v4844, %v4845
      %v4847 = vrot.slane %v4846, 4
      %v4848 = vadd.f32 %v4846, %v4847
      %v4849 = vrot.slane %v4848, 2
      %v4850 = vadd.f32 %v4848, %v4849
      %v4851 = vrot.slane %v4850, 1
      %v4852 = vadd.f32 %v4850, %v4851
      %v4853 = vmul.f32 %v4703, %v4739
      %v4854 = vmul.f32 %v4704, %v4740
      %v4855 = vmul.f32 %v4705, %v4741
      %v4856 = vmul.f32 %v4706, %v4742
      %v4857 = vmul.f32 %v4707, %v4743
      %v4858 = vmul.f32 %v4708, %v4744
      %v4859 = vmul.f32 %v4709, %v4745
      %v4860 = vmul.f32 %v4710, %v4746
      %v4861 = vmul.f32 %v4711, %v4747
      %v4862 = vmul.f32 %v4712, %v4748
      %v4863 = vmul.f32 %v4713, %v4749
      %v4864 = vmul.f32 %v4714, %v4750
      %v4865 = vmul.f32 %v4715, %v4751
      %v4866 = vmul.f32 %v4716, %v4752
      %v4867 = vmul.f32 %v4717, %v4753
      %v4868 = vmul.f32 %v4718, %v4754
      %v4869 = vmul.f32 %v4719, %v4755
      %v4870 = vmul.f32 %v4720, %v4756
      %v4871 = vmul.f32 %v4721, %v4757
      %v4872 = vmul.f32 %v4722, %v4758
      %v4873 = vmul.f32 %v4723, %v4759
      %v4874 = vmul.f32 %v4724, %v4760
      %v4875 = vmul.f32 %v4725, %v4761
      %v4876 = vmul.f32 %v4726, %v4762
      %v4877 = vmul.f32 %v4727, %v4763
      %v4878 = vmul.f32 %v4728, %v4764
      %v4879 = vmul.f32 %v4729, %v4765
      %v4880 = vmul.f32 %v4730, %v4766
      %v4881 = vmul.f32 %v4731, %v4767
      %v4882 = vmul.f32 %v4732, %v4768
      %v4883 = vmul.f32 %v4733, %v4769
      %v4884 = vmul.f32 %v4734, %v4770
      %v4885 = vmul.f32 %v4735, %v4771
      %v4886 = vmul.f32 %v4736, %v4772
      %v4887 = vmul.f32 %v4737, %v4773
      %v4888 = vmul.f32 %v4738, %v4774
      %v4889 = vsel %vm4775, %v4853, 0.0
      %v4890 = vsel %vm4775, %v4854, 0.0
      %v4891 = vadd.f32 %v4889, %v4890
      %v4892 = vsel %vm4775, %v4855, 0.0
      %v4893 = vadd.f32 %v4891, %v4892
      %v4894 = vsel %vm4775, %v4856, 0.0
      %v4895 = vadd.f32 %v4893, %v4894
      %v4896 = vsel %vm4775, %v4857, 0.0
      %v4897 = vadd.f32 %v4895, %v4896
      %v4898 = vsel %vm4775, %v4858, 0.0
      %v4899 = vadd.f32 %v4897, %v4898
      %v4900 = vsel %vm4775, %v4859, 0.0
      %v4901 = vadd.f32 %v4899, %v4900
      %v4902 = vsel %vm4775, %v4860, 0.0
      %v4903 = vadd.f32 %v4901, %v4902
      %v4904 = vsel %vm4775, %v4861, 0.0
      %v4905 = vadd.f32 %v4903, %v4904
      %v4906 = vsel %vm4775, %v4862, 0.0
      %v4907 = vadd.f32 %v4905, %v4906
      %v4908 = vsel %vm4775, %v4863, 0.0
      %v4909 = vadd.f32 %v4907, %v4908
      %v4910 = vsel %vm4775, %v4864, 0.0
      %v4911 = vadd.f32 %v4909, %v4910
      %v4912 = vsel %vm4775, %v4865, 0.0
      %v4913 = vadd.f32 %v4911, %v4912
      %v4914 = vsel %vm4775, %v4866, 0.0
      %v4915 = vadd.f32 %v4913, %v4914
      %v4916 = vsel %vm4775, %v4867, 0.0
      %v4917 = vadd.f32 %v4915, %v4916
      %v4918 = vsel %vm4775, %v4868, 0.0
      %v4919 = vadd.f32 %v4917, %v4918
      %v4920 = vsel %vm4775, %v4869, 0.0
      %v4921 = vadd.f32 %v4919, %v4920
      %v4922 = vsel %vm4775, %v4870, 0.0
      %v4923 = vadd.f32 %v4921, %v4922
      %v4924 = vsel %vm4775, %v4871, 0.0
      %v4925 = vadd.f32 %v4923, %v4924
      %v4926 = vsel %vm4775, %v4872, 0.0
      %v4927 = vadd.f32 %v4925, %v4926
      %v4928 = vsel %vm4775, %v4873, 0.0
      %v4929 = vadd.f32 %v4927, %v4928
      %v4930 = vsel %vm4775, %v4874, 0.0
      %v4931 = vadd.f32 %v4929, %v4930
      %v4932 = vsel %vm4775, %v4875, 0.0
      %v4933 = vadd.f32 %v4931, %v4932
      %v4934 = vsel %vm4775, %v4876, 0.0
      %v4935 = vadd.f32 %v4933, %v4934
      %v4936 = vsel %vm4775, %v4877, 0.0
      %v4937 = vadd.f32 %v4935, %v4936
      %v4938 = vsel %vm4775, %v4878, 0.0
      %v4939 = vadd.f32 %v4937, %v4938
      %v4940 = vsel %vm4775, %v4879, 0.0
      %v4941 = vadd.f32 %v4939, %v4940
      %v4942 = vsel %vm4775, %v4880, 0.0
      %v4943 = vadd.f32 %v4941, %v4942
      %v4944 = vsel %vm4775, %v4881, 0.0
      %v4945 = vadd.f32 %v4943, %v4944
      %v4946 = vsel %vm4775, %v4882, 0.0
      %v4947 = vadd.f32 %v4945, %v4946
      %v4948 = vsel %vm4775, %v4883, 0.0
      %v4949 = vadd.f32 %v4947, %v4948
      %v4950 = vsel %vm4775, %v4884, 0.0
      %v4951 = vadd.f32 %v4949, %v4950
      %v4952 = vsel %vm4775, %v4885, 0.0
      %v4953 = vadd.f32 %v4951, %v4952
      %v4954 = vsel %vm4775, %v4886, 0.0
      %v4955 = vadd.f32 %v4953, %v4954
      %v4956 = vsel %vm4775, %v4887, 0.0
      %v4957 = vadd.f32 %v4955, %v4956
      %v4958 = vsel %vm4775, %v4888, 0.0
      %v4959 = vadd.f32 %v4957, %v4958
      %v4960 = vrot.slane %v4959, 4
      %v4961 = vadd.f32 %v4959, %v4960
      %v4962 = vrot.slane %v4961, 2
      %v4963 = vadd.f32 %v4961, %v4962
      %v4964 = vrot.slane %v4963, 1
      %v4965 = vadd.f32 %v4963, %v4964
      %v4966 = vld [vmem:[%s9] sm:$0xff]
      %v4967 = vld [vmem:[%s9 + $0x8] sm:$0xff]
      %v4968 = vld [vmem:[%s9 + $0x10] sm:$0xff]
      %v4969 = vld [vmem:[%s9 + $0x18] sm:$0xff]
      %v4971 = vsel %vm4775, %v4852, 0
      %4973 = vmatprep.subr.mxu0 0.0
      %4974 = vmatpush1.msra.mxu0 %v4966
      %4975 = vmatprep.subr.mxu0 0.0
      %4976 = vmatpush1.msra.mxu0 %v4967
      %4977 = vmatprep.subr.mxu0 0.0
      %4978 = vmatpush1.msra.mxu0 %v4968
      %4979 = vmatprep.subr.mxu0 0.0
      %4980 = vmatpush1.msra.mxu0 %v4969
      %4981 = vmatprep.subr.mxu0 0.0
      %4982 = vmatpush1.msra.mxu0 0.0
      %4983 = vmatprep.subr.mxu0 0.0
      %4984 = vmatpush1.msra.mxu0 0.0
      %4985 = vmatprep.subr.mxu0 0.0
      %4986 = vmatpush1.msra.mxu0 0.0
      %4987 = vmatprep.subr.mxu0 0.0
      %4988 = vmatpush1.msra.mxu0 0.0
      %4989 = vmatprep.subr.mxu0 0.0
      %4990 = vmatpush1.msra.mxu0 0.0
      %4991 = vmatprep.subr.mxu0 0.0
      %4992 = vmatpush1.msra.mxu0 0.0
      %4993 = vmatprep.subr.mxu0 0.0
      %4994 = vmatpush1.msra.mxu0 0.0
      %4995 = vmatprep.subr.mxu0 0.0
      %4996 = vmatpush1.msra.mxu0 0.0
      %4997 = vmatprep.subr.mxu0 0.0
      %4998 = vmatpush1.msra.mxu0 0.0
      %4999 = vmatprep.subr.mxu0 0.0
      %5000 = vmatpush1.msra.mxu0 0.0
      %5001 = vmatprep.subr.mxu0 0.0
      %5002 = vmatpush1.msra.mxu0 0.0
      %5003 = vmatprep.subr.mxu0 0.0
      %5004 = vmatpush1.msra.mxu0 0.0
      %5005 = vmatprep.subr.mxu0 0.0
      %5006 = vmatpush1.msra.mxu0 0.0
      %5007 = vmatprep.subr.mxu0 0.0
      %5008 = vmatpush1.msra.mxu0 0.0
      %5009 = vmatprep.subr.mxu0 0.0
      %5010 = vmatpush1.msra.mxu0 0.0
      %5011 = vmatprep.subr.mxu0 0.0
      %5012 = vmatpush1.msra.mxu0 0.0
      %5013 = vmatprep.subr.mxu0 0.0
      %5014 = vmatpush1.msra.mxu0 0.0
      %5015 = vmatprep.subr.mxu0 0.0
      %5016 = vmatpush1.msra.mxu0 0.0
      %5017 = vmatprep.subr.mxu0 0.0
      %5018 = vmatpush1.msra.mxu0 0.0
      %5019 = vmatprep.subr.mxu0 0.0
      %5020 = vmatpush1.msra.mxu0 0.0
      %5021 = vmatprep.subr.mxu0 0.0
      %5022 = vmatpush1.msra.mxu0 0.0
      %5023 = vmatprep.subr.mxu0 0.0
      %5024 = vmatpush1.msra.mxu0 0.0
      %5025 = vmatprep.subr.mxu0 0.0
      %5026 = vmatpush1.msra.mxu0 0.0
      %5027 = vmatprep.subr.mxu0 0.0
      %5028 = vmatpush1.msra.mxu0 0.0
      %5029 = vmatprep.subr.mxu0 0.0
      %5030 = vmatpush1.msra.mxu0 0.0
      %5031 = vmatprep.subr.mxu0 0.0
      %5032 = vmatpush1.msra.mxu0 0.0
      %5033 = vmatprep.subr.mxu0 0.0
      %5034 = vmatpush1.msra.mxu0 0.0
      %5035 = vmatprep.subr.mxu0 0.0
      %5036 = vmatpush1.msra.mxu0 0.0
      %5037 = vmatprep.mubr.f32.mxu0 0.0
      %5038 = vmatmul.mubr.f32.gmra.mrb[0].mxu0 %v4971
      %v5039 = vpop.f32.mrb[0].mxu0
      %v5040 = vadd.f32 0.0, %v5039
      %v5041 = vpop.f32.mrb[0].mxu0
      %5042 = vdwg.mxu0
      %v5044 = vsel %vm4775, %v4965, 0
      %5046 = vmatprep.subr.mxu0 0.0
      %5047 = vmatpush1.msra.mxu0 %v4966
      %5048 = vmatprep.subr.mxu0 0.0
      %5049 = vmatpush1.msra.mxu0 %v4967
      %5050 = vmatprep.subr.mxu0 0.0
      %5051 = vmatpush1.msra.mxu0 %v4968
      %5052 = vmatprep.subr.mxu0 0.0
      %5053 = vmatpush1.msra.mxu0 %v4969
      %5054 = vmatprep.subr.mxu0 0.0
      %5055 = vmatpush1.msra.mxu0 0.0
      %5056 = vmatprep.subr.mxu0 0.0
      %5057 = vmatpush1.msra.mxu0 0.0
      %5058 = vmatprep.subr.mxu0 0.0
      %5059 = vmatpush1.msra.mxu0 0.0
      %5060 = vmatprep.subr.mxu0 0.0
      %5061 = vmatpush1.msra.mxu0 0.0
      %5062 = vmatprep.subr.mxu0 0.0
      %5063 = vmatpush1.msra.mxu0 0.0
      %5064 = vmatprep.subr.mxu0 0.0
      %5065 = vmatpush1.msra.mxu0 0.0
      %5066 = vmatprep.subr.mxu0 0.0
      %5067 = vmatpush1.msra.mxu0 0.0
      %5068 = vmatprep.subr.mxu0 0.0
      %5069 = vmatpush1.msra.mxu0 0.0
      %5070 = vmatprep.subr.mxu0 0.0
      %5071 = vmatpush1.msra.mxu0 0.0
      %5072 = vmatprep.subr.mxu0 0.0
      %5073 = vmatpush1.msra.mxu0 0.0
      %5074 = vmatprep.subr.mxu0 0.0
      %5075 = vmatpush1.msra.mxu0 0.0
      %5076 = vmatprep.subr.mxu0 0.0
      %5077 = vmatpush1.msra.mxu0 0.0
      %5078 = vmatprep.subr.mxu0 0.0
      %5079 = vmatpush1.msra.mxu0 0.0
      %5080 = vmatprep.subr.mxu0 0.0
      %5081 = vmatpush1.msra.mxu0 0.0
      %5082 = vmatprep.subr.mxu0 0.0
      %5083 = vmatpush1.msra.mxu0 0.0
      %5084 = vmatprep.subr.mxu0 0.0
      %5085 = vmatpush1.msra.mxu0 0.0
      %5086 = vmatprep.subr.mxu0 0.0
      %5087 = vmatpush1.msra.mxu0 0.0
      %5088 = vmatprep.subr.mxu0 0.0
      %5089 = vmatpush1.msra.mxu0 0.0
      %5090 = vmatprep.subr.mxu0 0.0
      %5091 = vmatpush1.msra.mxu0 0.0
      %5092 = vmatprep.subr.mxu0 0.0
      %5093 = vmatpush1.msra.mxu0 0.0
      %5094 = vmatprep.subr.mxu0 0.0
      %5095 = vmatpush1.msra.mxu0 0.0
      %5096 = vmatprep.subr.mxu0 0.0
      %5097 = vmatpush1.msra.mxu0 0.0
      %5098 = vmatprep.subr.mxu0 0.0
      %5099 = vmatpush1.msra.mxu0 0.0
      %5100 = vmatprep.subr.mxu0 0.0
      %5101 = vmatpush1.msra.mxu0 0.0
      %5102 = vmatprep.subr.mxu0 0.0
      %5103 = vmatpush1.msra.mxu0 0.0
      %5104 = vmatprep.subr.mxu0 0.0
      %5105 = vmatpush1.msra.mxu0 0.0
      %5106 = vmatprep.subr.mxu0 0.0
      %5107 = vmatpush1.msra.mxu0 0.0
      %5108 = vmatprep.subr.mxu0 0.0
      %5109 = vmatpush1.msra.mxu0 0.0
      %5110 = vmatprep.mubr.f32.mxu0 0.0
      %5111 = vmatmul.mubr.f32.gmra.mrb[0].mxu0 %v5044
      %v5112 = vpop.f32.mrb[0].mxu0
      %v5113 = vadd.f32 0.0, %v5112
      %v5114 = vpop.f32.mrb[0].mxu0
      %5115 = vdwg.mxu0
      %v5116 = vmul.f32 %v5040, %v5040
      %v5117 = vsub.f32 %v5113, %v5116
      %v5118 = vadd.f32 %v5117, 1e-05
      %v5119 = vrsqrt.pop %v5118
      %v5120 = vlaneseq
      %v5121 = vshrl.u32 %v5120, 7
      %v5122 = vsub.s32 0, %v5121
      %v5123 = vrot.slane %v5040, %v5122
      %v5124 = vsub.f32 %v4703, %v5123
      %v5125 = vsub.f32 %v4704, %v5123
      %v5126 = vsub.f32 %v4705, %v5123
      %v5127 = vsub.f32 %v4706, %v5123
      %v5128 = vsub.f32 %v4707, %v5123
      %v5129 = vsub.f32 %v4708, %v5123
      %v5130 = vsub.f32 %v4709, %v5123
      %v5131 = vsub.f32 %v4710, %v5123
      %v5132 = vsub.f32 %v4711, %v5123
      %v5133 = vsub.f32 %v4712, %v5123
      %v5134 = vsub.f32 %v4713, %v5123
      %v5135 = vsub.f32 %v4714, %v5123
      %v5136 = vsub.f32 %v4715, %v5123
      %v5137 = vsub.f32 %v4716, %v5123
      %v5138 = vsub.f32 %v4717, %v5123
      %v5139 = vsub.f32 %v4718, %v5123
      %v5140 = vsub.f32 %v4719, %v5123
      %v5141 = vsub.f32 %v4720, %v5123
      %v5142 = vsub.f32 %v4721, %v5123
      %v5143 = vsub.f32 %v4722, %v5123
      %v5144 = vsub.f32 %v4723, %v5123
      %v5145 = vsub.f32 %v4724, %v5123
      %v5146 = vsub.f32 %v4725, %v5123
      %v5147 = vsub.f32 %v4726, %v5123
      %v5148 = vsub.f32 %v4727, %v5123
      %v5149 = vsub.f32 %v4728, %v5123
      %v5150 = vsub.f32 %v4729, %v5123
      %v5151 = vsub.f32 %v4730, %v5123
      %v5152 = vsub.f32 %v4731, %v5123
      %v5153 = vsub.f32 %v4732, %v5123
      %v5154 = vsub.f32 %v4733, %v5123
      %v5155 = vsub.f32 %v4734, %v5123
      %v5156 = vsub.f32 %v4735, %v5123
      %v5157 = vsub.f32 %v4736, %v5123
      %v5158 = vsub.f32 %v4737, %v5123
      %v5159 = vsub.f32 %v4738, %v5123
      %v5160 = vlaneseq
      %v5161 = vshrl.u32 %v5160, 7
      %v5162 = vsub.s32 0, %v5161
      %v5163 = vrot.slane %v5119, %v5162
      %v5164 = vmul.f32 %v5124, %v5163
      %v5165 = vmul.f32 %v5125, %v5163
      %v5166 = vmul.f32 %v5126, %v5163
      %v5167 = vmul.f32 %v5127, %v5163
      %v5168 = vmul.f32 %v5128, %v5163
      %v5169 = vmul.f32 %v5129, %v5163
      %v5170 = vmul.f32 %v5130, %v5163
      %v5171 = vmul.f32 %v5131, %v5163
      %v5172 = vmul.f32 %v5132, %v5163
      %v5173 = vmul.f32 %v5133, %v5163
      %v5174 = vmul.f32 %v5134, %v5163
      %v5175 = vmul.f32 %v5135, %v5163
      %v5176 = vmul.f32 %v5136, %v5163
      %v5177 = vmul.f32 %v5137, %v5163
      %v5178 = vmul.f32 %v5138, %v5163
      %v5179 = vmul.f32 %v5139, %v5163
      %v5180 = vmul.f32 %v5140, %v5163
      %v5181 = vmul.f32 %v5141, %v5163
      %v5182 = vmul.f32 %v5142, %v5163
      %v5183 = vmul.f32 %v5143, %v5163
      %v5184 = vmul.f32 %v5144, %v5163
      %v5185 = vmul.f32 %v5145, %v5163
      %v5186 = vmul.f32 %v5146, %v5163
      %v5187 = vmul.f32 %v5147, %v5163
      %v5188 = vmul.f32 %v5148, %v5163
      %v5189 = vmul.f32 %v5149, %v5163
      %v5190 = vmul.f32 %v5150, %v5163
      %v5191 = vmul.f32 %v5151, %v5163
      %v5192 = vmul.f32 %v5152, %v5163
      %v5193 = vmul.f32 %v5153, %v5163
      %v5194 = vmul.f32 %v5154, %v5163
      %v5195 = vmul.f32 %v5155, %v5163
      %v5196 = vmul.f32 %v5156, %v5163
      %v5197 = vmul.f32 %v5157, %v5163
      %v5198 = vmul.f32 %v5158, %v5163
      %v5199 = vmul.f32 %v5159, %v5163
      %v5200 = vld [vmem:[%s7] sm:$0x1]
      %v5202 = vlaneseq
      %v5203 = vshrl.u32 %v5202, 7
      %v5204 = vsub.s32 0, %v5203
      %v5205 = vrot.slane %v5200, %v5204
      %v5207 = vmul.f32 %v5164, %v5205
      %v5208 = vmul.f32 %v5165, %v5205
      %v5209 = vmul.f32 %v5166, %v5205
      %v5210 = vmul.f32 %v5167, %v5205
      %v5211 = vmul.f32 %v5168, %v5205
      %v5212 = vmul.f32 %v5169, %v5205
      %v5213 = vmul.f32 %v5170, %v5205
      %v5214 = vmul.f32 %v5171, %v5205
      %v5215 = vmul.f32 %v5172, %v5205
      %v5216 = vmul.f32 %v5173, %v5205
      %v5217 = vmul.f32 %v5174, %v5205
      %v5218 = vmul.f32 %v5175, %v5205
      %v5219 = vmul.f32 %v5176, %v5205
      %v5220 = vmul.f32 %v5177, %v5205
      %v5221 = vmul.f32 %v5178, %v5205
      %v5222 = vmul.f32 %v5179, %v5205
      %v5223 = vmul.f32 %v5180, %v5205
      %v5224 = vmul.f32 %v5181, %v5205
      %v5225 = vmul.f32 %v5182, %v5205
      %v5226 = vmul.f32 %v5183, %v5205
      %v5227 = vmul.f32 %v5184, %v5205
      %v5228 = vmul.f32 %v5185, %v5205
      %v5229 = vmul.f32 %v5186, %v5205
      %v5230 = vmul.f32 %v5187, %v5205
      %v5231 = vmul.f32 %v5188, %v5205
      %v5232 = vmul.f32 %v5189, %v5205
      %v5233 = vmul.f32 %v5190, %v5205
      %v5234 = vmul.f32 %v5191, %v5205
      %v5235 = vmul.f32 %v5192, %v5205
      %v5236 = vmul.f32 %v5193, %v5205
      %v5237 = vmul.f32 %v5194, %v5205
      %v5238 = vmul.f32 %v5195, %v5205
      %v5239 = vmul.f32 %v5196, %v5205
      %v5240 = vmul.f32 %v5197, %v5205
      %v5241 = vmul.f32 %v5198, %v5205
      %v5242 = vmul.f32 %v5199, %v5205
      %v5243 = vld [vmem:[%s8] sm:$0x1]
      %v5245 = vlaneseq
      %v5246 = vshrl.u32 %v5245, 7
      %v5247 = vsub.s32 0, %v5246
      %v5248 = vrot.slane %v5243, %v5247
      %v5250 = vadd.f32 %v5207, %v5248
      %v5251 = vadd.f32 %v5208, %v5248
      %v5252 = vadd.f32 %v5209, %v5248
      %v5253 = vadd.f32 %v5210, %v5248
      %v5254 = vadd.f32 %v5211, %v5248
      %v5255 = vadd.f32 %v5212, %v5248
      %v5256 = vadd.f32 %v5213, %v5248
      %v5257 = vadd.f32 %v5214, %v5248
      %v5258 = vadd.f32 %v5215, %v5248
      %v5259 = vadd.f32 %v5216, %v5248
      %v5260 = vadd.f32 %v5217, %v5248
      %v5261 = vadd.f32 %v5218, %v5248
      %v5262 = vadd.f32 %v5219, %v5248
      %v5263 = vadd.f32 %v5220, %v5248
      %v5264 = vadd.f32 %v5221, %v5248
      %v5265 = vadd.f32 %v5222, %v5248
      %v5266 = vadd.f32 %v5223, %v5248
      %v5267 = vadd.f32 %v5224, %v5248
      %v5268 = vadd.f32 %v5225, %v5248
      %v5269 = vadd.f32 %v5226, %v5248
      %v5270 = vadd.f32 %v5227, %v5248
      %v5271 = vadd.f32 %v5228, %v5248
      %v5272 = vadd.f32 %v5229, %v5248
      %v5273 = vadd.f32 %v5230, %v5248
      %v5274 = vadd.f32 %v5231, %v5248
      %v5275 = vadd.f32 %v5232, %v5248
      %v5276 = vadd.f32 %v5233, %v5248
      %v5277 = vadd.f32 %v5234, %v5248
      %v5278 = vadd.f32 %v5235, %v5248
      %v5279 = vadd.f32 %v5236, %v5248
      %v5280 = vadd.f32 %v5237, %v5248
      %v5281 = vadd.f32 %v5238, %v5248
      %v5282 = vadd.f32 %v5239, %v5248
      %v5283 = vadd.f32 %v5240, %v5248
      %v5284 = vadd.f32 %v5241, %v5248
      %v5285 = vadd.f32 %v5242, %v5248
      %v5286 = vxor.u32 %v5250, 2147483648
      %v5287 = vxor.u32 %v5251, 2147483648
      %v5288 = vxor.u32 %v5252, 2147483648
      %v5289 = vxor.u32 %v5253, 2147483648
      %v5290 = vxor.u32 %v5254, 2147483648
      %v5291 = vxor.u32 %v5255, 2147483648
      %v5292 = vxor.u32 %v5256, 2147483648
      %v5293 = vxor.u32 %v5257, 2147483648
      %v5294 = vxor.u32 %v5258, 2147483648
      %v5295 = vxor.u32 %v5259, 2147483648
      %v5296 = vxor.u32 %v5260, 2147483648
      %v5297 = vxor.u32 %v5261, 2147483648
      %v5298 = vxor.u32 %v5262, 2147483648
      %v5299 = vxor.u32 %v5263, 2147483648
      %v5300 = vxor.u32 %v5264, 2147483648
      %v5301 = vxor.u32 %v5265, 2147483648
      %v5302 = vxor.u32 %v5266, 2147483648
      %v5303 = vxor.u32 %v5267, 2147483648
      %v5304 = vxor.u32 %v5268, 2147483648
      %v5305 = vxor.u32 %v5269, 2147483648
      %v5306 = vxor.u32 %v5270, 2147483648
      %v5307 = vxor.u32 %v5271, 2147483648
      %v5308 = vxor.u32 %v5272, 2147483648
      %v5309 = vxor.u32 %v5273, 2147483648
      %v5310 = vxor.u32 %v5274, 2147483648
      %v5311 = vxor.u32 %v5275, 2147483648
      %v5312 = vxor.u32 %v5276, 2147483648
      %v5313 = vxor.u32 %v5277, 2147483648
      %v5314 = vxor.u32 %v5278, 2147483648
      %v5315 = vxor.u32 %v5279, 2147483648
      %v5316 = vxor.u32 %v5280, 2147483648
      %v5317 = vxor.u32 %v5281, 2147483648
      %v5318 = vxor.u32 %v5282, 2147483648
      %v5319 = vxor.u32 %v5283, 2147483648
      %v5320 = vxor.u32 %v5284, 2147483648
      %v5321 = vxor.u32 %v5285, 2147483648
      %v5322 = vmul.f32 %v5286, 1.442695
      %v5323 = vpow.pop %v5322
      %v5324 = vmul.f32 %v5287, 1.442695
      %v5325 = vpow.pop %v5324
      %v5326 = vmul.f32 %v5288, 1.442695
      %v5327 = vpow.pop %v5326
      %v5328 = vmul.f32 %v5289, 1.442695
      %v5329 = vpow.pop %v5328
      %v5330 = vmul.f32 %v5290, 1.442695
      %v5331 = vpow.pop %v5330
      %v5332 = vmul.f32 %v5291, 1.442695
      %v5333 = vpow.pop %v5332
      %v5334 = vmul.f32 %v5292, 1.442695
      %v5335 = vpow.pop %v5334
      %v5336 = vmul.f32 %v5293, 1.442695
      %v5337 = vpow.pop %v5336
      %v5338 = vmul.f32 %v5294, 1.442695
      %v5339 = vpow.pop %v5338
      %v5340 = vmul.f32 %v5295, 1.442695
      %v5341 = vpow.pop %v5340
      %v5342 = vmul.f32 %v5296, 1.442695
      %v5343 = vpow.pop %v5342
      %v5344 = vmul.f32 %v5297, 1.442695
      %v5345 = vpow.pop %v5344
      %v5346 = vmul.f32 %v5298, 1.442695
      %v5347 = vpow.pop %v5346
      %v5348 = vmul.f32 %v5299, 1.442695
      %v5349 = vpow.pop %v5348
      %v5350 = vmul.f32 %v5300, 1.442695
      %v5351 = vpow.pop %v5350
      %v5352 = vmul.f32 %v5301, 1.442695
      %v5353 = vpow.pop %v5352
      %v5354 = vmul.f32 %v5302, 1.442695
      %v5355 = vpow.pop %v5354
      %v5356 = vmul.f32 %v5303, 1.442695
      %v5357 = vpow.pop %v5356
      %v5358 = vmul.f32 %v5304, 1.442695
      %v5359 = vpow.pop %v5358
      %v5360 = vmul.f32 %v5305, 1.442695
      %v5361 = vpow.pop %v5360
      %v5362 = vmul.f32 %v5306, 1.442695
      %v5363 = vpow.pop %v5362
      %v5364 = vmul.f32 %v5307, 1.442695
      %v5365 = vpow.pop %v5364
      %v5366 = vmul.f32 %v5308, 1.442695
      %v5367 = vpow.pop %v5366
      %v5368 = vmul.f32 %v5309, 1.442695
      %v5369 = vpow.pop %v5368
      %v5370 = vmul.f32 %v5310, 1.442695
      %v5371 = vpow.pop %v5370
      %v5372 = vmul.f32 %v5311, 1.442695
      %v5373 = vpow.pop %v5372
      %v5374 = vmul.f32 %v5312, 1.442695
      %v5375 = vpow.pop %v5374
      %v5376 = vmul.f32 %v5313, 1.442695
      %v5377 = vpow.pop %v5376
      %v5378 = vmul.f32 %v5314, 1.442695
      %v5379 = vpow.pop %v5378
      %v5380 = vmul.f32 %v5315, 1.442695
      %v5381 = vpow.pop %v5380
      %v5382 = vmul.f32 %v5316, 1.442695
      %v5383 = vpow.pop %v5382
      %v5384 = vmul.f32 %v5317, 1.442695
      %v5385 = vpow.pop %v5384
      %v5386 = vmul.f32 %v5318, 1.442695
      %v5387 = vpow.pop %v5386
      %v5388 = vmul.f32 %v5319, 1.442695
      %v5389 = vpow.pop %v5388
      %v5390 = vmul.f32 %v5320, 1.442695
      %v5391 = vpow.pop %v5390
      %v5392 = vmul.f32 %v5321, 1.442695
      %v5393 = vpow.pop %v5392
      %v5394 = vadd.f32 %v5323, 1.0
      %v5395 = vadd.f32 %v5325, 1.0
      %v5396 = vadd.f32 %v5327, 1.0
      %v5397 = vadd.f32 %v5329, 1.0
      %v5398 = vadd.f32 %v5331, 1.0
      %v5399 = vadd.f32 %v5333, 1.0
      %v5400 = vadd.f32 %v5335, 1.0
      %v5401 = vadd.f32 %v5337, 1.0
      %v5402 = vadd.f32 %v5339, 1.0
      %v5403 = vadd.f32 %v5341, 1.0
      %v5404 = vadd.f32 %v5343, 1.0
      %v5405 = vadd.f32 %v5345, 1.0
      %v5406 = vadd.f32 %v5347, 1.0
      %v5407 = vadd.f32 %v5349, 1.0
      %v5408 = vadd.f32 %v5351, 1.0
      %v5409 = vadd.f32 %v5353, 1.0
      %v5410 = vadd.f32 %v5355, 1.0
      %v5411 = vadd.f32 %v5357, 1.0
      %v5412 = vadd.f32 %v5359, 1.0
      %v5413 = vadd.f32 %v5361, 1.0
      %v5414 = vadd.f32 %v5363, 1.0
      %v5415 = vadd.f32 %v5365, 1.0
      %v5416 = vadd.f32 %v5367, 1.0
      %v5417 = vadd.f32 %v5369, 1.0
      %v5418 = vadd.f32 %v5371, 1.0
      %v5419 = vadd.f32 %v5373, 1.0
      %v5420 = vadd.f32 %v5375, 1.0
      %v5421 = vadd.f32 %v5377, 1.0
      %v5422 = vadd.f32 %v5379, 1.0
      %v5423 = vadd.f32 %v5381, 1.0
      %v5424 = vadd.f32 %v5383, 1.0
      %v5425 = vadd.f32 %v5385, 1.0
      %v5426 = vadd.f32 %v5387, 1.0
      %v5427 = vadd.f32 %v5389, 1.0
      %v5428 = vadd.f32 %v5391, 1.0
      %v5429 = vadd.f32 %v5393, 1.0
      %v5430 = vrcp.pop %v5394
      %v5431 = vmul.f32 1.0, %v5430
      %v5432 = vrcp.pop %v5395
      %v5433 = vmul.f32 1.0, %v5432
      %v5434 = vrcp.pop %v5396
      %v5435 = vmul.f32 1.0, %v5434
      %v5436 = vrcp.pop %v5397
      %v5437 = vmul.f32 1.0, %v5436
      %v5438 = vrcp.pop %v5398
      %v5439 = vmul.f32 1.0, %v5438
      %v5440 = vrcp.pop %v5399
      %v5441 = vmul.f32 1.0, %v5440
      %v5442 = vrcp.pop %v5400
      %v5443 = vmul.f32 1.0, %v5442
      %v5444 = vrcp.pop %v5401
      %v5445 = vmul.f32 1.0, %v5444
      %v5446 = vrcp.pop %v5402
      %v5447 = vmul.f32 1.0, %v5446
      %v5448 = vrcp.pop %v5403
      %v5449 = vmul.f32 1.0, %v5448
      %v5450 = vrcp.pop %v5404
      %v5451 = vmul.f32 1.0, %v5450
      %v5452 = vrcp.pop %v5405
      %v5453 = vmul.f32 1.0, %v5452
      %v5454 = vrcp.pop %v5406
      %v5455 = vmul.f32 1.0, %v5454
      %v5456 = vrcp.pop %v5407
      %v5457 = vmul.f32 1.0, %v5456
      %v5458 = vrcp.pop %v5408
      %v5459 = vmul.f32 1.0, %v5458
      %v5460 = vrcp.pop %v5409
      %v5461 = vmul.f32 1.0, %v5460
      %v5462 = vrcp.pop %v5410
      %v5463 = vmul.f32 1.0, %v5462
      %v5464 = vrcp.pop %v5411
      %v5465 = vmul.f32 1.0, %v5464
      %v5466 = vrcp.pop %v5412
      %v5467 = vmul.f32 1.0, %v5466
      %v5468 = vrcp.pop %v5413
      %v5469 = vmul.f32 1.0, %v5468
      %v5470 = vrcp.pop %v5414
      %v5471 = vmul.f32 1.0, %v5470
      %v5472 = vrcp.pop %v5415
      %v5473 = vmul.f32 1.0, %v5472
      %v5474 = vrcp.pop %v5416
      %v5475 = vmul.f32 1.0, %v5474
      %v5476 = vrcp.pop %v5417
      %v5477 = vmul.f32 1.0, %v5476
      %v5478 = vrcp.pop %v5418
      %v5479 = vmul.f32 1.0, %v5478
      %v5480 = vrcp.pop %v5419
      %v5481 = vmul.f32 1.0, %v5480
      %v5482 = vrcp.pop %v5420
      %v5483 = vmul.f32 1.0, %v5482
      %v5484 = vrcp.pop %v5421
      %v5485 = vmul.f32 1.0, %v5484
      %v5486 = vrcp.pop %v5422
      %v5487 = vmul.f32 1.0, %v5486
      %v5488 = vrcp.pop %v5423
      %v5489 = vmul.f32 1.0, %v5488
      %v5490 = vrcp.pop %v5424
      %v5491 = vmul.f32 1.0, %v5490
      %v5492 = vrcp.pop %v5425
      %v5493 = vmul.f32 1.0, %v5492
      %v5494 = vrcp.pop %v5426
      %v5495 = vmul.f32 1.0, %v5494
      %v5496 = vrcp.pop %v5427
      %v5497 = vmul.f32 1.0, %v5496
      %v5498 = vrcp.pop %v5428
      %v5499 = vmul.f32 1.0, %v5498
      %v5500 = vrcp.pop %v5429
      %v5501 = vmul.f32 1.0, %v5500
      %v5502 = vmul.f32 %v5250, %v5431
      %v5503 = vmul.f32 %v5251, %v5433
      %v5504 = vmul.f32 %v5252, %v5435
      %v5505 = vmul.f32 %v5253, %v5437
      %v5506 = vmul.f32 %v5254, %v5439
      %v5507 = vmul.f32 %v5255, %v5441
      %v5508 = vmul.f32 %v5256, %v5443
      %v5509 = vmul.f32 %v5257, %v5445
      %v5510 = vmul.f32 %v5258, %v5447
      %v5511 = vmul.f32 %v5259, %v5449
      %v5512 = vmul.f32 %v5260, %v5451
      %v5513 = vmul.f32 %v5261, %v5453
      %v5514 = vmul.f32 %v5262, %v5455
      %v5515 = vmul.f32 %v5263, %v5457
      %v5516 = vmul.f32 %v5264, %v5459
      %v5517 = vmul.f32 %v5265, %v5461
      %v5518 = vmul.f32 %v5266, %v5463
      %v5519 = vmul.f32 %v5267, %v5465
      %v5520 = vmul.f32 %v5268, %v5467
      %v5521 = vmul.f32 %v5269, %v5469
      %v5522 = vmul.f32 %v5270, %v5471
      %v5523 = vmul.f32 %v5271, %v5473
      %v5524 = vmul.f32 %v5272, %v5475
      %v5525 = vmul.f32 %v5273, %v5477
      %v5526 = vmul.f32 %v5274, %v5479
      %v5527 = vmul.f32 %v5275, %v5481
      %v5528 = vmul.f32 %v5276, %v5483
      %v5529 = vmul.f32 %v5277, %v5485
      %v5530 = vmul.f32 %v5278, %v5487
      %v5531 = vmul.f32 %v5279, %v5489
      %v5532 = vmul.f32 %v5280, %v5491
      %v5533 = vmul.f32 %v5281, %v5493
      %v5534 = vmul.f32 %v5282, %v5495
      %v5535 = vmul.f32 %v5283, %v5497
      %v5536 = vmul.f32 %v5284, %v5499
      %v5537 = vmul.f32 %v5285, %v5501
      %v5538 = vmul.f32 %v5502, %v1404
      %v5539 = vmul.f32 %v5503, %v1409
      %v5540 = vmul.f32 %v5504, %v1414
      %v5541 = vmul.f32 %v5505, %v1419
      %v5542 = vmul.f32 %v5506, %v1424
      %v5543 = vmul.f32 %v5507, %v1429
      %v5544 = vmul.f32 %v5508, %v1434
      %v5545 = vmul.f32 %v5509, %v1439
      %v5546 = vmul.f32 %v5510, %v1444
      %v5547 = vmul.f32 %v5511, %v1449
      %v5548 = vmul.f32 %v5512, %v1454
      %v5549 = vmul.f32 %v5513, %v1459
      %v5550 = vmul.f32 %v5514, %v1464
      %v5551 = vmul.f32 %v5515, %v1469
      %v5552 = vmul.f32 %v5516, %v1474
      %v5553 = vmul.f32 %v5517, %v1479
      %v5554 = vmul.f32 %v5518, %v1484
      %v5555 = vmul.f32 %v5519, %v1489
      %v5556 = vmul.f32 %v5520, %v1494
      %v5557 = vmul.f32 %v5521, %v1499
      %v5558 = vmul.f32 %v5522, %v1504
      %v5559 = vmul.f32 %v5523, %v1509
      %v5560 = vmul.f32 %v5524, %v1514
      %v5561 = vmul.f32 %v5525, %v1519
      %v5562 = vmul.f32 %v5526, %v1524
      %v5563 = vmul.f32 %v5527, %v1529
      %v5564 = vmul.f32 %v5528, %v1534
      %v5565 = vmul.f32 %v5529, %v1539
      %v5566 = vmul.f32 %v5530, %v1544
      %v5567 = vmul.f32 %v5531, %v1549
      %v5568 = vmul.f32 %v5532, %v1554
      %v5569 = vmul.f32 %v5533, %v1559
      %v5570 = vmul.f32 %v5534, %v1564
      %v5571 = vmul.f32 %v5535, %v1569
      %v5572 = vmul.f32 %v5536, %v1574
      %v5573 = vmul.f32 %v5537, %v1579
      %v5574 = vpack.c.bf16 %v5539, %v5538
      %v5575 = vpack.c.bf16 %v5541, %v5540
      %v5576 = vpack.c.bf16 %v5543, %v5542
      %v5577 = vpack.c.bf16 %v5545, %v5544
      %v5578 = vpack.c.bf16 %v5547, %v5546
      %v5579 = vpack.c.bf16 %v5549, %v5548
      %v5580 = vpack.c.bf16 %v5551, %v5550
      %v5581 = vpack.c.bf16 %v5553, %v5552
      %v5582 = vpack.c.bf16 %v5555, %v5554
      %v5583 = vpack.c.bf16 %v5557, %v5556
      %v5584 = vpack.c.bf16 %v5559, %v5558
      %v5585 = vpack.c.bf16 %v5561, %v5560
      %v5586 = vpack.c.bf16 %v5563, %v5562
      %v5587 = vpack.c.bf16 %v5565, %v5564
      %v5588 = vpack.c.bf16 %v5567, %v5566
      %v5589 = vpack.c.bf16 %v5569, %v5568
      %v5590 = vpack.c.bf16 %v5571, %v5570
      %v5591 = vpack.c.bf16 %v5573, %v5572
      %v5593 = vshrl.u32 %v5574, 16
      %v5595 = vrot.slane %v5593, 3
      %v5596 = vshll.u32 %v5574, 16
      %v5598 = vrot.slane %v5596, 4
      %v5599 = vor.u32 %v5595, %v5598
      %v5601 = vshrl.u32 %v5575, 16
      %v5603 = vrot.slane %v5601, 3
      %v5604 = vshll.u32 %v5575, 16
      %v5606 = vrot.slane %v5604, 4
      %v5607 = vor.u32 %v5603, %v5606
      %v5608 = vsel %vm1635, %v5599, %v5607
      %v5610 = vshrl.u32 %v5576, 16
      %v5612 = vrot.slane %v5610, 3
      %v5613 = vshll.u32 %v5576, 16
      %v5615 = vrot.slane %v5613, 4
      %v5616 = vor.u32 %v5612, %v5615
      %v5617 = vsel %vm1635, %v5607, %v5616
      %v5619 = vshrl.u32 %v5577, 16
      %v5621 = vrot.slane %v5619, 3
      %v5622 = vshll.u32 %v5577, 16
      %v5624 = vrot.slane %v5622, 4
      %v5625 = vor.u32 %v5621, %v5624
      %v5626 = vsel %vm1635, %v5616, %v5625
      %v5628 = vshrl.u32 %v5578, 16
      %v5630 = vrot.slane %v5628, 3
      %v5631 = vshll.u32 %v5578, 16
      %v5633 = vrot.slane %v5631, 4
      %v5634 = vor.u32 %v5630, %v5633
      %v5635 = vsel %vm1635, %v5625, %v5634
      %v5637 = vshrl.u32 %v5579, 16
      %v5639 = vrot.slane %v5637, 3
      %v5640 = vshll.u32 %v5579, 16
      %v5642 = vrot.slane %v5640, 4
      %v5643 = vor.u32 %v5639, %v5642
      %v5644 = vsel %vm1635, %v5634, %v5643
      %v5646 = vshrl.u32 %v5580, 16
      %v5648 = vrot.slane %v5646, 3
      %v5649 = vshll.u32 %v5580, 16
      %v5651 = vrot.slane %v5649, 4
      %v5652 = vor.u32 %v5648, %v5651
      %v5653 = vsel %vm1635, %v5643, %v5652
      %v5655 = vshrl.u32 %v5581, 16
      %v5657 = vrot.slane %v5655, 3
      %v5658 = vshll.u32 %v5581, 16
      %v5660 = vrot.slane %v5658, 4
      %v5661 = vor.u32 %v5657, %v5660
      %v5662 = vsel %vm1635, %v5652, %v5661
      %v5664 = vshrl.u32 %v5582, 16
      %v5666 = vrot.slane %v5664, 3
      %v5667 = vshll.u32 %v5582, 16
      %v5669 = vrot.slane %v5667, 4
      %v5670 = vor.u32 %v5666, %v5669
      %v5671 = vsel %vm1635, %v5661, %v5670
      %v5673 = vshrl.u32 %v5583, 16
      %v5675 = vrot.slane %v5673, 3
      %v5676 = vshll.u32 %v5583, 16
      %v5678 = vrot.slane %v5676, 4
      %v5679 = vor.u32 %v5675, %v5678
      %v5680 = vsel %vm1635, %v5670, %v5679
      %v5682 = vshrl.u32 %v5584, 16
      %v5684 = vrot.slane %v5682, 3
      %v5685 = vshll.u32 %v5584, 16
      %v5687 = vrot.slane %v5685, 4
      %v5688 = vor.u32 %v5684, %v5687
      %v5689 = vsel %vm1635, %v5679, %v5688
      %v5691 = vshrl.u32 %v5585, 16
      %v5693 = vrot.slane %v5691, 3
      %v5694 = vshll.u32 %v5585, 16
      %v5696 = vrot.slane %v5694, 4
      %v5697 = vor.u32 %v5693, %v5696
      %v5698 = vsel %vm1635, %v5688, %v5697
      %v5700 = vshrl.u32 %v5586, 16
      %v5702 = vrot.slane %v5700, 3
      %v5703 = vshll.u32 %v5586, 16
      %v5705 = vrot.slane %v5703, 4
      %v5706 = vor.u32 %v5702, %v5705
      %v5707 = vsel %vm1635, %v5697, %v5706
      %v5709 = vshrl.u32 %v5587, 16
      %v5711 = vrot.slane %v5709, 3
      %v5712 = vshll.u32 %v5587, 16
      %v5714 = vrot.slane %v5712, 4
      %v5715 = vor.u32 %v5711, %v5714
      %v5716 = vsel %vm1635, %v5706, %v5715
      %v5718 = vshrl.u32 %v5588, 16
      %v5720 = vrot.slane %v5718, 3
      %v5721 = vshll.u32 %v5588, 16
      %v5723 = vrot.slane %v5721, 4
      %v5724 = vor.u32 %v5720, %v5723
      %v5725 = vsel %vm1635, %v5715, %v5724
      %v5727 = vshrl.u32 %v5589, 16
      %v5729 = vrot.slane %v5727, 3
      %v5730 = vshll.u32 %v5589, 16
      %v5732 = vrot.slane %v5730, 4
      %v5733 = vor.u32 %v5729, %v5732
      %v5734 = vsel %vm1635, %v5724, %v5733
      %v5736 = vshrl.u32 %v5590, 16
      %v5738 = vrot.slane %v5736, 3
      %v5739 = vshll.u32 %v5590, 16
      %v5741 = vrot.slane %v5739, 4
      %v5742 = vor.u32 %v5738, %v5741
      %v5743 = vsel %vm1635, %v5733, %v5742
      %v5745 = vshrl.u32 %v5591, 16
      %v5747 = vrot.slane %v5745, 3
      %v5748 = vshll.u32 %v5591, 16
      %v5750 = vrot.slane %v5748, 4
      %v5751 = vor.u32 %v5747, %v5750
      %v5752 = vsel %vm1635, %v5742, %v5751
      %vm5772 = vcmask 261124
      %vm5773 = vmand %vm5772, %vm1817
      %v5774 = vld [vmem:[#allocation3 + $0x18] sm:$0xf0]
      %v5775 = vsel %vm5773, %v5599, %v5774
      %5776 = vst [vmem:[#allocation3 + $0x18] sm:$0xf0] %v5775
      %5777 = vst.msk [vmem:[#allocation3 + $0x20] sm:$0xff] %vm4775, %v5608
      %5778 = vst.msk [vmem:[#allocation3 + $0x28] sm:$0xff] %vm4775, %v5617
      %5779 = vst.msk [vmem:[#allocation3 + $0x30] sm:$0xff] %vm4775, %v5626
      %5780 = vst.msk [vmem:[#allocation3 + $0x38] sm:$0xff] %vm4775, %v5635
      %5781 = vst.msk [vmem:[#allocation3 + $0x40] sm:$0xff] %vm4775, %v5644
      %5782 = vst.msk [vmem:[#allocation3 + $0x48] sm:$0xff] %vm4775, %v5653
      %5783 = vst.msk [vmem:[#allocation3 + $0x50] sm:$0xff] %vm4775, %v5662
      %5784 = vst.msk [vmem:[#allocation3 + $0x58] sm:$0xff] %vm4775, %v5671
      %5785 = vst.msk [vmem:[#allocation3 + $0x60] sm:$0xff] %vm4775, %v5680
      %5786 = vst.msk [vmem:[#allocation3 + $0x68] sm:$0xff] %vm4775, %v5689
      %5787 = vst.msk [vmem:[#allocation3 + $0x70] sm:$0xff] %vm4775, %v5698
      %5788 = vst.msk [vmem:[#allocation3 + $0x78] sm:$0xff] %vm4775, %v5707
      %5789 = vst.msk [vmem:[#allocation3 + $0x80] sm:$0xff] %vm4775, %v5716
      %5790 = vst.msk [vmem:[#allocation3 + $0x88] sm:$0xff] %vm4775, %v5725
      %5791 = vst.msk [vmem:[#allocation3 + $0x90] sm:$0xff] %vm4775, %v5734
      %5792 = vst.msk [vmem:[#allocation3 + $0x98] sm:$0xff] %vm4775, %v5743
      %5793 = vst.msk [vmem:[#allocation3 + $0xa0] sm:$0xff] %vm4775, %v5752
      %vm5794 = vcmask 258048
      %vm5795 = vmand %vm5794, %vm1635
      %v5796 = vld [vmem:[#allocation3 + $0xa8] sm:$0x1f]
      %v5797 = vsel %vm5795, %v5751, %v5796
      %5798 = vst [vmem:[#allocation3 + $0xa8] sm:$0x1f] %v5797
      %v5817 = vrot.slane %v5574, 4
      %v5818 = vrot.slane %v5575, 4
      %v5819 = vsel %vm1862, %v5817, %v5818
      %v5820 = vrot.slane %v5576, 4
      %v5821 = vsel %vm1862, %v5818, %v5820
      %v5822 = vrot.slane %v5577, 4
      %v5823 = vsel %vm1862, %v5820, %v5822
      %v5824 = vrot.slane %v5578, 4
      %v5825 = vsel %vm1862, %v5822, %v5824
      %v5826 = vrot.slane %v5579, 4
      %v5827 = vsel %vm1862, %v5824, %v5826
      %v5828 = vrot.slane %v5580, 4
      %v5829 = vsel %vm1862, %v5826, %v5828
      %v5830 = vrot.slane %v5581, 4
      %v5831 = vsel %vm1862, %v5828, %v5830
      %v5832 = vrot.slane %v5582, 4
      %v5833 = vsel %vm1862, %v5830, %v5832
      %v5834 = vrot.slane %v5583, 4
      %v5835 = vsel %vm1862, %v5832, %v5834
      %v5836 = vrot.slane %v5584, 4
      %v5837 = vsel %vm1862, %v5834, %v5836
      %v5838 = vrot.slane %v5585, 4
      %v5839 = vsel %vm1862, %v5836, %v5838
      %v5840 = vrot.slane %v5586, 4
      %v5841 = vsel %vm1862, %v5838, %v5840
      %v5842 = vrot.slane %v5587, 4
      %v5843 = vsel %vm1862, %v5840, %v5842
      %v5844 = vrot.slane %v5588, 4
      %v5845 = vsel %vm1862, %v5842, %v5844
      %v5846 = vrot.slane %v5589, 4
      %v5847 = vsel %vm1862, %v5844, %v5846
      %v5848 = vrot.slane %v5590, 4
      %v5849 = vsel %vm1862, %v5846, %v5848
      %v5850 = vrot.slane %v5591, 4
      %v5851 = vsel %vm1862, %v5848, %v5850
      %5852 = vrot.lane.b32.xlu0 %v5817, 32
      %v5853 = vpop.permute.xlu0 %5852
      %5854 = vrot.lane.b32.xlu0 %v5819, 32
      %v5855 = vpop.permute.xlu0 %5854
      %5856 = vrot.lane.b32.xlu0 %v5821, 32
      %v5857 = vpop.permute.xlu0 %5856
      %5858 = vrot.lane.b32.xlu0 %v5823, 32
      %v5859 = vpop.permute.xlu0 %5858
      %5860 = vrot.lane.b32.xlu0 %v5825, 32
      %v5861 = vpop.permute.xlu0 %5860
      %5862 = vrot.lane.b32.xlu0 %v5827, 32
      %v5863 = vpop.permute.xlu0 %5862
      %5864 = vrot.lane.b32.xlu0 %v5829, 32
      %v5865 = vpop.permute.xlu0 %5864
      %5866 = vrot.lane.b32.xlu0 %v5831, 32
      %v5867 = vpop.permute.xlu0 %5866
      %5868 = vrot.lane.b32.xlu0 %v5833, 32
      %v5869 = vpop.permute.xlu0 %5868
      %5870 = vrot.lane.b32.xlu0 %v5835, 32
      %v5871 = vpop.permute.xlu0 %5870
      %5872 = vrot.lane.b32.xlu0 %v5837, 32
      %v5873 = vpop.permute.xlu0 %5872
      %5874 = vrot.lane.b32.xlu0 %v5839, 32
      %v5875 = vpop.permute.xlu0 %5874
      %5876 = vrot.lane.b32.xlu0 %v5841, 32
      %v5877 = vpop.permute.xlu0 %5876
      %5878 = vrot.lane.b32.xlu0 %v5843, 32
      %v5879 = vpop.permute.xlu0 %5878
      %5880 = vrot.lane.b32.xlu0 %v5845, 32
      %v5881 = vpop.permute.xlu0 %5880
      %5882 = vrot.lane.b32.xlu0 %v5847, 32
      %v5883 = vpop.permute.xlu0 %5882
      %5884 = vrot.lane.b32.xlu0 %v5849, 32
      %v5885 = vpop.permute.xlu0 %5884
      %5886 = vrot.lane.b32.xlu0 %v5851, 32
      %v5887 = vpop.permute.xlu0 %5886
      %5888 = vrot.lane.b32.xlu0 %v5850, 32
      %v5889 = vpop.permute.xlu0 %5888
      %vm5909 = vcmask 523524
      %5910 = vst.msk [vmem:[#allocation3 + $0x18] sm:$0xf0] %vm5909, %v5853
      %vm5911 = vcmask 523520
      %5912 = vst.msk [vmem:[#allocation3 + $0x20] sm:$0xff] %vm5911, %v5855
      %5913 = vst.msk [vmem:[#allocation3 + $0x28] sm:$0xff] %vm5911, %v5857
      %5914 = vst.msk [vmem:[#allocation3 + $0x30] sm:$0xff] %vm5911, %v5859
      %5915 = vst.msk [vmem:[#allocation3 + $0x38] sm:$0xff] %vm5911, %v5861
      %5916 = vst.msk [vmem:[#allocation3 + $0x40] sm:$0xff] %vm5911, %v5863
      %5917 = vst.msk [vmem:[#allocation3 + $0x48] sm:$0xff] %vm5911, %v5865
      %5918 = vst.msk [vmem:[#allocation3 + $0x50] sm:$0xff] %vm5911, %v5867
      %5919 = vst.msk [vmem:[#allocation3 + $0x58] sm:$0xff] %vm5911, %v5869
      %5920 = vst.msk [vmem:[#allocation3 + $0x60] sm:$0xff] %vm5911, %v5871
      %5921 = vst.msk [vmem:[#allocation3 + $0x68] sm:$0xff] %vm5911, %v5873
      %5922 = vst.msk [vmem:[#allocation3 + $0x70] sm:$0xff] %vm5911, %v5875
      %5923 = vst.msk [vmem:[#allocation3 + $0x78] sm:$0xff] %vm5911, %v5877
      %5924 = vst.msk [vmem:[#allocation3 + $0x80] sm:$0xff] %vm5911, %v5879
      %5925 = vst.msk [vmem:[#allocation3 + $0x88] sm:$0xff] %vm5911, %v5881
      %5926 = vst.msk [vmem:[#allocation3 + $0x90] sm:$0xff] %vm5911, %v5883
      %5927 = vst.msk [vmem:[#allocation3 + $0x98] sm:$0xff] %vm5911, %v5885
      %5928 = vst.msk [vmem:[#allocation3 + $0xa0] sm:$0xff] %vm5911, %v5887
      %vm5929 = vcmask 519424
      %5930 = vst.msk [vmem:[#allocation3 + $0xa8] sm:$0xf] %vm5929, %v5889
      %v5931 = vrot.slane %v5593, 4
      %v5932 = vrot.slane %v5596, 5
      %v5933 = vor.u32 %v5931, %v5932
      %v5934 = vrot.slane %v5601, 4
      %v5935 = vrot.slane %v5604, 5
      %v5936 = vor.u32 %v5934, %v5935
      %v5937 = vsel %vm1977, %v5933, %v5936
      %v5938 = vrot.slane %v5610, 4
      %v5939 = vrot.slane %v5613, 5
      %v5940 = vor.u32 %v5938, %v5939
      %v5941 = vsel %vm1977, %v5936, %v5940
      %v5942 = vrot.slane %v5619, 4
      %v5943 = vrot.slane %v5622, 5
      %v5944 = vor.u32 %v5942, %v5943
      %v5945 = vsel %vm1977, %v5940, %v5944
      %v5946 = vrot.slane %v5628, 4
      %v5947 = vrot.slane %v5631, 5
      %v5948 = vor.u32 %v5946, %v5947
      %v5949 = vsel %vm1977, %v5944, %v5948
      %v5950 = vrot.slane %v5637, 4
      %v5951 = vrot.slane %v5640, 5
      %v5952 = vor.u32 %v5950, %v5951
      %v5953 = vsel %vm1977, %v5948, %v5952
      %v5954 = vrot.slane %v5646, 4
      %v5955 = vrot.slane %v5649, 5
      %v5956 = vor.u32 %v5954, %v5955
      %v5957 = vsel %vm1977, %v5952, %v5956
      %v5958 = vrot.slane %v5655, 4
      %v5959 = vrot.slane %v5658, 5
      %v5960 = vor.u32 %v5958, %v5959
      %v5961 = vsel %vm1977, %v5956, %v5960
      %v5962 = vrot.slane %v5664, 4
      %v5963 = vrot.slane %v5667, 5
      %v5964 = vor.u32 %v5962, %v5963
      %v5965 = vsel %vm1977, %v5960, %v5964
      %v5966 = vrot.slane %v5673, 4
      %v5967 = vrot.slane %v5676, 5
      %v5968 = vor.u32 %v5966, %v5967
      %v5969 = vsel %vm1977, %v5964, %v5968
      %v5970 = vrot.slane %v5682, 4
      %v5971 = vrot.slane %v5685, 5
      %v5972 = vor.u32 %v5970, %v5971
      %v5973 = vsel %vm1977, %v5968, %v5972
      %v5974 = vrot.slane %v5691, 4
      %v5975 = vrot.slane %v5694, 5
      %v5976 = vor.u32 %v5974, %v5975
      %v5977 = vsel %vm1977, %v5972, %v5976
      %v5978 = vrot.slane %v5700, 4
      %v5979 = vrot.slane %v5703, 5
      %v5980 = vor.u32 %v5978, %v5979
      %v5981 = vsel %vm1977, %v5976, %v5980
      %v5982 = vrot.slane %v5709, 4
      %v5983 = vrot.slane %v5712, 5
      %v5984 = vor.u32 %v5982, %v5983
      %v5985 = vsel %vm1977, %v5980, %v5984
      %v5986 = vrot.slane %v5718, 4
      %v5987 = vrot.slane %v5721, 5
      %v5988 = vor.u32 %v5986, %v5987
      %v5989 = vsel %vm1977, %v5984, %v5988
      %v5990 = vrot.slane %v5727, 4
      %v5991 = vrot.slane %v5730, 5
      %v5992 = vor.u32 %v5990, %v5991
      %v5993 = vsel %vm1977, %v5988, %v5992
      %v5994 = vrot.slane %v5736, 4
      %v5995 = vrot.slane %v5739, 5
      %v5996 = vor.u32 %v5994, %v5995
      %v5997 = vsel %vm1977, %v5992, %v5996
      %v5998 = vrot.slane %v5745, 4
      %v5999 = vrot.slane %v5748, 5
      %v6000 = vor.u32 %v5998, %v5999
      %v6001 = vsel %vm1977, %v5996, %v6000
      %6002 = vrot.lane.b32.xlu0 %v5933, 64
      %v6003 = vpop.permute.xlu0 %6002
      %6004 = vrot.lane.b32.xlu0 %v5937, 64
      %v6005 = vpop.permute.xlu0 %6004
      %6006 = vrot.lane.b32.xlu0 %v5941, 64
      %v6007 = vpop.permute.xlu0 %6006
      %6008 = vrot.lane.b32.xlu0 %v5945, 64
      %v6009 = vpop.permute.xlu0 %6008
      %6010 = vrot.lane.b32.xlu0 %v5949, 64
      %v6011 = vpop.permute.xlu0 %6010
      %6012 = vrot.lane.b32.xlu0 %v5953, 64
      %v6013 = vpop.permute.xlu0 %6012
      %6014 = vrot.lane.b32.xlu0 %v5957, 64
      %v6015 = vpop.permute.xlu0 %6014
      %6016 = vrot.lane.b32.xlu0 %v5961, 64
      %v6017 = vpop.permute.xlu0 %6016
      %6018 = vrot.lane.b32.xlu0 %v5965, 64
      %v6019 = vpop.permute.xlu0 %6018
      %6020 = vrot.lane.b32.xlu0 %v5969, 64
      %v6021 = vpop.permute.xlu0 %6020
      %6022 = vrot.lane.b32.xlu0 %v5973, 64
      %v6023 = vpop.permute.xlu0 %6022
      %6024 = vrot.lane.b32.xlu0 %v5977, 64
      %v6025 = vpop.permute.xlu0 %6024
      %6026 = vrot.lane.b32.xlu0 %v5981, 64
      %v6027 = vpop.permute.xlu0 %6026
      %6028 = vrot.lane.b32.xlu0 %v5985, 64
      %v6029 = vpop.permute.xlu0 %6028
      %6030 = vrot.lane.b32.xlu0 %v5989, 64
      %v6031 = vpop.permute.xlu0 %6030
      %6032 = vrot.lane.b32.xlu0 %v5993, 64
      %v6033 = vpop.permute.xlu0 %6032
      %6034 = vrot.lane.b32.xlu0 %v5997, 64
      %v6035 = vpop.permute.xlu0 %6034
      %6036 = vrot.lane.b32.xlu0 %v6001, 64
      %v6037 = vpop.permute.xlu0 %6036
      %6038 = vrot.lane.b32.xlu0 %v6000, 64
      %v6039 = vpop.permute.xlu0 %6038
      %vm6059 = vcmask 785923
      %vm6060 = vmand %vm6059, %vm2107
      %v6061 = vld [vmem:[#allocation3 + $0x18] sm:$0xf8]
      %v6062 = vsel %vm6060, %v6003, %v6061
      %6063 = vst [vmem:[#allocation3 + $0x18] sm:$0xf8] %v6062
      %vm6064 = vcmask 785920
      %6065 = vst.msk [vmem:[#allocation3 + $0x20] sm:$0xff] %vm6064, %v6005
      %6066 = vst.msk [vmem:[#allocation3 + $0x28] sm:$0xff] %vm6064, %v6007
      %6067 = vst.msk [vmem:[#allocation3 + $0x30] sm:$0xff] %vm6064, %v6009
      %6068 = vst.msk [vmem:[#allocation3 + $0x38] sm:$0xff] %vm6064, %v6011
      %6069 = vst.msk [vmem:[#allocation3 + $0x40] sm:$0xff] %vm6064, %v6013
      %6070 = vst.msk [vmem:[#allocation3 + $0x48] sm:$0xff] %vm6064, %v6015
      %6071 = vst.msk [vmem:[#allocation3 + $0x50] sm:$0xff] %vm6064, %v6017
      %6072 = vst.msk [vmem:[#allocation3 + $0x58] sm:$0xff] %vm6064, %v6019
      %6073 = vst.msk [vmem:[#allocation3 + $0x60] sm:$0xff] %vm6064, %v6021
      %6074 = vst.msk [vmem:[#allocation3 + $0x68] sm:$0xff] %vm6064, %v6023
      %6075 = vst.msk [vmem:[#allocation3 + $0x70] sm:$0xff] %vm6064, %v6025
      %6076 = vst.msk [vmem:[#allocation3 + $0x78] sm:$0xff] %vm6064, %v6027
      %6077 = vst.msk [vmem:[#allocation3 + $0x80] sm:$0xff] %vm6064, %v6029
      %6078 = vst.msk [vmem:[#allocation3 + $0x88] sm:$0xff] %vm6064, %v6031
      %6079 = vst.msk [vmem:[#allocation3 + $0x90] sm:$0xff] %vm6064, %v6033
      %6080 = vst.msk [vmem:[#allocation3 + $0x98] sm:$0xff] %vm6064, %v6035
      %6081 = vst.msk [vmem:[#allocation3 + $0xa0] sm:$0xff] %vm6064, %v6037
      %vm6082 = vcmask 781824
      %vm6083 = vmand %vm6082, %vm1977
      %v6084 = vld [vmem:[#allocation3 + $0xa8] sm:$0xf]
      %v6085 = vsel %vm6083, %v6039, %v6084
      %6086 = vst [vmem:[#allocation3 + $0xa8] sm:$0xf] %v6085
      %v6087 = vld [vmem:[#allocation3] sm:$0xff]
      %v6088 = vld [vmem:[#allocation3 + $0x8] sm:$0xff]
      %v6089 = vld [vmem:[#allocation3 + $0x10] sm:$0xff]
      %v6090 = vld [vmem:[#allocation3 + $0x18] sm:$0xff]
      %v6091 = vld [vmem:[#allocation3 + $0x20] sm:$0xff]
      %v6092 = vld [vmem:[#allocation3 + $0x28] sm:$0xff]
      %v6093 = vld [vmem:[#allocation3 + $0x30] sm:$0xff]
      %v6094 = vld [vmem:[#allocation3 + $0x38] sm:$0xff]
      %v6095 = vld [vmem:[#allocation3 + $0x40] sm:$0xff]
      %v6096 = vld [vmem:[#allocation3 + $0x48] sm:$0xff]
      %v6097 = vld [vmem:[#allocation3 + $0x50] sm:$0xff]
      %v6098 = vld [vmem:[#allocation3 + $0x58] sm:$0xff]
      %v6099 = vld [vmem:[#allocation3 + $0x60] sm:$0xff]
      %v6100 = vld [vmem:[#allocation3 + $0x68] sm:$0xff]
      %v6101 = vld [vmem:[#allocation3 + $0x70] sm:$0xff]
      %v6102 = vld [vmem:[#allocation3 + $0x78] sm:$0xff]
      %v6103 = vld [vmem:[#allocation3 + $0x80] sm:$0xff]
      %v6104 = vld [vmem:[#allocation3 + $0x88] sm:$0xff]
      %v6105 = vld [vmem:[%s10] sm:$0xf]
      %v6106 = vld [vmem:[%s10 + $0x4] sm:$0xf]
      %v6107 = vld [vmem:[%s10 + $0x8] sm:$0xf]
      %v6108 = vld [vmem:[%s10 + $0xc] sm:$0xf]
      %v6109 = vld [vmem:[%s10 + $0x10] sm:$0xf]
      %v6110 = vld [vmem:[%s10 + $0x14] sm:$0xf]
      %v6111 = vld [vmem:[%s10 + $0x18] sm:$0xf]
      %v6112 = vld [vmem:[%s10 + $0x1c] sm:$0xf]
      %v6113 = vld [vmem:[%s10 + $0x20] sm:$0xf]
      %v6114 = vld [vmem:[%s10 + $0x24] sm:$0xf]
      %v6115 = vld [vmem:[%s10 + $0x28] sm:$0xf]
      %v6116 = vld [vmem:[%s10 + $0x2c] sm:$0xf]
      %v6117 = vld [vmem:[#allocation3] sm:$0xf0]
      %v6118 = vld [vmem:[#allocation3 + $0x90] sm:$0xf]
      %s6119 = scalar_lea.vmem %s10, 48
      %v6120 = vld [vmem:[%s6119] sm:$0xf]
      %v6121 = vld [vmem:[%s6119 + $0x4] sm:$0xf]
      %v6122 = vld [vmem:[%s6119 + $0x8] sm:$0xf]
      %v6123 = vld [vmem:[%s6119 + $0xc] sm:$0xf]
      %v6124 = vld [vmem:[%s6119 + $0x10] sm:$0xf]
      %v6125 = vld [vmem:[%s6119 + $0x14] sm:$0xf]
      %v6126 = vld [vmem:[%s6119 + $0x18] sm:$0xf]
      %v6127 = vld [vmem:[%s6119 + $0x1c] sm:$0xf]
      %v6128 = vld [vmem:[%s6119 + $0x20] sm:$0xf]
      %v6129 = vld [vmem:[%s6119 + $0x24] sm:$0xf]
      %v6130 = vld [vmem:[%s6119 + $0x28] sm:$0xf]
      %v6131 = vld [vmem:[%s6119 + $0x2c] sm:$0xf]
      %v6151 = vrot.slane %v6117, 4
      %v6152 = vrot.slane %v6088, 4
      %v6153 = vsel %vm1862, %v6151, %v6152
      %v6154 = vrot.slane %v6089, 4
      %v6155 = vsel %vm1862, %v6152, %v6154
      %v6156 = vrot.slane %v6090, 4
      %v6157 = vsel %vm1862, %v6154, %v6156
      %v6158 = vrot.slane %v6091, 4
      %v6159 = vsel %vm1862, %v6156, %v6158
      %v6160 = vrot.slane %v6092, 4
      %v6161 = vsel %vm1862, %v6158, %v6160
      %v6162 = vrot.slane %v6093, 4
      %v6163 = vsel %vm1862, %v6160, %v6162
      %v6164 = vrot.slane %v6094, 4
      %v6165 = vsel %vm1862, %v6162, %v6164
      %v6166 = vrot.slane %v6095, 4
      %v6167 = vsel %vm1862, %v6164, %v6166
      %v6168 = vrot.slane %v6096, 4
      %v6169 = vsel %vm1862, %v6166, %v6168
      %v6170 = vrot.slane %v6097, 4
      %v6171 = vsel %vm1862, %v6168, %v6170
      %v6172 = vrot.slane %v6098, 4
      %v6173 = vsel %vm1862, %v6170, %v6172
      %v6174 = vrot.slane %v6099, 4
      %v6175 = vsel %vm1862, %v6172, %v6174
      %v6176 = vrot.slane %v6100, 4
      %v6177 = vsel %vm1862, %v6174, %v6176
      %v6178 = vrot.slane %v6101, 4
      %v6179 = vsel %vm1862, %v6176, %v6178
      %v6180 = vrot.slane %v6102, 4
      %v6181 = vsel %vm1862, %v6178, %v6180
      %v6182 = vrot.slane %v6103, 4
      %v6183 = vsel %vm1862, %v6180, %v6182
      %v6184 = vrot.slane %v6104, 4
      %v6185 = vsel %vm1862, %v6182, %v6184
      %v6186 = vrot.slane %v6118, 4
      %v6187 = vsel %vm1862, %v6184, %v6186
      %v6200 = vunpack.c.l.b16 %v6120
      %v6201 = vunpack.c.l.b16 %v6121
      %v6202 = vunpack.c.l.b16 %v6122
      %v6203 = vunpack.c.l.b16 %v6123
      %v6204 = vunpack.c.l.b16 %v6124
      %v6205 = vunpack.c.l.b16 %v6125
      %v6206 = vunpack.c.l.b16 %v6126
      %v6207 = vunpack.c.l.b16 %v6127
      %v6208 = vunpack.c.l.b16 %v6128
      %v6209 = vunpack.c.l.b16 %v6129
      %v6210 = vunpack.c.l.b16 %v6130
      %v6211 = vunpack.c.l.b16 %v6131
      %v6212 = vpack.c.b16 %v6201, %v6200
      %v6213 = vpack.c.b16 %v6203, %v6202
      %v6214 = vpack.c.b16 %v6205, %v6204
      %v6215 = vpack.c.b16 %v6207, %v6206
      %v6216 = vpack.c.b16 %v6209, %v6208
      %v6217 = vpack.c.b16 %v6211, %v6210
      %v6225 = vsel %vm595, %v6153, 0
      %v6228 = vsel %vm595, %v6155, 0
      %v6231 = vsel %vm595, %v6157, 0
      %v6234 = vsel %vm595, %v6159, 0
      %v6237 = vsel %vm595, %v6161, 0
      %v6240 = vsel %vm595, %v6163, 0
      %v6243 = vsel %vm595, %v6165, 0
      %v6246 = vsel %vm595, %v6167, 0
      %v6249 = vsel %vm595, %v6169, 0
      %v6252 = vsel %vm595, %v6171, 0
      %v6255 = vsel %vm595, %v6173, 0
      %v6258 = vsel %vm595, %v6175, 0
      %v6261 = vsel %vm595, %v6177, 0
      %v6264 = vsel %vm595, %v6179, 0
      %v6267 = vsel %vm595, %v6181, 0
      %v6270 = vsel %vm595, %v6183, 0
      %v6273 = vsel %vm595, %v6185, 0
      %v6276 = vsel %vm595, %v6187, 0
      %6278 = vmatprep.subr.bf16.mxu0 0
      %6279 = vmatpush1.bf16.msra.mxu0 %v6212
      %6280 = vmatprep.subr.bf16.mxu0 0
      %6281 = vmatpush1.bf16.msra.mxu0 %v6213
      %6282 = vmatprep.subr.bf16.mxu0 0
      %6283 = vmatpush1.bf16.msra.mxu0 %v6214
      %6284 = vmatprep.subr.bf16.mxu0 0
      %6285 = vmatpush1.bf16.msra.mxu0 %v6215
      %6286 = vmatprep.subr.bf16.mxu0 0
      %6287 = vmatpush1.bf16.msra.mxu0 %v6216
      %6288 = vmatprep.subr.bf16.mxu0 0
      %6289 = vmatpush1.bf16.msra.mxu0 %v6217
      %6290 = vmatprep.subr.bf16.mxu0 0
      %6291 = vmatpush1.bf16.msra.mxu0 0
      %6292 = vmatprep.subr.bf16.mxu0 0
      %6293 = vmatpush1.bf16.msra.mxu0 0
      %6294 = vmatprep.subr.bf16.mxu0 0
      %6295 = vmatpush1.bf16.msra.mxu0 0
      %6296 = vmatprep.subr.bf16.mxu0 0
      %6297 = vmatpush1.bf16.msra.mxu0 0
      %6298 = vmatprep.subr.bf16.mxu0 0
      %6299 = vmatpush1.bf16.msra.mxu0 0
      %6300 = vmatprep.subr.bf16.mxu0 0
      %6301 = vmatpush1.bf16.msra.mxu0 0
      %6302 = vmatprep.subr.bf16.mxu0 0
      %6303 = vmatpush1.bf16.msra.mxu0 0
      %6304 = vmatprep.subr.bf16.mxu0 0
      %6305 = vmatpush1.bf16.msra.mxu0 0
      %6306 = vmatprep.subr.bf16.mxu0 0
      %6307 = vmatpush1.bf16.msra.mxu0 0
      %6308 = vmatprep.subr.bf16.mxu0 0
      %6309 = vmatpush1.bf16.msra.mxu0 0
      %6310 = vmatprep.mubr.bf16.mxu0 0
      %6311 = vmatmul.mubr.bf16.gmra.mrb[0].mxu0 %v6225
      %v6312 = vpop.f32.mrb[0].mxu0
      %v6313 = vpop.f32.mrb[0].mxu0
      %v6314 = vpop.f32.mrb[0].mxu0
      %v6315 = vpop.f32.mrb[0].mxu0
      %6316 = vmatprep.mubr.bf16.mxu0 0
      %6317 = vmatmul.mubr.bf16.gmra.mrb[0].mxu0 %v6228
      %v6318 = vpop.f32.mrb[0].mxu0
      %v6319 = vpop.f32.mrb[0].mxu0
      %v6320 = vpop.f32.mrb[0].mxu0
      %v6321 = vpop.f32.mrb[0].mxu0
      %6322 = vmatprep.mubr.bf16.mxu0 0
      %6323 = vmatmul.mubr.bf16.gmra.mrb[0].mxu0 %v6231
      %v6324 = vpop.f32.mrb[0].mxu0
      %v6325 = vpop.f32.mrb[0].mxu0
      %v6326 = vpop.f32.mrb[0].mxu0
      %v6327 = vpop.f32.mrb[0].mxu0
      %6328 = vmatprep.mubr.bf16.mxu0 0
      %6329 = vmatmul.mubr.bf16.gmra.mrb[0].mxu0 %v6234
      %v6330 = vpop.f32.mrb[0].mxu0
      %v6331 = vpop.f32.mrb[0].mxu0
      %v6332 = vpop.f32.mrb[0].mxu0
      %v6333 = vadd.f32 0.0, %v6332
      %v6334 = vpop.f32.mrb[0].mxu0
      %6335 = vmatprep.mubr.bf16.mxu0 0
      %6336 = vmatmul.mubr.bf16.gmra.mrb[0].mxu0 %v6237
      %v6337 = vpop.f32.mrb[0].mxu0
      %v6338 = vadd.f32 0.0, %v6337
      %v6339 = vpop.f32.mrb[0].mxu0
      %v6340 = vpop.f32.mrb[0].mxu0
      %v6341 = vadd.f32 0.0, %v6340
      %v6342 = vpop.f32.mrb[0].mxu0
      %6343 = vmatprep.mubr.bf16.mxu0 0
      %6344 = vmatmul.mubr.bf16.gmra.mrb[0].mxu0 %v6240
      %v6345 = vpop.f32.mrb[0].mxu0
      %v6346 = vadd.f32 0.0, %v6345
      %v6347 = vpop.f32.mrb[0].mxu0
      %v6348 = vpop.f32.mrb[0].mxu0
      %v6349 = vpop.f32.mrb[0].mxu0
      %6350 = vmatprep.mubr.bf16.mxu0 0
      %6351 = vmatmul.mubr.bf16.gmra.mrb[0].mxu0 %v6243
      %v6352 = vpop.f32.mrb[0].mxu0
      %v6353 = vpop.f32.mrb[0].mxu0
      %v6354 = vpop.f32.mrb[0].mxu0
      %v6355 = vadd.f32 0.0, %v6354
      %v6356 = vpop.f32.mrb[0].mxu0
      %6357 = vmatprep.mubr.bf16.mxu0 0
      %6358 = vmatmul.mubr.bf16.gmra.mrb[0].mxu0 %v6246
      %v6359 = vpop.f32.mrb[0].mxu0
      %v6360 = vadd.f32 0.0, %v6359
      %v6361 = vpop.f32.mrb[0].mxu0
      %v6362 = vpop.f32.mrb[0].mxu0
      %v6363 = vadd.f32 0.0, %v6362
      %v6364 = vpop.f32.mrb[0].mxu0
      %6365 = vmatprep.mubr.bf16.mxu0 0
      %6366 = vmatmul.mubr.bf16.gmra.mrb[0].mxu0 %v6249
      %v6367 = vpop.f32.mrb[0].mxu0
      %v6368 = vadd.f32 0.0, %v6367
      %v6369 = vpop.f32.mrb[0].mxu0
      %v6370 = vpop.f32.mrb[0].mxu0
      %v6371 = vpop.f32.mrb[0].mxu0
      %6372 = vmatprep.mubr.bf16.mxu0 0
      %6373 = vmatmul.mubr.bf16.gmra.mrb[0].mxu0 %v6252
      %v6374 = vpop.f32.mrb[0].mxu0
      %v6375 = vpop.f32.mrb[0].mxu0
      %v6376 = vpop.f32.mrb[0].mxu0
      %v6377 = vadd.f32 0.0, %v6376
      %v6378 = vpop.f32.mrb[0].mxu0
      %6379 = vmatprep.mubr.bf16.mxu0 0
      %6380 = vmatmul.mubr.bf16.gmra.mrb[0].mxu0 %v6255
      %v6381 = vpop.f32.mrb[0].mxu0
      %v6382 = vadd.f32 0.0, %v6381
      %v6383 = vpop.f32.mrb[0].mxu0
      %v6384 = vpop.f32.mrb[0].mxu0
      %v6385 = vadd.f32 0.0, %v6384
      %v6386 = vpop.f32.mrb[0].mxu0
      %6387 = vmatprep.mubr.bf16.mxu0 0
      %6388 = vmatmul.mubr.bf16.gmra.mrb[0].mxu0 %v6258
      %v6389 = vpop.f32.mrb[0].mxu0
      %v6390 = vadd.f32 0.0, %v6389
      %v6391 = vpop.f32.mrb[0].mxu0
      %v6392 = vpop.f32.mrb[0].mxu0
      %v6393 = vpop.f32.mrb[0].mxu0
      %6394 = vmatprep.mubr.bf16.mxu0 0
      %6395 = vmatmul.mubr.bf16.gmra.mrb[0].mxu0 %v6261
      %v6396 = vpop.f32.mrb[0].mxu0
      %v6397 = vpop.f32.mrb[0].mxu0
      %v6398 = vpop.f32.mrb[0].mxu0
      %v6399 = vadd.f32 0.0, %v6398
      %v6400 = vpop.f32.mrb[0].mxu0
      %6401 = vmatprep.mubr.bf16.mxu0 0
      %6402 = vmatmul.mubr.bf16.gmra.mrb[0].mxu0 %v6264
      %v6403 = vpop.f32.mrb[0].mxu0
      %v6404 = vadd.f32 0.0, %v6403
      %v6405 = vpop.f32.mrb[0].mxu0
      %v6406 = vpop.f32.mrb[0].mxu0
      %v6407 = vadd.f32 0.0, %v6406
      %v6408 = vpop.f32.mrb[0].mxu0
      %6409 = vmatprep.mubr.bf16.mxu0 0
      %6410 = vmatmul.mubr.bf16.gmra.mrb[0].mxu0 %v6267
      %v6411 = vpop.f32.mrb[0].mxu0
      %v6412 = vadd.f32 0.0, %v6411
      %v6413 = vpop.f32.mrb[0].mxu0
      %v6414 = vpop.f32.mrb[0].mxu0
      %v6415 = vpop.f32.mrb[0].mxu0
      %6416 = vmatprep.mubr.bf16.mxu0 0
      %6417 = vmatmul.mubr.bf16.gmra.mrb[0].mxu0 %v6270
      %v6418 = vpop.f32.mrb[0].mxu0
      %v6419 = vpop.f32.mrb[0].mxu0
      %v6420 = vpop.f32.mrb[0].mxu0
      %v6421 = vpop.f32.mrb[0].mxu0
      %6422 = vmatprep.mubr.bf16.mxu0 0
      %6423 = vmatmul.mubr.bf16.gmra.mrb[0].mxu0 %v6273
      %v6424 = vpop.f32.mrb[0].mxu0
      %v6425 = vpop.f32.mrb[0].mxu0
      %v6426 = vpop.f32.mrb[0].mxu0
      %v6427 = vpop.f32.mrb[0].mxu0
      %6428 = vmatprep.mubr.bf16.mxu0 0
      %6429 = vmatmul.mubr.bf16.gmra.mrb[0].mxu0 %v6276
      %v6430 = vpop.f32.mrb[0].mxu0
      %v6431 = vpop.f32.mrb[0].mxu0
      %v6432 = vpop.f32.mrb[0].mxu0
      %v6433 = vpop.f32.mrb[0].mxu0
      %6434 = vdwg.mxu0
      %v6447 = vunpack.c.l.b16 %v6105
      %v6448 = vunpack.c.l.b16 %v6106
      %v6449 = vunpack.c.l.b16 %v6107
      %v6450 = vunpack.c.l.b16 %v6108
      %v6451 = vunpack.c.l.b16 %v6109
      %v6452 = vunpack.c.l.b16 %v6110
      %v6453 = vunpack.c.l.b16 %v6111
      %v6454 = vunpack.c.l.b16 %v6112
      %v6455 = vunpack.c.l.b16 %v6113
      %v6456 = vunpack.c.l.b16 %v6114
      %v6457 = vunpack.c.l.b16 %v6115
      %v6458 = vunpack.c.l.b16 %v6116
      %v6459 = vpack.c.b16 %v6448, %v6447
      %v6460 = vpack.c.b16 %v6450, %v6449
      %v6461 = vpack.c.b16 %v6452, %v6451
      %v6462 = vpack.c.b16 %v6454, %v6453
      %v6463 = vpack.c.b16 %v6456, %v6455
      %v6464 = vpack.c.b16 %v6458, %v6457
      %v6472 = vsel %vm595, %v6087, 0
      %v6475 = vsel %vm595, %v6088, 0
      %v6478 = vsel %vm595, %v6089, 0
      %v6481 = vsel %vm595, %v6090, 0
      %v6484 = vsel %vm595, %v6091, 0
      %v6487 = vsel %vm595, %v6092, 0
      %v6490 = vsel %vm595, %v6093, 0
      %v6493 = vsel %vm595, %v6094, 0
      %v6496 = vsel %vm595, %v6095, 0
      %v6499 = vsel %vm595, %v6096, 0
      %v6502 = vsel %vm595, %v6097, 0
      %v6505 = vsel %vm595, %v6098, 0
      %v6508 = vsel %vm595, %v6099, 0
      %v6511 = vsel %vm595, %v6100, 0
      %v6514 = vsel %vm595, %v6101, 0
      %v6517 = vsel %vm595, %v6102, 0
      %v6520 = vsel %vm595, %v6103, 0
      %v6523 = vsel %vm595, %v6104, 0
      %6525 = vmatprep.subr.bf16.mxu0 0
      %6526 = vmatpush1.bf16.msra.mxu0 %v6459
      %6527 = vmatprep.subr.bf16.mxu0 0
      %6528 = vmatpush1.bf16.msra.mxu0 %v6460
      %6529 = vmatprep.subr.bf16.mxu0 0
      %6530 = vmatpush1.bf16.msra.mxu0 %v6461
      %6531 = vmatprep.subr.bf16.mxu0 0
      %6532 = vmatpush1.bf16.msra.mxu0 %v6462
      %6533 = vmatprep.subr.bf16.mxu0 0
      %6534 = vmatpush1.bf16.msra.mxu0 %v6463
      %6535 = vmatprep.subr.bf16.mxu0 0
      %6536 = vmatpush1.bf16.msra.mxu0 %v6464
      %6537 = vmatprep.subr.bf16.mxu0 0
      %6538 = vmatpush1.bf16.msra.mxu0 0
      %6539 = vmatprep.subr.bf16.mxu0 0
      %6540 = vmatpush1.bf16.msra.mxu0 0
      %6541 = vmatprep.subr.bf16.mxu0 0
      %6542 = vmatpush1.bf16.msra.mxu0 0
      %6543 = vmatprep.subr.bf16.mxu0 0
      %6544 = vmatpush1.bf16.msra.mxu0 0
      %6545 = vmatprep.subr.bf16.mxu0 0
      %6546 = vmatpush1.bf16.msra.mxu0 0
      %6547 = vmatprep.subr.bf16.mxu0 0
      %6548 = vmatpush1.bf16.msra.mxu0 0
      %6549 = vmatprep.subr.bf16.mxu0 0
      %6550 = vmatpush1.bf16.msra.mxu0 0
      %6551 = vmatprep.subr.bf16.mxu0 0
      %6552 = vmatpush1.bf16.msra.mxu0 0
      %6553 = vmatprep.subr.bf16.mxu0 0
      %6554 = vmatpush1.bf16.msra.mxu0 0
      %6555 = vmatprep.subr.bf16.mxu0 0
      %6556 = vmatpush1.bf16.msra.mxu0 0
      %6557 = vmatprep.mubr.bf16.mxu0 0
      %6558 = vmatmul.mubr.bf16.gmra.mrb[0].mxu0 %v6472
      %v6559 = vpop.f32.mrb[0].mxu0
      %v6560 = vpop.f32.mrb[0].mxu0
      %v6561 = vpop.f32.mrb[0].mxu0
      %v6562 = vpop.f32.mrb[0].mxu0
      %6563 = vmatprep.mubr.bf16.mxu0 0
      %6564 = vmatmul.mubr.bf16.gmra.mrb[0].mxu0 %v6475
      %v6565 = vpop.f32.mrb[0].mxu0
      %v6566 = vpop.f32.mrb[0].mxu0
      %v6567 = vpop.f32.mrb[0].mxu0
      %v6568 = vpop.f32.mrb[0].mxu0
      %6569 = vmatprep.mubr.bf16.mxu0 0
      %6570 = vmatmul.mubr.bf16.gmra.mrb[0].mxu0 %v6478
      %v6571 = vpop.f32.mrb[0].mxu0
      %v6572 = vpop.f32.mrb[0].mxu0
      %v6573 = vpop.f32.mrb[0].mxu0
      %v6574 = vpop.f32.mrb[0].mxu0
      %6575 = vmatprep.mubr.bf16.mxu0 0
      %6576 = vmatmul.mubr.bf16.gmra.mrb[0].mxu0 %v6481
      %v6577 = vpop.f32.mrb[0].mxu0
      %v6578 = vpop.f32.mrb[0].mxu0
      %v6579 = vpop.f32.mrb[0].mxu0
      %v6580 = vadd.f32 %v6333, %v6579
      %v6581 = vpop.f32.mrb[0].mxu0
      %6582 = vmatprep.mubr.bf16.mxu0 0
      %6583 = vmatmul.mubr.bf16.gmra.mrb[0].mxu0 %v6484
      %v6584 = vpop.f32.mrb[0].mxu0
      %v6585 = vadd.f32 %v6338, %v6584
      %v6586 = vpop.f32.mrb[0].mxu0
      %v6587 = vpop.f32.mrb[0].mxu0
      %v6588 = vadd.f32 %v6341, %v6587
      %v6589 = vpop.f32.mrb[0].mxu0
      %6590 = vmatprep.mubr.bf16.mxu0 0
      %6591 = vmatmul.mubr.bf16.gmra.mrb[0].mxu0 %v6487
      %v6592 = vpop.f32.mrb[0].mxu0
      %v6593 = vadd.f32 %v6346, %v6592
      %v6594 = vpop.f32.mrb[0].mxu0
      %v6595 = vpop.f32.mrb[0].mxu0
      %v6596 = vpop.f32.mrb[0].mxu0
      %6597 = vmatprep.mubr.bf16.mxu0 0
      %6598 = vmatmul.mubr.bf16.gmra.mrb[0].mxu0 %v6490
      %v6599 = vpop.f32.mrb[0].mxu0
      %v6600 = vpop.f32.mrb[0].mxu0
      %v6601 = vpop.f32.mrb[0].mxu0
      %v6602 = vadd.f32 %v6355, %v6601
      %v6603 = vpop.f32.mrb[0].mxu0
      %6604 = vmatprep.mubr.bf16.mxu0 0
      %6605 = vmatmul.mubr.bf16.gmra.mrb[0].mxu0 %v6493
      %v6606 = vpop.f32.mrb[0].mxu0
      %v6607 = vadd.f32 %v6360, %v6606
      %v6608 = vpop.f32.mrb[0].mxu0
      %v6609 = vpop.f32.mrb[0].mxu0
      %v6610 = vadd.f32 %v6363, %v6609
      %v6611 = vpop.f32.mrb[0].mxu0
      %6612 = vmatprep.mubr.bf16.mxu0 0
      %6613 = vmatmul.mubr.bf16.gmra.mrb[0].mxu0 %v6496
      %v6614 = vpop.f32.mrb[0].mxu0
      %v6615 = vadd.f32 %v6368, %v6614
      %v6616 = vpop.f32.mrb[0].mxu0
      %v6617 = vpop.f32.mrb[0].mxu0
      %v6618 = vpop.f32.mrb[0].mxu0
      %6619 = vmatprep.mubr.bf16.mxu0 0
      %6620 = vmatmul.mubr.bf16.gmra.mrb[0].mxu0 %v6499
      %v6621 = vpop.f32.mrb[0].mxu0
      %v6622 = vpop.f32.mrb[0].mxu0
      %v6623 = vpop.f32.mrb[0].mxu0
      %v6624 = vadd.f32 %v6377, %v6623
      %v6625 = vpop.f32.mrb[0].mxu0
      %6626 = vmatprep.mubr.bf16.mxu0 0
      %6627 = vmatmul.mubr.bf16.gmra.mrb[0].mxu0 %v6502
      %v6628 = vpop.f32.mrb[0].mxu0
      %v6629 = vadd.f32 %v6382, %v6628
      %v6630 = vpop.f32.mrb[0].mxu0
      %v6631 = vpop.f32.mrb[0].mxu0
      %v6632 = vadd.f32 %v6385, %v6631
      %v6633 = vpop.f32.mrb[0].mxu0
      %6634 = vmatprep.mubr.bf16.mxu0 0
      %6635 = vmatmul.mubr.bf16.gmra.mrb[0].mxu0 %v6505
      %v6636 = vpop.f32.mrb[0].mxu0
      %v6637 = vadd.f32 %v6390, %v6636
      %v6638 = vpop.f32.mrb[0].mxu0
      %v6639 = vpop.f32.mrb[0].mxu0
      %v6640 = vpop.f32.mrb[0].mxu0
      %6641 = vmatprep.mubr.bf16.mxu0 0
      %6642 = vmatmul.mubr.bf16.gmra.mrb[0].mxu0 %v6508
      %v6643 = vpop.f32.mrb[0].mxu0
      %v6644 = vpop.f32.mrb[0].mxu0
      %v6645 = vpop.f32.mrb[0].mxu0
      %v6646 = vadd.f32 %v6399, %v6645
      %v6647 = vpop.f32.mrb[0].mxu0
      %6648 = vmatprep.mubr.bf16.mxu0 0
      %6649 = vmatmul.mubr.bf16.gmra.mrb[0].mxu0 %v6511
      %v6650 = vpop.f32.mrb[0].mxu0
      %v6651 = vadd.f32 %v6404, %v6650
      %v6652 = vpop.f32.mrb[0].mxu0
      %v6653 = vpop.f32.mrb[0].mxu0
      %v6654 = vadd.f32 %v6407, %v6653
      %v6655 = vpop.f32.mrb[0].mxu0
      %6656 = vmatprep.mubr.bf16.mxu0 0
      %6657 = vmatmul.mubr.bf16.gmra.mrb[0].mxu0 %v6514
      %v6658 = vpop.f32.mrb[0].mxu0
      %v6659 = vadd.f32 %v6412, %v6658
      %v6660 = vpop.f32.mrb[0].mxu0
      %v6661 = vpop.f32.mrb[0].mxu0
      %v6662 = vpop.f32.mrb[0].mxu0
      %6663 = vmatprep.mubr.bf16.mxu0 0
      %6664 = vmatmul.mubr.bf16.gmra.mrb[0].mxu0 %v6517
      %v6665 = vpop.f32.mrb[0].mxu0
      %v6666 = vpop.f32.mrb[0].mxu0
      %v6667 = vpop.f32.mrb[0].mxu0
      %v6668 = vpop.f32.mrb[0].mxu0
      %6669 = vmatprep.mubr.bf16.mxu0 0
      %6670 = vmatmul.mubr.bf16.gmra.mrb[0].mxu0 %v6520
      %v6671 = vpop.f32.mrb[0].mxu0
      %v6672 = vpop.f32.mrb[0].mxu0
      %v6673 = vpop.f32.mrb[0].mxu0
      %v6674 = vpop.f32.mrb[0].mxu0
      %6675 = vmatprep.mubr.bf16.mxu0 0
      %6676 = vmatmul.mubr.bf16.gmra.mrb[0].mxu0 %v6523
      %v6677 = vpop.f32.mrb[0].mxu0
      %v6678 = vpop.f32.mrb[0].mxu0
      %v6679 = vpop.f32.mrb[0].mxu0
      %v6680 = vpop.f32.mrb[0].mxu0
      %6681 = vdwg.mxu0
      %v6682 = vld [vmem:[#allocation3 + $0x90] sm:$0xff]
      %s6683 = scalar_lea.vmem %s10, 96
      %v6684 = vld [vmem:[%s6683] sm:$0xf]
      %v6685 = vld [vmem:[%s6683 + $0x4] sm:$0xf]
      %v6686 = vld [vmem:[%s6683 + $0x8] sm:$0xf]
      %v6687 = vld [vmem:[%s6683 + $0xc] sm:$0xf]
      %v6688 = vld [vmem:[%s6683 + $0x10] sm:$0xf]
      %v6689 = vld [vmem:[%s6683 + $0x14] sm:$0xf]
      %v6690 = vld [vmem:[%s6683 + $0x18] sm:$0xf]
      %v6691 = vld [vmem:[%s6683 + $0x1c] sm:$0xf]
      %v6692 = vld [vmem:[%s6683 + $0x20] sm:$0xf]
      %v6693 = vld [vmem:[%s6683 + $0x24] sm:$0xf]
      %v6694 = vld [vmem:[%s6683 + $0x28] sm:$0xf]
      %v6695 = vld [vmem:[%s6683 + $0x2c] sm:$0xf]
      %v6708 = vunpack.c.l.b16 %v6684
      %v6709 = vunpack.c.l.b16 %v6685
      %v6710 = vunpack.c.l.b16 %v6686
      %v6711 = vunpack.c.l.b16 %v6687
      %v6712 = vunpack.c.l.b16 %v6688
      %v6713 = vunpack.c.l.b16 %v6689
      %v6714 = vunpack.c.l.b16 %v6690
      %v6715 = vunpack.c.l.b16 %v6691
      %v6716 = vunpack.c.l.b16 %v6692
      %v6717 = vunpack.c.l.b16 %v6693
      %v6718 = vunpack.c.l.b16 %v6694
      %v6719 = vunpack.c.l.b16 %v6695
      %v6720 = vpack.c.b16 %v6709, %v6708
      %v6721 = vpack.c.b16 %v6711, %v6710
      %v6722 = vpack.c.b16 %v6713, %v6712
      %v6723 = vpack.c.b16 %v6715, %v6714
      %v6724 = vpack.c.b16 %v6717, %v6716
      %v6725 = vpack.c.b16 %v6719, %v6718
      %v6733 = vsel %vm595, %v6682, 0
      %6735 = vmatprep.subr.bf16.mxu0 0
      %6736 = vmatpush1.bf16.msra.mxu0 %v6720
      %6737 = vmatprep.subr.bf16.mxu0 0
      %6738 = vmatpush1.bf16.msra.mxu0 %v6721
      %6739 = vmatprep.subr.bf16.mxu0 0
      %6740 = vmatpush1.bf16.msra.mxu0 %v6722
      %6741 = vmatprep.subr.bf16.mxu0 0
      %6742 = vmatpush1.bf16.msra.mxu0 %v6723
      %6743 = vmatprep.subr.bf16.mxu0 0
      %6744 = vmatpush1.bf16.msra.mxu0 %v6724
      %6745 = vmatprep.subr.bf16.mxu0 0
      %6746 = vmatpush1.bf16.msra.mxu0 %v6725
      %6747 = vmatprep.subr.bf16.mxu0 0
      %6748 = vmatpush1.bf16.msra.mxu0 0
      %6749 = vmatprep.subr.bf16.mxu0 0
      %6750 = vmatpush1.bf16.msra.mxu0 0
      %6751 = vmatprep.subr.bf16.mxu0 0
      %6752 = vmatpush1.bf16.msra.mxu0 0
      %6753 = vmatprep.subr.bf16.mxu0 0
      %6754 = vmatpush1.bf16.msra.mxu0 0
      %6755 = vmatprep.subr.bf16.mxu0 0
      %6756 = vmatpush1.bf16.msra.mxu0 0
      %6757 = vmatprep.subr.bf16.mxu0 0
      %6758 = vmatpush1.bf16.msra.mxu0 0
      %6759 = vmatprep.subr.bf16.mxu0 0
      %6760 = vmatpush1.bf16.msra.mxu0 0
      %6761 = vmatprep.subr.bf16.mxu0 0
      %6762 = vmatpush1.bf16.msra.mxu0 0
      %6763 = vmatprep.subr.bf16.mxu0 0
      %6764 = vmatpush1.bf16.msra.mxu0 0
      %6765 = vmatprep.subr.bf16.mxu0 0
      %6766 = vmatpush1.bf16.msra.mxu0 0
      %6767 = vmatprep.mubr.bf16.mxu0 0
      %6768 = vmatmul.mubr.bf16.gmra.mrb[0].mxu0 %v6475
      %v6769 = vpop.f32.mrb[0].mxu0
      %v6770 = vpop.f32.mrb[0].mxu0
      %v6771 = vpop.f32.mrb[0].mxu0
      %v6772 = vpop.f32.mrb[0].mxu0
      %6773 = vmatprep.mubr.bf16.mxu0 0
      %6774 = vmatmul.mubr.bf16.gmra.mrb[0].mxu0 %v6478
      %v6775 = vpop.f32.mrb[0].mxu0
      %v6776 = vpop.f32.mrb[0].mxu0
      %v6777 = vpop.f32.mrb[0].mxu0
      %v6778 = vpop.f32.mrb[0].mxu0
      %6779 = vmatprep.mubr.bf16.mxu0 0
      %6780 = vmatmul.mubr.bf16.gmra.mrb[0].mxu0 %v6481
      %v6781 = vpop.f32.mrb[0].mxu0
      %v6782 = vpop.f32.mrb[0].mxu0
      %v6783 = vpop.f32.mrb[0].mxu0
      %v6784 = vpop.f32.mrb[0].mxu0
      %6785 = vmatprep.mubr.bf16.mxu0 0
      %6786 = vmatmul.mubr.bf16.gmra.mrb[0].mxu0 %v6484
      %v6787 = vpop.f32.mrb[0].mxu0
      %v6788 = vpop.f32.mrb[0].mxu0
      %v6789 = vpop.f32.mrb[0].mxu0
      %v6790 = vadd.f32 0.0, %v6789
      %v6791 = vpop.f32.mrb[0].mxu0
      %6792 = vmatprep.mubr.bf16.mxu0 0
      %6793 = vmatmul.mubr.bf16.gmra.mrb[0].mxu0 %v6487
      %v6794 = vpop.f32.mrb[0].mxu0
      %v6795 = vadd.f32 0.0, %v6794
      %v6796 = vpop.f32.mrb[0].mxu0
      %v6797 = vpop.f32.mrb[0].mxu0
      %v6798 = vadd.f32 0.0, %v6797
      %v6799 = vpop.f32.mrb[0].mxu0
      %6800 = vmatprep.mubr.bf16.mxu0 0
      %6801 = vmatmul.mubr.bf16.gmra.mrb[0].mxu0 %v6490
      %v6802 = vpop.f32.mrb[0].mxu0
      %v6803 = vadd.f32 0.0, %v6802
      %v6804 = vpop.f32.mrb[0].mxu0
      %v6805 = vpop.f32.mrb[0].mxu0
      %v6806 = vpop.f32.mrb[0].mxu0
      %6807 = vmatprep.mubr.bf16.mxu0 0
      %6808 = vmatmul.mubr.bf16.gmra.mrb[0].mxu0 %v6493
      %v6809 = vpop.f32.mrb[0].mxu0
      %v6810 = vpop.f32.mrb[0].mxu0
      %v6811 = vpop.f32.mrb[0].mxu0
      %v6812 = vadd.f32 0.0, %v6811
      %v6813 = vpop.f32.mrb[0].mxu0
      %6814 = vmatprep.mubr.bf16.mxu0 0
      %6815 = vmatmul.mubr.bf16.gmra.mrb[0].mxu0 %v6496
      %v6816 = vpop.f32.mrb[0].mxu0
      %v6817 = vadd.f32 0.0, %v6816
      %v6818 = vpop.f32.mrb[0].mxu0
      %v6819 = vpop.f32.mrb[0].mxu0
      %v6820 = vadd.f32 0.0, %v6819
      %v6821 = vpop.f32.mrb[0].mxu0
      %6822 = vmatprep.mubr.bf16.mxu0 0
      %6823 = vmatmul.mubr.bf16.gmra.mrb[0].mxu0 %v6499
      %v6824 = vpop.f32.mrb[0].mxu0
      %v6825 = vadd.f32 0.0, %v6824
      %v6826 = vpop.f32.mrb[0].mxu0
      %v6827 = vpop.f32.mrb[0].mxu0
      %v6828 = vpop.f32.mrb[0].mxu0
      %6829 = vmatprep.mubr.bf16.mxu0 0
      %6830 = vmatmul.mubr.bf16.gmra.mrb[0].mxu0 %v6502
      %v6831 = vpop.f32.mrb[0].mxu0
      %v6832 = vpop.f32.mrb[0].mxu0
      %v6833 = vpop.f32.mrb[0].mxu0
      %v6834 = vadd.f32 0.0, %v6833
      %v6835 = vpop.f32.mrb[0].mxu0
      %6836 = vmatprep.mubr.bf16.mxu0 0
      %6837 = vmatmul.mubr.bf16.gmra.mrb[0].mxu0 %v6505
      %v6838 = vpop.f32.mrb[0].mxu0
      %v6839 = vadd.f32 0.0, %v6838
      %v6840 = vpop.f32.mrb[0].mxu0
      %v6841 = vpop.f32.mrb[0].mxu0
      %v6842 = vadd.f32 0.0, %v6841
      %v6843 = vpop.f32.mrb[0].mxu0
      %6844 = vmatprep.mubr.bf16.mxu0 0
      %6845 = vmatmul.mubr.bf16.gmra.mrb[0].mxu0 %v6508
      %v6846 = vpop.f32.mrb[0].mxu0
      %v6847 = vadd.f32 0.0, %v6846
      %v6848 = vpop.f32.mrb[0].mxu0
      %v6849 = vpop.f32.mrb[0].mxu0
      %v6850 = vpop.f32.mrb[0].mxu0
      %6851 = vmatprep.mubr.bf16.mxu0 0
      %6852 = vmatmul.mubr.bf16.gmra.mrb[0].mxu0 %v6511
      %v6853 = vpop.f32.mrb[0].mxu0
      %v6854 = vpop.f32.mrb[0].mxu0
      %v6855 = vpop.f32.mrb[0].mxu0
      %v6856 = vadd.f32 0.0, %v6855
      %v6857 = vpop.f32.mrb[0].mxu0
      %6858 = vmatprep.mubr.bf16.mxu0 0
      %6859 = vmatmul.mubr.bf16.gmra.mrb[0].mxu0 %v6514
      %v6860 = vpop.f32.mrb[0].mxu0
      %v6861 = vadd.f32 0.0, %v6860
      %v6862 = vpop.f32.mrb[0].mxu0
      %v6863 = vpop.f32.mrb[0].mxu0
      %v6864 = vadd.f32 0.0, %v6863
      %v6865 = vpop.f32.mrb[0].mxu0
      %6866 = vmatprep.mubr.bf16.mxu0 0
      %6867 = vmatmul.mubr.bf16.gmra.mrb[0].mxu0 %v6517
      %v6868 = vpop.f32.mrb[0].mxu0
      %v6869 = vadd.f32 0.0, %v6868
      %v6870 = vpop.f32.mrb[0].mxu0
      %v6871 = vpop.f32.mrb[0].mxu0
      %v6872 = vpop.f32.mrb[0].mxu0
      %6873 = vmatprep.mubr.bf16.mxu0 0
      %6874 = vmatmul.mubr.bf16.gmra.mrb[0].mxu0 %v6520
      %v6875 = vpop.f32.mrb[0].mxu0
      %v6876 = vpop.f32.mrb[0].mxu0
      %v6877 = vpop.f32.mrb[0].mxu0
      %v6878 = vpop.f32.mrb[0].mxu0
      %6879 = vmatprep.mubr.bf16.mxu0 0
      %6880 = vmatmul.mubr.bf16.gmra.mrb[0].mxu0 %v6523
      %v6881 = vpop.f32.mrb[0].mxu0
      %v6882 = vpop.f32.mrb[0].mxu0
      %v6883 = vpop.f32.mrb[0].mxu0
      %v6884 = vpop.f32.mrb[0].mxu0
      %6885 = vmatprep.mubr.bf16.mxu0 0
      %6886 = vmatmul.mubr.bf16.gmra.mrb[0].mxu0 %v6733
      %v6887 = vpop.f32.mrb[0].mxu0
      %v6888 = vpop.f32.mrb[0].mxu0
      %v6889 = vpop.f32.mrb[0].mxu0
      %v6890 = vpop.f32.mrb[0].mxu0
      %6891 = vdwg.mxu0
      %v6892 = vadd.f32 %v6580, %v6790
      %v6893 = vadd.f32 %v6585, %v6795
      %v6894 = vadd.f32 %v6588, %v6798
      %v6895 = vadd.f32 %v6593, %v6803
      %v6896 = vadd.f32 %v6602, %v6812
      %v6897 = vadd.f32 %v6607, %v6817
      %v6898 = vadd.f32 %v6610, %v6820
      %v6899 = vadd.f32 %v6615, %v6825
      %v6900 = vadd.f32 %v6624, %v6834
      %v6901 = vadd.f32 %v6629, %v6839
      %v6902 = vadd.f32 %v6632, %v6842
      %v6903 = vadd.f32 %v6637, %v6847
      %v6904 = vadd.f32 %v6646, %v6856
      %v6905 = vadd.f32 %v6651, %v6861
      %v6906 = vadd.f32 %v6654, %v6864
      %v6907 = vadd.f32 %v6659, %v6869
      %v6908 = vld [vmem:[#allocation3 + $0x18] sm:$0xff]
      %v6909 = vld [vmem:[#allocation3 + $0x20] sm:$0xff]
      %v6910 = vld [vmem:[#allocation3 + $0x28] sm:$0xff]
      %v6911 = vld [vmem:[#allocation3 + $0x30] sm:$0xff]
      %v6912 = vld [vmem:[#allocation3 + $0x38] sm:$0xff]
      %v6913 = vld [vmem:[#allocation3 + $0x40] sm:$0xff]
      %v6914 = vld [vmem:[#allocation3 + $0x48] sm:$0xff]
      %v6915 = vld [vmem:[#allocation3 + $0x50] sm:$0xff]
      %v6916 = vld [vmem:[#allocation3 + $0x58] sm:$0xff]
      %v6917 = vld [vmem:[#allocation3 + $0x60] sm:$0xff]
      %v6918 = vld [vmem:[#allocation3 + $0x68] sm:$0xff]
      %v6919 = vld [vmem:[#allocation3 + $0x70] sm:$0xff]
      %v6920 = vld [vmem:[#allocation3 + $0x78] sm:$0xff]
      %v6921 = vld [vmem:[#allocation3 + $0x80] sm:$0xff]
      %v6922 = vld [vmem:[#allocation3 + $0x88] sm:$0xff]
      %v6923 = vld [vmem:[#allocation3 + $0x90] sm:$0xff]
      %v6924 = vld [vmem:[#allocation3 + $0x98] sm:$0xff]
      %v6925 = vld [vmem:[#allocation3 + $0xa0] sm:$0xff]
      %s6926 = scalar_lea.vmem %s10, 144
      %v6927 = vld [vmem:[%s6926] sm:$0xf]
      %v6928 = vld [vmem:[%s6926 + $0x4] sm:$0xf]
      %v6929 = vld [vmem:[%s6926 + $0x8] sm:$0xf]
      %v6930 = vld [vmem:[%s6926 + $0xc] sm:$0xf]
      %v6931 = vld [vmem:[%s6926 + $0x10] sm:$0xf]
      %v6932 = vld [vmem:[%s6926 + $0x14] sm:$0xf]
      %v6933 = vld [vmem:[%s6926 + $0x18] sm:$0xf]
      %v6934 = vld [vmem:[%s6926 + $0x1c] sm:$0xf]
      %v6935 = vld [vmem:[%s6926 + $0x20] sm:$0xf]
      %v6936 = vld [vmem:[%s6926 + $0x24] sm:$0xf]
      %v6937 = vld [vmem:[%s6926 + $0x28] sm:$0xf]
      %v6938 = vld [vmem:[%s6926 + $0x2c] sm:$0xf]
      %v6939 = vld [vmem:[#allocation3 + $0x18] sm:$0xf0]
      %v6940 = vld [vmem:[#allocation3 + $0xa8] sm:$0xf]
      %s6941 = scalar_lea.vmem %s10, 192
      %v6942 = vld [vmem:[%s6941] sm:$0xf]
      %v6943 = vld [vmem:[%s6941 + $0x4] sm:$0xf]
      %v6944 = vld [vmem:[%s6941 + $0x8] sm:$0xf]
      %v6945 = vld [vmem:[%s6941 + $0xc] sm:$0xf]
      %v6946 = vld [vmem:[%s6941 + $0x10] sm:$0xf]
      %v6947 = vld [vmem:[%s6941 + $0x14] sm:$0xf]
      %v6948 = vld [vmem:[%s6941 + $0x18] sm:$0xf]
      %v6949 = vld [vmem:[%s6941 + $0x1c] sm:$0xf]
      %v6950 = vld [vmem:[%s6941 + $0x20] sm:$0xf]
      %v6951 = vld [vmem:[%s6941 + $0x24] sm:$0xf]
      %v6952 = vld [vmem:[%s6941 + $0x28] sm:$0xf]
      %v6953 = vld [vmem:[%s6941 + $0x2c] sm:$0xf]
      %v6973 = vrot.slane %v6939, 4
      %v6974 = vrot.slane %v6909, 4
      %v6975 = vsel %vm1862, %v6973, %v6974
      %v6976 = vrot.slane %v6910, 4
      %v6977 = vsel %vm1862, %v6974, %v6976
      %v6978 = vrot.slane %v6911, 4
      %v6979 = vsel %vm1862, %v6976, %v6978
      %v6980 = vrot.slane %v6912, 4
      %v6981 = vsel %vm1862, %v6978, %v6980
      %v6982 = vrot.slane %v6913, 4
      %v6983 = vsel %vm1862, %v6980, %v6982
      %v6984 = vrot.slane %v6914, 4
      %v6985 = vsel %vm1862, %v6982, %v6984
      %v6986 = vrot.slane %v6915, 4
      %v6987 = vsel %vm1862, %v6984, %v6986
      %v6988 = vrot.slane %v6916, 4
      %v6989 = vsel %vm1862, %v6986, %v6988
      %v6990 = vrot.slane %v6917, 4
      %v6991 = vsel %vm1862, %v6988, %v6990
      %v6992 = vrot.slane %v6918, 4
      %v6993 = vsel %vm1862, %v6990, %v6992
      %v6994 = vrot.slane %v6919, 4
      %v6995 = vsel %vm1862, %v6992, %v6994
      %v6996 = vrot.slane %v6920, 4
      %v6997 = vsel %vm1862, %v6994, %v6996
      %v6998 = vrot.slane %v6921, 4
      %v6999 = vsel %vm1862, %v6996, %v6998
      %v7000 = vrot.slane %v6922, 4
      %v7001 = vsel %vm1862, %v6998, %v7000
      %v7002 = vrot.slane %v6923, 4
      %v7003 = vsel %vm1862, %v7000, %v7002
      %v7004 = vrot.slane %v6924, 4
      %v7005 = vsel %vm1862, %v7002, %v7004
      %v7006 = vrot.slane %v6925, 4
      %v7007 = vsel %vm1862, %v7004, %v7006
      %v7008 = vrot.slane %v6940, 4
      %v7009 = vsel %vm1862, %v7006, %v7008
      %v7022 = vunpack.c.l.b16 %v6942
      %v7023 = vunpack.c.l.b16 %v6943
      %v7024 = vunpack.c.l.b16 %v6944
      %v7025 = vunpack.c.l.b16 %v6945
      %v7026 = vunpack.c.l.b16 %v6946
      %v7027 = vunpack.c.l.b16 %v6947
      %v7028 = vunpack.c.l.b16 %v6948
      %v7029 = vunpack.c.l.b16 %v6949
      %v7030 = vunpack.c.l.b16 %v6950
      %v7031 = vunpack.c.l.b16 %v6951
      %v7032 = vunpack.c.l.b16 %v6952
      %v7033 = vunpack.c.l.b16 %v6953
      %v7034 = vpack.c.b16 %v7023, %v7022
      %v7035 = vpack.c.b16 %v7025, %v7024
      %v7036 = vpack.c.b16 %v7027, %v7026
      %v7037 = vpack.c.b16 %v7029, %v7028
      %v7038 = vpack.c.b16 %v7031, %v7030
      %v7039 = vpack.c.b16 %v7033, %v7032
      %v7047 = vsel %vm595, %v6975, 0
      %v7050 = vsel %vm595, %v6977, 0
      %v7053 = vsel %vm595, %v6979, 0
      %v7056 = vsel %vm595, %v6981, 0
      %v7059 = vsel %vm595, %v6983, 0
      %v7062 = vsel %vm595, %v6985, 0
      %v7065 = vsel %vm595, %v6987, 0
      %v7068 = vsel %vm595, %v6989, 0
      %v7071 = vsel %vm595, %v6991, 0
      %v7074 = vsel %vm595, %v6993, 0
      %v7077 = vsel %vm595, %v6995, 0
      %v7080 = vsel %vm595, %v6997, 0
      %v7083 = vsel %vm595, %v6999, 0
      %v7086 = vsel %vm595, %v7001, 0
      %v7089 = vsel %vm595, %v7003, 0
      %v7092 = vsel %vm595, %v7005, 0
      %v7095 = vsel %vm595, %v7007, 0
      %v7098 = vsel %vm595, %v7009, 0
      %7100 = vmatprep.subr.bf16.mxu0 0
      %7101 = vmatpush1.bf16.msra.mxu0 %v7034
      %7102 = vmatprep.subr.bf16.mxu0 0
      %7103 = vmatpush1.bf16.msra.mxu0 %v7035
      %7104 = vmatprep.subr.bf16.mxu0 0
      %7105 = vmatpush1.bf16.msra.mxu0 %v7036
      %7106 = vmatprep.subr.bf16.mxu0 0
      %7107 = vmatpush1.bf16.msra.mxu0 %v7037
      %7108 = vmatprep.subr.bf16.mxu0 0
      %7109 = vmatpush1.bf16.msra.mxu0 %v7038
      %7110 = vmatprep.subr.bf16.mxu0 0
      %7111 = vmatpush1.bf16.msra.mxu0 %v7039
      %7112 = vmatprep.subr.bf16.mxu0 0
      %7113 = vmatpush1.bf16.msra.mxu0 0
      %7114 = vmatprep.subr.bf16.mxu0 0
      %7115 = vmatpush1.bf16.msra.mxu0 0
      %7116 = vmatprep.subr.bf16.mxu0 0
      %7117 = vmatpush1.bf16.msra.mxu0 0
      %7118 = vmatprep.subr.bf16.mxu0 0
      %7119 = vmatpush1.bf16.msra.mxu0 0
      %7120 = vmatprep.subr.bf16.mxu0 0
      %7121 = vmatpush1.bf16.msra.mxu0 0
      %7122 = vmatprep.subr.bf16.mxu0 0
      %7123 = vmatpush1.bf16.msra.mxu0 0
      %7124 = vmatprep.subr.bf16.mxu0 0
      %7125 = vmatpush1.bf16.msra.mxu0 0
      %7126 = vmatprep.subr.bf16.mxu0 0
      %7127 = vmatpush1.bf16.msra.mxu0 0
      %7128 = vmatprep.subr.bf16.mxu0 0
      %7129 = vmatpush1.bf16.msra.mxu0 0
      %7130 = vmatprep.subr.bf16.mxu0 0
      %7131 = vmatpush1.bf16.msra.mxu0 0
      %7132 = vmatprep.mubr.bf16.mxu0 0
      %7133 = vmatmul.mubr.bf16.gmra.mrb[0].mxu0 %v7047
      %v7134 = vpop.f32.mrb[0].mxu0
      %v7135 = vpop.f32.mrb[0].mxu0
      %v7136 = vpop.f32.mrb[0].mxu0
      %v7137 = vpop.f32.mrb[0].mxu0
      %7138 = vmatprep.mubr.bf16.mxu0 0
      %7139 = vmatmul.mubr.bf16.gmra.mrb[0].mxu0 %v7050
      %v7140 = vpop.f32.mrb[0].mxu0
      %v7141 = vpop.f32.mrb[0].mxu0
      %v7142 = vpop.f32.mrb[0].mxu0
      %v7143 = vpop.f32.mrb[0].mxu0
      %7144 = vmatprep.mubr.bf16.mxu0 0
      %7145 = vmatmul.mubr.bf16.gmra.mrb[0].mxu0 %v7053
      %v7146 = vpop.f32.mrb[0].mxu0
      %v7147 = vpop.f32.mrb[0].mxu0
      %v7148 = vpop.f32.mrb[0].mxu0
      %v7149 = vpop.f32.mrb[0].mxu0
      %7150 = vmatprep.mubr.bf16.mxu0 0
      %7151 = vmatmul.mubr.bf16.gmra.mrb[0].mxu0 %v7056
      %v7152 = vpop.f32.mrb[0].mxu0
      %v7153 = vpop.f32.mrb[0].mxu0
      %v7154 = vpop.f32.mrb[0].mxu0
      %v7155 = vadd.f32 0.0, %v7154
      %v7156 = vpop.f32.mrb[0].mxu0
      %7157 = vmatprep.mubr.bf16.mxu0 0
      %7158 = vmatmul.mubr.bf16.gmra.mrb[0].mxu0 %v7059
      %v7159 = vpop.f32.mrb[0].mxu0
      %v7160 = vadd.f32 0.0, %v7159
      %v7161 = vpop.f32.mrb[0].mxu0
      %v7162 = vpop.f32.mrb[0].mxu0
      %v7163 = vadd.f32 0.0, %v7162
      %v7164 = vpop.f32.mrb[0].mxu0
      %7165 = vmatprep.mubr.bf16.mxu0 0
      %7166 = vmatmul.mubr.bf16.gmra.mrb[0].mxu0 %v7062
      %v7167 = vpop.f32.mrb[0].mxu0
      %v7168 = vadd.f32 0.0, %v7167
      %v7169 = vpop.f32.mrb[0].mxu0
      %v7170 = vpop.f32.mrb[0].mxu0
      %v7171 = vpop.f32.mrb[0].mxu0
      %7172 = vmatprep.mubr.bf16.mxu0 0
      %7173 = vmatmul.mubr.bf16.gmra.mrb[0].mxu0 %v7065
      %v7174 = vpop.f32.mrb[0].mxu0
      %v7175 = vpop.f32.mrb[0].mxu0
      %v7176 = vpop.f32.mrb[0].mxu0
      %v7177 = vadd.f32 0.0, %v7176
      %v7178 = vpop.f32.mrb[0].mxu0
      %7179 = vmatprep.mubr.bf16.mxu0 0
      %7180 = vmatmul.mubr.bf16.gmra.mrb[0].mxu0 %v7068
      %v7181 = vpop.f32.mrb[0].mxu0
      %v7182 = vadd.f32 0.0, %v7181
      %v7183 = vpop.f32.mrb[0].mxu0
      %v7184 = vpop.f32.mrb[0].mxu0
      %v7185 = vadd.f32 0.0, %v7184
      %v7186 = vpop.f32.mrb[0].mxu0
      %7187 = vmatprep.mubr.bf16.mxu0 0
      %7188 = vmatmul.mubr.bf16.gmra.mrb[0].mxu0 %v7071
      %v7189 = vpop.f32.mrb[0].mxu0
      %v7190 = vadd.f32 0.0, %v7189
      %v7191 = vpop.f32.mrb[0].mxu0
      %v7192 = vpop.f32.mrb[0].mxu0
      %v7193 = vpop.f32.mrb[0].mxu0
      %7194 = vmatprep.mubr.bf16.mxu0 0
      %7195 = vmatmul.mubr.bf16.gmra.mrb[0].mxu0 %v7074
      %v7196 = vpop.f32.mrb[0].mxu0
      %v7197 = vpop.f32.mrb[0].mxu0
      %v7198 = vpop.f32.mrb[0].mxu0
      %v7199 = vadd.f32 0.0, %v7198
      %v7200 = vpop.f32.mrb[0].mxu0
      %7201 = vmatprep.mubr.bf16.mxu0 0
      %7202 = vmatmul.mubr.bf16.gmra.mrb[0].mxu0 %v7077
      %v7203 = vpop.f32.mrb[0].mxu0
      %v7204 = vadd.f32 0.0, %v7203
      %v7205 = vpop.f32.mrb[0].mxu0
      %v7206 = vpop.f32.mrb[0].mxu0
      %v7207 = vadd.f32 0.0, %v7206
      %v7208 = vpop.f32.mrb[0].mxu0
      %7209 = vmatprep.mubr.bf16.mxu0 0
      %7210 = vmatmul.mubr.bf16.gmra.mrb[0].mxu0 %v7080
      %v7211 = vpop.f32.mrb[0].mxu0
      %v7212 = vadd.f32 0.0, %v7211
      %v7213 = vpop.f32.mrb[0].mxu0
      %v7214 = vpop.f32.mrb[0].mxu0
      %v7215 = vpop.f32.mrb[0].mxu0
      %7216 = vmatprep.mubr.bf16.mxu0 0
      %7217 = vmatmul.mubr.bf16.gmra.mrb[0].mxu0 %v7083
      %v7218 = vpop.f32.mrb[0].mxu0
      %v7219 = vpop.f32.mrb[0].mxu0
      %v7220 = vpop.f32.mrb[0].mxu0
      %v7221 = vadd.f32 0.0, %v7220
      %v7222 = vpop.f32.mrb[0].mxu0
      %7223 = vmatprep.mubr.bf16.mxu0 0
      %7224 = vmatmul.mubr.bf16.gmra.mrb[0].mxu0 %v7086
      %v7225 = vpop.f32.mrb[0].mxu0
      %v7226 = vadd.f32 0.0, %v7225
      %v7227 = vpop.f32.mrb[0].mxu0
      %v7228 = vpop.f32.mrb[0].mxu0
      %v7229 = vadd.f32 0.0, %v7228
      %v7230 = vpop.f32.mrb[0].mxu0
      %7231 = vmatprep.mubr.bf16.mxu0 0
      %7232 = vmatmul.mubr.bf16.gmra.mrb[0].mxu0 %v7089
      %v7233 = vpop.f32.mrb[0].mxu0
      %v7234 = vadd.f32 0.0, %v7233
      %v7235 = vpop.f32.mrb[0].mxu0
      %v7236 = vpop.f32.mrb[0].mxu0
      %v7237 = vpop.f32.mrb[0].mxu0
      %7238 = vmatprep.mubr.bf16.mxu0 0
      %7239 = vmatmul.mubr.bf16.gmra.mrb[0].mxu0 %v7092
      %v7240 = vpop.f32.mrb[0].mxu0
      %v7241 = vpop.f32.mrb[0].mxu0
      %v7242 = vpop.f32.mrb[0].mxu0
      %v7243 = vpop.f32.mrb[0].mxu0
      %7244 = vmatprep.mubr.bf16.mxu0 0
      %7245 = vmatmul.mubr.bf16.gmra.mrb[0].mxu0 %v7095
      %v7246 = vpop.f32.mrb[0].mxu0
      %v7247 = vpop.f32.mrb[0].mxu0
      %v7248 = vpop.f32.mrb[0].mxu0
      %v7249 = vpop.f32.mrb[0].mxu0
      %7250 = vmatprep.mubr.bf16.mxu0 0
      %7251 = vmatmul.mubr.bf16.gmra.mrb[0].mxu0 %v7098
      %v7252 = vpop.f32.mrb[0].mxu0
      %v7253 = vpop.f32.mrb[0].mxu0
      %v7254 = vpop.f32.mrb[0].mxu0
      %v7255 = vpop.f32.mrb[0].mxu0
      %7256 = vdwg.mxu0
      %v7269 = vunpack.c.l.b16 %v6927
      %v7270 = vunpack.c.l.b16 %v6928
      %v7271 = vunpack.c.l.b16 %v6929
      %v7272 = vunpack.c.l.b16 %v6930
      %v7273 = vunpack.c.l.b16 %v6931
      %v7274 = vunpack.c.l.b16 %v6932
      %v7275 = vunpack.c.l.b16 %v6933
      %v7276 = vunpack.c.l.b16 %v6934
      %v7277 = vunpack.c.l.b16 %v6935
      %v7278 = vunpack.c.l.b16 %v6936
      %v7279 = vunpack.c.l.b16 %v6937
      %v7280 = vunpack.c.l.b16 %v6938
      %v7281 = vpack.c.b16 %v7270, %v7269
      %v7282 = vpack.c.b16 %v7272, %v7271
      %v7283 = vpack.c.b16 %v7274, %v7273
      %v7284 = vpack.c.b16 %v7276, %v7275
      %v7285 = vpack.c.b16 %v7278, %v7277
      %v7286 = vpack.c.b16 %v7280, %v7279
      %v7294 = vsel %vm595, %v6908, 0
      %v7297 = vsel %vm595, %v6909, 0
      %v7300 = vsel %vm595, %v6910, 0
      %v7303 = vsel %vm595, %v6911, 0
      %v7306 = vsel %vm595, %v6912, 0
      %v7309 = vsel %vm595, %v6913, 0
      %v7312 = vsel %vm595, %v6914, 0
      %v7315 = vsel %vm595, %v6915, 0
      %v7318 = vsel %vm595, %v6916, 0
      %v7321 = vsel %vm595, %v6917, 0
      %v7324 = vsel %vm595, %v6918, 0
      %v7327 = vsel %vm595, %v6919, 0
      %v7330 = vsel %vm595, %v6920, 0
      %v7333 = vsel %vm595, %v6921, 0
      %v7336 = vsel %vm595, %v6922, 0
      %v7339 = vsel %vm595, %v6923, 0
      %v7342 = vsel %vm595, %v6924, 0
      %v7345 = vsel %vm595, %v6925, 0
      %7347 = vmatprep.subr.bf16.mxu0 0
      %7348 = vmatpush1.bf16.msra.mxu0 %v7281
      %7349 = vmatprep.subr.bf16.mxu0 0
      %7350 = vmatpush1.bf16.msra.mxu0 %v7282
      %7351 = vmatprep.subr.bf16.mxu0 0
      %7352 = vmatpush1.bf16.msra.mxu0 %v7283
      %7353 = vmatprep.subr.bf16.mxu0 0
      %7354 = vmatpush1.bf16.msra.mxu0 %v7284
      %7355 = vmatprep.subr.bf16.mxu0 0
      %7356 = vmatpush1.bf16.msra.mxu0 %v7285
      %7357 = vmatprep.subr.bf16.mxu0 0
      %7358 = vmatpush1.bf16.msra.mxu0 %v7286
      %7359 = vmatprep.subr.bf16.mxu0 0
      %7360 = vmatpush1.bf16.msra.mxu0 0
      %7361 = vmatprep.subr.bf16.mxu0 0
      %7362 = vmatpush1.bf16.msra.mxu0 0
      %7363 = vmatprep.subr.bf16.mxu0 0
      %7364 = vmatpush1.bf16.msra.mxu0 0
      %7365 = vmatprep.subr.bf16.mxu0 0
      %7366 = vmatpush1.bf16.msra.mxu0 0
      %7367 = vmatprep.subr.bf16.mxu0 0
      %7368 = vmatpush1.bf16.msra.mxu0 0
      %7369 = vmatprep.subr.bf16.mxu0 0
      %7370 = vmatpush1.bf16.msra.mxu0 0
      %7371 = vmatprep.subr.bf16.mxu0 0
      %7372 = vmatpush1.bf16.msra.mxu0 0
      %7373 = vmatprep.subr.bf16.mxu0 0
      %7374 = vmatpush1.bf16.msra.mxu0 0
      %7375 = vmatprep.subr.bf16.mxu0 0
      %7376 = vmatpush1.bf16.msra.mxu0 0
      %7377 = vmatprep.subr.bf16.mxu0 0
      %7378 = vmatpush1.bf16.msra.mxu0 0
      %7379 = vmatprep.mubr.bf16.mxu0 0
      %7380 = vmatmul.mubr.bf16.gmra.mrb[0].mxu0 %v7294
      %v7381 = vpop.f32.mrb[0].mxu0
      %v7382 = vpop.f32.mrb[0].mxu0
      %v7383 = vpop.f32.mrb[0].mxu0
      %v7384 = vpop.f32.mrb[0].mxu0
      %7385 = vmatprep.mubr.bf16.mxu0 0
      %7386 = vmatmul.mubr.bf16.gmra.mrb[0].mxu0 %v7297
      %v7387 = vpop.f32.mrb[0].mxu0
      %v7388 = vpop.f32.mrb[0].mxu0
      %v7389 = vpop.f32.mrb[0].mxu0
      %v7390 = vpop.f32.mrb[0].mxu0
      %7391 = vmatprep.mubr.bf16.mxu0 0
      %7392 = vmatmul.mubr.bf16.gmra.mrb[0].mxu0 %v7300
      %v7393 = vpop.f32.mrb[0].mxu0
      %v7394 = vpop.f32.mrb[0].mxu0
      %v7395 = vpop.f32.mrb[0].mxu0
      %v7396 = vpop.f32.mrb[0].mxu0
      %7397 = vmatprep.mubr.bf16.mxu0 0
      %7398 = vmatmul.mubr.bf16.gmra.mrb[0].mxu0 %v7303
      %v7399 = vpop.f32.mrb[0].mxu0
      %v7400 = vpop.f32.mrb[0].mxu0
      %v7401 = vpop.f32.mrb[0].mxu0
      %v7402 = vadd.f32 %v7155, %v7401
      %v7403 = vpop.f32.mrb[0].mxu0
      %7404 = vmatprep.mubr.bf16.mxu0 0
      %7405 = vmatmul.mubr.bf16.gmra.mrb[0].mxu0 %v7306
      %v7406 = vpop.f32.mrb[0].mxu0
      %v7407 = vadd.f32 %v7160, %v7406
      %v7408 = vpop.f32.mrb[0].mxu0
      %v7409 = vpop.f32.mrb[0].mxu0
      %v7410 = vadd.f32 %v7163, %v7409
      %v7411 = vpop.f32.mrb[0].mxu0
      %7412 = vmatprep.mubr.bf16.mxu0 0
      %7413 = vmatmul.mubr.bf16.gmra.mrb[0].mxu0 %v7309
      %v7414 = vpop.f32.mrb[0].mxu0
      %v7415 = vadd.f32 %v7168, %v7414
      %v7416 = vpop.f32.mrb[0].mxu0
      %v7417 = vpop.f32.mrb[0].mxu0
      %v7418 = vpop.f32.mrb[0].mxu0
      %7419 = vmatprep.mubr.bf16.mxu0 0
      %7420 = vmatmul.mubr.bf16.gmra.mrb[0].mxu0 %v7312
      %v7421 = vpop.f32.mrb[0].mxu0
      %v7422 = vpop.f32.mrb[0].mxu0
      %v7423 = vpop.f32.mrb[0].mxu0
      %v7424 = vadd.f32 %v7177, %v7423
      %v7425 = vpop.f32.mrb[0].mxu0
      %7426 = vmatprep.mubr.bf16.mxu0 0
      %7427 = vmatmul.mubr.bf16.gmra.mrb[0].mxu0 %v7315
      %v7428 = vpop.f32.mrb[0].mxu0
      %v7429 = vadd.f32 %v7182, %v7428
      %v7430 = vpop.f32.mrb[0].mxu0
      %v7431 = vpop.f32.mrb[0].mxu0
      %v7432 = vadd.f32 %v7185, %v7431
      %v7433 = vpop.f32.mrb[0].mxu0
      %7434 = vmatprep.mubr.bf16.mxu0 0
      %7435 = vmatmul.mubr.bf16.gmra.mrb[0].mxu0 %v7318
      %v7436 = vpop.f32.mrb[0].mxu0
      %v7437 = vadd.f32 %v7190, %v7436
      %v7438 = vpop.f32.mrb[0].mxu0
      %v7439 = vpop.f32.mrb[0].mxu0
      %v7440 = vpop.f32.mrb[0].mxu0
      %7441 = vmatprep.mubr.bf16.mxu0 0
      %7442 = vmatmul.mubr.bf16.gmra.mrb[0].mxu0 %v7321
      %v7443 = vpop.f32.mrb[0].mxu0
      %v7444 = vpop.f32.mrb[0].mxu0
      %v7445 = vpop.f32.mrb[0].mxu0
      %v7446 = vadd.f32 %v7199, %v7445
      %v7447 = vpop.f32.mrb[0].mxu0
      %7448 = vmatprep.mubr.bf16.mxu0 0
      %7449 = vmatmul.mubr.bf16.gmra.mrb[0].mxu0 %v7324
      %v7450 = vpop.f32.mrb[0].mxu0
      %v7451 = vadd.f32 %v7204, %v7450
      %v7452 = vpop.f32.mrb[0].mxu0
      %v7453 = vpop.f32.mrb[0].mxu0
      %v7454 = vadd.f32 %v7207, %v7453
      %v7455 = vpop.f32.mrb[0].mxu0
      %7456 = vmatprep.mubr.bf16.mxu0 0
      %7457 = vmatmul.mubr.bf16.gmra.mrb[0].mxu0 %v7327
      %v7458 = vpop.f32.mrb[0].mxu0
      %v7459 = vadd.f32 %v7212, %v7458
      %v7460 = vpop.f32.mrb[0].mxu0
      %v7461 = vpop.f32.mrb[0].mxu0
      %v7462 = vpop.f32.mrb[0].mxu0
      %7463 = vmatprep.mubr.bf16.mxu0 0
      %7464 = vmatmul.mubr.bf16.gmra.mrb[0].mxu0 %v7330
      %v7465 = vpop.f32.mrb[0].mxu0
      %v7466 = vpop.f32.mrb[0].mxu0
      %v7467 = vpop.f32.mrb[0].mxu0
      %v7468 = vadd.f32 %v7221, %v7467
      %v7469 = vpop.f32.mrb[0].mxu0
      %7470 = vmatprep.mubr.bf16.mxu0 0
      %7471 = vmatmul.mubr.bf16.gmra.mrb[0].mxu0 %v7333
      %v7472 = vpop.f32.mrb[0].mxu0
      %v7473 = vadd.f32 %v7226, %v7472
      %v7474 = vpop.f32.mrb[0].mxu0
      %v7475 = vpop.f32.mrb[0].mxu0
      %v7476 = vadd.f32 %v7229, %v7475
      %v7477 = vpop.f32.mrb[0].mxu0
      %7478 = vmatprep.mubr.bf16.mxu0 0
      %7479 = vmatmul.mubr.bf16.gmra.mrb[0].mxu0 %v7336
      %v7480 = vpop.f32.mrb[0].mxu0
      %v7481 = vadd.f32 %v7234, %v7480
      %v7482 = vpop.f32.mrb[0].mxu0
      %v7483 = vpop.f32.mrb[0].mxu0
      %v7484 = vpop.f32.mrb[0].mxu0
      %7485 = vmatprep.mubr.bf16.mxu0 0
      %7486 = vmatmul.mubr.bf16.gmra.mrb[0].mxu0 %v7339
      %v7487 = vpop.f32.mrb[0].mxu0
      %v7488 = vpop.f32.mrb[0].mxu0
      %v7489 = vpop.f32.mrb[0].mxu0
      %v7490 = vpop.f32.mrb[0].mxu0
      %7491 = vmatprep.mubr.bf16.mxu0 0
      %7492 = vmatmul.mubr.bf16.gmra.mrb[0].mxu0 %v7342
      %v7493 = vpop.f32.mrb[0].mxu0
      %v7494 = vpop.f32.mrb[0].mxu0
      %v7495 = vpop.f32.mrb[0].mxu0
      %v7496 = vpop.f32.mrb[0].mxu0
      %7497 = vmatprep.mubr.bf16.mxu0 0
      %7498 = vmatmul.mubr.bf16.gmra.mrb[0].mxu0 %v7345
      %v7499 = vpop.f32.mrb[0].mxu0
      %v7500 = vpop.f32.mrb[0].mxu0
      %v7501 = vpop.f32.mrb[0].mxu0
      %v7502 = vpop.f32.mrb[0].mxu0
      %7503 = vdwg.mxu0
      %v7504 = vld [vmem:[#allocation3 + $0xa8] sm:$0xff]
      %s7505 = scalar_lea.vmem %s10, 240
      %v7506 = vld [vmem:[%s7505] sm:$0xf]
      %v7507 = vld [vmem:[%s7505 + $0x4] sm:$0xf]
      %v7508 = vld [vmem:[%s7505 + $0x8] sm:$0xf]
      %v7509 = vld [vmem:[%s7505 + $0xc] sm:$0xf]
      %v7510 = vld [vmem:[%s7505 + $0x10] sm:$0xf]
      %v7511 = vld [vmem:[%s7505 + $0x14] sm:$0xf]
      %v7512 = vld [vmem:[%s7505 + $0x18] sm:$0xf]
      %v7513 = vld [vmem:[%s7505 + $0x1c] sm:$0xf]
      %v7514 = vld [vmem:[%s7505 + $0x20] sm:$0xf]
      %v7515 = vld [vmem:[%s7505 + $0x24] sm:$0xf]
      %v7516 = vld [vmem:[%s7505 + $0x28] sm:$0xf]
      %v7517 = vld [vmem:[%s7505 + $0x2c] sm:$0xf]
      %v7530 = vunpack.c.l.b16 %v7506
      %v7531 = vunpack.c.l.b16 %v7507
      %v7532 = vunpack.c.l.b16 %v7508
      %v7533 = vunpack.c.l.b16 %v7509
      %v7534 = vunpack.c.l.b16 %v7510
      %v7535 = vunpack.c.l.b16 %v7511
      %v7536 = vunpack.c.l.b16 %v7512
      %v7537 = vunpack.c.l.b16 %v7513
      %v7538 = vunpack.c.l.b16 %v7514
      %v7539 = vunpack.c.l.b16 %v7515
      %v7540 = vunpack.c.l.b16 %v7516
      %v7541 = vunpack.c.l.b16 %v7517
      %v7542 = vpack.c.b16 %v7531, %v7530
      %v7543 = vpack.c.b16 %v7533, %v7532
      %v7544 = vpack.c.b16 %v7535, %v7534
      %v7545 = vpack.c.b16 %v7537, %v7536
      %v7546 = vpack.c.b16 %v7539, %v7538
      %v7547 = vpack.c.b16 %v7541, %v7540
      %v7555 = vsel %vm595, %v7504, 0
      %7557 = vmatprep.subr.bf16.mxu0 0
      %7558 = vmatpush1.bf16.msra.mxu0 %v7542
      %7559 = vmatprep.subr.bf16.mxu0 0
      %7560 = vmatpush1.bf16.msra.mxu0 %v7543
      %7561 = vmatprep.subr.bf16.mxu0 0
      %7562 = vmatpush1.bf16.msra.mxu0 %v7544
      %7563 = vmatprep.subr.bf16.mxu0 0
      %7564 = vmatpush1.bf16.msra.mxu0 %v7545
      %7565 = vmatprep.subr.bf16.mxu0 0
      %7566 = vmatpush1.bf16.msra.mxu0 %v7546
      %7567 = vmatprep.subr.bf16.mxu0 0
      %7568 = vmatpush1.bf16.msra.mxu0 %v7547
      %7569 = vmatprep.subr.bf16.mxu0 0
      %7570 = vmatpush1.bf16.msra.mxu0 0
      %7571 = vmatprep.subr.bf16.mxu0 0
      %7572 = vmatpush1.bf16.msra.mxu0 0
      %7573 = vmatprep.subr.bf16.mxu0 0
      %7574 = vmatpush1.bf16.msra.mxu0 0
      %7575 = vmatprep.subr.bf16.mxu0 0
      %7576 = vmatpush1.bf16.msra.mxu0 0
      %7577 = vmatprep.subr.bf16.mxu0 0
      %7578 = vmatpush1.bf16.msra.mxu0 0
      %7579 = vmatprep.subr.bf16.mxu0 0
      %7580 = vmatpush1.bf16.msra.mxu0 0
      %7581 = vmatprep.subr.bf16.mxu0 0
      %7582 = vmatpush1.bf16.msra.mxu0 0
      %7583 = vmatprep.subr.bf16.mxu0 0
      %7584 = vmatpush1.bf16.msra.mxu0 0
      %7585 = vmatprep.subr.bf16.mxu0 0
      %7586 = vmatpush1.bf16.msra.mxu0 0
      %7587 = vmatprep.subr.bf16.mxu0 0
      %7588 = vmatpush1.bf16.msra.mxu0 0
      %7589 = vmatprep.mubr.bf16.mxu0 0
      %7590 = vmatmul.mubr.bf16.gmra.mrb[0].mxu0 %v7297
      %v7591 = vpop.f32.mrb[0].mxu0
      %v7592 = vpop.f32.mrb[0].mxu0
      %v7593 = vpop.f32.mrb[0].mxu0
      %v7594 = vpop.f32.mrb[0].mxu0
      %7595 = vmatprep.mubr.bf16.mxu0 0
      %7596 = vmatmul.mubr.bf16.gmra.mrb[0].mxu0 %v7300
      %v7597 = vpop.f32.mrb[0].mxu0
      %v7598 = vpop.f32.mrb[0].mxu0
      %v7599 = vpop.f32.mrb[0].mxu0
      %v7600 = vpop.f32.mrb[0].mxu0
      %7601 = vmatprep.mubr.bf16.mxu0 0
      %7602 = vmatmul.mubr.bf16.gmra.mrb[0].mxu0 %v7303
      %v7603 = vpop.f32.mrb[0].mxu0
      %v7604 = vpop.f32.mrb[0].mxu0
      %v7605 = vpop.f32.mrb[0].mxu0
      %v7606 = vpop.f32.mrb[0].mxu0
      %7607 = vmatprep.mubr.bf16.mxu0 0
      %7608 = vmatmul.mubr.bf16.gmra.mrb[0].mxu0 %v7306
      %v7609 = vpop.f32.mrb[0].mxu0
      %v7610 = vpop.f32.mrb[0].mxu0
      %v7611 = vpop.f32.mrb[0].mxu0
      %v7612 = vadd.f32 0.0, %v7611
      %v7613 = vpop.f32.mrb[0].mxu0
      %7614 = vmatprep.mubr.bf16.mxu0 0
      %7615 = vmatmul.mubr.bf16.gmra.mrb[0].mxu0 %v7309
      %v7616 = vpop.f32.mrb[0].mxu0
      %v7617 = vadd.f32 0.0, %v7616
      %v7618 = vpop.f32.mrb[0].mxu0
      %v7619 = vpop.f32.mrb[0].mxu0
      %v7620 = vadd.f32 0.0, %v7619
      %v7621 = vpop.f32.mrb[0].mxu0
      %7622 = vmatprep.mubr.bf16.mxu0 0
      %7623 = vmatmul.mubr.bf16.gmra.mrb[0].mxu0 %v7312
      %v7624 = vpop.f32.mrb[0].mxu0
      %v7625 = vadd.f32 0.0, %v7624
      %v7626 = vpop.f32.mrb[0].mxu0
      %v7627 = vpop.f32.mrb[0].mxu0
      %v7628 = vpop.f32.mrb[0].mxu0
      %7629 = vmatprep.mubr.bf16.mxu0 0
      %7630 = vmatmul.mubr.bf16.gmra.mrb[0].mxu0 %v7315
      %v7631 = vpop.f32.mrb[0].mxu0
      %v7632 = vpop.f32.mrb[0].mxu0
      %v7633 = vpop.f32.mrb[0].mxu0
      %v7634 = vadd.f32 0.0, %v7633
      %v7635 = vpop.f32.mrb[0].mxu0
      %7636 = vmatprep.mubr.bf16.mxu0 0
      %7637 = vmatmul.mubr.bf16.gmra.mrb[0].mxu0 %v7318
      %v7638 = vpop.f32.mrb[0].mxu0
      %v7639 = vadd.f32 0.0, %v7638
      %v7640 = vpop.f32.mrb[0].mxu0
      %v7641 = vpop.f32.mrb[0].mxu0
      %v7642 = vadd.f32 0.0, %v7641
      %v7643 = vpop.f32.mrb[0].mxu0
      %7644 = vmatprep.mubr.bf16.mxu0 0
      %7645 = vmatmul.mubr.bf16.gmra.mrb[0].mxu0 %v7321
      %v7646 = vpop.f32.mrb[0].mxu0
      %v7647 = vadd.f32 0.0, %v7646
      %v7648 = vpop.f32.mrb[0].mxu0
      %v7649 = vpop.f32.mrb[0].mxu0
      %v7650 = vpop.f32.mrb[0].mxu0
      %7651 = vmatprep.mubr.bf16.mxu0 0
      %7652 = vmatmul.mubr.bf16.gmra.mrb[0].mxu0 %v7324
      %v7653 = vpop.f32.mrb[0].mxu0
      %v7654 = vpop.f32.mrb[0].mxu0
      %v7655 = vpop.f32.mrb[0].mxu0
      %v7656 = vadd.f32 0.0, %v7655
      %v7657 = vpop.f32.mrb[0].mxu0
      %7658 = vmatprep.mubr.bf16.mxu0 0
      %7659 = vmatmul.mubr.bf16.gmra.mrb[0].mxu0 %v7327
      %v7660 = vpop.f32.mrb[0].mxu0
      %v7661 = vadd.f32 0.0, %v7660
      %v7662 = vpop.f32.mrb[0].mxu0
      %v7663 = vpop.f32.mrb[0].mxu0
      %v7664 = vadd.f32 0.0, %v7663
      %v7665 = vpop.f32.mrb[0].mxu0
      %7666 = vmatprep.mubr.bf16.mxu0 0
      %7667 = vmatmul.mubr.bf16.gmra.mrb[0].mxu0 %v7330
      %v7668 = vpop.f32.mrb[0].mxu0
      %v7669 = vadd.f32 0.0, %v7668
      %v7670 = vpop.f32.mrb[0].mxu0
      %v7671 = vpop.f32.mrb[0].mxu0
      %v7672 = vpop.f32.mrb[0].mxu0
      %7673 = vmatprep.mubr.bf16.mxu0 0
      %7674 = vmatmul.mubr.bf16.gmra.mrb[0].mxu0 %v7333
      %v7675 = vpop.f32.mrb[0].mxu0
      %v7676 = vpop.f32.mrb[0].mxu0
      %v7677 = vpop.f32.mrb[0].mxu0
      %v7678 = vadd.f32 0.0, %v7677
      %v7679 = vpop.f32.mrb[0].mxu0
      %7680 = vmatprep.mubr.bf16.mxu0 0
      %7681 = vmatmul.mubr.bf16.gmra.mrb[0].mxu0 %v7336
      %v7682 = vpop.f32.mrb[0].mxu0
      %v7683 = vadd.f32 0.0, %v7682
      %v7684 = vpop.f32.mrb[0].mxu0
      %v7685 = vpop.f32.mrb[0].mxu0
      %v7686 = vadd.f32 0.0, %v7685
      %v7687 = vpop.f32.mrb[0].mxu0
      %7688 = vmatprep.mubr.bf16.mxu0 0
      %7689 = vmatmul.mubr.bf16.gmra.mrb[0].mxu0 %v7339
      %v7690 = vpop.f32.mrb[0].mxu0
      %v7691 = vadd.f32 0.0, %v7690
      %v7692 = vpop.f32.mrb[0].mxu0
      %v7693 = vpop.f32.mrb[0].mxu0
      %v7694 = vpop.f32.mrb[0].mxu0
      %7695 = vmatprep.mubr.bf16.mxu0 0
      %7696 = vmatmul.mubr.bf16.gmra.mrb[0].mxu0 %v7342
      %v7697 = vpop.f32.mrb[0].mxu0
      %v7698 = vpop.f32.mrb[0].mxu0
      %v7699 = vpop.f32.mrb[0].mxu0
      %v7700 = vpop.f32.mrb[0].mxu0
      %7701 = vmatprep.mubr.bf16.mxu0 0
      %7702 = vmatmul.mubr.bf16.gmra.mrb[0].mxu0 %v7345
      %v7703 = vpop.f32.mrb[0].mxu0
      %v7704 = vpop.f32.mrb[0].mxu0
      %v7705 = vpop.f32.mrb[0].mxu0
      %v7706 = vpop.f32.mrb[0].mxu0
      %7707 = vmatprep.mubr.bf16.mxu0 0
      %7708 = vmatmul.mubr.bf16.gmra.mrb[0].mxu0 %v7555
      %v7709 = vpop.f32.mrb[0].mxu0
      %v7710 = vpop.f32.mrb[0].mxu0
      %v7711 = vpop.f32.mrb[0].mxu0
      %v7712 = vpop.f32.mrb[0].mxu0
      %7713 = vdwg.mxu0
      %v7714 = vadd.f32 %v7402, %v7612
      %v7715 = vadd.f32 %v7407, %v7617
      %v7716 = vadd.f32 %v7410, %v7620
      %v7717 = vadd.f32 %v7415, %v7625
      %v7718 = vadd.f32 %v7424, %v7634
      %v7719 = vadd.f32 %v7429, %v7639
      %v7720 = vadd.f32 %v7432, %v7642
      %v7721 = vadd.f32 %v7437, %v7647
      %v7722 = vadd.f32 %v7446, %v7656
      %v7723 = vadd.f32 %v7451, %v7661
      %v7724 = vadd.f32 %v7454, %v7664
      %v7725 = vadd.f32 %v7459, %v7669
      %v7726 = vadd.f32 %v7468, %v7678
      %v7727 = vadd.f32 %v7473, %v7683
      %v7728 = vadd.f32 %v7476, %v7686
      %v7729 = vadd.f32 %v7481, %v7691
      %v7730 = vld [vmem:[#allocation3 + $0x30] sm:$0xff]
      %v7731 = vld [vmem:[#allocation3 + $0x38] sm:$0xff]
      %v7732 = vld [vmem:[#allocation3 + $0x40] sm:$0xff]
      %v7733 = vld [vmem:[#allocation3 + $0x48] sm:$0xff]
      %v7734 = vld [vmem:[#allocation3 + $0x50] sm:$0xff]
      %v7735 = vld [vmem:[#allocation3 + $0x58] sm:$0xff]
      %v7736 = vld [vmem:[#allocation3 + $0x60] sm:$0xff]
      %v7737 = vld [vmem:[#allocation3 + $0x68] sm:$0xff]
      %v7738 = vld [vmem:[#allocation3 + $0x70] sm:$0xff]
      %v7739 = vld [vmem:[#allocation3 + $0x78] sm:$0xff]
      %v7740 = vld [vmem:[#allocation3 + $0x80] sm:$0xff]
      %v7741 = vld [vmem:[#allocation3 + $0x88] sm:$0xff]
      %v7742 = vld [vmem:[#allocation3 + $0x90] sm:$0xff]
      %v7743 = vld [vmem:[#allocation3 + $0x98] sm:$0xff]
      %v7744 = vld [vmem:[#allocation3 + $0xa0] sm:$0xff]
      %v7745 = vld [vmem:[#allocation3 + $0xa8] sm:$0xff]
      %v7746 = vld [vmem:[#allocation3 + $0xb0] sm:$0xff]
      %v7747 = vld [vmem:[#allocation3 + $0xb8] sm:$0xff]
      %s7748 = scalar_lea.vmem %s10, 288
      %v7749 = vld [vmem:[%s7748] sm:$0xf]
      %v7750 = vld [vmem:[%s7748 + $0x4] sm:$0xf]
      %v7751 = vld [vmem:[%s7748 + $0x8] sm:$0xf]
      %v7752 = vld [vmem:[%s7748 + $0xc] sm:$0xf]
      %v7753 = vld [vmem:[%s7748 + $0x10] sm:$0xf]
      %v7754 = vld [vmem:[%s7748 + $0x14] sm:$0xf]
      %v7755 = vld [vmem:[%s7748 + $0x18] sm:$0xf]
      %v7756 = vld [vmem:[%s7748 + $0x1c] sm:$0xf]
      %v7757 = vld [vmem:[%s7748 + $0x20] sm:$0xf]
      %v7758 = vld [vmem:[%s7748 + $0x24] sm:$0xf]
      %v7759 = vld [vmem:[%s7748 + $0x28] sm:$0xf]
      %v7760 = vld [vmem:[%s7748 + $0x2c] sm:$0xf]
      %v7761 = vld [vmem:[#allocation3 + $0x30] sm:$0xf0]
      %v7762 = vld [vmem:[#allocation3 + $0xc0] sm:$0xf]
      %s7763 = scalar_lea.vmem %s10, 336
      %v7764 = vld [vmem:[%s7763] sm:$0xf]
      %v7765 = vld [vmem:[%s7763 + $0x4] sm:$0xf]
      %v7766 = vld [vmem:[%s7763 + $0x8] sm:$0xf]
      %v7767 = vld [vmem:[%s7763 + $0xc] sm:$0xf]
      %v7768 = vld [vmem:[%s7763 + $0x10] sm:$0xf]
      %v7769 = vld [vmem:[%s7763 + $0x14] sm:$0xf]
      %v7770 = vld [vmem:[%s7763 + $0x18] sm:$0xf]
      %v7771 = vld [vmem:[%s7763 + $0x1c] sm:$0xf]
      %v7772 = vld [vmem:[%s7763 + $0x20] sm:$0xf]
      %v7773 = vld [vmem:[%s7763 + $0x24] sm:$0xf]
      %v7774 = vld [vmem:[%s7763 + $0x28] sm:$0xf]
      %v7775 = vld [vmem:[%s7763 + $0x2c] sm:$0xf]
      %v7795 = vrot.slane %v7761, 4
      %v7796 = vrot.slane %v7731, 4
      %v7797 = vsel %vm1862, %v7795, %v7796
      %v7798 = vrot.slane %v7732, 4
      %v7799 = vsel %vm1862, %v7796, %v7798
      %v7800 = vrot.slane %v7733, 4
      %v7801 = vsel %vm1862, %v7798, %v7800
      %v7802 = vrot.slane %v7734, 4
      %v7803 = vsel %vm1862, %v7800, %v7802
      %v7804 = vrot.slane %v7735, 4
      %v7805 = vsel %vm1862, %v7802, %v7804
      %v7806 = vrot.slane %v7736, 4
      %v7807 = vsel %vm1862, %v7804, %v7806
      %v7808 = vrot.slane %v7737, 4
      %v7809 = vsel %vm1862, %v7806, %v7808
      %v7810 = vrot.slane %v7738, 4
      %v7811 = vsel %vm1862, %v7808, %v7810
      %v7812 = vrot.slane %v7739, 4
      %v7813 = vsel %vm1862, %v7810, %v7812
      %v7814 = vrot.slane %v7740, 4
      %v7815 = vsel %vm1862, %v7812, %v7814
      %v7816 = vrot.slane %v7741, 4
      %v7817 = vsel %vm1862, %v7814, %v7816
      %v7818 = vrot.slane %v7742, 4
      %v7819 = vsel %vm1862, %v7816, %v7818
      %v7820 = vrot.slane %v7743, 4
      %v7821 = vsel %vm1862, %v7818, %v7820
      %v7822 = vrot.slane %v7744, 4
      %v7823 = vsel %vm1862, %v7820, %v7822
      %v7824 = vrot.slane %v7745, 4
      %v7825 = vsel %vm1862, %v7822, %v7824
      %v7826 = vrot.slane %v7746, 4
      %v7827 = vsel %vm1862, %v7824, %v7826
      %v7828 = vrot.slane %v7747, 4
      %v7829 = vsel %vm1862, %v7826, %v7828
      %v7830 = vrot.slane %v7762, 4
      %v7831 = vsel %vm1862, %v7828, %v7830
      %v7844 = vunpack.c.l.b16 %v7764
      %v7845 = vunpack.c.l.b16 %v7765
      %v7846 = vunpack.c.l.b16 %v7766
      %v7847 = vunpack.c.l.b16 %v7767
      %v7848 = vunpack.c.l.b16 %v7768
      %v7849 = vunpack.c.l.b16 %v7769
      %v7850 = vunpack.c.l.b16 %v7770
      %v7851 = vunpack.c.l.b16 %v7771
      %v7852 = vunpack.c.l.b16 %v7772
      %v7853 = vunpack.c.l.b16 %v7773
      %v7854 = vunpack.c.l.b16 %v7774
      %v7855 = vunpack.c.l.b16 %v7775
      %v7856 = vpack.c.b16 %v7845, %v7844
      %v7857 = vpack.c.b16 %v7847, %v7846
      %v7858 = vpack.c.b16 %v7849, %v7848
      %v7859 = vpack.c.b16 %v7851, %v7850
      %v7860 = vpack.c.b16 %v7853, %v7852
      %v7861 = vpack.c.b16 %v7855, %v7854
      %v7869 = vsel %vm595, %v7797, 0
      %v7872 = vsel %vm595, %v7799, 0
      %v7875 = vsel %vm595, %v7801, 0
      %v7878 = vsel %vm595, %v7803, 0
      %v7881 = vsel %vm595, %v7805, 0
      %v7884 = vsel %vm595, %v7807, 0
      %v7887 = vsel %vm595, %v7809, 0
      %v7890 = vsel %vm595, %v7811, 0
      %v7893 = vsel %vm595, %v7813, 0
      %v7896 = vsel %vm595, %v7815, 0
      %v7899 = vsel %vm595, %v7817, 0
      %v7902 = vsel %vm595, %v7819, 0
      %v7905 = vsel %vm595, %v7821, 0
      %v7908 = vsel %vm595, %v7823, 0
      %v7911 = vsel %vm595, %v7825, 0
      %v7914 = vsel %vm595, %v7827, 0
      %v7917 = vsel %vm595, %v7829, 0
      %v7920 = vsel %vm595, %v7831, 0
      %7922 = vmatprep.subr.bf16.mxu0 0
      %7923 = vmatpush1.bf16.msra.mxu0 %v7856
      %7924 = vmatprep.subr.bf16.mxu0 0
      %7925 = vmatpush1.bf16.msra.mxu0 %v7857
      %7926 = vmatprep.subr.bf16.mxu0 0
      %7927 = vmatpush1.bf16.msra.mxu0 %v7858
      %7928 = vmatprep.subr.bf16.mxu0 0
      %7929 = vmatpush1.bf16.msra.mxu0 %v7859
      %7930 = vmatprep.subr.bf16.mxu0 0
      %7931 = vmatpush1.bf16.msra.mxu0 %v7860
      %7932 = vmatprep.subr.bf16.mxu0 0
      %7933 = vmatpush1.bf16.msra.mxu0 %v7861
      %7934 = vmatprep.subr.bf16.mxu0 0
      %7935 = vmatpush1.bf16.msra.mxu0 0
      %7936 = vmatprep.subr.bf16.mxu0 0
      %7937 = vmatpush1.bf16.msra.mxu0 0
      %7938 = vmatprep.subr.bf16.mxu0 0
      %7939 = vmatpush1.bf16.msra.mxu0 0
      %7940 = vmatprep.subr.bf16.mxu0 0
      %7941 = vmatpush1.bf16.msra.mxu0 0
      %7942 = vmatprep.subr.bf16.mxu0 0
      %7943 = vmatpush1.bf16.msra.mxu0 0
      %7944 = vmatprep.subr.bf16.mxu0 0
      %7945 = vmatpush1.bf16.msra.mxu0 0
      %7946 = vmatprep.subr.bf16.mxu0 0
      %7947 = vmatpush1.bf16.msra.mxu0 0
      %7948 = vmatprep.subr.bf16.mxu0 0
      %7949 = vmatpush1.bf16.msra.mxu0 0
      %7950 = vmatprep.subr.bf16.mxu0 0
      %7951 = vmatpush1.bf16.msra.mxu0 0
      %7952 = vmatprep.subr.bf16.mxu0 0
      %7953 = vmatpush1.bf16.msra.mxu0 0
      %7954 = vmatprep.mubr.bf16.mxu0 0
      %7955 = vmatmul.mubr.bf16.gmra.mrb[0].mxu0 %v7869
      %v7956 = vpop.f32.mrb[0].mxu0
      %v7957 = vpop.f32.mrb[0].mxu0
      %v7958 = vpop.f32.mrb[0].mxu0
      %v7959 = vpop.f32.mrb[0].mxu0
      %7960 = vmatprep.mubr.bf16.mxu0 0
      %7961 = vmatmul.mubr.bf16.gmra.mrb[0].mxu0 %v7872
      %v7962 = vpop.f32.mrb[0].mxu0
      %v7963 = vpop.f32.mrb[0].mxu0
      %v7964 = vpop.f32.mrb[0].mxu0
      %v7965 = vpop.f32.mrb[0].mxu0
      %7966 = vmatprep.mubr.bf16.mxu0 0
      %7967 = vmatmul.mubr.bf16.gmra.mrb[0].mxu0 %v7875
      %v7968 = vpop.f32.mrb[0].mxu0
      %v7969 = vpop.f32.mrb[0].mxu0
      %v7970 = vpop.f32.mrb[0].mxu0
      %v7971 = vpop.f32.mrb[0].mxu0
      %7972 = vmatprep.mubr.bf16.mxu0 0
      %7973 = vmatmul.mubr.bf16.gmra.mrb[0].mxu0 %v7878
      %v7974 = vpop.f32.mrb[0].mxu0
      %v7975 = vpop.f32.mrb[0].mxu0
      %v7976 = vpop.f32.mrb[0].mxu0
      %v7977 = vadd.f32 0.0, %v7976
      %v7978 = vpop.f32.mrb[0].mxu0
      %7979 = vmatprep.mubr.bf16.mxu0 0
      %7980 = vmatmul.mubr.bf16.gmra.mrb[0].mxu0 %v7881
      %v7981 = vpop.f32.mrb[0].mxu0
      %v7982 = vadd.f32 0.0, %v7981
      %v7983 = vpop.f32.mrb[0].mxu0
      %v7984 = vpop.f32.mrb[0].mxu0
      %v7985 = vadd.f32 0.0, %v7984
      %v7986 = vpop.f32.mrb[0].mxu0
      %7987 = vmatprep.mubr.bf16.mxu0 0
      %7988 = vmatmul.mubr.bf16.gmra.mrb[0].mxu0 %v7884
      %v7989 = vpop.f32.mrb[0].mxu0
      %v7990 = vadd.f32 0.0, %v7989
      %v7991 = vpop.f32.mrb[0].mxu0
      %v7992 = vpop.f32.mrb[0].mxu0
      %v7993 = vpop.f32.mrb[0].mxu0
      %7994 = vmatprep.mubr.bf16.mxu0 0
      %7995 = vmatmul.mubr.bf16.gmra.mrb[0].mxu0 %v7887
      %v7996 = vpop.f32.mrb[0].mxu0
      %v7997 = vpop.f32.mrb[0].mxu0
      %v7998 = vpop.f32.mrb[0].mxu0
      %v7999 = vadd.f32 0.0, %v7998
      %v8000 = vpop.f32.mrb[0].mxu0
      %8001 = vmatprep.mubr.bf16.mxu0 0
      %8002 = vmatmul.mubr.bf16.gmra.mrb[0].mxu0 %v7890
      %v8003 = vpop.f32.mrb[0].mxu0
      %v8004 = vadd.f32 0.0, %v8003
      %v8005 = vpop.f32.mrb[0].mxu0
      %v8006 = vpop.f32.mrb[0].mxu0
      %v8007 = vadd.f32 0.0, %v8006
      %v8008 = vpop.f32.mrb[0].mxu0
      %8009 = vmatprep.mubr.bf16.mxu0 0
      %8010 = vmatmul.mubr.bf16.gmra.mrb[0].mxu0 %v7893
      %v8011 = vpop.f32.mrb[0].mxu0
      %v8012 = vadd.f32 0.0, %v8011
      %v8013 = vpop.f32.mrb[0].mxu0
      %v8014 = vpop.f32.mrb[0].mxu0
      %v8015 = vpop.f32.mrb[0].mxu0
      %8016 = vmatprep.mubr.bf16.mxu0 0
      %8017 = vmatmul.mubr.bf16.gmra.mrb[0].mxu0 %v7896
      %v8018 = vpop.f32.mrb[0].mxu0
      %v8019 = vpop.f32.mrb[0].mxu0
      %v8020 = vpop.f32.mrb[0].mxu0
      %v8021 = vadd.f32 0.0, %v8020
      %v8022 = vpop.f32.mrb[0].mxu0
      %8023 = vmatprep.mubr.bf16.mxu0 0
      %8024 = vmatmul.mubr.bf16.gmra.mrb[0].mxu0 %v7899
      %v8025 = vpop.f32.mrb[0].mxu0
      %v8026 = vadd.f32 0.0, %v8025
      %v8027 = vpop.f32.mrb[0].mxu0
      %v8028 = vpop.f32.mrb[0].mxu0
      %v8029 = vadd.f32 0.0, %v8028
      %v8030 = vpop.f32.mrb[0].mxu0
      %8031 = vmatprep.mubr.bf16.mxu0 0
      %8032 = vmatmul.mubr.bf16.gmra.mrb[0].mxu0 %v7902
      %v8033 = vpop.f32.mrb[0].mxu0
      %v8034 = vadd.f32 0.0, %v8033
      %v8035 = vpop.f32.mrb[0].mxu0
      %v8036 = vpop.f32.mrb[0].mxu0
      %v8037 = vpop.f32.mrb[0].mxu0
      %8038 = vmatprep.mubr.bf16.mxu0 0
      %8039 = vmatmul.mubr.bf16.gmra.mrb[0].mxu0 %v7905
      %v8040 = vpop.f32.mrb[0].mxu0
      %v8041 = vpop.f32.mrb[0].mxu0
      %v8042 = vpop.f32.mrb[0].mxu0
      %v8043 = vadd.f32 0.0, %v8042
      %v8044 = vpop.f32.mrb[0].mxu0
      %8045 = vmatprep.mubr.bf16.mxu0 0
      %8046 = vmatmul.mubr.bf16.gmra.mrb[0].mxu0 %v7908
      %v8047 = vpop.f32.mrb[0].mxu0
      %v8048 = vadd.f32 0.0, %v8047
      %v8049 = vpop.f32.mrb[0].mxu0
      %v8050 = vpop.f32.mrb[0].mxu0
      %v8051 = vadd.f32 0.0, %v8050
      %v8052 = vpop.f32.mrb[0].mxu0
      %8053 = vmatprep.mubr.bf16.mxu0 0
      %8054 = vmatmul.mubr.bf16.gmra.mrb[0].mxu0 %v7911
      %v8055 = vpop.f32.mrb[0].mxu0
      %v8056 = vadd.f32 0.0, %v8055
      %v8057 = vpop.f32.mrb[0].mxu0
      %v8058 = vpop.f32.mrb[0].mxu0
      %v8059 = vpop.f32.mrb[0].mxu0
      %8060 = vmatprep.mubr.bf16.mxu0 0
      %8061 = vmatmul.mubr.bf16.gmra.mrb[0].mxu0 %v7914
      %v8062 = vpop.f32.mrb[0].mxu0
      %v8063 = vpop.f32.mrb[0].mxu0
      %v8064 = vpop.f32.mrb[0].mxu0
      %v8065 = vpop.f32.mrb[0].mxu0
      %8066 = vmatprep.mubr.bf16.mxu0 0
      %8067 = vmatmul.mubr.bf16.gmra.mrb[0].mxu0 %v7917
      %v8068 = vpop.f32.mrb[0].mxu0
      %v8069 = vpop.f32.mrb[0].mxu0
      %v8070 = vpop.f32.mrb[0].mxu0
      %v8071 = vpop.f32.mrb[0].mxu0
      %8072 = vmatprep.mubr.bf16.mxu0 0
      %8073 = vmatmul.mubr.bf16.gmra.mrb[0].mxu0 %v7920
      %v8074 = vpop.f32.mrb[0].mxu0
      %v8075 = vpop.f32.mrb[0].mxu0
      %v8076 = vpop.f32.mrb[0].mxu0
      %v8077 = vpop.f32.mrb[0].mxu0
      %8078 = vdwg.mxu0
      %v8091 = vunpack.c.l.b16 %v7749
      %v8092 = vunpack.c.l.b16 %v7750
      %v8093 = vunpack.c.l.b16 %v7751
      %v8094 = vunpack.c.l.b16 %v7752
      %v8095 = vunpack.c.l.b16 %v7753
      %v8096 = vunpack.c.l.b16 %v7754
      %v8097 = vunpack.c.l.b16 %v7755
      %v8098 = vunpack.c.l.b16 %v7756
      %v8099 = vunpack.c.l.b16 %v7757
      %v8100 = vunpack.c.l.b16 %v7758
      %v8101 = vunpack.c.l.b16 %v7759
      %v8102 = vunpack.c.l.b16 %v7760
      %v8103 = vpack.c.b16 %v8092, %v8091
      %v8104 = vpack.c.b16 %v8094, %v8093
      %v8105 = vpack.c.b16 %v8096, %v8095
      %v8106 = vpack.c.b16 %v8098, %v8097
      %v8107 = vpack.c.b16 %v8100, %v8099
      %v8108 = vpack.c.b16 %v8102, %v8101
      %v8116 = vsel %vm595, %v7730, 0
      %v8119 = vsel %vm595, %v7731, 0
      %v8122 = vsel %vm595, %v7732, 0
      %v8125 = vsel %vm595, %v7733, 0
      %v8128 = vsel %vm595, %v7734, 0
      %v8131 = vsel %vm595, %v7735, 0
      %v8134 = vsel %vm595, %v7736, 0
      %v8137 = vsel %vm595, %v7737, 0
      %v8140 = vsel %vm595, %v7738, 0
      %v8143 = vsel %vm595, %v7739, 0
      %v8146 = vsel %vm595, %v7740, 0
      %v8149 = vsel %vm595, %v7741, 0
      %v8152 = vsel %vm595, %v7742, 0
      %v8155 = vsel %vm595, %v7743, 0
      %v8158 = vsel %vm595, %v7744, 0
      %v8161 = vsel %vm595, %v7745, 0
      %v8164 = vsel %vm595, %v7746, 0
      %v8167 = vsel %vm595, %v7747, 0
      %8169 = vmatprep.subr.bf16.mxu0 0
      %8170 = vmatpush1.bf16.msra.mxu0 %v8103
      %8171 = vmatprep.subr.bf16.mxu0 0
      %8172 = vmatpush1.bf16.msra.mxu0 %v8104
      %8173 = vmatprep.subr.bf16.mxu0 0
      %8174 = vmatpush1.bf16.msra.mxu0 %v8105
      %8175 = vmatprep.subr.bf16.mxu0 0
      %8176 = vmatpush1.bf16.msra.mxu0 %v8106
      %8177 = vmatprep.subr.bf16.mxu0 0
      %8178 = vmatpush1.bf16.msra.mxu0 %v8107
      %8179 = vmatprep.subr.bf16.mxu0 0
      %8180 = vmatpush1.bf16.msra.mxu0 %v8108
      %8181 = vmatprep.subr.bf16.mxu0 0
      %8182 = vmatpush1.bf16.msra.mxu0 0
      %8183 = vmatprep.subr.bf16.mxu0 0
      %8184 = vmatpush1.bf16.msra.mxu0 0
      %8185 = vmatprep.subr.bf16.mxu0 0
      %8186 = vmatpush1.bf16.msra.mxu0 0
      %8187 = vmatprep.subr.bf16.mxu0 0
      %8188 = vmatpush1.bf16.msra.mxu0 0
      %8189 = vmatprep.subr.bf16.mxu0 0
      %8190 = vmatpush1.bf16.msra.mxu0 0
      %8191 = vmatprep.subr.bf16.mxu0 0
      %8192 = vmatpush1.bf16.msra.mxu0 0
      %8193 = vmatprep.subr.bf16.mxu0 0
      %8194 = vmatpush1.bf16.msra.mxu0 0
      %8195 = vmatprep.subr.bf16.mxu0 0
      %8196 = vmatpush1.bf16.msra.mxu0 0
      %8197 = vmatprep.subr.bf16.mxu0 0
      %8198 = vmatpush1.bf16.msra.mxu0 0
      %8199 = vmatprep.subr.bf16.mxu0 0
      %8200 = vmatpush1.bf16.msra.mxu0 0
      %8201 = vmatprep.mubr.bf16.mxu0 0
      %8202 = vmatmul.mubr.bf16.gmra.mrb[0].mxu0 %v8116
      %v8203 = vpop.f32.mrb[0].mxu0
      %v8204 = vpop.f32.mrb[0].mxu0
      %v8205 = vpop.f32.mrb[0].mxu0
      %v8206 = vpop.f32.mrb[0].mxu0
      %8207 = vmatprep.mubr.bf16.mxu0 0
      %8208 = vmatmul.mubr.bf16.gmra.mrb[0].mxu0 %v8119
      %v8209 = vpop.f32.mrb[0].mxu0
      %v8210 = vpop.f32.mrb[0].mxu0
      %v8211 = vpop.f32.mrb[0].mxu0
      %v8212 = vpop.f32.mrb[0].mxu0
      %8213 = vmatprep.mubr.bf16.mxu0 0
      %8214 = vmatmul.mubr.bf16.gmra.mrb[0].mxu0 %v8122
      %v8215 = vpop.f32.mrb[0].mxu0
      %v8216 = vpop.f32.mrb[0].mxu0
      %v8217 = vpop.f32.mrb[0].mxu0
      %v8218 = vpop.f32.mrb[0].mxu0
      %8219 = vmatprep.mubr.bf16.mxu0 0
      %8220 = vmatmul.mubr.bf16.gmra.mrb[0].mxu0 %v8125
      %v8221 = vpop.f32.mrb[0].mxu0
      %v8222 = vpop.f32.mrb[0].mxu0
      %v8223 = vpop.f32.mrb[0].mxu0
      %v8224 = vadd.f32 %v7977, %v8223
      %v8225 = vpop.f32.mrb[0].mxu0
      %8226 = vmatprep.mubr.bf16.mxu0 0
      %8227 = vmatmul.mubr.bf16.gmra.mrb[0].mxu0 %v8128
      %v8228 = vpop.f32.mrb[0].mxu0
      %v8229 = vadd.f32 %v7982, %v8228
      %v8230 = vpop.f32.mrb[0].mxu0
      %v8231 = vpop.f32.mrb[0].mxu0
      %v8232 = vadd.f32 %v7985, %v8231
      %v8233 = vpop.f32.mrb[0].mxu0
      %8234 = vmatprep.mubr.bf16.mxu0 0
      %8235 = vmatmul.mubr.bf16.gmra.mrb[0].mxu0 %v8131
      %v8236 = vpop.f32.mrb[0].mxu0
      %v8237 = vadd.f32 %v7990, %v8236
      %v8238 = vpop.f32.mrb[0].mxu0
      %v8239 = vpop.f32.mrb[0].mxu0
      %v8240 = vpop.f32.mrb[0].mxu0
      %8241 = vmatprep.mubr.bf16.mxu0 0
      %8242 = vmatmul.mubr.bf16.gmra.mrb[0].mxu0 %v8134
      %v8243 = vpop.f32.mrb[0].mxu0
      %v8244 = vpop.f32.mrb[0].mxu0
      %v8245 = vpop.f32.mrb[0].mxu0
      %v8246 = vadd.f32 %v7999, %v8245
      %v8247 = vpop.f32.mrb[0].mxu0
      %8248 = vmatprep.mubr.bf16.mxu0 0
      %8249 = vmatmul.mubr.bf16.gmra.mrb[0].mxu0 %v8137
      %v8250 = vpop.f32.mrb[0].mxu0
      %v8251 = vadd.f32 %v8004, %v8250
      %v8252 = vpop.f32.mrb[0].mxu0
      %v8253 = vpop.f32.mrb[0].mxu0
      %v8254 = vadd.f32 %v8007, %v8253
      %v8255 = vpop.f32.mrb[0].mxu0
      %8256 = vmatprep.mubr.bf16.mxu0 0
      %8257 = vmatmul.mubr.bf16.gmra.mrb[0].mxu0 %v8140
      %v8258 = vpop.f32.mrb[0].mxu0
      %v8259 = vadd.f32 %v8012, %v8258
      %v8260 = vpop.f32.mrb[0].mxu0
      %v8261 = vpop.f32.mrb[0].mxu0
      %v8262 = vpop.f32.mrb[0].mxu0
      %8263 = vmatprep.mubr.bf16.mxu0 0
      %8264 = vmatmul.mubr.bf16.gmra.mrb[0].mxu0 %v8143
      %v8265 = vpop.f32.mrb[0].mxu0
      %v8266 = vpop.f32.mrb[0].mxu0
      %v8267 = vpop.f32.mrb[0].mxu0
      %v8268 = vadd.f32 %v8021, %v8267
      %v8269 = vpop.f32.mrb[0].mxu0
      %8270 = vmatprep.mubr.bf16.mxu0 0
      %8271 = vmatmul.mubr.bf16.gmra.mrb[0].mxu0 %v8146
      %v8272 = vpop.f32.mrb[0].mxu0
      %v8273 = vadd.f32 %v8026, %v8272
      %v8274 = vpop.f32.mrb[0].mxu0
      %v8275 = vpop.f32.mrb[0].mxu0
      %v8276 = vadd.f32 %v8029, %v8275
      %v8277 = vpop.f32.mrb[0].mxu0
      %8278 = vmatprep.mubr.bf16.mxu0 0
      %8279 = vmatmul.mubr.bf16.gmra.mrb[0].mxu0 %v8149
      %v8280 = vpop.f32.mrb[0].mxu0
      %v8281 = vadd.f32 %v8034, %v8280
      %v8282 = vpop.f32.mrb[0].mxu0
      %v8283 = vpop.f32.mrb[0].mxu0
      %v8284 = vpop.f32.mrb[0].mxu0
      %8285 = vmatprep.mubr.bf16.mxu0 0
      %8286 = vmatmul.mubr.bf16.gmra.mrb[0].mxu0 %v8152
      %v8287 = vpop.f32.mrb[0].mxu0
      %v8288 = vpop.f32.mrb[0].mxu0
      %v8289 = vpop.f32.mrb[0].mxu0
      %v8290 = vadd.f32 %v8043, %v8289
      %v8291 = vpop.f32.mrb[0].mxu0
      %8292 = vmatprep.mubr.bf16.mxu0 0
      %8293 = vmatmul.mubr.bf16.gmra.mrb[0].mxu0 %v8155
      %v8294 = vpop.f32.mrb[0].mxu0
      %v8295 = vadd.f32 %v8048, %v8294
      %v8296 = vpop.f32.mrb[0].mxu0
      %v8297 = vpop.f32.mrb[0].mxu0
      %v8298 = vadd.f32 %v8051, %v8297
      %v8299 = vpop.f32.mrb[0].mxu0
      %8300 = vmatprep.mubr.bf16.mxu0 0
      %8301 = vmatmul.mubr.bf16.gmra.mrb[0].mxu0 %v8158
      %v8302 = vpop.f32.mrb[0].mxu0
      %v8303 = vadd.f32 %v8056, %v8302
      %v8304 = vpop.f32.mrb[0].mxu0
      %v8305 = vpop.f32.mrb[0].mxu0
      %v8306 = vpop.f32.mrb[0].mxu0
      %8307 = vmatprep.mubr.bf16.mxu0 0
      %8308 = vmatmul.mubr.bf16.gmra.mrb[0].mxu0 %v8161
      %v8309 = vpop.f32.mrb[0].mxu0
      %v8310 = vpop.f32.mrb[0].mxu0
      %v8311 = vpop.f32.mrb[0].mxu0
      %v8312 = vpop.f32.mrb[0].mxu0
      %8313 = vmatprep.mubr.bf16.mxu0 0
      %8314 = vmatmul.mubr.bf16.gmra.mrb[0].mxu0 %v8164
      %v8315 = vpop.f32.mrb[0].mxu0
      %v8316 = vpop.f32.mrb[0].mxu0
      %v8317 = vpop.f32.mrb[0].mxu0
      %v8318 = vpop.f32.mrb[0].mxu0
      %8319 = vmatprep.mubr.bf16.mxu0 0
      %8320 = vmatmul.mubr.bf16.gmra.mrb[0].mxu0 %v8167
      %v8321 = vpop.f32.mrb[0].mxu0
      %v8322 = vpop.f32.mrb[0].mxu0
      %v8323 = vpop.f32.mrb[0].mxu0
      %v8324 = vpop.f32.mrb[0].mxu0
      %8325 = vdwg.mxu0
      %v8326 = vld [vmem:[#allocation3 + $0xc0] sm:$0xff]
      %s8327 = scalar_lea.vmem %s10, 384
      %v8328 = vld [vmem:[%s8327] sm:$0xf]
      %v8329 = vld [vmem:[%s8327 + $0x4] sm:$0xf]
      %v8330 = vld [vmem:[%s8327 + $0x8] sm:$0xf]
      %v8331 = vld [vmem:[%s8327 + $0xc] sm:$0xf]
      %v8332 = vld [vmem:[%s8327 + $0x10] sm:$0xf]
      %v8333 = vld [vmem:[%s8327 + $0x14] sm:$0xf]
      %v8334 = vld [vmem:[%s8327 + $0x18] sm:$0xf]
      %v8335 = vld [vmem:[%s8327 + $0x1c] sm:$0xf]
      %v8336 = vld [vmem:[%s8327 + $0x20] sm:$0xf]
      %v8337 = vld [vmem:[%s8327 + $0x24] sm:$0xf]
      %v8338 = vld [vmem:[%s8327 + $0x28] sm:$0xf]
      %v8339 = vld [vmem:[%s8327 + $0x2c] sm:$0xf]
      %v8352 = vunpack.c.l.b16 %v8328
      %v8353 = vunpack.c.l.b16 %v8329
      %v8354 = vunpack.c.l.b16 %v8330
      %v8355 = vunpack.c.l.b16 %v8331
      %v8356 = vunpack.c.l.b16 %v8332
      %v8357 = vunpack.c.l.b16 %v8333
      %v8358 = vunpack.c.l.b16 %v8334
      %v8359 = vunpack.c.l.b16 %v8335
      %v8360 = vunpack.c.l.b16 %v8336
      %v8361 = vunpack.c.l.b16 %v8337
      %v8362 = vunpack.c.l.b16 %v8338
      %v8363 = vunpack.c.l.b16 %v8339
      %v8364 = vpack.c.b16 %v8353, %v8352
      %v8365 = vpack.c.b16 %v8355, %v8354
      %v8366 = vpack.c.b16 %v8357, %v8356
      %v8367 = vpack.c.b16 %v8359, %v8358
      %v8368 = vpack.c.b16 %v8361, %v8360
      %v8369 = vpack.c.b16 %v8363, %v8362
      %v8377 = vsel %vm595, %v8326, 0
      %8379 = vmatprep.subr.bf16.mxu0 0
      %8380 = vmatpush1.bf16.msra.mxu0 %v8364
      %8381 = vmatprep.subr.bf16.mxu0 0
      %8382 = vmatpush1.bf16.msra.mxu0 %v8365
      %8383 = vmatprep.subr.bf16.mxu0 0
      %8384 = vmatpush1.bf16.msra.mxu0 %v8366
      %8385 = vmatprep.subr.bf16.mxu0 0
      %8386 = vmatpush1.bf16.msra.mxu0 %v8367
      %8387 = vmatprep.subr.bf16.mxu0 0
      %8388 = vmatpush1.bf16.msra.mxu0 %v8368
      %8389 = vmatprep.subr.bf16.mxu0 0
      %8390 = vmatpush1.bf16.msra.mxu0 %v8369
      %8391 = vmatprep.subr.bf16.mxu0 0
      %8392 = vmatpush1.bf16.msra.mxu0 0
      %8393 = vmatprep.subr.bf16.mxu0 0
      %8394 = vmatpush1.bf16.msra.mxu0 0
      %8395 = vmatprep.subr.bf16.mxu0 0
      %8396 = vmatpush1.bf16.msra.mxu0 0
      %8397 = vmatprep.subr.bf16.mxu0 0
      %8398 = vmatpush1.bf16.msra.mxu0 0
      %8399 = vmatprep.subr.bf16.mxu0 0
      %8400 = vmatpush1.bf16.msra.mxu0 0
      %8401 = vmatprep.subr.bf16.mxu0 0
      %8402 = vmatpush1.bf16.msra.mxu0 0
      %8403 = vmatprep.subr.bf16.mxu0 0
      %8404 = vmatpush1.bf16.msra.mxu0 0
      %8405 = vmatprep.subr.bf16.mxu0 0
      %8406 = vmatpush1.bf16.msra.mxu0 0
      %8407 = vmatprep.subr.bf16.mxu0 0
      %8408 = vmatpush1.bf16.msra.mxu0 0
      %8409 = vmatprep.subr.bf16.mxu0 0
      %8410 = vmatpush1.bf16.msra.mxu0 0
      %8411 = vmatprep.mubr.bf16.mxu0 0
      %8412 = vmatmul.mubr.bf16.gmra.mrb[0].mxu0 %v8119
      %v8413 = vpop.f32.mrb[0].mxu0
      %v8414 = vpop.f32.mrb[0].mxu0
      %v8415 = vpop.f32.mrb[0].mxu0
      %v8416 = vpop.f32.mrb[0].mxu0
      %8417 = vmatprep.mubr.bf16.mxu0 0
      %8418 = vmatmul.mubr.bf16.gmra.mrb[0].mxu0 %v8122
      %v8419 = vpop.f32.mrb[0].mxu0
      %v8420 = vpop.f32.mrb[0].mxu0
      %v8421 = vpop.f32.mrb[0].mxu0
      %v8422 = vpop.f32.mrb[0].mxu0
      %8423 = vmatprep.mubr.bf16.mxu0 0
      %8424 = vmatmul.mubr.bf16.gmra.mrb[0].mxu0 %v8125
      %v8425 = vpop.f32.mrb[0].mxu0
      %v8426 = vpop.f32.mrb[0].mxu0
      %v8427 = vpop.f32.mrb[0].mxu0
      %v8428 = vpop.f32.mrb[0].mxu0
      %8429 = vmatprep.mubr.bf16.mxu0 0
      %8430 = vmatmul.mubr.bf16.gmra.mrb[0].mxu0 %v8128
      %v8431 = vpop.f32.mrb[0].mxu0
      %v8432 = vpop.f32.mrb[0].mxu0
      %v8433 = vpop.f32.mrb[0].mxu0
      %v8434 = vadd.f32 0.0, %v8433
      %v8435 = vpop.f32.mrb[0].mxu0
      %8436 = vmatprep.mubr.bf16.mxu0 0
      %8437 = vmatmul.mubr.bf16.gmra.mrb[0].mxu0 %v8131
      %v8438 = vpop.f32.mrb[0].mxu0
      %v8439 = vadd.f32 0.0, %v8438
      %v8440 = vpop.f32.mrb[0].mxu0
      %v8441 = vpop.f32.mrb[0].mxu0
      %v8442 = vadd.f32 0.0, %v8441
      %v8443 = vpop.f32.mrb[0].mxu0
      %8444 = vmatprep.mubr.bf16.mxu0 0
      %8445 = vmatmul.mubr.bf16.gmra.mrb[0].mxu0 %v8134
      %v8446 = vpop.f32.mrb[0].mxu0
      %v8447 = vadd.f32 0.0, %v8446
      %v8448 = vpop.f32.mrb[0].mxu0
      %v8449 = vpop.f32.mrb[0].mxu0
      %v8450 = vpop.f32.mrb[0].mxu0
      %8451 = vmatprep.mubr.bf16.mxu0 0
      %8452 = vmatmul.mubr.bf16.gmra.mrb[0].mxu0 %v8137
      %v8453 = vpop.f32.mrb[0].mxu0
      %v8454 = vpop.f32.mrb[0].mxu0
      %v8455 = vpop.f32.mrb[0].mxu0
      %v8456 = vadd.f32 0.0, %v8455
      %v8457 = vpop.f32.mrb[0].mxu0
      %8458 = vmatprep.mubr.bf16.mxu0 0
      %8459 = vmatmul.mubr.bf16.gmra.mrb[0].mxu0 %v8140
      %v8460 = vpop.f32.mrb[0].mxu0
      %v8461 = vadd.f32 0.0, %v8460
      %v8462 = vpop.f32.mrb[0].mxu0
      %v8463 = vpop.f32.mrb[0].mxu0
      %v8464 = vadd.f32 0.0, %v8463
      %v8465 = vpop.f32.mrb[0].mxu0
      %8466 = vmatprep.mubr.bf16.mxu0 0
      %8467 = vmatmul.mubr.bf16.gmra.mrb[0].mxu0 %v8143
      %v8468 = vpop.f32.mrb[0].mxu0
      %v8469 = vadd.f32 0.0, %v8468
      %v8470 = vpop.f32.mrb[0].mxu0
      %v8471 = vpop.f32.mrb[0].mxu0
      %v8472 = vpop.f32.mrb[0].mxu0
      %8473 = vmatprep.mubr.bf16.mxu0 0
      %8474 = vmatmul.mubr.bf16.gmra.mrb[0].mxu0 %v8146
      %v8475 = vpop.f32.mrb[0].mxu0
      %v8476 = vpop.f32.mrb[0].mxu0
      %v8477 = vpop.f32.mrb[0].mxu0
      %v8478 = vadd.f32 0.0, %v8477
      %v8479 = vpop.f32.mrb[0].mxu0
      %8480 = vmatprep.mubr.bf16.mxu0 0
      %8481 = vmatmul.mubr.bf16.gmra.mrb[0].mxu0 %v8149
      %v8482 = vpop.f32.mrb[0].mxu0
      %v8483 = vadd.f32 0.0, %v8482
      %v8484 = vpop.f32.mrb[0].mxu0
      %v8485 = vpop.f32.mrb[0].mxu0
      %v8486 = vadd.f32 0.0, %v8485
      %v8487 = vpop.f32.mrb[0].mxu0
      %8488 = vmatprep.mubr.bf16.mxu0 0
      %8489 = vmatmul.mubr.bf16.gmra.mrb[0].mxu0 %v8152
      %v8490 = vpop.f32.mrb[0].mxu0
      %v8491 = vadd.f32 0.0, %v8490
      %v8492 = vpop.f32.mrb[0].mxu0
      %v8493 = vpop.f32.mrb[0].mxu0
      %v8494 = vpop.f32.mrb[0].mxu0
      %8495 = vmatprep.mubr.bf16.mxu0 0
      %8496 = vmatmul.mubr.bf16.gmra.mrb[0].mxu0 %v8155
      %v8497 = vpop.f32.mrb[0].mxu0
      %v8498 = vpop.f32.mrb[0].mxu0
      %v8499 = vpop.f32.mrb[0].mxu0
      %v8500 = vadd.f32 0.0, %v8499
      %v8501 = vpop.f32.mrb[0].mxu0
      %8502 = vmatprep.mubr.bf16.mxu0 0
      %8503 = vmatmul.mubr.bf16.gmra.mrb[0].mxu0 %v8158
      %v8504 = vpop.f32.mrb[0].mxu0
      %v8505 = vadd.f32 0.0, %v8504
      %v8506 = vpop.f32.mrb[0].mxu0
      %v8507 = vpop.f32.mrb[0].mxu0
      %v8508 = vadd.f32 0.0, %v8507
      %v8509 = vpop.f32.mrb[0].mxu0
      %8510 = vmatprep.mubr.bf16.mxu0 0
      %8511 = vmatmul.mubr.bf16.gmra.mrb[0].mxu0 %v8161
      %v8512 = vpop.f32.mrb[0].mxu0
      %v8513 = vadd.f32 0.0, %v8512
      %v8514 = vpop.f32.mrb[0].mxu0
      %v8515 = vpop.f32.mrb[0].mxu0
      %v8516 = vpop.f32.mrb[0].mxu0
      %8517 = vmatprep.mubr.bf16.mxu0 0
      %8518 = vmatmul.mubr.bf16.gmra.mrb[0].mxu0 %v8164
      %v8519 = vpop.f32.mrb[0].mxu0
      %v8520 = vpop.f32.mrb[0].mxu0
      %v8521 = vpop.f32.mrb[0].mxu0
      %v8522 = vpop.f32.mrb[0].mxu0
      %8523 = vmatprep.mubr.bf16.mxu0 0
      %8524 = vmatmul.mubr.bf16.gmra.mrb[0].mxu0 %v8167
      %v8525 = vpop.f32.mrb[0].mxu0
      %v8526 = vpop.f32.mrb[0].mxu0
      %v8527 = vpop.f32.mrb[0].mxu0
      %v8528 = vpop.f32.mrb[0].mxu0
      %8529 = vmatprep.mubr.bf16.mxu0 0
      %8530 = vmatmul.mubr.bf16.gmra.mrb[0].mxu0 %v8377
      %v8531 = vpop.f32.mrb[0].mxu0
      %v8532 = vpop.f32.mrb[0].mxu0
      %v8533 = vpop.f32.mrb[0].mxu0
      %v8534 = vpop.f32.mrb[0].mxu0
      %8535 = vdwg.mxu0
      %v8536 = vadd.f32 %v8224, %v8434
      %v8537 = vadd.f32 %v8229, %v8439
      %v8538 = vadd.f32 %v8232, %v8442
      %v8539 = vadd.f32 %v8237, %v8447
      %v8540 = vadd.f32 %v8246, %v8456
      %v8541 = vadd.f32 %v8251, %v8461
      %v8542 = vadd.f32 %v8254, %v8464
      %v8543 = vadd.f32 %v8259, %v8469
      %v8544 = vadd.f32 %v8268, %v8478
      %v8545 = vadd.f32 %v8273, %v8483
      %v8546 = vadd.f32 %v8276, %v8486
      %v8547 = vadd.f32 %v8281, %v8491
      %v8548 = vadd.f32 %v8290, %v8500
      %v8549 = vadd.f32 %v8295, %v8505
      %v8550 = vadd.f32 %v8298, %v8508
      %v8551 = vadd.f32 %v8303, %v8513
      %v8552 = vadd.f32 %v6892, %v7714
      %v8553 = vadd.f32 %v6893, %v7715
      %v8554 = vadd.f32 %v6894, %v7716
      %v8555 = vadd.f32 %v6895, %v7717
      %v8556 = vadd.f32 %v6896, %v7718
      %v8557 = vadd.f32 %v6897, %v7719
      %v8558 = vadd.f32 %v6898, %v7720
      %v8559 = vadd.f32 %v6899, %v7721
      %v8560 = vadd.f32 %v6900, %v7722
      %v8561 = vadd.f32 %v6901, %v7723
      %v8562 = vadd.f32 %v6902, %v7724
      %v8563 = vadd.f32 %v6903, %v7725
      %v8564 = vadd.f32 %v6904, %v7726
      %v8565 = vadd.f32 %v6905, %v7727
      %v8566 = vadd.f32 %v6906, %v7728
      %v8567 = vadd.f32 %v6907, %v7729
      %v8568 = vadd.f32 %v8552, %v8536
      %v8569 = vadd.f32 %v8553, %v8537
      %v8570 = vadd.f32 %v8554, %v8538
      %v8571 = vadd.f32 %v8555, %v8539
      %v8572 = vadd.f32 %v8556, %v8540
      %v8573 = vadd.f32 %v8557, %v8541
      %v8574 = vadd.f32 %v8558, %v8542
      %v8575 = vadd.f32 %v8559, %v8543
      %v8576 = vadd.f32 %v8560, %v8544
      %v8577 = vadd.f32 %v8561, %v8545
      %v8578 = vadd.f32 %v8562, %v8546
      %v8579 = vadd.f32 %v8563, %v8547
      %v8580 = vadd.f32 %v8564, %v8548
      %v8581 = vadd.f32 %v8565, %v8549
      %v8582 = vadd.f32 %v8566, %v8550
      %v8583 = vadd.f32 %v8567, %v8551
      %v8584 = vld [vmem:[%s11] sm:$0x1]
      %v8586 = vlaneseq
      %v8587 = vshrl.u32 %v8586, 7
      %v8588 = vsub.s32 0, %v8587
      %v8589 = vrot.slane %v8584, %v8588
      %v8591 = vadd.f32 %v8568, %v8589
      %v8592 = vadd.f32 %v8569, %v8589
      %v8593 = vadd.f32 %v8570, %v8589
      %v8594 = vadd.f32 %v8571, %v8589
      %v8595 = vadd.f32 %v8572, %v8589
      %v8596 = vadd.f32 %v8573, %v8589
      %v8597 = vadd.f32 %v8574, %v8589
      %v8598 = vadd.f32 %v8575, %v8589
      %v8599 = vadd.f32 %v8576, %v8589
      %v8600 = vadd.f32 %v8577, %v8589
      %v8601 = vadd.f32 %v8578, %v8589
      %v8602 = vadd.f32 %v8579, %v8589
      %v8603 = vadd.f32 %v8580, %v8589
      %v8604 = vadd.f32 %v8581, %v8589
      %v8605 = vadd.f32 %v8582, %v8589
      %v8606 = vadd.f32 %v8583, %v8589
      %v8607 = vpack.c.bf16 %v605, %v604
      %v8608 = vpack.c.bf16 %v607, %v606
      %v8609 = vpack.c.bf16 %v609, %v608
      %v8610 = vpack.c.bf16 %v611, %v610
      %v8611 = vpack.c.bf16 %v613, %v612
      %v8612 = vpack.c.bf16 %v615, %v614
      %v8613 = vpack.c.bf16 %v617, %v616
      %v8614 = vpack.c.bf16 %v619, %v618
      %v8615 = vpack.c.bf16 %v621, %v620
      %v8616 = vpack.c.bf16 %v623, %v622
      %v8617 = vpack.c.bf16 %v625, %v624
      %v8618 = vpack.c.bf16 %v627, %v626
      %v8619 = vpack.c.bf16 %v629, %v628
      %v8620 = vpack.c.bf16 %v631, %v630
      %v8621 = vpack.c.bf16 %v633, %v632
      %v8622 = vpack.c.bf16 %v635, %v634
      %v8623 = vpack.c.bf16 %v637, %v636
      %v8624 = vpack.c.bf16 %v639, %v638
      %v8625 = vld [vmem:[%s12] sm:$0xf]
      %v8626 = vld [vmem:[%s12 + $0x4] sm:$0xf]
      %v8627 = vld [vmem:[%s13] sm:$0x1]
      %v8629 = vlaneseq
      %v8630 = vshrl.u32 %v8629, 7
      %v8631 = vsub.s32 0, %v8630
      %v8632 = vrot.slane %v8627, %v8631
      %v8636 = vunpack.c.l.b16 %v8625
      %v8637 = vunpack.c.l.b16 %v8626
      %v8638 = vpack.c.b16 %v8637, %v8636
      %v8641 = vsel %vm640, %v8607, 0
      %v8644 = vsel %vm640, %v8608, 0
      %v8647 = vsel %vm640, %v8609, 0
      %v8650 = vsel %vm640, %v8610, 0
      %v8653 = vsel %vm640, %v8611, 0
      %v8656 = vsel %vm640, %v8612, 0
      %v8659 = vsel %vm640, %v8613, 0
      %v8662 = vsel %vm640, %v8614, 0
      %v8665 = vsel %vm640, %v8615, 0
      %v8668 = vsel %vm640, %v8616, 0
      %v8671 = vsel %vm640, %v8617, 0
      %v8674 = vsel %vm640, %v8618, 0
      %v8677 = vsel %vm640, %v8619, 0
      %v8680 = vsel %vm640, %v8620, 0
      %v8683 = vsel %vm640, %v8621, 0
      %v8686 = vsel %vm640, %v8622, 0
      %v8689 = vsel %vm640, %v8623, 0
      %v8692 = vsel %vm640, %v8624, 0
      %8694 = vmatprep.subr.bf16.mxu0 0
      %8695 = vmatpush1.bf16.msra.mxu0 %v8638
      %8696 = vmatprep.subr.bf16.mxu0 0
      %8697 = vmatpush1.bf16.msra.mxu0 0
      %8698 = vmatprep.subr.bf16.mxu0 0
      %8699 = vmatpush1.bf16.msra.mxu0 0
      %8700 = vmatprep.subr.bf16.mxu0 0
      %8701 = vmatpush1.bf16.msra.mxu0 0
      %8702 = vmatprep.subr.bf16.mxu0 0
      %8703 = vmatpush1.bf16.msra.mxu0 0
      %8704 = vmatprep.subr.bf16.mxu0 0
      %8705 = vmatpush1.bf16.msra.mxu0 0
      %8706 = vmatprep.subr.bf16.mxu0 0
      %8707 = vmatpush1.bf16.msra.mxu0 0
      %8708 = vmatprep.subr.bf16.mxu0 0
      %8709 = vmatpush1.bf16.msra.mxu0 0
      %8710 = vmatprep.subr.bf16.mxu0 0
      %8711 = vmatpush1.bf16.msra.mxu0 0
      %8712 = vmatprep.subr.bf16.mxu0 0
      %8713 = vmatpush1.bf16.msra.mxu0 0
      %8714 = vmatprep.subr.bf16.mxu0 0
      %8715 = vmatpush1.bf16.msra.mxu0 0
      %8716 = vmatprep.subr.bf16.mxu0 0
      %8717 = vmatpush1.bf16.msra.mxu0 0
      %8718 = vmatprep.subr.bf16.mxu0 0
      %8719 = vmatpush1.bf16.msra.mxu0 0
      %8720 = vmatprep.subr.bf16.mxu0 0
      %8721 = vmatpush1.bf16.msra.mxu0 0
      %8722 = vmatprep.subr.bf16.mxu0 0
      %8723 = vmatpush1.bf16.msra.mxu0 0
      %8724 = vmatprep.subr.bf16.mxu0 0
      %8725 = vmatpush1.bf16.msra.mxu0 0
      %8726 = vmatprep.mubr.bf16.mxu0 0
      %8727 = vmatmul.mubr.bf16.gmra.mrb[0].mxu0 %v8641
      %v8728 = vpop.f32.mrb[0].mxu0
      %v8729 = vpop.f32.mrb[0].mxu0
      %v8730 = vpop.f32.mrb[0].mxu0
      %v8731 = vpop.f32.mrb[0].mxu0
      %8732 = vmatprep.mubr.bf16.mxu0 0
      %8733 = vmatmul.mubr.bf16.gmra.mrb[0].mxu0 %v8644
      %v8734 = vpop.f32.mrb[0].mxu0
      %v8735 = vpop.f32.mrb[0].mxu0
      %v8736 = vpop.f32.mrb[0].mxu0
      %v8737 = vpop.f32.mrb[0].mxu0
      %8738 = vmatprep.mubr.bf16.mxu0 0
      %8739 = vmatmul.mubr.bf16.gmra.mrb[0].mxu0 %v8647
      %v8740 = vpop.f32.mrb[0].mxu0
      %v8741 = vpop.f32.mrb[0].mxu0
      %v8742 = vpop.f32.mrb[0].mxu0
      %v8743 = vpop.f32.mrb[0].mxu0
      %8744 = vmatprep.mubr.bf16.mxu0 0
      %8745 = vmatmul.mubr.bf16.gmra.mrb[0].mxu0 %v8650
      %v8746 = vpop.f32.mrb[0].mxu0
      %v8747 = vpop.f32.mrb[0].mxu0
      %v8748 = vpop.f32.mrb[0].mxu0
      %v8749 = vadd.f32 %v8632, %v8748
      %v8750 = vpop.f32.mrb[0].mxu0
      %8751 = vmatprep.mubr.bf16.mxu0 0
      %8752 = vmatmul.mubr.bf16.gmra.mrb[0].mxu0 %v8653
      %v8753 = vpop.f32.mrb[0].mxu0
      %v8754 = vadd.f32 %v8632, %v8753
      %v8755 = vpop.f32.mrb[0].mxu0
      %v8756 = vpop.f32.mrb[0].mxu0
      %v8757 = vadd.f32 %v8632, %v8756
      %v8758 = vpop.f32.mrb[0].mxu0
      %8759 = vmatprep.mubr.bf16.mxu0 0
      %8760 = vmatmul.mubr.bf16.gmra.mrb[0].mxu0 %v8656
      %v8761 = vpop.f32.mrb[0].mxu0
      %v8762 = vadd.f32 %v8632, %v8761
      %v8763 = vpop.f32.mrb[0].mxu0
      %v8764 = vpop.f32.mrb[0].mxu0
      %v8765 = vpop.f32.mrb[0].mxu0
      %8766 = vmatprep.mubr.bf16.mxu0 0
      %8767 = vmatmul.mubr.bf16.gmra.mrb[0].mxu0 %v8659
      %v8768 = vpop.f32.mrb[0].mxu0
      %v8769 = vpop.f32.mrb[0].mxu0
      %v8770 = vpop.f32.mrb[0].mxu0
      %v8771 = vadd.f32 %v8632, %v8770
      %v8772 = vpop.f32.mrb[0].mxu0
      %8773 = vmatprep.mubr.bf16.mxu0 0
      %8774 = vmatmul.mubr.bf16.gmra.mrb[0].mxu0 %v8662
      %v8775 = vpop.f32.mrb[0].mxu0
      %v8776 = vadd.f32 %v8632, %v8775
      %v8777 = vpop.f32.mrb[0].mxu0
      %v8778 = vpop.f32.mrb[0].mxu0
      %v8779 = vadd.f32 %v8632, %v8778
      %v8780 = vpop.f32.mrb[0].mxu0
      %8781 = vmatprep.mubr.bf16.mxu0 0
      %8782 = vmatmul.mubr.bf16.gmra.mrb[0].mxu0 %v8665
      %v8783 = vpop.f32.mrb[0].mxu0
      %v8784 = vadd.f32 %v8632, %v8783
      %v8785 = vpop.f32.mrb[0].mxu0
      %v8786 = vpop.f32.mrb[0].mxu0
      %v8787 = vpop.f32.mrb[0].mxu0
      %8788 = vmatprep.mubr.bf16.mxu0 0
      %8789 = vmatmul.mubr.bf16.gmra.mrb[0].mxu0 %v8668
      %v8790 = vpop.f32.mrb[0].mxu0
      %v8791 = vpop.f32.mrb[0].mxu0
      %v8792 = vpop.f32.mrb[0].mxu0
      %v8793 = vadd.f32 %v8632, %v8792
      %v8794 = vpop.f32.mrb[0].mxu0
      %8795 = vmatprep.mubr.bf16.mxu0 0
      %8796 = vmatmul.mubr.bf16.gmra.mrb[0].mxu0 %v8671
      %v8797 = vpop.f32.mrb[0].mxu0
      %v8798 = vadd.f32 %v8632, %v8797
      %v8799 = vpop.f32.mrb[0].mxu0
      %v8800 = vpop.f32.mrb[0].mxu0
      %v8801 = vadd.f32 %v8632, %v8800
      %v8802 = vpop.f32.mrb[0].mxu0
      %8803 = vmatprep.mubr.bf16.mxu0 0
      %8804 = vmatmul.mubr.bf16.gmra.mrb[0].mxu0 %v8674
      %v8805 = vpop.f32.mrb[0].mxu0
      %v8806 = vadd.f32 %v8632, %v8805
      %v8807 = vpop.f32.mrb[0].mxu0
      %v8808 = vpop.f32.mrb[0].mxu0
      %v8809 = vpop.f32.mrb[0].mxu0
      %8810 = vmatprep.mubr.bf16.mxu0 0
      %8811 = vmatmul.mubr.bf16.gmra.mrb[0].mxu0 %v8677
      %v8812 = vpop.f32.mrb[0].mxu0
      %v8813 = vpop.f32.mrb[0].mxu0
      %v8814 = vpop.f32.mrb[0].mxu0
      %v8815 = vadd.f32 %v8632, %v8814
      %v8816 = vpop.f32.mrb[0].mxu0
      %8817 = vmatprep.mubr.bf16.mxu0 0
      %8818 = vmatmul.mubr.bf16.gmra.mrb[0].mxu0 %v8680
      %v8819 = vpop.f32.mrb[0].mxu0
      %v8820 = vadd.f32 %v8632, %v8819
      %v8821 = vpop.f32.mrb[0].mxu0
      %v8822 = vpop.f32.mrb[0].mxu0
      %v8823 = vadd.f32 %v8632, %v8822
      %v8824 = vpop.f32.mrb[0].mxu0
      %8825 = vmatprep.mubr.bf16.mxu0 0
      %8826 = vmatmul.mubr.bf16.gmra.mrb[0].mxu0 %v8683
      %v8827 = vpop.f32.mrb[0].mxu0
      %v8828 = vadd.f32 %v8632, %v8827
      %v8829 = vpop.f32.mrb[0].mxu0
      %v8830 = vpop.f32.mrb[0].mxu0
      %v8831 = vpop.f32.mrb[0].mxu0
      %8832 = vmatprep.mubr.bf16.mxu0 0
      %8833 = vmatmul.mubr.bf16.gmra.mrb[0].mxu0 %v8686
      %v8834 = vpop.f32.mrb[0].mxu0
      %v8835 = vpop.f32.mrb[0].mxu0
      %v8836 = vpop.f32.mrb[0].mxu0
      %v8837 = vpop.f32.mrb[0].mxu0
      %8838 = vmatprep.mubr.bf16.mxu0 0
      %8839 = vmatmul.mubr.bf16.gmra.mrb[0].mxu0 %v8689
      %v8840 = vpop.f32.mrb[0].mxu0
      %v8841 = vpop.f32.mrb[0].mxu0
      %v8842 = vpop.f32.mrb[0].mxu0
      %v8843 = vpop.f32.mrb[0].mxu0
      %8844 = vmatprep.mubr.bf16.mxu0 0
      %8845 = vmatmul.mubr.bf16.gmra.mrb[0].mxu0 %v8692
      %v8846 = vpop.f32.mrb[0].mxu0
      %v8847 = vpop.f32.mrb[0].mxu0
      %v8848 = vpop.f32.mrb[0].mxu0
      %v8849 = vpop.f32.mrb[0].mxu0
      %8850 = vdwg.mxu0
      %v8851 = vadd.f32 %v8591, %v8749
      %v8852 = vadd.f32 %v8592, %v8754
      %v8853 = vadd.f32 %v8593, %v8757
      %v8854 = vadd.f32 %v8594, %v8762
      %v8855 = vadd.f32 %v8595, %v8771
      %v8856 = vadd.f32 %v8596, %v8776
      %v8857 = vadd.f32 %v8597, %v8779
      %v8858 = vadd.f32 %v8598, %v8784
      %v8859 = vadd.f32 %v8599, %v8793
      %v8860 = vadd.f32 %v8600, %v8798
      %v8861 = vadd.f32 %v8601, %v8801
      %v8862 = vadd.f32 %v8602, %v8806
      %v8863 = vadd.f32 %v8603, %v8815
      %v8864 = vadd.f32 %v8604, %v8820
      %v8865 = vadd.f32 %v8605, %v8823
      %v8866 = vadd.f32 %v8606, %v8828
      %vm8867 = vcmask 257024
      %8868 = vst.msk [vmem:[#allocation4] sm:$0xf] %vm8867, %v8851
      %8869 = vst.msk [vmem:[#allocation4 + $0x4] sm:$0xf] %vm8867, %v8852
      %8870 = vst.msk [vmem:[#allocation4 + $0x8] sm:$0xf] %vm8867, %v8853
      %8871 = vst.msk [vmem:[#allocation4 + $0xc] sm:$0xf] %vm8867, %v8854
      %8872 = vst.msk [vmem:[#allocation4 + $0x10] sm:$0xf] %vm8867, %v8855
      %8873 = vst.msk [vmem:[#allocation4 + $0x14] sm:$0xf] %vm8867, %v8856
      %8874 = vst.msk [vmem:[#allocation4 + $0x18] sm:$0xf] %vm8867, %v8857
      %8875 = vst.msk [vmem:[#allocation4 + $0x1c] sm:$0xf] %vm8867, %v8858
      %8876 = vst.msk [vmem:[#allocation4 + $0x20] sm:$0xf] %vm8867, %v8859
      %8877 = vst.msk [vmem:[#allocation4 + $0x24] sm:$0xf] %vm8867, %v8860
      %8878 = vst.msk [vmem:[#allocation4 + $0x28] sm:$0xf] %vm8867, %v8861
      %8879 = vst.msk [vmem:[#allocation4 + $0x2c] sm:$0xf] %vm8867, %v8862
      %8880 = vst.msk [vmem:[#allocation4 + $0x30] sm:$0xf] %vm8867, %v8863
      %8881 = vst.msk [vmem:[#allocation4 + $0x34] sm:$0xf] %vm8867, %v8864
      %8882 = vst.msk [vmem:[#allocation4 + $0x38] sm:$0xf] %vm8867, %v8865
      %8883 = vst.msk [vmem:[#allocation4 + $0x3c] sm:$0xf] %vm8867, %v8866
      %v8884 = vld [vmem:[#allocation4] sm:$0xff]
      %v8885 = vld [vmem:[#allocation4 + $0x8] sm:$0xff]
      %v8886 = vld [vmem:[#allocation4 + $0x10] sm:$0xff]
      %v8887 = vld [vmem:[#allocation4 + $0x18] sm:$0xff]
      %v8888 = vld [vmem:[#allocation4 + $0x20] sm:$0xff]
      %v8889 = vld [vmem:[#allocation4 + $0x28] sm:$0xff]
      %v8890 = vld [vmem:[#allocation4 + $0x30] sm:$0xff]
      %v8891 = vld [vmem:[#allocation4 + $0x38] sm:$0xff]
      %v8892 = vpack.c.bf16 %v8885, %v8884
      %v8893 = vpack.c.bf16 %v8887, %v8886
      %v8894 = vpack.c.bf16 %v8889, %v8888
      %v8895 = vpack.c.bf16 %v8891, %v8890
      %v8896 = vld [vmem:[%s14] sm:$0xf]
      %v8897 = vld [vmem:[%s14 + $0x4] sm:$0xf]
      %v8898 = vld [vmem:[%s14 + $0x8] sm:$0xf]
      %v8899 = vld [vmem:[%s14 + $0xc] sm:$0xf]
      %v8900 = vld [vmem:[%s15] sm:$0x1]
      %v8902 = vlaneseq
      %v8903 = vshrl.u32 %v8902, 7
      %v8904 = vsub.s32 0, %v8903
      %v8905 = vrot.slane %v8900, %v8904
      %v8911 = vunpack.c.l.b16 %v8896
      %v8912 = vunpack.c.l.b16 %v8897
      %v8913 = vunpack.c.l.b16 %v8898
      %v8914 = vunpack.c.l.b16 %v8899
      %v8915 = vpack.c.b16 %v8912, %v8911
      %v8916 = vpack.c.b16 %v8914, %v8913
      %v8920 = vsel %vm4775, %v8892, 0
      %v8923 = vsel %vm4775, %v8893, 0
      %v8926 = vsel %vm4775, %v8894, 0
      %v8929 = vsel %vm4775, %v8895, 0
      %8931 = vmatprep.subr.bf16.mxu0 0
      %8932 = vmatpush1.bf16.msra.mxu0 %v8915
      %8933 = vmatprep.subr.bf16.mxu0 0
      %8934 = vmatpush1.bf16.msra.mxu0 %v8916
      %8935 = vmatprep.subr.bf16.mxu0 0
      %8936 = vmatpush1.bf16.msra.mxu0 0
      %8937 = vmatprep.subr.bf16.mxu0 0
      %8938 = vmatpush1.bf16.msra.mxu0 0
      %8939 = vmatprep.subr.bf16.mxu0 0
      %8940 = vmatpush1.bf16.msra.mxu0 0
      %8941 = vmatprep.subr.bf16.mxu0 0
      %8942 = vmatpush1.bf16.msra.mxu0 0
      %8943 = vmatprep.subr.bf16.mxu0 0
      %8944 = vmatpush1.bf16.msra.mxu0 0
      %8945 = vmatprep.subr.bf16.mxu0 0
      %8946 = vmatpush1.bf16.msra.mxu0 0
      %8947 = vmatprep.subr.bf16.mxu0 0
      %8948 = vmatpush1.bf16.msra.mxu0 0
      %8949 = vmatprep.subr.bf16.mxu0 0
      %8950 = vmatpush1.bf16.msra.mxu0 0
      %8951 = vmatprep.subr.bf16.mxu0 0
      %8952 = vmatpush1.bf16.msra.mxu0 0
      %8953 = vmatprep.subr.bf16.mxu0 0
      %8954 = vmatpush1.bf16.msra.mxu0 0
      %8955 = vmatprep.subr.bf16.mxu0 0
      %8956 = vmatpush1.bf16.msra.mxu0 0
      %8957 = vmatprep.subr.bf16.mxu0 0
      %8958 = vmatpush1.bf16.msra.mxu0 0
      %8959 = vmatprep.subr.bf16.mxu0 0
      %8960 = vmatpush1.bf16.msra.mxu0 0
      %8961 = vmatprep.subr.bf16.mxu0 0
      %8962 = vmatpush1.bf16.msra.mxu0 0
      %8963 = vmatprep.mubr.bf16.mxu0 0
      %8964 = vmatmul.mubr.bf16.gmra.mrb[0].mxu0 %v8920
      %v8965 = vpop.f32.mrb[0].mxu0
      %v8966 = vadd.f32 %v8905, %v8965
      %v8967 = vpop.f32.mrb[0].mxu0
      %v8968 = vpop.f32.mrb[0].mxu0
      %v8969 = vadd.f32 %v8905, %v8968
      %v8970 = vpop.f32.mrb[0].mxu0
      %8971 = vmatprep.mubr.bf16.mxu0 0
      %8972 = vmatmul.mubr.bf16.gmra.mrb[0].mxu0 %v8923
      %v8973 = vpop.f32.mrb[0].mxu0
      %v8974 = vadd.f32 %v8905, %v8973
      %v8975 = vpop.f32.mrb[0].mxu0
      %v8976 = vpop.f32.mrb[0].mxu0
      %v8977 = vadd.f32 %v8905, %v8976
      %v8978 = vpop.f32.mrb[0].mxu0
      %8979 = vmatprep.mubr.bf16.mxu0 0
      %8980 = vmatmul.mubr.bf16.gmra.mrb[0].mxu0 %v8926
      %v8981 = vpop.f32.mrb[0].mxu0
      %v8982 = vadd.f32 %v8905, %v8981
      %v8983 = vpop.f32.mrb[0].mxu0
      %v8984 = vpop.f32.mrb[0].mxu0
      %v8985 = vadd.f32 %v8905, %v8984
      %v8986 = vpop.f32.mrb[0].mxu0
      %8987 = vmatprep.mubr.bf16.mxu0 0
      %8988 = vmatmul.mubr.bf16.gmra.mrb[0].mxu0 %v8929
      %v8989 = vpop.f32.mrb[0].mxu0
      %v8990 = vadd.f32 %v8905, %v8989
      %v8991 = vpop.f32.mrb[0].mxu0
      %v8992 = vpop.f32.mrb[0].mxu0
      %v8993 = vadd.f32 %v8905, %v8992
      %v8994 = vpop.f32.mrb[0].mxu0
      %8995 = vdwg.mxu0
      %v8996 = vpack.c.bf16 %v8969, %v8966
      %v8997 = vpack.c.bf16 %v8977, %v8974
      %v8998 = vpack.c.bf16 %v8985, %v8982
      %v8999 = vpack.c.bf16 %v8993, %v8990
      %9004 = vrot.lane.b32.xlu0 %v8996, 96
      %v9005 = vpop.permute.xlu0 %9004
      %9006 = vrot.lane.b32.xlu0 %v8997, 96
      %v9007 = vpop.permute.xlu0 %9006
      %9008 = vrot.lane.b32.xlu0 %v8998, 96
      %v9009 = vpop.permute.xlu0 %9008
      %9010 = vrot.lane.b32.xlu0 %v8999, 96
      %v9011 = vpop.permute.xlu0 %9010
      %v9013 = vsel %vm4775, %v8996, 0
      %v9016 = vsel %vm4775, %v8997, 0
      %v9019 = vsel %vm4775, %v8998, 0
      %v9022 = vsel %vm4775, %v8999, 0
      %v9025 = vsel %vm4775, %v9005, 0
      %v9028 = vsel %vm4775, %v9007, 0
      %v9031 = vsel %vm4775, %v9009, 0
      %v9034 = vsel %vm4775, %v9011, 0
      %9036 = vmatprep.subr.bf16.mxu0 0
      %9037 = vmatpush1.bf16.xpose.msra.mxu0 %v9025
      %9038 = vmatprep.subr.bf16.mxu0 0
      %9039 = vmatpush1.bf16.xpose.msra.mxu0 %v9028
      %9040 = vmatprep.subr.bf16.mxu0 0
      %9041 = vmatpush1.bf16.xpose.msra.mxu0 %v9031
      %9042 = vmatprep.subr.bf16.mxu0 0
      %9043 = vmatpush1.bf16.xpose.msra.mxu0 %v9034
      %9044 = vmatprep.subr.bf16.mxu0 0
      %9045 = vmatpush1.bf16.xpose.msra.mxu0 0
      %9046 = vmatprep.subr.bf16.mxu0 0
      %9047 = vmatpush1.bf16.xpose.msra.mxu0 0
      %9048 = vmatprep.subr.bf16.mxu0 0
      %9049 = vmatpush1.bf16.xpose.msra.mxu0 0
      %9050 = vmatprep.subr.bf16.mxu0 0
      %9051 = vmatpush1.bf16.xpose.msra.mxu0 0
      %9052 = vmatprep.subr.bf16.mxu0 0
      %9053 = vmatpush1.bf16.xpose.msra.mxu0 0
      %9054 = vmatprep.subr.bf16.mxu0 0
      %9055 = vmatpush1.bf16.xpose.msra.mxu0 0
      %9056 = vmatprep.subr.bf16.mxu0 0
      %9057 = vmatpush1.bf16.xpose.msra.mxu0 0
      %9058 = vmatprep.subr.bf16.mxu0 0
      %9059 = vmatpush1.bf16.xpose.msra.mxu0 0
      %9060 = vmatprep.subr.bf16.mxu0 0
      %9061 = vmatpush1.bf16.xpose.msra.mxu0 0
      %9062 = vmatprep.subr.bf16.mxu0 0
      %9063 = vmatpush1.bf16.xpose.msra.mxu0 0
      %9064 = vmatprep.subr.bf16.mxu0 0
      %9065 = vmatpush1.bf16.xpose.msra.mxu0 0
      %9066 = vmatprep.subr.bf16.mxu0 0
      %9067 = vmatpush1.bf16.xpose.msra.mxu0 0
      %9068 = vmatprep.mubr.bf16.mxu0 0
      %9069 = vmatmul.mubr.bf16.gmra.mrb[0].mxu0 %v9013
      %v9070 = vpop.f32.mrb[0].mxu0
      %v9071 = vadd.f32 0.0, %v9070
      %v9072 = vpop.f32.mrb[0].mxu0
      %v9073 = vpop.f32.mrb[0].mxu0
      %v9074 = vadd.f32 0.0, %v9073
      %v9075 = vpop.f32.mrb[0].mxu0
      %9076 = vmatprep.mubr.bf16.mxu0 0
      %9077 = vmatmul.mubr.bf16.gmra.mrb[0].mxu0 %v9016
      %v9078 = vpop.f32.mrb[0].mxu0
      %v9079 = vadd.f32 0.0, %v9078
      %v9080 = vpop.f32.mrb[0].mxu0
      %v9081 = vpop.f32.mrb[0].mxu0
      %v9082 = vadd.f32 0.0, %v9081
      %v9083 = vpop.f32.mrb[0].mxu0
      %9084 = vmatprep.mubr.bf16.mxu0 0
      %9085 = vmatmul.mubr.bf16.gmra.mrb[0].mxu0 %v9019
      %v9086 = vpop.f32.mrb[0].mxu0
      %v9087 = vadd.f32 0.0, %v9086
      %v9088 = vpop.f32.mrb[0].mxu0
      %v9089 = vpop.f32.mrb[0].mxu0
      %v9090 = vadd.f32 0.0, %v9089
      %v9091 = vpop.f32.mrb[0].mxu0
      %9092 = vmatprep.mubr.bf16.mxu0 0
      %9093 = vmatmul.mubr.bf16.gmra.mrb[0].mxu0 %v9022
      %v9094 = vpop.f32.mrb[0].mxu0
      %v9095 = vadd.f32 0.0, %v9094
      %v9096 = vpop.f32.mrb[0].mxu0
      %v9097 = vpop.f32.mrb[0].mxu0
      %v9098 = vadd.f32 0.0, %v9097
      %v9099 = vpop.f32.mrb[0].mxu0
      %9100 = vdwg.mxu0
      %vm9101 = vcmask 523264
      %v9102 = vsel %vm9101, %v9071, -inf
      %9103 = vmax.xlane.f32.xlu0 %v9102
      %v9104 = vpop.xlane.xlu0 %9103
      %v9105 = vsel %vm9101, %v9074, -inf
      %9106 = vmax.xlane.f32.xlu0 %v9105
      %v9107 = vpop.xlane.xlu0 %9106
      %v9108 = vsel %vm9101, %v9079, -inf
      %9109 = vmax.xlane.f32.xlu0 %v9108
      %v9110 = vpop.xlane.xlu0 %9109
      %v9111 = vsel %vm9101, %v9082, -inf
      %9112 = vmax.xlane.f32.xlu0 %v9111
      %v9113 = vpop.xlane.xlu0 %9112
      %v9114 = vsel %vm9101, %v9087, -inf
      %9115 = vmax.xlane.f32.xlu0 %v9114
      %v9116 = vpop.xlane.xlu0 %9115
      %v9117 = vsel %vm9101, %v9090, -inf
      %9118 = vmax.xlane.f32.xlu0 %v9117
      %v9119 = vpop.xlane.xlu0 %9118
      %v9120 = vsel %vm9101, %v9095, -inf
      %9121 = vmax.xlane.f32.xlu0 %v9120
      %v9122 = vpop.xlane.xlu0 %9121
      %v9123 = vsel %vm9101, %v9098, -inf
      %9124 = vmax.xlane.f32.xlu0 %v9123
      %v9125 = vpop.xlane.xlu0 %9124
      %v9126 = vsub.f32 %v9071, %v9104
      %v9127 = vsub.f32 %v9074, %v9107
      %v9128 = vsub.f32 %v9079, %v9110
      %v9129 = vsub.f32 %v9082, %v9113
      %v9130 = vsub.f32 %v9087, %v9116
      %v9131 = vsub.f32 %v9090, %v9119
      %v9132 = vsub.f32 %v9095, %v9122
      %v9133 = vsub.f32 %v9098, %v9125
      %v9134 = vmul.f32 %v9126, 1.442695
      %v9135 = vpow.pop %v9134
      %v9136 = vmul.f32 %v9127, 1.442695
      %v9137 = vpow.pop %v9136
      %v9138 = vmul.f32 %v9128, 1.442695
      %v9139 = vpow.pop %v9138
      %v9140 = vmul.f32 %v9129, 1.442695
      %v9141 = vpow.pop %v9140
      %v9142 = vmul.f32 %v9130, 1.442695
      %v9143 = vpow.pop %v9142
      %v9144 = vmul.f32 %v9131, 1.442695
      %v9145 = vpow.pop %v9144
      %v9146 = vmul.f32 %v9132, 1.442695
      %v9147 = vpow.pop %v9146
      %v9148 = vmul.f32 %v9133, 1.442695
      %v9149 = vpow.pop %v9148
      %v9150 = vsel %vm9101, %v9135, 0.0
      %9151 = vadd.xlane.f32.xlu0 %v9150
      %v9152 = vpop.xlane.xlu0 %9151
      %v9153 = vsel %vm9101, %v9137, 0.0
      %9154 = vadd.xlane.f32.xlu0 %v9153
      %v9155 = vpop.xlane.xlu0 %9154
      %v9156 = vsel %vm9101, %v9139, 0.0
      %9157 = vadd.xlane.f32.xlu0 %v9156
      %v9158 = vpop.xlane.xlu0 %9157
      %v9159 = vsel %vm9101, %v9141, 0.0
      %9160 = vadd.xlane.f32.xlu0 %v9159
      %v9161 = vpop.xlane.xlu0 %9160
      %v9162 = vsel %vm9101, %v9143, 0.0
      %9163 = vadd.xlane.f32.xlu0 %v9162
      %v9164 = vpop.xlane.xlu0 %9163
      %v9165 = vsel %vm9101, %v9145, 0.0
      %9166 = vadd.xlane.f32.xlu0 %v9165
      %v9167 = vpop.xlane.xlu0 %9166
      %v9168 = vsel %vm9101, %v9147, 0.0
      %9169 = vadd.xlane.f32.xlu0 %v9168
      %v9170 = vpop.xlane.xlu0 %9169
      %v9171 = vsel %vm9101, %v9149, 0.0
      %9172 = vadd.xlane.f32.xlu0 %v9171
      %v9173 = vpop.xlane.xlu0 %9172
      %v9174 = vrcp.pop %v9152
      %v9175 = vrcp.pop %v9155
      %v9176 = vrcp.pop %v9158
      %v9177 = vrcp.pop %v9161
      %v9178 = vrcp.pop %v9164
      %v9179 = vrcp.pop %v9167
      %v9180 = vrcp.pop %v9170
      %v9181 = vrcp.pop %v9173
      %v9182 = vmul.f32 %v9135, %v9174
      %v9183 = vmul.f32 %v9137, %v9175
      %v9184 = vmul.f32 %v9139, %v9176
      %v9185 = vmul.f32 %v9141, %v9177
      %v9186 = vmul.f32 %v9143, %v9178
      %v9187 = vmul.f32 %v9145, %v9179
      %v9188 = vmul.f32 %v9147, %v9180
      %v9189 = vmul.f32 %v9149, %v9181
      %v9190 = vpack.c.bf16 %v9183, %v9182
      %v9191 = vpack.c.bf16 %v9185, %v9184
      %v9192 = vpack.c.bf16 %v9187, %v9186
      %v9193 = vpack.c.bf16 %v9189, %v9188
      %v9194 = vld [vmem:[%s16] sm:$0x1]
      %v9196 = vlaneseq
      %v9197 = vshrl.u32 %v9196, 7
      %v9198 = vsub.s32 0, %v9197
      %v9199 = vrot.slane %v9194, %v9198
      %9201 = vrot.lane.b32.xlu0 %v8996, 64
      %v9202 = vpop.permute.xlu0 %9201
      %9203 = vrot.lane.b32.xlu0 %v8997, 64
      %v9204 = vpop.permute.xlu0 %9203
      %9205 = vrot.lane.b32.xlu0 %v8998, 64
      %v9206 = vpop.permute.xlu0 %9205
      %9207 = vrot.lane.b32.xlu0 %v8999, 64
      %v9208 = vpop.permute.xlu0 %9207
      %v9214 = vsel %vm9101, %v9190, 0
      %v9217 = vsel %vm9101, %v9191, 0
      %v9220 = vsel %vm9101, %v9192, 0
      %v9223 = vsel %vm9101, %v9193, 0
      %9225 = vmatprep.subr.bf16.mxu0 0
      %9226 = vmatpush1.bf16.msra.mxu0 %v9202
      %9227 = vmatprep.subr.bf16.mxu0 0
      %9228 = vmatpush1.bf16.msra.mxu0 %v9204
      %9229 = vmatprep.subr.bf16.mxu0 0
      %9230 = vmatpush1.bf16.msra.mxu0 %v9206
      %9231 = vmatprep.subr.bf16.mxu0 0
      %9232 = vmatpush1.bf16.msra.mxu0 %v9208
      %9233 = vmatprep.subr.bf16.mxu0 0
      %9234 = vmatpush1.bf16.msra.mxu0 0
      %9235 = vmatprep.subr.bf16.mxu0 0
      %9236 = vmatpush1.bf16.msra.mxu0 0
      %9237 = vmatprep.subr.bf16.mxu0 0
      %9238 = vmatpush1.bf16.msra.mxu0 0
      %9239 = vmatprep.subr.bf16.mxu0 0
      %9240 = vmatpush1.bf16.msra.mxu0 0
      %9241 = vmatprep.subr.bf16.mxu0 0
      %9242 = vmatpush1.bf16.msra.mxu0 0
      %9243 = vmatprep.subr.bf16.mxu0 0
      %9244 = vmatpush1.bf16.msra.mxu0 0
      %9245 = vmatprep.subr.bf16.mxu0 0
      %9246 = vmatpush1.bf16.msra.mxu0 0
      %9247 = vmatprep.subr.bf16.mxu0 0
      %9248 = vmatpush1.bf16.msra.mxu0 0
      %9249 = vmatprep.subr.bf16.mxu0 0
      %9250 = vmatpush1.bf16.msra.mxu0 0
      %9251 = vmatprep.subr.bf16.mxu0 0
      %9252 = vmatpush1.bf16.msra.mxu0 0
      %9253 = vmatprep.subr.bf16.mxu0 0
      %9254 = vmatpush1.bf16.msra.mxu0 0
      %9255 = vmatprep.subr.bf16.mxu0 0
      %9256 = vmatpush1.bf16.msra.mxu0 0
      %9257 = vmatprep.mubr.bf16.mxu0 0
      %9258 = vmatmul.mubr.bf16.gmra.mrb[0].mxu0 %v9214
      %v9259 = vpop.f32.mrb[0].mxu0
      %v9260 = vadd.f32 %v9199, %v9259
      %v9261 = vpop.f32.mrb[0].mxu0
      %v9262 = vpop.f32.mrb[0].mxu0
      %v9263 = vadd.f32 %v9199, %v9262
      %v9264 = vpop.f32.mrb[0].mxu0
      %9265 = vmatprep.mubr.bf16.mxu0 0
      %9266 = vmatmul.mubr.bf16.gmra.mrb[0].mxu0 %v9217
      %v9267 = vpop.f32.mrb[0].mxu0
      %v9268 = vadd.f32 %v9199, %v9267
      %v9269 = vpop.f32.mrb[0].mxu0
      %v9270 = vpop.f32.mrb[0].mxu0
      %v9271 = vadd.f32 %v9199, %v9270
      %v9272 = vpop.f32.mrb[0].mxu0
      %9273 = vmatprep.mubr.bf16.mxu0 0
      %9274 = vmatmul.mubr.bf16.gmra.mrb[0].mxu0 %v9220
      %v9275 = vpop.f32.mrb[0].mxu0
      %v9276 = vadd.f32 %v9199, %v9275
      %v9277 = vpop.f32.mrb[0].mxu0
      %v9278 = vpop.f32.mrb[0].mxu0
      %v9279 = vadd.f32 %v9199, %v9278
      %v9280 = vpop.f32.mrb[0].mxu0
      %9281 = vmatprep.mubr.bf16.mxu0 0
      %9282 = vmatmul.mubr.bf16.gmra.mrb[0].mxu0 %v9223
      %v9283 = vpop.f32.mrb[0].mxu0
      %v9284 = vadd.f32 %v9199, %v9283
      %v9285 = vpop.f32.mrb[0].mxu0
      %v9286 = vpop.f32.mrb[0].mxu0
      %v9287 = vadd.f32 %v9199, %v9286
      %v9288 = vpop.f32.mrb[0].mxu0
      %9289 = vdwg.mxu0
      %v9290 = vadd.f32 %v9260, %v8884
      %v9291 = vadd.f32 %v9263, %v8885
      %v9292 = vadd.f32 %v9268, %v8886
      %v9293 = vadd.f32 %v9271, %v8887
      %v9294 = vadd.f32 %v9276, %v8888
      %v9295 = vadd.f32 %v9279, %v8889
      %v9296 = vadd.f32 %v9284, %v8890
      %v9297 = vadd.f32 %v9287, %v8891
      %9298 = vst.msk [vmem:[%s548] sm:$0xff] %vm4775, %v9290
      %9299 = vst.msk [vmem:[%s548 + $0x8] sm:$0xff] %vm4775, %v9291
      %9300 = vst.msk [vmem:[%s548 + $0x10] sm:$0xff] %vm4775, %v9292
      %9301 = vst.msk [vmem:[%s548 + $0x18] sm:$0xff] %vm4775, %v9293
      %9302 = vst.msk [vmem:[%s548 + $0x20] sm:$0xff] %vm4775, %v9294
      %9303 = vst.msk [vmem:[%s548 + $0x28] sm:$0xff] %vm4775, %v9295
      %9304 = vst.msk [vmem:[%s548 + $0x30] sm:$0xff] %vm4775, %v9296
      %9305 = vst.msk [vmem:[%s548 + $0x38] sm:$0xff] %vm4775, %v9297
      %p9306 = scmp.lt.s32.totalorder %s28, 1
      %s9307 = scalar_select %p9306, %s28, 1
      %s9308 = smul.addr %s9307, 8
      %s9309 = smul.addr %s9308, 8
      %s9310 = scalar_lea.vmem %s17, %s9309
      // Predicated region
      $region89: #{tpu_custom_call.1} parent=87 // pred_check
        %p9311 = pneg %p408
      $region90: #{tpu_custom_call.1} parent=87 // pred_check_branch
        %9313 = sbr.rel (%p9311) target = $region92
      $region91: #{tpu_custom_call.1} parent=87 // pred_region
        _
      $region92: #{tpu_custom_call.1} parent=87 // pred_fallthru
        _
    $region88: #{tpu_custom_call.1} parent=5 // pred_fallthru
      _
    %p9314 = scmp.le.s32.totalorder 2, %s23
    // Predicated region
    $region93: #{tpu_custom_call.1} parent=5 // pred_check
      %p9315 = pneg %p9314
    $region94: #{tpu_custom_call.1} parent=5 // pred_check_branch
      %9317 = sbr.rel (%p9315) target = $region96
    $region95: #{tpu_custom_call.1} parent=5 // pred_region
      %s9318 = ssub.s32 %s23, 2
      // Predicated region
      $region97: #{tpu_custom_call.1} parent=95 // pred_check
        %p9319 = pneg %p414
      $region98: #{tpu_custom_call.1} parent=95 // pred_check_branch
        %9321 = sbr.rel (%p9319) target = $region100
      $region99: #{tpu_custom_call.1} parent=95 // pred_region
        %p9322 = scmp.lt.s32.totalorder %s29, 1
        %s9323 = scalar_select %p9322, %s29, 1
        %s9324 = smul.addr %s9323, 8
        %s9325 = smul.addr %s9324, 8
        %s9326 = scalar_lea.vmem %s17, %s9325
      $region100: #{tpu_custom_call.1} parent=95 // pred_fallthru
        _
    $region96: #{tpu_custom_call.1} parent=5 // pred_fallthru
      _
  $region6: #{tpu_custom_call.1} parent=0 // loop_footer
    %s27 = sadd.s32 1, %s23
  $region7: #{tpu_custom_call.1} parent=0 // loop_footer_branch
    %22 = sbr.rel target = $region3
  $region8: #{tpu_custom_call.1} parent=0 // loop_exit
    _

</llo_original>
